<compile_context>
chip_gen: v6e
topology: v6e:2x2x1
jax: 0.10.0
libtpu: 0.0.40
codegen_flags: <defaults>
</compile_context>

<pallas_src>
import jax
import jax.numpy as jnp
import numpy as np
from jax.experimental import pallas as pl
from jax.experimental.pallas import tpu as pltpu

LANES = 128  # images per grid step, mapped onto the 128 vreg lanes

# conv1 tap table for the mod-4 column-split input.
# The wrapper provides x_ref[q, h, g, b] == image[b, h, 4*g + q], so conv1
# output columns congruent to q (mod 4) are
#     y1_q[:, i] = sum_kw w[kh, kw] * x_ref[src, kh:kh+26, start+i]
# i.e. only unit-stride slices are ever needed.
# _CONV1_TERMS[q][kw] = (source split q', col-slice start, col-slice stop)
_CONV1_TERMS = (
    ((0, 0, 7), (1, 0, 7), (2, 0, 7)),   # output cols 0,4,...,24  (width 7)
    ((1, 0, 7), (2, 0, 7), (3, 0, 7)),   # output cols 1,5,...,25  (width 7)
    ((2, 0, 6), (3, 0, 6), (0, 1, 7)),   # output cols 2,6,...,22  (width 6)
    ((3, 0, 6), (0, 1, 7), (1, 1, 7)),   # output cols 3,7,...,23  (width 6)
)


# ----------------------------------------------------------------------------
# Fused kernel: conv1+ReLU+pool -> conv2+ReLU+pool -> fc1+ReLU+fc2+ReLU+fc3
# ----------------------------------------------------------------------------
def _lenet_kernel(x_ref, c1w_ref, c1b_ref, c2w_ref, c2b_ref,
                  f1w_ref, f1b_ref, f2w_ref, f2b_ref, f3w_ref, f3b_ref,
                  o_ref, p1e_ref, p1o_ref, p2_ref, fbuf_ref):
    # x_ref   : (4, 28, 7, 128) VMEM   -- input, columns split mod 4, batch on lanes
    # c1w/c1b : (54,), (6,)   SMEM     -- conv1 weights (co,kh,kw) / bias
    # c2w/c2b : (864,), (16,) SMEM     -- conv2 weights (co,ci,kh,kw) / bias
    # f1w..f3b: VMEM, zero-padded FC weights/biases (see prepare_params)
    # o_ref   : (10, 128) VMEM         -- logits block (batch on lanes)
    # p1e_ref : (6, 13, 7, 128) VMEM   -- pool1 output, even columns
    # p1o_ref : (6, 13, 6, 128) VMEM   -- pool1 output, odd columns
    # p2_ref  : (16, 5, 5, 128) VMEM   -- pool2 output
    # fbuf_ref: (400, 128) VMEM        -- flattened features (torch c,h,w order)

    # ---- conv1 (1->6, 3x3, VALID) + ReLU + 2x2/2 max-pool ------------------
    def conv1_body(co, carry):
        wbase = co * 9
        accs = []
        for q in range(4):
            width = 7 if q < 2 else 6
            acc = jnp.zeros((26, width, LANES), jnp.float32)
            for kh in range(3):
                for kw in range(3):
                    src, c0, c1 = _CONV1_TERMS[q][kw]
                    w = c1w_ref[wbase + kh * 3 + kw]
                    acc = acc + w * x_ref[src, kh:kh + 26, c0:c1, :]
            accs.append(acc)
        bias = c1b_ref[co]
        # column-direction pool (max over the two column parities), bias, ReLU
        m_e = jnp.maximum(jnp.maximum(accs[0], accs[1]) + bias, 0.0)  # (26,7,L)
        m_o = jnp.maximum(jnp.maximum(accs[2], accs[3]) + bias, 0.0)  # (26,6,L)
        # row-direction pool: pairwise max of adjacent rows (leading-dim reshape)
        m_e = m_e.reshape(13, 2, 7, LANES)
        m_o = m_o.reshape(13, 2, 6, LANES)
        p1e_ref[co] = jnp.maximum(m_e[:, 0], m_e[:, 1])               # (13,7,L)
        p1o_ref[co] = jnp.maximum(m_o[:, 0], m_o[:, 1])               # (13,6,L)
        return carry

    jax.lax.fori_loop(0, 6, conv1_body, 0)

    # ---- conv2 (6->16, 3x3, VALID) + ReLU + 2x2/2 max-pool -----------------
    def conv2_body(co, carry):
        wbase = co * 54
        acc_e = jnp.zeros((11, 5, LANES), jnp.float32)   # conv2 cols 0,2,..,8
        acc_o = jnp.zeros((11, 5, LANES), jnp.float32)   # conv2 cols 1,3,..,9
        for ci in range(6):
            for kh in range(3):
                pe0 = p1e_ref[ci, kh:kh + 11, 0:5, :]
                po0 = p1o_ref[ci, kh:kh + 11, 0:5, :]
                pe1 = p1e_ref[ci, kh:kh + 11, 1:6, :]
                po1 = p1o_ref[ci, kh:kh + 11, 1:6, :]
                widx = wbase + ci * 9 + kh * 3
                wa = c2w_ref[widx + 0]
                wb = c2w_ref[widx + 1]
                wc = c2w_ref[widx + 2]
                acc_e = acc_e + wa * pe0 + wb * po0 + wc * pe1
                acc_o = acc_o + wa * po0 + wb * pe1 + wc * po1
        bias = c2b_ref[co]
        m2 = jnp.maximum(jnp.maximum(acc_e, acc_o) + bias, 0.0)       # (11,5,L)
        m2 = m2[0:10].reshape(5, 2, 5, LANES)          # floor pool: drop row 10
        p2_ref[co] = jnp.maximum(m2[:, 0], m2[:, 1])                   # (5,5,L)
        return carry

    jax.lax.fori_loop(0, 16, conv2_body, 0)

    # ---- flatten to torch .view order: feature row = c*25 + h*5 + w --------
    for co in range(16):
        for r in range(5):
            off = co * 25 + r * 5
            fbuf_ref[off:off + 5, :] = p2_ref[co, r]

    # ---- fc1 + ReLU + fc2 + ReLU + fc3 (MXU matmuls, batch on lanes) -------
    feat = fbuf_ref[...]                                               # (400,L)
    h = jnp.dot(f1w_ref[...], feat, preferred_element_type=jnp.float32)
    h = jnp.maximum(h + f1b_ref[...], 0.0)                             # (128,L)
    h = jnp.dot(f2w_ref[...], h, preferred_element_type=jnp.float32)
    h = jnp.maximum(h + f2b_ref[...], 0.0)                             # (128,L)
    out = jnp.dot(f3w_ref[...], h, preferred_element_type=jnp.float32)
    o_ref[...] = out + f3b_ref[...]                                    # (10,L)


def _lenet_pallas(xq, kp):
    npad = xq.shape[-1]
    n_blocks = npad // LANES
    smem = pl.BlockSpec(memory_space=pltpu.MemorySpace.SMEM)
    flops_per_img = (2 * 6 * 9 * 26 * 26 + 2 * 16 * 54 * 11 * 10
                     + 2 * (128 * 400 + 128 * 128 + 10 * 128))
    bytes_accessed = npad * (28 * 28 + 10) * 4 + 300 * 1024
    return pl.pallas_call(
        _lenet_kernel,
        out_shape=jax.ShapeDtypeStruct((10, npad), jnp.float32),
        grid=(n_blocks,),
        in_specs=[
            pl.BlockSpec((4, 28, 7, LANES), lambda i: (0, 0, 0, i)),
            smem, smem, smem, smem,
            pl.BlockSpec((128, 400), lambda i: (0, 0)),
            pl.BlockSpec((128, 1), lambda i: (0, 0)),
            pl.BlockSpec((128, 128), lambda i: (0, 0)),
            pl.BlockSpec((128, 1), lambda i: (0, 0)),
            pl.BlockSpec((10, 128), lambda i: (0, 0)),
            pl.BlockSpec((10, 1), lambda i: (0, 0)),
        ],
        out_specs=pl.BlockSpec((10, LANES), lambda i: (0, i)),
        scratch_shapes=[
            pltpu.VMEM((6, 13, 7, LANES), jnp.float32),   # pool1, even columns
            pltpu.VMEM((6, 13, 6, LANES), jnp.float32),   # pool1, odd columns
            pltpu.VMEM((16, 5, 5, LANES), jnp.float32),   # pool2 output
            pltpu.VMEM((400, LANES), jnp.float32),        # flattened features
        ],
        compiler_params=pltpu.CompilerParams(
            dimension_semantics=("parallel",),
            vmem_limit_bytes=32 * 1024 * 1024,
        ),
        cost_estimate=pl.CostEstimate(
            flops=int(flops_per_img) * int(npad),
            transcendentals=0,
            bytes_accessed=int(bytes_accessed)),
    )(xq, kp["c1w"], kp["c1b"], kp["c2w"], kp["c2b"],
      kp["f1w"], kp["f1b"], kp["f2w"], kp["f2b"], kp["f3w"], kp["f3b"])


# ----------------------------------------------------------------------------
# Parameters
# ----------------------------------------------------------------------------
def init_lenet_params(key):
    def uniform(k, shape, fan_in):
        bound = 1.0 / np.sqrt(fan_in)
        return jax.random.uniform(k, shape, jnp.float32, -bound, bound)

    keys = jax.random.split(key, 10)
    return {
        "conv1_w": uniform(keys[0], (6, 1, 3, 3), 9),
        "conv1_b": uniform(keys[1], (6,), 9),
        "conv2_w": uniform(keys[2], (16, 6, 3, 3), 54),
        "conv2_b": uniform(keys[3], (16,), 54),
        "fc1_w": uniform(keys[4], (120, 400), 400),
        "fc1_b": uniform(keys[5], (120,), 400),
        "fc2_w": uniform(keys[6], (84, 120), 120),
        "fc2_b": uniform(keys[7], (84,), 120),
        "fc3_w": uniform(keys[8], (10, 84), 84),
        "fc3_b": uniform(keys[9], (10,), 84),
    }


def prepare_params(params):
    """One-time repack: conv weights flattened for SMEM; FC weights kept in
    (out, in) orientation and zero-padded so all FC matmul dims are 128/400.
    Zero padding keeps padded rows exactly 0 through the ReLUs."""
    def pad2(w, rows, cols):
        w = jnp.asarray(w, jnp.float32)
        return jnp.pad(w, ((0, rows - w.shape[0]), (0, cols - w.shape[1])))

    def padb(b, rows):
        b = jnp.asarray(b, jnp.float32)
        return jnp.pad(b, (0, rows - b.shape[0])).reshape(rows, 1)

    return {
        "c1w": jnp.asarray(params["conv1_w"], jnp.float32).reshape(-1),   # (54,)
        "c1b": jnp.asarray(params["conv1_b"], jnp.float32),               # (6,)
        "c2w": jnp.asarray(params["conv2_w"], jnp.float32).reshape(-1),   # (864,)
        "c2b": jnp.asarray(params["conv2_b"], jnp.float32),               # (16,)
        "f1w": pad2(params["fc1_w"], 128, 400), "f1b": padb(params["fc1_b"], 128),
        "f2w": pad2(params["fc2_w"], 128, 128), "f2b": padb(params["fc2_b"], 128),
        "f3w": pad2(params["fc3_w"], 10, 128), "f3b": padb(params["fc3_b"], 10),
    }


# ----------------------------------------------------------------------------
# Forward pass: one pallas_call; only input re-layout / output transpose in XLA
# ----------------------------------------------------------------------------
@jax.jit
def lenet_forward(kparams, x):
    n = x.shape[0]
    xi = x.astype(jnp.float32).reshape(n, 28, 28)
    npad = pl.cdiv(n, LANES) * LANES
    xt = jnp.transpose(xi, (1, 2, 0))                       # (28, 28, n), batch last
    if npad != n:
        xt = jnp.pad(xt, ((0, 0), (0, 0), (0, npad - n)))
    # Split image columns by index mod 4 so the kernel never needs a stride-2
    # slice for the two successive 2x2 max-pools.
    xq = xt.reshape(28, 7, 4, npad).transpose(2, 0, 1, 3)   # (4, 28, 7, npad)
    logits = _lenet_pallas(xq, kparams)                     # (10, npad)
    return jnp.transpose(logits[:, :n])                     # (n, 10)


def lenet_reference(params, x):
    """Pure-JAX reference for correctness checking."""
    def conv(x, w, b):
        y = jax.lax.conv_general_dilated(
            x, w, (1, 1), "VALID",
            dimension_numbers=("NCHW", "OIHW", "NCHW"))
        return jax.nn.relu(y + b[None, :, None, None])

    def pool(x):
        return jax.lax.reduce_window(
            x, -jnp.inf, jax.lax.max, (1, 1, 2, 2), (1, 1, 2, 2), "VALID")

    x = pool(conv(x, params["conv1_w"], params["conv1_b"]))
    x = pool(conv(x, params["conv2_w"], params["conv2_b"]))
    x = x.reshape(x.shape[0], -1)
    x = jax.nn.relu(x @ params["fc1_w"].T + params["fc1_b"])
    x = jax.nn.relu(x @ params["fc2_w"].T + params["fc2_b"])
    return x @ params["fc3_w"].T + params["fc3_b"]


if __name__ == "__main__":
    key = jax.random.PRNGKey(0)
    pkey, xkey = jax.random.split(key)
    params = init_lenet_params(pkey)
    kparams = prepare_params(params)
    # LeNet with 3x3 convs and fc1 of 16*5*5 implies a 28x28 1-channel input.
    x = jax.random.normal(xkey, (2, 1, 28, 28), dtype=jnp.float32)

    out = jax.block_until_ready(lenet_forward(kparams, x))
    ref = lenet_reference(params, x)
    np.testing.assert_allclose(np.asarray(out), np.asarray(ref),
                               rtol=1e-3, atol=1e-3)
    assert out.shape == (2, 10)
    print("KERNEL_OK")
</pallas_src>

<mosaic_0001>
module attributes {stable_mosaic.version = 11 : i64} {
  func.func @_lenet_kernel(%arg0: i32, %arg1: memref<4x28x7x128xf32, #tpu.memory_space<vmem>>, %arg2: memref<54xf32, #tpu.memory_space<smem>>, %arg3: memref<6xf32, #tpu.memory_space<smem>>, %arg4: memref<864xf32, #tpu.memory_space<smem>>, %arg5: memref<16xf32, #tpu.memory_space<smem>>, %arg6: memref<128x400xf32, #tpu.memory_space<vmem>>, %arg7: memref<128x1xf32, #tpu.memory_space<vmem>>, %arg8: memref<128x128xf32, #tpu.memory_space<vmem>>, %arg9: memref<128x1xf32, #tpu.memory_space<vmem>>, %arg10: memref<10x128xf32, #tpu.memory_space<vmem>>, %arg11: memref<10x1xf32, #tpu.memory_space<vmem>>, %arg12: memref<10x128xf32, #tpu.memory_space<vmem>>, %arg13: memref<6x13x7x128xf32, #tpu.memory_space<vmem>>, %arg14: memref<6x13x6x128xf32, #tpu.memory_space<vmem>>, %arg15: memref<16x5x5x128xf32, #tpu.memory_space<vmem>>, %arg16: memref<400x128xf32, #tpu.memory_space<vmem>>) attributes {dimension_semantics = [#tpu.dimension_semantics<parallel>], iteration_bounds = array<i64: 1>, scalar_prefetch = 0 : i64, scratch_operands = 4 : i64, tpu.core_type = #tpu.core_type<tc>, window_params = [{transform_indices = @transform_0, window_bounds = array<i64: 4, 28, 7, 128>}, {transform_indices = @transform_1, window_bounds = array<i64: 54>}, {transform_indices = @transform_2, window_bounds = array<i64: 6>}, {transform_indices = @transform_3, window_bounds = array<i64: 864>}, {transform_indices = @transform_4, window_bounds = array<i64: 16>}, {pipeline_mode = #tpu.pipeline_mode<synchronous>, transform_indices = @transform_5, window_bounds = array<i64: 128, 400>}, {pipeline_mode = #tpu.pipeline_mode<synchronous>, transform_indices = @transform_6, window_bounds = array<i64: 128, 1>}, {pipeline_mode = #tpu.pipeline_mode<synchronous>, transform_indices = @transform_7, window_bounds = array<i64: 128, 128>}, {pipeline_mode = #tpu.pipeline_mode<synchronous>, transform_indices = @transform_8, window_bounds = array<i64: 128, 1>}, {pipeline_mode = #tpu.pipeline_mode<synchronous>, transform_indices = @transform_9, window_bounds = array<i64: 10, 128>}, {pipeline_mode = #tpu.pipeline_mode<synchronous>, transform_indices = @transform_10, window_bounds = array<i64: 10, 1>}, {transform_indices = @transform_11, window_bounds = array<i64: 10, 128>}]} {
    %c0_i32 = arith.constant 0 : i32
    %c6_i32 = arith.constant 6 : i32
    %0 = arith.addi %c0_i32, %c6_i32 : i32
    %c1_i32 = arith.constant 1 : i32
    scf.for %arg17 = %c0_i32 to %0 step %c1_i32  : i32 {
      %c9_i32 = arith.constant 9 : i32
      %263 = arith.muli %arg17, %c9_i32 : i32
      %cst_412 = arith.constant 0.000000e+00 : f32
      %264 = vector.broadcast %cst_412 : f32 to vector<26x7x128xf32>
      %c0_i32_413 = arith.constant 0 : i32
      %265 = arith.addi %263, %c0_i32_413 : i32
      %c0_i32_414 = arith.constant 0 : i32
      %266 = arith.addi %265, %c0_i32_414 : i32
      %267 = arith.index_cast %266 : i32 to index
      %268 = memref.load %arg2[%267] : memref<54xf32, #tpu.memory_space<smem>>
      %c0_415 = arith.constant 0 : index
      %c0_416 = arith.constant 0 : index
      %c0_417 = arith.constant 0 : index
      %c0_418 = arith.constant 0 : index
      %269 = vector.load %arg1[%c0_415, %c0_416, %c0_417, %c0_418] : memref<4x28x7x128xf32, #tpu.memory_space<vmem>>, vector<1x26x7x128xf32>
      %270 = vector.shape_cast %269 : vector<1x26x7x128xf32> to vector<26x7x128xf32>
      %271 = vector.broadcast %268 : f32 to vector<26x7x128xf32>
      %272 = arith.mulf %271, %270 : vector<26x7x128xf32>
      %273 = arith.addf %264, %272 : vector<26x7x128xf32>
      %c0_i32_419 = arith.constant 0 : i32
      %274 = arith.addi %263, %c0_i32_419 : i32
      %c1_i32_420 = arith.constant 1 : i32
      %275 = arith.addi %274, %c1_i32_420 : i32
      %276 = arith.index_cast %275 : i32 to index
      %277 = memref.load %arg2[%276] : memref<54xf32, #tpu.memory_space<smem>>
      %c1_421 = arith.constant 1 : index
      %c0_422 = arith.constant 0 : index
      %c0_423 = arith.constant 0 : index
      %c0_424 = arith.constant 0 : index
      %278 = vector.load %arg1[%c1_421, %c0_422, %c0_423, %c0_424] : memref<4x28x7x128xf32, #tpu.memory_space<vmem>>, vector<1x26x7x128xf32>
      %279 = vector.shape_cast %278 : vector<1x26x7x128xf32> to vector<26x7x128xf32>
      %280 = vector.broadcast %277 : f32 to vector<26x7x128xf32>
      %281 = arith.mulf %280, %279 : vector<26x7x128xf32>
      %282 = arith.addf %273, %281 : vector<26x7x128xf32>
      %c0_i32_425 = arith.constant 0 : i32
      %283 = arith.addi %263, %c0_i32_425 : i32
      %c2_i32 = arith.constant 2 : i32
      %284 = arith.addi %283, %c2_i32 : i32
      %285 = arith.index_cast %284 : i32 to index
      %286 = memref.load %arg2[%285] : memref<54xf32, #tpu.memory_space<smem>>
      %c2_426 = arith.constant 2 : index
      %c0_427 = arith.constant 0 : index
      %c0_428 = arith.constant 0 : index
      %c0_429 = arith.constant 0 : index
      %287 = vector.load %arg1[%c2_426, %c0_427, %c0_428, %c0_429] : memref<4x28x7x128xf32, #tpu.memory_space<vmem>>, vector<1x26x7x128xf32>
      %288 = vector.shape_cast %287 : vector<1x26x7x128xf32> to vector<26x7x128xf32>
      %289 = vector.broadcast %286 : f32 to vector<26x7x128xf32>
      %290 = arith.mulf %289, %288 : vector<26x7x128xf32>
      %291 = arith.addf %282, %290 : vector<26x7x128xf32>
      %c3_i32 = arith.constant 3 : i32
      %292 = arith.addi %263, %c3_i32 : i32
      %c0_i32_430 = arith.constant 0 : i32
      %293 = arith.addi %292, %c0_i32_430 : i32
      %294 = arith.index_cast %293 : i32 to index
      %295 = memref.load %arg2[%294] : memref<54xf32, #tpu.memory_space<smem>>
      %c0_431 = arith.constant 0 : index
      %c1_432 = arith.constant 1 : index
      %c0_433 = arith.constant 0 : index
      %c0_434 = arith.constant 0 : index
      %296 = vector.load %arg1[%c0_431, %c1_432, %c0_433, %c0_434] : memref<4x28x7x128xf32, #tpu.memory_space<vmem>>, vector<1x26x7x128xf32>
      %297 = vector.shape_cast %296 : vector<1x26x7x128xf32> to vector<26x7x128xf32>
      %298 = vector.broadcast %295 : f32 to vector<26x7x128xf32>
      %299 = arith.mulf %298, %297 : vector<26x7x128xf32>
      %300 = arith.addf %291, %299 : vector<26x7x128xf32>
      %c3_i32_435 = arith.constant 3 : i32
      %301 = arith.addi %263, %c3_i32_435 : i32
      %c1_i32_436 = arith.constant 1 : i32
      %302 = arith.addi %301, %c1_i32_436 : i32
      %303 = arith.index_cast %302 : i32 to index
      %304 = memref.load %arg2[%303] : memref<54xf32, #tpu.memory_space<smem>>
      %c1_437 = arith.constant 1 : index
      %c1_438 = arith.constant 1 : index
      %c0_439 = arith.constant 0 : index
      %c0_440 = arith.constant 0 : index
      %305 = vector.load %arg1[%c1_437, %c1_438, %c0_439, %c0_440] : memref<4x28x7x128xf32, #tpu.memory_space<vmem>>, vector<1x26x7x128xf32>
      %306 = vector.shape_cast %305 : vector<1x26x7x128xf32> to vector<26x7x128xf32>
      %307 = vector.broadcast %304 : f32 to vector<26x7x128xf32>
      %308 = arith.mulf %307, %306 : vector<26x7x128xf32>
      %309 = arith.addf %300, %308 : vector<26x7x128xf32>
      %c3_i32_441 = arith.constant 3 : i32
      %310 = arith.addi %263, %c3_i32_441 : i32
      %c2_i32_442 = arith.constant 2 : i32
      %311 = arith.addi %310, %c2_i32_442 : i32
      %312 = arith.index_cast %311 : i32 to index
      %313 = memref.load %arg2[%312] : memref<54xf32, #tpu.memory_space<smem>>
      %c2_443 = arith.constant 2 : index
      %c1_444 = arith.constant 1 : index
      %c0_445 = arith.constant 0 : index
      %c0_446 = arith.constant 0 : index
      %314 = vector.load %arg1[%c2_443, %c1_444, %c0_445, %c0_446] : memref<4x28x7x128xf32, #tpu.memory_space<vmem>>, vector<1x26x7x128xf32>
      %315 = vector.shape_cast %314 : vector<1x26x7x128xf32> to vector<26x7x128xf32>
      %316 = vector.broadcast %313 : f32 to vector<26x7x128xf32>
      %317 = arith.mulf %316, %315 : vector<26x7x128xf32>
      %318 = arith.addf %309, %317 : vector<26x7x128xf32>
      %c6_i32_447 = arith.constant 6 : i32
      %319 = arith.addi %263, %c6_i32_447 : i32
      %c0_i32_448 = arith.constant 0 : i32
      %320 = arith.addi %319, %c0_i32_448 : i32
      %321 = arith.index_cast %320 : i32 to index
      %322 = memref.load %arg2[%321] : memref<54xf32, #tpu.memory_space<smem>>
      %c0_449 = arith.constant 0 : index
      %c2_450 = arith.constant 2 : index
      %c0_451 = arith.constant 0 : index
      %c0_452 = arith.constant 0 : index
      %323 = vector.load %arg1[%c0_449, %c2_450, %c0_451, %c0_452] : memref<4x28x7x128xf32, #tpu.memory_space<vmem>>, vector<1x26x7x128xf32>
      %324 = vector.shape_cast %323 : vector<1x26x7x128xf32> to vector<26x7x128xf32>
      %325 = vector.broadcast %322 : f32 to vector<26x7x128xf32>
      %326 = arith.mulf %325, %324 : vector<26x7x128xf32>
      %327 = arith.addf %318, %326 : vector<26x7x128xf32>
      %c6_i32_453 = arith.constant 6 : i32
      %328 = arith.addi %263, %c6_i32_453 : i32
      %c1_i32_454 = arith.constant 1 : i32
      %329 = arith.addi %328, %c1_i32_454 : i32
      %330 = arith.index_cast %329 : i32 to index
      %331 = memref.load %arg2[%330] : memref<54xf32, #tpu.memory_space<smem>>
      %c1_455 = arith.constant 1 : index
      %c2_456 = arith.constant 2 : index
      %c0_457 = arith.constant 0 : index
      %c0_458 = arith.constant 0 : index
      %332 = vector.load %arg1[%c1_455, %c2_456, %c0_457, %c0_458] : memref<4x28x7x128xf32, #tpu.memory_space<vmem>>, vector<1x26x7x128xf32>
      %333 = vector.shape_cast %332 : vector<1x26x7x128xf32> to vector<26x7x128xf32>
      %334 = vector.broadcast %331 : f32 to vector<26x7x128xf32>
      %335 = arith.mulf %334, %333 : vector<26x7x128xf32>
      %336 = arith.addf %327, %335 : vector<26x7x128xf32>
      %c6_i32_459 = arith.constant 6 : i32
      %337 = arith.addi %263, %c6_i32_459 : i32
      %c2_i32_460 = arith.constant 2 : i32
      %338 = arith.addi %337, %c2_i32_460 : i32
      %339 = arith.index_cast %338 : i32 to index
      %340 = memref.load %arg2[%339] : memref<54xf32, #tpu.memory_space<smem>>
      %c2_461 = arith.constant 2 : index
      %c2_462 = arith.constant 2 : index
      %c0_463 = arith.constant 0 : index
      %c0_464 = arith.constant 0 : index
      %341 = vector.load %arg1[%c2_461, %c2_462, %c0_463, %c0_464] : memref<4x28x7x128xf32, #tpu.memory_space<vmem>>, vector<1x26x7x128xf32>
      %342 = vector.shape_cast %341 : vector<1x26x7x128xf32> to vector<26x7x128xf32>
      %343 = vector.broadcast %340 : f32 to vector<26x7x128xf32>
      %344 = arith.mulf %343, %342 : vector<26x7x128xf32>
      %345 = arith.addf %336, %344 : vector<26x7x128xf32>
      %cst_465 = arith.constant 0.000000e+00 : f32
      %346 = vector.broadcast %cst_465 : f32 to vector<26x7x128xf32>
      %c0_i32_466 = arith.constant 0 : i32
      %347 = arith.addi %263, %c0_i32_466 : i32
      %c0_i32_467 = arith.constant 0 : i32
      %348 = arith.addi %347, %c0_i32_467 : i32
      %349 = arith.index_cast %348 : i32 to index
      %350 = memref.load %arg2[%349] : memref<54xf32, #tpu.memory_space<smem>>
      %c1_468 = arith.constant 1 : index
      %c0_469 = arith.constant 0 : index
      %c0_470 = arith.constant 0 : index
      %c0_471 = arith.constant 0 : index
      %351 = vector.load %arg1[%c1_468, %c0_469, %c0_470, %c0_471] : memref<4x28x7x128xf32, #tpu.memory_space<vmem>>, vector<1x26x7x128xf32>
      %352 = vector.shape_cast %351 : vector<1x26x7x128xf32> to vector<26x7x128xf32>
      %353 = vector.broadcast %350 : f32 to vector<26x7x128xf32>
      %354 = arith.mulf %353, %352 : vector<26x7x128xf32>
      %355 = arith.addf %346, %354 : vector<26x7x128xf32>
      %c0_i32_472 = arith.constant 0 : i32
      %356 = arith.addi %263, %c0_i32_472 : i32
      %c1_i32_473 = arith.constant 1 : i32
      %357 = arith.addi %356, %c1_i32_473 : i32
      %358 = arith.index_cast %357 : i32 to index
      %359 = memref.load %arg2[%358] : memref<54xf32, #tpu.memory_space<smem>>
      %c2_474 = arith.constant 2 : index
      %c0_475 = arith.constant 0 : index
      %c0_476 = arith.constant 0 : index
      %c0_477 = arith.constant 0 : index
      %360 = vector.load %arg1[%c2_474, %c0_475, %c0_476, %c0_477] : memref<4x28x7x128xf32, #tpu.memory_space<vmem>>, vector<1x26x7x128xf32>
      %361 = vector.shape_cast %360 : vector<1x26x7x128xf32> to vector<26x7x128xf32>
      %362 = vector.broadcast %359 : f32 to vector<26x7x128xf32>
      %363 = arith.mulf %362, %361 : vector<26x7x128xf32>
      %364 = arith.addf %355, %363 : vector<26x7x128xf32>
      %c0_i32_478 = arith.constant 0 : i32
      %365 = arith.addi %263, %c0_i32_478 : i32
      %c2_i32_479 = arith.constant 2 : i32
      %366 = arith.addi %365, %c2_i32_479 : i32
      %367 = arith.index_cast %366 : i32 to index
      %368 = memref.load %arg2[%367] : memref<54xf32, #tpu.memory_space<smem>>
      %c3_480 = arith.constant 3 : index
      %c0_481 = arith.constant 0 : index
      %c0_482 = arith.constant 0 : index
      %c0_483 = arith.constant 0 : index
      %369 = vector.load %arg1[%c3_480, %c0_481, %c0_482, %c0_483] : memref<4x28x7x128xf32, #tpu.memory_space<vmem>>, vector<1x26x7x128xf32>
      %370 = vector.shape_cast %369 : vector<1x26x7x128xf32> to vector<26x7x128xf32>
      %371 = vector.broadcast %368 : f32 to vector<26x7x128xf32>
      %372 = arith.mulf %371, %370 : vector<26x7x128xf32>
      %373 = arith.addf %364, %372 : vector<26x7x128xf32>
      %c3_i32_484 = arith.constant 3 : i32
      %374 = arith.addi %263, %c3_i32_484 : i32
      %c0_i32_485 = arith.constant 0 : i32
      %375 = arith.addi %374, %c0_i32_485 : i32
      %376 = arith.index_cast %375 : i32 to index
      %377 = memref.load %arg2[%376] : memref<54xf32, #tpu.memory_space<smem>>
      %c1_486 = arith.constant 1 : index
      %c1_487 = arith.constant 1 : index
      %c0_488 = arith.constant 0 : index
      %c0_489 = arith.constant 0 : index
      %378 = vector.load %arg1[%c1_486, %c1_487, %c0_488, %c0_489] : memref<4x28x7x128xf32, #tpu.memory_space<vmem>>, vector<1x26x7x128xf32>
      %379 = vector.shape_cast %378 : vector<1x26x7x128xf32> to vector<26x7x128xf32>
      %380 = vector.broadcast %377 : f32 to vector<26x7x128xf32>
      %381 = arith.mulf %380, %379 : vector<26x7x128xf32>
      %382 = arith.addf %373, %381 : vector<26x7x128xf32>
      %c3_i32_490 = arith.constant 3 : i32
      %383 = arith.addi %263, %c3_i32_490 : i32
      %c1_i32_491 = arith.constant 1 : i32
      %384 = arith.addi %383, %c1_i32_491 : i32
      %385 = arith.index_cast %384 : i32 to index
      %386 = memref.load %arg2[%385] : memref<54xf32, #tpu.memory_space<smem>>
      %c2_492 = arith.constant 2 : index
      %c1_493 = arith.constant 1 : index
      %c0_494 = arith.constant 0 : index
      %c0_495 = arith.constant 0 : index
      %387 = vector.load %arg1[%c2_492, %c1_493, %c0_494, %c0_495] : memref<4x28x7x128xf32, #tpu.memory_space<vmem>>, vector<1x26x7x128xf32>
      %388 = vector.shape_cast %387 : vector<1x26x7x128xf32> to vector<26x7x128xf32>
      %389 = vector.broadcast %386 : f32 to vector<26x7x128xf32>
      %390 = arith.mulf %389, %388 : vector<26x7x128xf32>
      %391 = arith.addf %382, %390 : vector<26x7x128xf32>
      %c3_i32_496 = arith.constant 3 : i32
      %392 = arith.addi %263, %c3_i32_496 : i32
      %c2_i32_497 = arith.constant 2 : i32
      %393 = arith.addi %392, %c2_i32_497 : i32
      %394 = arith.index_cast %393 : i32 to index
      %395 = memref.load %arg2[%394] : memref<54xf32, #tpu.memory_space<smem>>
      %c3_498 = arith.constant 3 : index
      %c1_499 = arith.constant 1 : index
      %c0_500 = arith.constant 0 : index
      %c0_501 = arith.constant 0 : index
      %396 = vector.load %arg1[%c3_498, %c1_499, %c0_500, %c0_501] : memref<4x28x7x128xf32, #tpu.memory_space<vmem>>, vector<1x26x7x128xf32>
      %397 = vector.shape_cast %396 : vector<1x26x7x128xf32> to vector<26x7x128xf32>
      %398 = vector.broadcast %395 : f32 to vector<26x7x128xf32>
      %399 = arith.mulf %398, %397 : vector<26x7x128xf32>
      %400 = arith.addf %391, %399 : vector<26x7x128xf32>
      %c6_i32_502 = arith.constant 6 : i32
      %401 = arith.addi %263, %c6_i32_502 : i32
      %c0_i32_503 = arith.constant 0 : i32
      %402 = arith.addi %401, %c0_i32_503 : i32
      %403 = arith.index_cast %402 : i32 to index
      %404 = memref.load %arg2[%403] : memref<54xf32, #tpu.memory_space<smem>>
      %c1_504 = arith.constant 1 : index
      %c2_505 = arith.constant 2 : index
      %c0_506 = arith.constant 0 : index
      %c0_507 = arith.constant 0 : index
      %405 = vector.load %arg1[%c1_504, %c2_505, %c0_506, %c0_507] : memref<4x28x7x128xf32, #tpu.memory_space<vmem>>, vector<1x26x7x128xf32>
      %406 = vector.shape_cast %405 : vector<1x26x7x128xf32> to vector<26x7x128xf32>
      %407 = vector.broadcast %404 : f32 to vector<26x7x128xf32>
      %408 = arith.mulf %407, %406 : vector<26x7x128xf32>
      %409 = arith.addf %400, %408 : vector<26x7x128xf32>
      %c6_i32_508 = arith.constant 6 : i32
      %410 = arith.addi %263, %c6_i32_508 : i32
      %c1_i32_509 = arith.constant 1 : i32
      %411 = arith.addi %410, %c1_i32_509 : i32
      %412 = arith.index_cast %411 : i32 to index
      %413 = memref.load %arg2[%412] : memref<54xf32, #tpu.memory_space<smem>>
      %c2_510 = arith.constant 2 : index
      %c2_511 = arith.constant 2 : index
      %c0_512 = arith.constant 0 : index
      %c0_513 = arith.constant 0 : index
      %414 = vector.load %arg1[%c2_510, %c2_511, %c0_512, %c0_513] : memref<4x28x7x128xf32, #tpu.memory_space<vmem>>, vector<1x26x7x128xf32>
      %415 = vector.shape_cast %414 : vector<1x26x7x128xf32> to vector<26x7x128xf32>
      %416 = vector.broadcast %413 : f32 to vector<26x7x128xf32>
      %417 = arith.mulf %416, %415 : vector<26x7x128xf32>
      %418 = arith.addf %409, %417 : vector<26x7x128xf32>
      %c6_i32_514 = arith.constant 6 : i32
      %419 = arith.addi %263, %c6_i32_514 : i32
      %c2_i32_515 = arith.constant 2 : i32
      %420 = arith.addi %419, %c2_i32_515 : i32
      %421 = arith.index_cast %420 : i32 to index
      %422 = memref.load %arg2[%421] : memref<54xf32, #tpu.memory_space<smem>>
      %c3_516 = arith.constant 3 : index
      %c2_517 = arith.constant 2 : index
      %c0_518 = arith.constant 0 : index
      %c0_519 = arith.constant 0 : index
      %423 = vector.load %arg1[%c3_516, %c2_517, %c0_518, %c0_519] : memref<4x28x7x128xf32, #tpu.memory_space<vmem>>, vector<1x26x7x128xf32>
      %424 = vector.shape_cast %423 : vector<1x26x7x128xf32> to vector<26x7x128xf32>
      %425 = vector.broadcast %422 : f32 to vector<26x7x128xf32>
      %426 = arith.mulf %425, %424 : vector<26x7x128xf32>
      %427 = arith.addf %418, %426 : vector<26x7x128xf32>
      %cst_520 = arith.constant 0.000000e+00 : f32
      %428 = vector.broadcast %cst_520 : f32 to vector<26x6x128xf32>
      %c0_i32_521 = arith.constant 0 : i32
      %429 = arith.addi %263, %c0_i32_521 : i32
      %c0_i32_522 = arith.constant 0 : i32
      %430 = arith.addi %429, %c0_i32_522 : i32
      %431 = arith.index_cast %430 : i32 to index
      %432 = memref.load %arg2[%431] : memref<54xf32, #tpu.memory_space<smem>>
      %c2_523 = arith.constant 2 : index
      %c0_524 = arith.constant 0 : index
      %c0_525 = arith.constant 0 : index
      %c0_526 = arith.constant 0 : index
      %433 = vector.load %arg1[%c2_523, %c0_524, %c0_525, %c0_526] : memref<4x28x7x128xf32, #tpu.memory_space<vmem>>, vector<1x26x6x128xf32>
      %434 = vector.shape_cast %433 : vector<1x26x6x128xf32> to vector<26x6x128xf32>
      %435 = vector.broadcast %432 : f32 to vector<26x6x128xf32>
      %436 = arith.mulf %435, %434 : vector<26x6x128xf32>
      %437 = arith.addf %428, %436 : vector<26x6x128xf32>
      %c0_i32_527 = arith.constant 0 : i32
      %438 = arith.addi %263, %c0_i32_527 : i32
      %c1_i32_528 = arith.constant 1 : i32
      %439 = arith.addi %438, %c1_i32_528 : i32
      %440 = arith.index_cast %439 : i32 to index
      %441 = memref.load %arg2[%440] : memref<54xf32, #tpu.memory_space<smem>>
      %c3_529 = arith.constant 3 : index
      %c0_530 = arith.constant 0 : index
      %c0_531 = arith.constant 0 : index
      %c0_532 = arith.constant 0 : index
      %442 = vector.load %arg1[%c3_529, %c0_530, %c0_531, %c0_532] : memref<4x28x7x128xf32, #tpu.memory_space<vmem>>, vector<1x26x6x128xf32>
      %443 = vector.shape_cast %442 : vector<1x26x6x128xf32> to vector<26x6x128xf32>
      %444 = vector.broadcast %441 : f32 to vector<26x6x128xf32>
      %445 = arith.mulf %444, %443 : vector<26x6x128xf32>
      %446 = arith.addf %437, %445 : vector<26x6x128xf32>
      %c0_i32_533 = arith.constant 0 : i32
      %447 = arith.addi %263, %c0_i32_533 : i32
      %c2_i32_534 = arith.constant 2 : i32
      %448 = arith.addi %447, %c2_i32_534 : i32
      %449 = arith.index_cast %448 : i32 to index
      %450 = memref.load %arg2[%449] : memref<54xf32, #tpu.memory_space<smem>>
      %c0_535 = arith.constant 0 : index
      %c0_536 = arith.constant 0 : index
      %c1_537 = arith.constant 1 : index
      %c0_538 = arith.constant 0 : index
      %451 = vector.load %arg1[%c0_535, %c0_536, %c1_537, %c0_538] : memref<4x28x7x128xf32, #tpu.memory_space<vmem>>, vector<1x26x6x128xf32>
      %452 = vector.shape_cast %451 : vector<1x26x6x128xf32> to vector<26x6x128xf32>
      %453 = vector.broadcast %450 : f32 to vector<26x6x128xf32>
      %454 = arith.mulf %453, %452 : vector<26x6x128xf32>
      %455 = arith.addf %446, %454 : vector<26x6x128xf32>
      %c3_i32_539 = arith.constant 3 : i32
      %456 = arith.addi %263, %c3_i32_539 : i32
      %c0_i32_540 = arith.constant 0 : i32
      %457 = arith.addi %456, %c0_i32_540 : i32
      %458 = arith.index_cast %457 : i32 to index
      %459 = memref.load %arg2[%458] : memref<54xf32, #tpu.memory_space<smem>>
      %c2_541 = arith.constant 2 : index
      %c1_542 = arith.constant 1 : index
      %c0_543 = arith.constant 0 : index
      %c0_544 = arith.constant 0 : index
      %460 = vector.load %arg1[%c2_541, %c1_542, %c0_543, %c0_544] : memref<4x28x7x128xf32, #tpu.memory_space<vmem>>, vector<1x26x6x128xf32>
      %461 = vector.shape_cast %460 : vector<1x26x6x128xf32> to vector<26x6x128xf32>
      %462 = vector.broadcast %459 : f32 to vector<26x6x128xf32>
      %463 = arith.mulf %462, %461 : vector<26x6x128xf32>
      %464 = arith.addf %455, %463 : vector<26x6x128xf32>
      %c3_i32_545 = arith.constant 3 : i32
      %465 = arith.addi %263, %c3_i32_545 : i32
      %c1_i32_546 = arith.constant 1 : i32
      %466 = arith.addi %465, %c1_i32_546 : i32
      %467 = arith.index_cast %466 : i32 to index
      %468 = memref.load %arg2[%467] : memref<54xf32, #tpu.memory_space<smem>>
      %c3_547 = arith.constant 3 : index
      %c1_548 = arith.constant 1 : index
      %c0_549 = arith.constant 0 : index
      %c0_550 = arith.constant 0 : index
      %469 = vector.load %arg1[%c3_547, %c1_548, %c0_549, %c0_550] : memref<4x28x7x128xf32, #tpu.memory_space<vmem>>, vector<1x26x6x128xf32>
      %470 = vector.shape_cast %469 : vector<1x26x6x128xf32> to vector<26x6x128xf32>
      %471 = vector.broadcast %468 : f32 to vector<26x6x128xf32>
      %472 = arith.mulf %471, %470 : vector<26x6x128xf32>
      %473 = arith.addf %464, %472 : vector<26x6x128xf32>
      %c3_i32_551 = arith.constant 3 : i32
      %474 = arith.addi %263, %c3_i32_551 : i32
      %c2_i32_552 = arith.constant 2 : i32
      %475 = arith.addi %474, %c2_i32_552 : i32
      %476 = arith.index_cast %475 : i32 to index
      %477 = memref.load %arg2[%476] : memref<54xf32, #tpu.memory_space<smem>>
      %c0_553 = arith.constant 0 : index
      %c1_554 = arith.constant 1 : index
      %c1_555 = arith.constant 1 : index
      %c0_556 = arith.constant 0 : index
      %478 = vector.load %arg1[%c0_553, %c1_554, %c1_555, %c0_556] : memref<4x28x7x128xf32, #tpu.memory_space<vmem>>, vector<1x26x6x128xf32>
      %479 = vector.shape_cast %478 : vector<1x26x6x128xf32> to vector<26x6x128xf32>
      %480 = vector.broadcast %477 : f32 to vector<26x6x128xf32>
      %481 = arith.mulf %480, %479 : vector<26x6x128xf32>
      %482 = arith.addf %473, %481 : vector<26x6x128xf32>
      %c6_i32_557 = arith.constant 6 : i32
      %483 = arith.addi %263, %c6_i32_557 : i32
      %c0_i32_558 = arith.constant 0 : i32
      %484 = arith.addi %483, %c0_i32_558 : i32
      %485 = arith.index_cast %484 : i32 to index
      %486 = memref.load %arg2[%485] : memref<54xf32, #tpu.memory_space<smem>>
      %c2_559 = arith.constant 2 : index
      %c2_560 = arith.constant 2 : index
      %c0_561 = arith.constant 0 : index
      %c0_562 = arith.constant 0 : index
      %487 = vector.load %arg1[%c2_559, %c2_560, %c0_561, %c0_562] : memref<4x28x7x128xf32, #tpu.memory_space<vmem>>, vector<1x26x6x128xf32>
      %488 = vector.shape_cast %487 : vector<1x26x6x128xf32> to vector<26x6x128xf32>
      %489 = vector.broadcast %486 : f32 to vector<26x6x128xf32>
      %490 = arith.mulf %489, %488 : vector<26x6x128xf32>
      %491 = arith.addf %482, %490 : vector<26x6x128xf32>
      %c6_i32_563 = arith.constant 6 : i32
      %492 = arith.addi %263, %c6_i32_563 : i32
      %c1_i32_564 = arith.constant 1 : i32
      %493 = arith.addi %492, %c1_i32_564 : i32
      %494 = arith.index_cast %493 : i32 to index
      %495 = memref.load %arg2[%494] : memref<54xf32, #tpu.memory_space<smem>>
      %c3_565 = arith.constant 3 : index
      %c2_566 = arith.constant 2 : index
      %c0_567 = arith.constant 0 : index
      %c0_568 = arith.constant 0 : index
      %496 = vector.load %arg1[%c3_565, %c2_566, %c0_567, %c0_568] : memref<4x28x7x128xf32, #tpu.memory_space<vmem>>, vector<1x26x6x128xf32>
      %497 = vector.shape_cast %496 : vector<1x26x6x128xf32> to vector<26x6x128xf32>
      %498 = vector.broadcast %495 : f32 to vector<26x6x128xf32>
      %499 = arith.mulf %498, %497 : vector<26x6x128xf32>
      %500 = arith.addf %491, %499 : vector<26x6x128xf32>
      %c6_i32_569 = arith.constant 6 : i32
      %501 = arith.addi %263, %c6_i32_569 : i32
      %c2_i32_570 = arith.constant 2 : i32
      %502 = arith.addi %501, %c2_i32_570 : i32
      %503 = arith.index_cast %502 : i32 to index
      %504 = memref.load %arg2[%503] : memref<54xf32, #tpu.memory_space<smem>>
      %c0_571 = arith.constant 0 : index
      %c2_572 = arith.constant 2 : index
      %c1_573 = arith.constant 1 : index
      %c0_574 = arith.constant 0 : index
      %505 = vector.load %arg1[%c0_571, %c2_572, %c1_573, %c0_574] : memref<4x28x7x128xf32, #tpu.memory_space<vmem>>, vector<1x26x6x128xf32>
      %506 = vector.shape_cast %505 : vector<1x26x6x128xf32> to vector<26x6x128xf32>
      %507 = vector.broadcast %504 : f32 to vector<26x6x128xf32>
      %508 = arith.mulf %507, %506 : vector<26x6x128xf32>
      %509 = arith.addf %500, %508 : vector<26x6x128xf32>
      %cst_575 = arith.constant 0.000000e+00 : f32
      %510 = vector.broadcast %cst_575 : f32 to vector<26x6x128xf32>
      %c0_i32_576 = arith.constant 0 : i32
      %511 = arith.addi %263, %c0_i32_576 : i32
      %c0_i32_577 = arith.constant 0 : i32
      %512 = arith.addi %511, %c0_i32_577 : i32
      %513 = arith.index_cast %512 : i32 to index
      %514 = memref.load %arg2[%513] : memref<54xf32, #tpu.memory_space<smem>>
      %c3_578 = arith.constant 3 : index
      %c0_579 = arith.constant 0 : index
      %c0_580 = arith.constant 0 : index
      %c0_581 = arith.constant 0 : index
      %515 = vector.load %arg1[%c3_578, %c0_579, %c0_580, %c0_581] : memref<4x28x7x128xf32, #tpu.memory_space<vmem>>, vector<1x26x6x128xf32>
      %516 = vector.shape_cast %515 : vector<1x26x6x128xf32> to vector<26x6x128xf32>
      %517 = vector.broadcast %514 : f32 to vector<26x6x128xf32>
      %518 = arith.mulf %517, %516 : vector<26x6x128xf32>
      %519 = arith.addf %510, %518 : vector<26x6x128xf32>
      %c0_i32_582 = arith.constant 0 : i32
      %520 = arith.addi %263, %c0_i32_582 : i32
      %c1_i32_583 = arith.constant 1 : i32
      %521 = arith.addi %520, %c1_i32_583 : i32
      %522 = arith.index_cast %521 : i32 to index
      %523 = memref.load %arg2[%522] : memref<54xf32, #tpu.memory_space<smem>>
      %c0_584 = arith.constant 0 : index
      %c0_585 = arith.constant 0 : index
      %c1_586 = arith.constant 1 : index
      %c0_587 = arith.constant 0 : index
      %524 = vector.load %arg1[%c0_584, %c0_585, %c1_586, %c0_587] : memref<4x28x7x128xf32, #tpu.memory_space<vmem>>, vector<1x26x6x128xf32>
      %525 = vector.shape_cast %524 : vector<1x26x6x128xf32> to vector<26x6x128xf32>
      %526 = vector.broadcast %523 : f32 to vector<26x6x128xf32>
      %527 = arith.mulf %526, %525 : vector<26x6x128xf32>
      %528 = arith.addf %519, %527 : vector<26x6x128xf32>
      %c0_i32_588 = arith.constant 0 : i32
      %529 = arith.addi %263, %c0_i32_588 : i32
      %c2_i32_589 = arith.constant 2 : i32
      %530 = arith.addi %529, %c2_i32_589 : i32
      %531 = arith.index_cast %530 : i32 to index
      %532 = memref.load %arg2[%531] : memref<54xf32, #tpu.memory_space<smem>>
      %c1_590 = arith.constant 1 : index
      %c0_591 = arith.constant 0 : index
      %c1_592 = arith.constant 1 : index
      %c0_593 = arith.constant 0 : index
      %533 = vector.load %arg1[%c1_590, %c0_591, %c1_592, %c0_593] : memref<4x28x7x128xf32, #tpu.memory_space<vmem>>, vector<1x26x6x128xf32>
      %534 = vector.shape_cast %533 : vector<1x26x6x128xf32> to vector<26x6x128xf32>
      %535 = vector.broadcast %532 : f32 to vector<26x6x128xf32>
      %536 = arith.mulf %535, %534 : vector<26x6x128xf32>
      %537 = arith.addf %528, %536 : vector<26x6x128xf32>
      %c3_i32_594 = arith.constant 3 : i32
      %538 = arith.addi %263, %c3_i32_594 : i32
      %c0_i32_595 = arith.constant 0 : i32
      %539 = arith.addi %538, %c0_i32_595 : i32
      %540 = arith.index_cast %539 : i32 to index
      %541 = memref.load %arg2[%540] : memref<54xf32, #tpu.memory_space<smem>>
      %c3_596 = arith.constant 3 : index
      %c1_597 = arith.constant 1 : index
      %c0_598 = arith.constant 0 : index
      %c0_599 = arith.constant 0 : index
      %542 = vector.load %arg1[%c3_596, %c1_597, %c0_598, %c0_599] : memref<4x28x7x128xf32, #tpu.memory_space<vmem>>, vector<1x26x6x128xf32>
      %543 = vector.shape_cast %542 : vector<1x26x6x128xf32> to vector<26x6x128xf32>
      %544 = vector.broadcast %541 : f32 to vector<26x6x128xf32>
      %545 = arith.mulf %544, %543 : vector<26x6x128xf32>
      %546 = arith.addf %537, %545 : vector<26x6x128xf32>
      %c3_i32_600 = arith.constant 3 : i32
      %547 = arith.addi %263, %c3_i32_600 : i32
      %c1_i32_601 = arith.constant 1 : i32
      %548 = arith.addi %547, %c1_i32_601 : i32
      %549 = arith.index_cast %548 : i32 to index
      %550 = memref.load %arg2[%549] : memref<54xf32, #tpu.memory_space<smem>>
      %c0_602 = arith.constant 0 : index
      %c1_603 = arith.constant 1 : index
      %c1_604 = arith.constant 1 : index
      %c0_605 = arith.constant 0 : index
      %551 = vector.load %arg1[%c0_602, %c1_603, %c1_604, %c0_605] : memref<4x28x7x128xf32, #tpu.memory_space<vmem>>, vector<1x26x6x128xf32>
      %552 = vector.shape_cast %551 : vector<1x26x6x128xf32> to vector<26x6x128xf32>
      %553 = vector.broadcast %550 : f32 to vector<26x6x128xf32>
      %554 = arith.mulf %553, %552 : vector<26x6x128xf32>
      %555 = arith.addf %546, %554 : vector<26x6x128xf32>
      %c3_i32_606 = arith.constant 3 : i32
      %556 = arith.addi %263, %c3_i32_606 : i32
      %c2_i32_607 = arith.constant 2 : i32
      %557 = arith.addi %556, %c2_i32_607 : i32
      %558 = arith.index_cast %557 : i32 to index
      %559 = memref.load %arg2[%558] : memref<54xf32, #tpu.memory_space<smem>>
      %c1_608 = arith.constant 1 : index
      %c1_609 = arith.constant 1 : index
      %c1_610 = arith.constant 1 : index
      %c0_611 = arith.constant 0 : index
      %560 = vector.load %arg1[%c1_608, %c1_609, %c1_610, %c0_611] : memref<4x28x7x128xf32, #tpu.memory_space<vmem>>, vector<1x26x6x128xf32>
      %561 = vector.shape_cast %560 : vector<1x26x6x128xf32> to vector<26x6x128xf32>
      %562 = vector.broadcast %559 : f32 to vector<26x6x128xf32>
      %563 = arith.mulf %562, %561 : vector<26x6x128xf32>
      %564 = arith.addf %555, %563 : vector<26x6x128xf32>
      %c6_i32_612 = arith.constant 6 : i32
      %565 = arith.addi %263, %c6_i32_612 : i32
      %c0_i32_613 = arith.constant 0 : i32
      %566 = arith.addi %565, %c0_i32_613 : i32
      %567 = arith.index_cast %566 : i32 to index
      %568 = memref.load %arg2[%567] : memref<54xf32, #tpu.memory_space<smem>>
      %c3_614 = arith.constant 3 : index
      %c2_615 = arith.constant 2 : index
      %c0_616 = arith.constant 0 : index
      %c0_617 = arith.constant 0 : index
      %569 = vector.load %arg1[%c3_614, %c2_615, %c0_616, %c0_617] : memref<4x28x7x128xf32, #tpu.memory_space<vmem>>, vector<1x26x6x128xf32>
      %570 = vector.shape_cast %569 : vector<1x26x6x128xf32> to vector<26x6x128xf32>
      %571 = vector.broadcast %568 : f32 to vector<26x6x128xf32>
      %572 = arith.mulf %571, %570 : vector<26x6x128xf32>
      %573 = arith.addf %564, %572 : vector<26x6x128xf32>
      %c6_i32_618 = arith.constant 6 : i32
      %574 = arith.addi %263, %c6_i32_618 : i32
      %c1_i32_619 = arith.constant 1 : i32
      %575 = arith.addi %574, %c1_i32_619 : i32
      %576 = arith.index_cast %575 : i32 to index
      %577 = memref.load %arg2[%576] : memref<54xf32, #tpu.memory_space<smem>>
      %c0_620 = arith.constant 0 : index
      %c2_621 = arith.constant 2 : index
      %c1_622 = arith.constant 1 : index
      %c0_623 = arith.constant 0 : index
      %578 = vector.load %arg1[%c0_620, %c2_621, %c1_622, %c0_623] : memref<4x28x7x128xf32, #tpu.memory_space<vmem>>, vector<1x26x6x128xf32>
      %579 = vector.shape_cast %578 : vector<1x26x6x128xf32> to vector<26x6x128xf32>
      %580 = vector.broadcast %577 : f32 to vector<26x6x128xf32>
      %581 = arith.mulf %580, %579 : vector<26x6x128xf32>
      %582 = arith.addf %573, %581 : vector<26x6x128xf32>
      %c6_i32_624 = arith.constant 6 : i32
      %583 = arith.addi %263, %c6_i32_624 : i32
      %c2_i32_625 = arith.constant 2 : i32
      %584 = arith.addi %583, %c2_i32_625 : i32
      %585 = arith.index_cast %584 : i32 to index
      %586 = memref.load %arg2[%585] : memref<54xf32, #tpu.memory_space<smem>>
      %c1_626 = arith.constant 1 : index
      %c2_627 = arith.constant 2 : index
      %c1_628 = arith.constant 1 : index
      %c0_629 = arith.constant 0 : index
      %587 = vector.load %arg1[%c1_626, %c2_627, %c1_628, %c0_629] : memref<4x28x7x128xf32, #tpu.memory_space<vmem>>, vector<1x26x6x128xf32>
      %588 = vector.shape_cast %587 : vector<1x26x6x128xf32> to vector<26x6x128xf32>
      %589 = vector.broadcast %586 : f32 to vector<26x6x128xf32>
      %590 = arith.mulf %589, %588 : vector<26x6x128xf32>
      %591 = arith.addf %582, %590 : vector<26x6x128xf32>
      %592 = arith.index_cast %arg17 : i32 to index
      %593 = memref.load %arg3[%592] : memref<6xf32, #tpu.memory_space<smem>>
      %594 = arith.maximumf %345, %427 : vector<26x7x128xf32>
      %595 = vector.broadcast %593 : f32 to vector<26x7x128xf32>
      %596 = arith.addf %594, %595 : vector<26x7x128xf32>
      %cst_630 = arith.constant 0.000000e+00 : f32
      %597 = vector.broadcast %cst_630 : f32 to vector<26x7x128xf32>
      %598 = arith.maximumf %596, %597 : vector<26x7x128xf32>
      %599 = arith.maximumf %509, %591 : vector<26x6x128xf32>
      %600 = vector.broadcast %593 : f32 to vector<26x6x128xf32>
      %601 = arith.addf %599, %600 : vector<26x6x128xf32>
      %cst_631 = arith.constant 0.000000e+00 : f32
      %602 = vector.broadcast %cst_631 : f32 to vector<26x6x128xf32>
      %603 = arith.maximumf %601, %602 : vector<26x6x128xf32>
      %604 = vector.shape_cast %598 : vector<26x7x128xf32> to vector<13x2x7x128xf32>
      %605 = vector.shape_cast %603 : vector<26x6x128xf32> to vector<13x2x6x128xf32>
      %606 = vector.extract_strided_slice %604 {offsets = [0, 0, 0, 0], sizes = [13, 1, 7, 128], strides = [1, 1, 1, 1]} : vector<13x2x7x128xf32> to vector<13x1x7x128xf32>
      %607 = vector.shape_cast %606 : vector<13x1x7x128xf32> to vector<13x7x128xf32>
      %608 = vector.extract_strided_slice %604 {offsets = [0, 1, 0, 0], sizes = [13, 1, 7, 128], strides = [1, 1, 1, 1]} : vector<13x2x7x128xf32> to vector<13x1x7x128xf32>
      %609 = vector.shape_cast %608 : vector<13x1x7x128xf32> to vector<13x7x128xf32>
      %610 = arith.maximumf %607, %609 : vector<13x7x128xf32>
      %611 = arith.index_cast %arg17 : i32 to index
      %c0_632 = arith.constant 0 : index
      %c0_633 = arith.constant 0 : index
      %c0_634 = arith.constant 0 : index
      %612 = vector.load %arg13[%611, %c0_632, %c0_633, %c0_634] : memref<6x13x7x128xf32, #tpu.memory_space<vmem>>, vector<1x13x7x128xf32>
      %613 = vector.shape_cast %612 : vector<1x13x7x128xf32> to vector<13x7x128xf32>
      %614 = vector.shape_cast %610 : vector<13x7x128xf32> to vector<1x13x7x128xf32>
      tpu.vector_store %arg13[%611, %c0_632, %c0_633, %c0_634], %614 {strides = array<i32>} : memref<6x13x7x128xf32, #tpu.memory_space<vmem>>, vector<1x13x7x128xf32>,
      %615 = vector.extract_strided_slice %605 {offsets = [0, 0, 0, 0], sizes = [13, 1, 6, 128], strides = [1, 1, 1, 1]} : vector<13x2x6x128xf32> to vector<13x1x6x128xf32>
      %616 = vector.shape_cast %615 : vector<13x1x6x128xf32> to vector<13x6x128xf32>
      %617 = vector.extract_strided_slice %605 {offsets = [0, 1, 0, 0], sizes = [13, 1, 6, 128], strides = [1, 1, 1, 1]} : vector<13x2x6x128xf32> to vector<13x1x6x128xf32>
      %618 = vector.shape_cast %617 : vector<13x1x6x128xf32> to vector<13x6x128xf32>
      %619 = arith.maximumf %616, %618 : vector<13x6x128xf32>
      %620 = arith.index_cast %arg17 : i32 to index
      %c0_635 = arith.constant 0 : index
      %c0_636 = arith.constant 0 : index
      %c0_637 = arith.constant 0 : index
      %621 = vector.load %arg14[%620, %c0_635, %c0_636, %c0_637] : memref<6x13x6x128xf32, #tpu.memory_space<vmem>>, vector<1x13x6x128xf32>
      %622 = vector.shape_cast %621 : vector<1x13x6x128xf32> to vector<13x6x128xf32>
      %623 = vector.shape_cast %619 : vector<13x6x128xf32> to vector<1x13x6x128xf32>
      tpu.vector_store %arg14[%620, %c0_635, %c0_636, %c0_637], %623 {strides = array<i32>} : memref<6x13x6x128xf32, #tpu.memory_space<vmem>>, vector<1x13x6x128xf32>,
    }
    %c6_i32_0 = arith.constant 6 : i32
    %c0_i32_1 = arith.constant 0 : i32
    %c16_i32 = arith.constant 16 : i32
    %1 = arith.addi %c0_i32_1, %c16_i32 : i32
    %c1_i32_2 = arith.constant 1 : i32
    scf.for %arg17 = %c0_i32_1 to %1 step %c1_i32_2  : i32 {
      %c54_i32 = arith.constant 54 : i32
      %263 = arith.muli %arg17, %c54_i32 : i32
      %cst_412 = arith.constant 0.000000e+00 : f32
      %264 = vector.broadcast %cst_412 : f32 to vector<11x5x128xf32>
      %cst_413 = arith.constant 0.000000e+00 : f32
      %265 = vector.broadcast %cst_413 : f32 to vector<11x5x128xf32>
      %c0_414 = arith.constant 0 : index
      %c0_415 = arith.constant 0 : index
      %c0_416 = arith.constant 0 : index
      %c0_417 = arith.constant 0 : index
      %266 = vector.load %arg13[%c0_414, %c0_415, %c0_416, %c0_417] : memref<6x13x7x128xf32, #tpu.memory_space<vmem>>, vector<1x11x5x128xf32>
      %267 = vector.shape_cast %266 : vector<1x11x5x128xf32> to vector<11x5x128xf32>
      %c0_418 = arith.constant 0 : index
      %c0_419 = arith.constant 0 : index
      %c0_420 = arith.constant 0 : index
      %c0_421 = arith.constant 0 : index
      %268 = vector.load %arg14[%c0_418, %c0_419, %c0_420, %c0_421] : memref<6x13x6x128xf32, #tpu.memory_space<vmem>>, vector<1x11x5x128xf32>
      %269 = vector.shape_cast %268 : vector<1x11x5x128xf32> to vector<11x5x128xf32>
      %c0_422 = arith.constant 0 : index
      %c0_423 = arith.constant 0 : index
      %c1_424 = arith.constant 1 : index
      %c0_425 = arith.constant 0 : index
      %270 = vector.load %arg13[%c0_422, %c0_423, %c1_424, %c0_425] : memref<6x13x7x128xf32, #tpu.memory_space<vmem>>, vector<1x11x5x128xf32>
      %271 = vector.shape_cast %270 : vector<1x11x5x128xf32> to vector<11x5x128xf32>
      %c0_426 = arith.constant 0 : index
      %c0_427 = arith.constant 0 : index
      %c1_428 = arith.constant 1 : index
      %c0_429 = arith.constant 0 : index
      %272 = vector.load %arg14[%c0_426, %c0_427, %c1_428, %c0_429] : memref<6x13x6x128xf32, #tpu.memory_space<vmem>>, vector<1x11x5x128xf32>
      %273 = vector.shape_cast %272 : vector<1x11x5x128xf32> to vector<11x5x128xf32>
      %c0_i32_430 = arith.constant 0 : i32
      %274 = arith.addi %263, %c0_i32_430 : i32
      %c0_i32_431 = arith.constant 0 : i32
      %275 = arith.addi %274, %c0_i32_431 : i32
      %c0_i32_432 = arith.constant 0 : i32
      %276 = arith.addi %275, %c0_i32_432 : i32
      %277 = arith.index_cast %276 : i32 to index
      %278 = memref.load %arg4[%277] : memref<864xf32, #tpu.memory_space<smem>>
      %c1_i32_433 = arith.constant 1 : i32
      %279 = arith.addi %275, %c1_i32_433 : i32
      %280 = arith.index_cast %279 : i32 to index
      %281 = memref.load %arg4[%280] : memref<864xf32, #tpu.memory_space<smem>>
      %c2_i32 = arith.constant 2 : i32
      %282 = arith.addi %275, %c2_i32 : i32
      %283 = arith.index_cast %282 : i32 to index
      %284 = memref.load %arg4[%283] : memref<864xf32, #tpu.memory_space<smem>>
      %285 = vector.broadcast %278 : f32 to vector<11x5x128xf32>
      %286 = arith.mulf %285, %267 : vector<11x5x128xf32>
      %287 = arith.addf %264, %286 : vector<11x5x128xf32>
      %288 = vector.broadcast %281 : f32 to vector<11x5x128xf32>
      %289 = arith.mulf %288, %269 : vector<11x5x128xf32>
      %290 = arith.addf %287, %289 : vector<11x5x128xf32>
      %291 = vector.broadcast %284 : f32 to vector<11x5x128xf32>
      %292 = arith.mulf %291, %271 : vector<11x5x128xf32>
      %293 = arith.addf %290, %292 : vector<11x5x128xf32>
      %294 = vector.broadcast %278 : f32 to vector<11x5x128xf32>
      %295 = arith.mulf %294, %269 : vector<11x5x128xf32>
      %296 = arith.addf %265, %295 : vector<11x5x128xf32>
      %297 = vector.broadcast %281 : f32 to vector<11x5x128xf32>
      %298 = arith.mulf %297, %271 : vector<11x5x128xf32>
      %299 = arith.addf %296, %298 : vector<11x5x128xf32>
      %300 = vector.broadcast %284 : f32 to vector<11x5x128xf32>
      %301 = arith.mulf %300, %273 : vector<11x5x128xf32>
      %302 = arith.addf %299, %301 : vector<11x5x128xf32>
      %c0_434 = arith.constant 0 : index
      %c1_435 = arith.constant 1 : index
      %c0_436 = arith.constant 0 : index
      %c0_437 = arith.constant 0 : index
      %303 = vector.load %arg13[%c0_434, %c1_435, %c0_436, %c0_437] : memref<6x13x7x128xf32, #tpu.memory_space<vmem>>, vector<1x11x5x128xf32>
      %304 = vector.shape_cast %303 : vector<1x11x5x128xf32> to vector<11x5x128xf32>
      %c0_438 = arith.constant 0 : index
      %c1_439 = arith.constant 1 : index
      %c0_440 = arith.constant 0 : index
      %c0_441 = arith.constant 0 : index
      %305 = vector.load %arg14[%c0_438, %c1_439, %c0_440, %c0_441] : memref<6x13x6x128xf32, #tpu.memory_space<vmem>>, vector<1x11x5x128xf32>
      %306 = vector.shape_cast %305 : vector<1x11x5x128xf32> to vector<11x5x128xf32>
      %c0_442 = arith.constant 0 : index
      %c1_443 = arith.constant 1 : index
      %c1_444 = arith.constant 1 : index
      %c0_445 = arith.constant 0 : index
      %307 = vector.load %arg13[%c0_442, %c1_443, %c1_444, %c0_445] : memref<6x13x7x128xf32, #tpu.memory_space<vmem>>, vector<1x11x5x128xf32>
      %308 = vector.shape_cast %307 : vector<1x11x5x128xf32> to vector<11x5x128xf32>
      %c0_446 = arith.constant 0 : index
      %c1_447 = arith.constant 1 : index
      %c1_448 = arith.constant 1 : index
      %c0_449 = arith.constant 0 : index
      %309 = vector.load %arg14[%c0_446, %c1_447, %c1_448, %c0_449] : memref<6x13x6x128xf32, #tpu.memory_space<vmem>>, vector<1x11x5x128xf32>
      %310 = vector.shape_cast %309 : vector<1x11x5x128xf32> to vector<11x5x128xf32>
      %c0_i32_450 = arith.constant 0 : i32
      %311 = arith.addi %263, %c0_i32_450 : i32
      %c3_i32 = arith.constant 3 : i32
      %312 = arith.addi %311, %c3_i32 : i32
      %c0_i32_451 = arith.constant 0 : i32
      %313 = arith.addi %312, %c0_i32_451 : i32
      %314 = arith.index_cast %313 : i32 to index
      %315 = memref.load %arg4[%314] : memref<864xf32, #tpu.memory_space<smem>>
      %c1_i32_452 = arith.constant 1 : i32
      %316 = arith.addi %312, %c1_i32_452 : i32
      %317 = arith.index_cast %316 : i32 to index
      %318 = memref.load %arg4[%317] : memref<864xf32, #tpu.memory_space<smem>>
      %c2_i32_453 = arith.constant 2 : i32
      %319 = arith.addi %312, %c2_i32_453 : i32
      %320 = arith.index_cast %319 : i32 to index
      %321 = memref.load %arg4[%320] : memref<864xf32, #tpu.memory_space<smem>>
      %322 = vector.broadcast %315 : f32 to vector<11x5x128xf32>
      %323 = arith.mulf %322, %304 : vector<11x5x128xf32>
      %324 = arith.addf %293, %323 : vector<11x5x128xf32>
      %325 = vector.broadcast %318 : f32 to vector<11x5x128xf32>
      %326 = arith.mulf %325, %306 : vector<11x5x128xf32>
      %327 = arith.addf %324, %326 : vector<11x5x128xf32>
      %328 = vector.broadcast %321 : f32 to vector<11x5x128xf32>
      %329 = arith.mulf %328, %308 : vector<11x5x128xf32>
      %330 = arith.addf %327, %329 : vector<11x5x128xf32>
      %331 = vector.broadcast %315 : f32 to vector<11x5x128xf32>
      %332 = arith.mulf %331, %306 : vector<11x5x128xf32>
      %333 = arith.addf %302, %332 : vector<11x5x128xf32>
      %334 = vector.broadcast %318 : f32 to vector<11x5x128xf32>
      %335 = arith.mulf %334, %308 : vector<11x5x128xf32>
      %336 = arith.addf %333, %335 : vector<11x5x128xf32>
      %337 = vector.broadcast %321 : f32 to vector<11x5x128xf32>
      %338 = arith.mulf %337, %310 : vector<11x5x128xf32>
      %339 = arith.addf %336, %338 : vector<11x5x128xf32>
      %c0_454 = arith.constant 0 : index
      %c2_455 = arith.constant 2 : index
      %c0_456 = arith.constant 0 : index
      %c0_457 = arith.constant 0 : index
      %340 = vector.load %arg13[%c0_454, %c2_455, %c0_456, %c0_457] : memref<6x13x7x128xf32, #tpu.memory_space<vmem>>, vector<1x11x5x128xf32>
      %341 = vector.shape_cast %340 : vector<1x11x5x128xf32> to vector<11x5x128xf32>
      %c0_458 = arith.constant 0 : index
      %c2_459 = arith.constant 2 : index
      %c0_460 = arith.constant 0 : index
      %c0_461 = arith.constant 0 : index
      %342 = vector.load %arg14[%c0_458, %c2_459, %c0_460, %c0_461] : memref<6x13x6x128xf32, #tpu.memory_space<vmem>>, vector<1x11x5x128xf32>
      %343 = vector.shape_cast %342 : vector<1x11x5x128xf32> to vector<11x5x128xf32>
      %c0_462 = arith.constant 0 : index
      %c2_463 = arith.constant 2 : index
      %c1_464 = arith.constant 1 : index
      %c0_465 = arith.constant 0 : index
      %344 = vector.load %arg13[%c0_462, %c2_463, %c1_464, %c0_465] : memref<6x13x7x128xf32, #tpu.memory_space<vmem>>, vector<1x11x5x128xf32>
      %345 = vector.shape_cast %344 : vector<1x11x5x128xf32> to vector<11x5x128xf32>
      %c0_466 = arith.constant 0 : index
      %c2_467 = arith.constant 2 : index
      %c1_468 = arith.constant 1 : index
      %c0_469 = arith.constant 0 : index
      %346 = vector.load %arg14[%c0_466, %c2_467, %c1_468, %c0_469] : memref<6x13x6x128xf32, #tpu.memory_space<vmem>>, vector<1x11x5x128xf32>
      %347 = vector.shape_cast %346 : vector<1x11x5x128xf32> to vector<11x5x128xf32>
      %c0_i32_470 = arith.constant 0 : i32
      %348 = arith.addi %263, %c0_i32_470 : i32
      %c6_i32_471 = arith.constant 6 : i32
      %349 = arith.addi %348, %c6_i32_471 : i32
      %c0_i32_472 = arith.constant 0 : i32
      %350 = arith.addi %349, %c0_i32_472 : i32
      %351 = arith.index_cast %350 : i32 to index
      %352 = memref.load %arg4[%351] : memref<864xf32, #tpu.memory_space<smem>>
      %c1_i32_473 = arith.constant 1 : i32
      %353 = arith.addi %349, %c1_i32_473 : i32
      %354 = arith.index_cast %353 : i32 to index
      %355 = memref.load %arg4[%354] : memref<864xf32, #tpu.memory_space<smem>>
      %c2_i32_474 = arith.constant 2 : i32
      %356 = arith.addi %349, %c2_i32_474 : i32
      %357 = arith.index_cast %356 : i32 to index
      %358 = memref.load %arg4[%357] : memref<864xf32, #tpu.memory_space<smem>>
      %359 = vector.broadcast %352 : f32 to vector<11x5x128xf32>
      %360 = arith.mulf %359, %341 : vector<11x5x128xf32>
      %361 = arith.addf %330, %360 : vector<11x5x128xf32>
      %362 = vector.broadcast %355 : f32 to vector<11x5x128xf32>
      %363 = arith.mulf %362, %343 : vector<11x5x128xf32>
      %364 = arith.addf %361, %363 : vector<11x5x128xf32>
      %365 = vector.broadcast %358 : f32 to vector<11x5x128xf32>
      %366 = arith.mulf %365, %345 : vector<11x5x128xf32>
      %367 = arith.addf %364, %366 : vector<11x5x128xf32>
      %368 = vector.broadcast %352 : f32 to vector<11x5x128xf32>
      %369 = arith.mulf %368, %343 : vector<11x5x128xf32>
      %370 = arith.addf %339, %369 : vector<11x5x128xf32>
      %371 = vector.broadcast %355 : f32 to vector<11x5x128xf32>
      %372 = arith.mulf %371, %345 : vector<11x5x128xf32>
      %373 = arith.addf %370, %372 : vector<11x5x128xf32>
      %374 = vector.broadcast %358 : f32 to vector<11x5x128xf32>
      %375 = arith.mulf %374, %347 : vector<11x5x128xf32>
      %376 = arith.addf %373, %375 : vector<11x5x128xf32>
      %c1_475 = arith.constant 1 : index
      %c0_476 = arith.constant 0 : index
      %c0_477 = arith.constant 0 : index
      %c0_478 = arith.constant 0 : index
      %377 = vector.load %arg13[%c1_475, %c0_476, %c0_477, %c0_478] : memref<6x13x7x128xf32, #tpu.memory_space<vmem>>, vector<1x11x5x128xf32>
      %378 = vector.shape_cast %377 : vector<1x11x5x128xf32> to vector<11x5x128xf32>
      %c1_479 = arith.constant 1 : index
      %c0_480 = arith.constant 0 : index
      %c0_481 = arith.constant 0 : index
      %c0_482 = arith.constant 0 : index
      %379 = vector.load %arg14[%c1_479, %c0_480, %c0_481, %c0_482] : memref<6x13x6x128xf32, #tpu.memory_space<vmem>>, vector<1x11x5x128xf32>
      %380 = vector.shape_cast %379 : vector<1x11x5x128xf32> to vector<11x5x128xf32>
      %c1_483 = arith.constant 1 : index
      %c0_484 = arith.constant 0 : index
      %c1_485 = arith.constant 1 : index
      %c0_486 = arith.constant 0 : index
      %381 = vector.load %arg13[%c1_483, %c0_484, %c1_485, %c0_486] : memref<6x13x7x128xf32, #tpu.memory_space<vmem>>, vector<1x11x5x128xf32>
      %382 = vector.shape_cast %381 : vector<1x11x5x128xf32> to vector<11x5x128xf32>
      %c1_487 = arith.constant 1 : index
      %c0_488 = arith.constant 0 : index
      %c1_489 = arith.constant 1 : index
      %c0_490 = arith.constant 0 : index
      %383 = vector.load %arg14[%c1_487, %c0_488, %c1_489, %c0_490] : memref<6x13x6x128xf32, #tpu.memory_space<vmem>>, vector<1x11x5x128xf32>
      %384 = vector.shape_cast %383 : vector<1x11x5x128xf32> to vector<11x5x128xf32>
      %c9_i32 = arith.constant 9 : i32
      %385 = arith.addi %263, %c9_i32 : i32
      %c0_i32_491 = arith.constant 0 : i32
      %386 = arith.addi %385, %c0_i32_491 : i32
      %c0_i32_492 = arith.constant 0 : i32
      %387 = arith.addi %386, %c0_i32_492 : i32
      %388 = arith.index_cast %387 : i32 to index
      %389 = memref.load %arg4[%388] : memref<864xf32, #tpu.memory_space<smem>>
      %c1_i32_493 = arith.constant 1 : i32
      %390 = arith.addi %386, %c1_i32_493 : i32
      %391 = arith.index_cast %390 : i32 to index
      %392 = memref.load %arg4[%391] : memref<864xf32, #tpu.memory_space<smem>>
      %c2_i32_494 = arith.constant 2 : i32
      %393 = arith.addi %386, %c2_i32_494 : i32
      %394 = arith.index_cast %393 : i32 to index
      %395 = memref.load %arg4[%394] : memref<864xf32, #tpu.memory_space<smem>>
      %396 = vector.broadcast %389 : f32 to vector<11x5x128xf32>
      %397 = arith.mulf %396, %378 : vector<11x5x128xf32>
      %398 = arith.addf %367, %397 : vector<11x5x128xf32>
      %399 = vector.broadcast %392 : f32 to vector<11x5x128xf32>
      %400 = arith.mulf %399, %380 : vector<11x5x128xf32>
      %401 = arith.addf %398, %400 : vector<11x5x128xf32>
      %402 = vector.broadcast %395 : f32 to vector<11x5x128xf32>
      %403 = arith.mulf %402, %382 : vector<11x5x128xf32>
      %404 = arith.addf %401, %403 : vector<11x5x128xf32>
      %405 = vector.broadcast %389 : f32 to vector<11x5x128xf32>
      %406 = arith.mulf %405, %380 : vector<11x5x128xf32>
      %407 = arith.addf %376, %406 : vector<11x5x128xf32>
      %408 = vector.broadcast %392 : f32 to vector<11x5x128xf32>
      %409 = arith.mulf %408, %382 : vector<11x5x128xf32>
      %410 = arith.addf %407, %409 : vector<11x5x128xf32>
      %411 = vector.broadcast %395 : f32 to vector<11x5x128xf32>
      %412 = arith.mulf %411, %384 : vector<11x5x128xf32>
      %413 = arith.addf %410, %412 : vector<11x5x128xf32>
      %c1_495 = arith.constant 1 : index
      %c1_496 = arith.constant 1 : index
      %c0_497 = arith.constant 0 : index
      %c0_498 = arith.constant 0 : index
      %414 = vector.load %arg13[%c1_495, %c1_496, %c0_497, %c0_498] : memref<6x13x7x128xf32, #tpu.memory_space<vmem>>, vector<1x11x5x128xf32>
      %415 = vector.shape_cast %414 : vector<1x11x5x128xf32> to vector<11x5x128xf32>
      %c1_499 = arith.constant 1 : index
      %c1_500 = arith.constant 1 : index
      %c0_501 = arith.constant 0 : index
      %c0_502 = arith.constant 0 : index
      %416 = vector.load %arg14[%c1_499, %c1_500, %c0_501, %c0_502] : memref<6x13x6x128xf32, #tpu.memory_space<vmem>>, vector<1x11x5x128xf32>
      %417 = vector.shape_cast %416 : vector<1x11x5x128xf32> to vector<11x5x128xf32>
      %c1_503 = arith.constant 1 : index
      %c1_504 = arith.constant 1 : index
      %c1_505 = arith.constant 1 : index
      %c0_506 = arith.constant 0 : index
      %418 = vector.load %arg13[%c1_503, %c1_504, %c1_505, %c0_506] : memref<6x13x7x128xf32, #tpu.memory_space<vmem>>, vector<1x11x5x128xf32>
      %419 = vector.shape_cast %418 : vector<1x11x5x128xf32> to vector<11x5x128xf32>
      %c1_507 = arith.constant 1 : index
      %c1_508 = arith.constant 1 : index
      %c1_509 = arith.constant 1 : index
      %c0_510 = arith.constant 0 : index
      %420 = vector.load %arg14[%c1_507, %c1_508, %c1_509, %c0_510] : memref<6x13x6x128xf32, #tpu.memory_space<vmem>>, vector<1x11x5x128xf32>
      %421 = vector.shape_cast %420 : vector<1x11x5x128xf32> to vector<11x5x128xf32>
      %c9_i32_511 = arith.constant 9 : i32
      %422 = arith.addi %263, %c9_i32_511 : i32
      %c3_i32_512 = arith.constant 3 : i32
      %423 = arith.addi %422, %c3_i32_512 : i32
      %c0_i32_513 = arith.constant 0 : i32
      %424 = arith.addi %423, %c0_i32_513 : i32
      %425 = arith.index_cast %424 : i32 to index
      %426 = memref.load %arg4[%425] : memref<864xf32, #tpu.memory_space<smem>>
      %c1_i32_514 = arith.constant 1 : i32
      %427 = arith.addi %423, %c1_i32_514 : i32
      %428 = arith.index_cast %427 : i32 to index
      %429 = memref.load %arg4[%428] : memref<864xf32, #tpu.memory_space<smem>>
      %c2_i32_515 = arith.constant 2 : i32
      %430 = arith.addi %423, %c2_i32_515 : i32
      %431 = arith.index_cast %430 : i32 to index
      %432 = memref.load %arg4[%431] : memref<864xf32, #tpu.memory_space<smem>>
      %433 = vector.broadcast %426 : f32 to vector<11x5x128xf32>
      %434 = arith.mulf %433, %415 : vector<11x5x128xf32>
      %435 = arith.addf %404, %434 : vector<11x5x128xf32>
      %436 = vector.broadcast %429 : f32 to vector<11x5x128xf32>
      %437 = arith.mulf %436, %417 : vector<11x5x128xf32>
      %438 = arith.addf %435, %437 : vector<11x5x128xf32>
      %439 = vector.broadcast %432 : f32 to vector<11x5x128xf32>
      %440 = arith.mulf %439, %419 : vector<11x5x128xf32>
      %441 = arith.addf %438, %440 : vector<11x5x128xf32>
      %442 = vector.broadcast %426 : f32 to vector<11x5x128xf32>
      %443 = arith.mulf %442, %417 : vector<11x5x128xf32>
      %444 = arith.addf %413, %443 : vector<11x5x128xf32>
      %445 = vector.broadcast %429 : f32 to vector<11x5x128xf32>
      %446 = arith.mulf %445, %419 : vector<11x5x128xf32>
      %447 = arith.addf %444, %446 : vector<11x5x128xf32>
      %448 = vector.broadcast %432 : f32 to vector<11x5x128xf32>
      %449 = arith.mulf %448, %421 : vector<11x5x128xf32>
      %450 = arith.addf %447, %449 : vector<11x5x128xf32>
      %c1_516 = arith.constant 1 : index
      %c2_517 = arith.constant 2 : index
      %c0_518 = arith.constant 0 : index
      %c0_519 = arith.constant 0 : index
      %451 = vector.load %arg13[%c1_516, %c2_517, %c0_518, %c0_519] : memref<6x13x7x128xf32, #tpu.memory_space<vmem>>, vector<1x11x5x128xf32>
      %452 = vector.shape_cast %451 : vector<1x11x5x128xf32> to vector<11x5x128xf32>
      %c1_520 = arith.constant 1 : index
      %c2_521 = arith.constant 2 : index
      %c0_522 = arith.constant 0 : index
      %c0_523 = arith.constant 0 : index
      %453 = vector.load %arg14[%c1_520, %c2_521, %c0_522, %c0_523] : memref<6x13x6x128xf32, #tpu.memory_space<vmem>>, vector<1x11x5x128xf32>
      %454 = vector.shape_cast %453 : vector<1x11x5x128xf32> to vector<11x5x128xf32>
      %c1_524 = arith.constant 1 : index
      %c2_525 = arith.constant 2 : index
      %c1_526 = arith.constant 1 : index
      %c0_527 = arith.constant 0 : index
      %455 = vector.load %arg13[%c1_524, %c2_525, %c1_526, %c0_527] : memref<6x13x7x128xf32, #tpu.memory_space<vmem>>, vector<1x11x5x128xf32>
      %456 = vector.shape_cast %455 : vector<1x11x5x128xf32> to vector<11x5x128xf32>
      %c1_528 = arith.constant 1 : index
      %c2_529 = arith.constant 2 : index
      %c1_530 = arith.constant 1 : index
      %c0_531 = arith.constant 0 : index
      %457 = vector.load %arg14[%c1_528, %c2_529, %c1_530, %c0_531] : memref<6x13x6x128xf32, #tpu.memory_space<vmem>>, vector<1x11x5x128xf32>
      %458 = vector.shape_cast %457 : vector<1x11x5x128xf32> to vector<11x5x128xf32>
      %c9_i32_532 = arith.constant 9 : i32
      %459 = arith.addi %263, %c9_i32_532 : i32
      %c6_i32_533 = arith.constant 6 : i32
      %460 = arith.addi %459, %c6_i32_533 : i32
      %c0_i32_534 = arith.constant 0 : i32
      %461 = arith.addi %460, %c0_i32_534 : i32
      %462 = arith.index_cast %461 : i32 to index
      %463 = memref.load %arg4[%462] : memref<864xf32, #tpu.memory_space<smem>>
      %c1_i32_535 = arith.constant 1 : i32
      %464 = arith.addi %460, %c1_i32_535 : i32
      %465 = arith.index_cast %464 : i32 to index
      %466 = memref.load %arg4[%465] : memref<864xf32, #tpu.memory_space<smem>>
      %c2_i32_536 = arith.constant 2 : i32
      %467 = arith.addi %460, %c2_i32_536 : i32
      %468 = arith.index_cast %467 : i32 to index
      %469 = memref.load %arg4[%468] : memref<864xf32, #tpu.memory_space<smem>>
      %470 = vector.broadcast %463 : f32 to vector<11x5x128xf32>
      %471 = arith.mulf %470, %452 : vector<11x5x128xf32>
      %472 = arith.addf %441, %471 : vector<11x5x128xf32>
      %473 = vector.broadcast %466 : f32 to vector<11x5x128xf32>
      %474 = arith.mulf %473, %454 : vector<11x5x128xf32>
      %475 = arith.addf %472, %474 : vector<11x5x128xf32>
      %476 = vector.broadcast %469 : f32 to vector<11x5x128xf32>
      %477 = arith.mulf %476, %456 : vector<11x5x128xf32>
      %478 = arith.addf %475, %477 : vector<11x5x128xf32>
      %479 = vector.broadcast %463 : f32 to vector<11x5x128xf32>
      %480 = arith.mulf %479, %454 : vector<11x5x128xf32>
      %481 = arith.addf %450, %480 : vector<11x5x128xf32>
      %482 = vector.broadcast %466 : f32 to vector<11x5x128xf32>
      %483 = arith.mulf %482, %456 : vector<11x5x128xf32>
      %484 = arith.addf %481, %483 : vector<11x5x128xf32>
      %485 = vector.broadcast %469 : f32 to vector<11x5x128xf32>
      %486 = arith.mulf %485, %458 : vector<11x5x128xf32>
      %487 = arith.addf %484, %486 : vector<11x5x128xf32>
      %c2_537 = arith.constant 2 : index
      %c0_538 = arith.constant 0 : index
      %c0_539 = arith.constant 0 : index
      %c0_540 = arith.constant 0 : index
      %488 = vector.load %arg13[%c2_537, %c0_538, %c0_539, %c0_540] : memref<6x13x7x128xf32, #tpu.memory_space<vmem>>, vector<1x11x5x128xf32>
      %489 = vector.shape_cast %488 : vector<1x11x5x128xf32> to vector<11x5x128xf32>
      %c2_541 = arith.constant 2 : index
      %c0_542 = arith.constant 0 : index
      %c0_543 = arith.constant 0 : index
      %c0_544 = arith.constant 0 : index
      %490 = vector.load %arg14[%c2_541, %c0_542, %c0_543, %c0_544] : memref<6x13x6x128xf32, #tpu.memory_space<vmem>>, vector<1x11x5x128xf32>
      %491 = vector.shape_cast %490 : vector<1x11x5x128xf32> to vector<11x5x128xf32>
      %c2_545 = arith.constant 2 : index
      %c0_546 = arith.constant 0 : index
      %c1_547 = arith.constant 1 : index
      %c0_548 = arith.constant 0 : index
      %492 = vector.load %arg13[%c2_545, %c0_546, %c1_547, %c0_548] : memref<6x13x7x128xf32, #tpu.memory_space<vmem>>, vector<1x11x5x128xf32>
      %493 = vector.shape_cast %492 : vector<1x11x5x128xf32> to vector<11x5x128xf32>
      %c2_549 = arith.constant 2 : index
      %c0_550 = arith.constant 0 : index
      %c1_551 = arith.constant 1 : index
      %c0_552 = arith.constant 0 : index
      %494 = vector.load %arg14[%c2_549, %c0_550, %c1_551, %c0_552] : memref<6x13x6x128xf32, #tpu.memory_space<vmem>>, vector<1x11x5x128xf32>
      %495 = vector.shape_cast %494 : vector<1x11x5x128xf32> to vector<11x5x128xf32>
      %c18_i32 = arith.constant 18 : i32
      %496 = arith.addi %263, %c18_i32 : i32
      %c0_i32_553 = arith.constant 0 : i32
      %497 = arith.addi %496, %c0_i32_553 : i32
      %c0_i32_554 = arith.constant 0 : i32
      %498 = arith.addi %497, %c0_i32_554 : i32
      %499 = arith.index_cast %498 : i32 to index
      %500 = memref.load %arg4[%499] : memref<864xf32, #tpu.memory_space<smem>>
      %c1_i32_555 = arith.constant 1 : i32
      %501 = arith.addi %497, %c1_i32_555 : i32
      %502 = arith.index_cast %501 : i32 to index
      %503 = memref.load %arg4[%502] : memref<864xf32, #tpu.memory_space<smem>>
      %c2_i32_556 = arith.constant 2 : i32
      %504 = arith.addi %497, %c2_i32_556 : i32
      %505 = arith.index_cast %504 : i32 to index
      %506 = memref.load %arg4[%505] : memref<864xf32, #tpu.memory_space<smem>>
      %507 = vector.broadcast %500 : f32 to vector<11x5x128xf32>
      %508 = arith.mulf %507, %489 : vector<11x5x128xf32>
      %509 = arith.addf %478, %508 : vector<11x5x128xf32>
      %510 = vector.broadcast %503 : f32 to vector<11x5x128xf32>
      %511 = arith.mulf %510, %491 : vector<11x5x128xf32>
      %512 = arith.addf %509, %511 : vector<11x5x128xf32>
      %513 = vector.broadcast %506 : f32 to vector<11x5x128xf32>
      %514 = arith.mulf %513, %493 : vector<11x5x128xf32>
      %515 = arith.addf %512, %514 : vector<11x5x128xf32>
      %516 = vector.broadcast %500 : f32 to vector<11x5x128xf32>
      %517 = arith.mulf %516, %491 : vector<11x5x128xf32>
      %518 = arith.addf %487, %517 : vector<11x5x128xf32>
      %519 = vector.broadcast %503 : f32 to vector<11x5x128xf32>
      %520 = arith.mulf %519, %493 : vector<11x5x128xf32>
      %521 = arith.addf %518, %520 : vector<11x5x128xf32>
      %522 = vector.broadcast %506 : f32 to vector<11x5x128xf32>
      %523 = arith.mulf %522, %495 : vector<11x5x128xf32>
      %524 = arith.addf %521, %523 : vector<11x5x128xf32>
      %c2_557 = arith.constant 2 : index
      %c1_558 = arith.constant 1 : index
      %c0_559 = arith.constant 0 : index
      %c0_560 = arith.constant 0 : index
      %525 = vector.load %arg13[%c2_557, %c1_558, %c0_559, %c0_560] : memref<6x13x7x128xf32, #tpu.memory_space<vmem>>, vector<1x11x5x128xf32>
      %526 = vector.shape_cast %525 : vector<1x11x5x128xf32> to vector<11x5x128xf32>
      %c2_561 = arith.constant 2 : index
      %c1_562 = arith.constant 1 : index
      %c0_563 = arith.constant 0 : index
      %c0_564 = arith.constant 0 : index
      %527 = vector.load %arg14[%c2_561, %c1_562, %c0_563, %c0_564] : memref<6x13x6x128xf32, #tpu.memory_space<vmem>>, vector<1x11x5x128xf32>
      %528 = vector.shape_cast %527 : vector<1x11x5x128xf32> to vector<11x5x128xf32>
      %c2_565 = arith.constant 2 : index
      %c1_566 = arith.constant 1 : index
      %c1_567 = arith.constant 1 : index
      %c0_568 = arith.constant 0 : index
      %529 = vector.load %arg13[%c2_565, %c1_566, %c1_567, %c0_568] : memref<6x13x7x128xf32, #tpu.memory_space<vmem>>, vector<1x11x5x128xf32>
      %530 = vector.shape_cast %529 : vector<1x11x5x128xf32> to vector<11x5x128xf32>
      %c2_569 = arith.constant 2 : index
      %c1_570 = arith.constant 1 : index
      %c1_571 = arith.constant 1 : index
      %c0_572 = arith.constant 0 : index
      %531 = vector.load %arg14[%c2_569, %c1_570, %c1_571, %c0_572] : memref<6x13x6x128xf32, #tpu.memory_space<vmem>>, vector<1x11x5x128xf32>
      %532 = vector.shape_cast %531 : vector<1x11x5x128xf32> to vector<11x5x128xf32>
      %c18_i32_573 = arith.constant 18 : i32
      %533 = arith.addi %263, %c18_i32_573 : i32
      %c3_i32_574 = arith.constant 3 : i32
      %534 = arith.addi %533, %c3_i32_574 : i32
      %c0_i32_575 = arith.constant 0 : i32
      %535 = arith.addi %534, %c0_i32_575 : i32
      %536 = arith.index_cast %535 : i32 to index
      %537 = memref.load %arg4[%536] : memref<864xf32, #tpu.memory_space<smem>>
      %c1_i32_576 = arith.constant 1 : i32
      %538 = arith.addi %534, %c1_i32_576 : i32
      %539 = arith.index_cast %538 : i32 to index
      %540 = memref.load %arg4[%539] : memref<864xf32, #tpu.memory_space<smem>>
      %c2_i32_577 = arith.constant 2 : i32
      %541 = arith.addi %534, %c2_i32_577 : i32
      %542 = arith.index_cast %541 : i32 to index
      %543 = memref.load %arg4[%542] : memref<864xf32, #tpu.memory_space<smem>>
      %544 = vector.broadcast %537 : f32 to vector<11x5x128xf32>
      %545 = arith.mulf %544, %526 : vector<11x5x128xf32>
      %546 = arith.addf %515, %545 : vector<11x5x128xf32>
      %547 = vector.broadcast %540 : f32 to vector<11x5x128xf32>
      %548 = arith.mulf %547, %528 : vector<11x5x128xf32>
      %549 = arith.addf %546, %548 : vector<11x5x128xf32>
      %550 = vector.broadcast %543 : f32 to vector<11x5x128xf32>
      %551 = arith.mulf %550, %530 : vector<11x5x128xf32>
      %552 = arith.addf %549, %551 : vector<11x5x128xf32>
      %553 = vector.broadcast %537 : f32 to vector<11x5x128xf32>
      %554 = arith.mulf %553, %528 : vector<11x5x128xf32>
      %555 = arith.addf %524, %554 : vector<11x5x128xf32>
      %556 = vector.broadcast %540 : f32 to vector<11x5x128xf32>
      %557 = arith.mulf %556, %530 : vector<11x5x128xf32>
      %558 = arith.addf %555, %557 : vector<11x5x128xf32>
      %559 = vector.broadcast %543 : f32 to vector<11x5x128xf32>
      %560 = arith.mulf %559, %532 : vector<11x5x128xf32>
      %561 = arith.addf %558, %560 : vector<11x5x128xf32>
      %c2_578 = arith.constant 2 : index
      %c2_579 = arith.constant 2 : index
      %c0_580 = arith.constant 0 : index
      %c0_581 = arith.constant 0 : index
      %562 = vector.load %arg13[%c2_578, %c2_579, %c0_580, %c0_581] : memref<6x13x7x128xf32, #tpu.memory_space<vmem>>, vector<1x11x5x128xf32>
      %563 = vector.shape_cast %562 : vector<1x11x5x128xf32> to vector<11x5x128xf32>
      %c2_582 = arith.constant 2 : index
      %c2_583 = arith.constant 2 : index
      %c0_584 = arith.constant 0 : index
      %c0_585 = arith.constant 0 : index
      %564 = vector.load %arg14[%c2_582, %c2_583, %c0_584, %c0_585] : memref<6x13x6x128xf32, #tpu.memory_space<vmem>>, vector<1x11x5x128xf32>
      %565 = vector.shape_cast %564 : vector<1x11x5x128xf32> to vector<11x5x128xf32>
      %c2_586 = arith.constant 2 : index
      %c2_587 = arith.constant 2 : index
      %c1_588 = arith.constant 1 : index
      %c0_589 = arith.constant 0 : index
      %566 = vector.load %arg13[%c2_586, %c2_587, %c1_588, %c0_589] : memref<6x13x7x128xf32, #tpu.memory_space<vmem>>, vector<1x11x5x128xf32>
      %567 = vector.shape_cast %566 : vector<1x11x5x128xf32> to vector<11x5x128xf32>
      %c2_590 = arith.constant 2 : index
      %c2_591 = arith.constant 2 : index
      %c1_592 = arith.constant 1 : index
      %c0_593 = arith.constant 0 : index
      %568 = vector.load %arg14[%c2_590, %c2_591, %c1_592, %c0_593] : memref<6x13x6x128xf32, #tpu.memory_space<vmem>>, vector<1x11x5x128xf32>
      %569 = vector.shape_cast %568 : vector<1x11x5x128xf32> to vector<11x5x128xf32>
      %c18_i32_594 = arith.constant 18 : i32
      %570 = arith.addi %263, %c18_i32_594 : i32
      %c6_i32_595 = arith.constant 6 : i32
      %571 = arith.addi %570, %c6_i32_595 : i32
      %c0_i32_596 = arith.constant 0 : i32
      %572 = arith.addi %571, %c0_i32_596 : i32
      %573 = arith.index_cast %572 : i32 to index
      %574 = memref.load %arg4[%573] : memref<864xf32, #tpu.memory_space<smem>>
      %c1_i32_597 = arith.constant 1 : i32
      %575 = arith.addi %571, %c1_i32_597 : i32
      %576 = arith.index_cast %575 : i32 to index
      %577 = memref.load %arg4[%576] : memref<864xf32, #tpu.memory_space<smem>>
      %c2_i32_598 = arith.constant 2 : i32
      %578 = arith.addi %571, %c2_i32_598 : i32
      %579 = arith.index_cast %578 : i32 to index
      %580 = memref.load %arg4[%579] : memref<864xf32, #tpu.memory_space<smem>>
      %581 = vector.broadcast %574 : f32 to vector<11x5x128xf32>
      %582 = arith.mulf %581, %563 : vector<11x5x128xf32>
      %583 = arith.addf %552, %582 : vector<11x5x128xf32>
      %584 = vector.broadcast %577 : f32 to vector<11x5x128xf32>
      %585 = arith.mulf %584, %565 : vector<11x5x128xf32>
      %586 = arith.addf %583, %585 : vector<11x5x128xf32>
      %587 = vector.broadcast %580 : f32 to vector<11x5x128xf32>
      %588 = arith.mulf %587, %567 : vector<11x5x128xf32>
      %589 = arith.addf %586, %588 : vector<11x5x128xf32>
      %590 = vector.broadcast %574 : f32 to vector<11x5x128xf32>
      %591 = arith.mulf %590, %565 : vector<11x5x128xf32>
      %592 = arith.addf %561, %591 : vector<11x5x128xf32>
      %593 = vector.broadcast %577 : f32 to vector<11x5x128xf32>
      %594 = arith.mulf %593, %567 : vector<11x5x128xf32>
      %595 = arith.addf %592, %594 : vector<11x5x128xf32>
      %596 = vector.broadcast %580 : f32 to vector<11x5x128xf32>
      %597 = arith.mulf %596, %569 : vector<11x5x128xf32>
      %598 = arith.addf %595, %597 : vector<11x5x128xf32>
      %c3_599 = arith.constant 3 : index
      %c0_600 = arith.constant 0 : index
      %c0_601 = arith.constant 0 : index
      %c0_602 = arith.constant 0 : index
      %599 = vector.load %arg13[%c3_599, %c0_600, %c0_601, %c0_602] : memref<6x13x7x128xf32, #tpu.memory_space<vmem>>, vector<1x11x5x128xf32>
      %600 = vector.shape_cast %599 : vector<1x11x5x128xf32> to vector<11x5x128xf32>
      %c3_603 = arith.constant 3 : index
      %c0_604 = arith.constant 0 : index
      %c0_605 = arith.constant 0 : index
      %c0_606 = arith.constant 0 : index
      %601 = vector.load %arg14[%c3_603, %c0_604, %c0_605, %c0_606] : memref<6x13x6x128xf32, #tpu.memory_space<vmem>>, vector<1x11x5x128xf32>
      %602 = vector.shape_cast %601 : vector<1x11x5x128xf32> to vector<11x5x128xf32>
      %c3_607 = arith.constant 3 : index
      %c0_608 = arith.constant 0 : index
      %c1_609 = arith.constant 1 : index
      %c0_610 = arith.constant 0 : index
      %603 = vector.load %arg13[%c3_607, %c0_608, %c1_609, %c0_610] : memref<6x13x7x128xf32, #tpu.memory_space<vmem>>, vector<1x11x5x128xf32>
      %604 = vector.shape_cast %603 : vector<1x11x5x128xf32> to vector<11x5x128xf32>
      %c3_611 = arith.constant 3 : index
      %c0_612 = arith.constant 0 : index
      %c1_613 = arith.constant 1 : index
      %c0_614 = arith.constant 0 : index
      %605 = vector.load %arg14[%c3_611, %c0_612, %c1_613, %c0_614] : memref<6x13x6x128xf32, #tpu.memory_space<vmem>>, vector<1x11x5x128xf32>
      %606 = vector.shape_cast %605 : vector<1x11x5x128xf32> to vector<11x5x128xf32>
      %c27_i32 = arith.constant 27 : i32
      %607 = arith.addi %263, %c27_i32 : i32
      %c0_i32_615 = arith.constant 0 : i32
      %608 = arith.addi %607, %c0_i32_615 : i32
      %c0_i32_616 = arith.constant 0 : i32
      %609 = arith.addi %608, %c0_i32_616 : i32
      %610 = arith.index_cast %609 : i32 to index
      %611 = memref.load %arg4[%610] : memref<864xf32, #tpu.memory_space<smem>>
      %c1_i32_617 = arith.constant 1 : i32
      %612 = arith.addi %608, %c1_i32_617 : i32
      %613 = arith.index_cast %612 : i32 to index
      %614 = memref.load %arg4[%613] : memref<864xf32, #tpu.memory_space<smem>>
      %c2_i32_618 = arith.constant 2 : i32
      %615 = arith.addi %608, %c2_i32_618 : i32
      %616 = arith.index_cast %615 : i32 to index
      %617 = memref.load %arg4[%616] : memref<864xf32, #tpu.memory_space<smem>>
      %618 = vector.broadcast %611 : f32 to vector<11x5x128xf32>
      %619 = arith.mulf %618, %600 : vector<11x5x128xf32>
      %620 = arith.addf %589, %619 : vector<11x5x128xf32>
      %621 = vector.broadcast %614 : f32 to vector<11x5x128xf32>
      %622 = arith.mulf %621, %602 : vector<11x5x128xf32>
      %623 = arith.addf %620, %622 : vector<11x5x128xf32>
      %624 = vector.broadcast %617 : f32 to vector<11x5x128xf32>
      %625 = arith.mulf %624, %604 : vector<11x5x128xf32>
      %626 = arith.addf %623, %625 : vector<11x5x128xf32>
      %627 = vector.broadcast %611 : f32 to vector<11x5x128xf32>
      %628 = arith.mulf %627, %602 : vector<11x5x128xf32>
      %629 = arith.addf %598, %628 : vector<11x5x128xf32>
      %630 = vector.broadcast %614 : f32 to vector<11x5x128xf32>
      %631 = arith.mulf %630, %604 : vector<11x5x128xf32>
      %632 = arith.addf %629, %631 : vector<11x5x128xf32>
      %633 = vector.broadcast %617 : f32 to vector<11x5x128xf32>
      %634 = arith.mulf %633, %606 : vector<11x5x128xf32>
      %635 = arith.addf %632, %634 : vector<11x5x128xf32>
      %c3_619 = arith.constant 3 : index
      %c1_620 = arith.constant 1 : index
      %c0_621 = arith.constant 0 : index
      %c0_622 = arith.constant 0 : index
      %636 = vector.load %arg13[%c3_619, %c1_620, %c0_621, %c0_622] : memref<6x13x7x128xf32, #tpu.memory_space<vmem>>, vector<1x11x5x128xf32>
      %637 = vector.shape_cast %636 : vector<1x11x5x128xf32> to vector<11x5x128xf32>
      %c3_623 = arith.constant 3 : index
      %c1_624 = arith.constant 1 : index
      %c0_625 = arith.constant 0 : index
      %c0_626 = arith.constant 0 : index
      %638 = vector.load %arg14[%c3_623, %c1_624, %c0_625, %c0_626] : memref<6x13x6x128xf32, #tpu.memory_space<vmem>>, vector<1x11x5x128xf32>
      %639 = vector.shape_cast %638 : vector<1x11x5x128xf32> to vector<11x5x128xf32>
      %c3_627 = arith.constant 3 : index
      %c1_628 = arith.constant 1 : index
      %c1_629 = arith.constant 1 : index
      %c0_630 = arith.constant 0 : index
      %640 = vector.load %arg13[%c3_627, %c1_628, %c1_629, %c0_630] : memref<6x13x7x128xf32, #tpu.memory_space<vmem>>, vector<1x11x5x128xf32>
      %641 = vector.shape_cast %640 : vector<1x11x5x128xf32> to vector<11x5x128xf32>
      %c3_631 = arith.constant 3 : index
      %c1_632 = arith.constant 1 : index
      %c1_633 = arith.constant 1 : index
      %c0_634 = arith.constant 0 : index
      %642 = vector.load %arg14[%c3_631, %c1_632, %c1_633, %c0_634] : memref<6x13x6x128xf32, #tpu.memory_space<vmem>>, vector<1x11x5x128xf32>
      %643 = vector.shape_cast %642 : vector<1x11x5x128xf32> to vector<11x5x128xf32>
      %c27_i32_635 = arith.constant 27 : i32
      %644 = arith.addi %263, %c27_i32_635 : i32
      %c3_i32_636 = arith.constant 3 : i32
      %645 = arith.addi %644, %c3_i32_636 : i32
      %c0_i32_637 = arith.constant 0 : i32
      %646 = arith.addi %645, %c0_i32_637 : i32
      %647 = arith.index_cast %646 : i32 to index
      %648 = memref.load %arg4[%647] : memref<864xf32, #tpu.memory_space<smem>>
      %c1_i32_638 = arith.constant 1 : i32
      %649 = arith.addi %645, %c1_i32_638 : i32
      %650 = arith.index_cast %649 : i32 to index
      %651 = memref.load %arg4[%650] : memref<864xf32, #tpu.memory_space<smem>>
      %c2_i32_639 = arith.constant 2 : i32
      %652 = arith.addi %645, %c2_i32_639 : i32
      %653 = arith.index_cast %652 : i32 to index
      %654 = memref.load %arg4[%653] : memref<864xf32, #tpu.memory_space<smem>>
      %655 = vector.broadcast %648 : f32 to vector<11x5x128xf32>
      %656 = arith.mulf %655, %637 : vector<11x5x128xf32>
      %657 = arith.addf %626, %656 : vector<11x5x128xf32>
      %658 = vector.broadcast %651 : f32 to vector<11x5x128xf32>
      %659 = arith.mulf %658, %639 : vector<11x5x128xf32>
      %660 = arith.addf %657, %659 : vector<11x5x128xf32>
      %661 = vector.broadcast %654 : f32 to vector<11x5x128xf32>
      %662 = arith.mulf %661, %641 : vector<11x5x128xf32>
      %663 = arith.addf %660, %662 : vector<11x5x128xf32>
      %664 = vector.broadcast %648 : f32 to vector<11x5x128xf32>
      %665 = arith.mulf %664, %639 : vector<11x5x128xf32>
      %666 = arith.addf %635, %665 : vector<11x5x128xf32>
      %667 = vector.broadcast %651 : f32 to vector<11x5x128xf32>
      %668 = arith.mulf %667, %641 : vector<11x5x128xf32>
      %669 = arith.addf %666, %668 : vector<11x5x128xf32>
      %670 = vector.broadcast %654 : f32 to vector<11x5x128xf32>
      %671 = arith.mulf %670, %643 : vector<11x5x128xf32>
      %672 = arith.addf %669, %671 : vector<11x5x128xf32>
      %c3_640 = arith.constant 3 : index
      %c2_641 = arith.constant 2 : index
      %c0_642 = arith.constant 0 : index
      %c0_643 = arith.constant 0 : index
      %673 = vector.load %arg13[%c3_640, %c2_641, %c0_642, %c0_643] : memref<6x13x7x128xf32, #tpu.memory_space<vmem>>, vector<1x11x5x128xf32>
      %674 = vector.shape_cast %673 : vector<1x11x5x128xf32> to vector<11x5x128xf32>
      %c3_644 = arith.constant 3 : index
      %c2_645 = arith.constant 2 : index
      %c0_646 = arith.constant 0 : index
      %c0_647 = arith.constant 0 : index
      %675 = vector.load %arg14[%c3_644, %c2_645, %c0_646, %c0_647] : memref<6x13x6x128xf32, #tpu.memory_space<vmem>>, vector<1x11x5x128xf32>
      %676 = vector.shape_cast %675 : vector<1x11x5x128xf32> to vector<11x5x128xf32>
      %c3_648 = arith.constant 3 : index
      %c2_649 = arith.constant 2 : index
      %c1_650 = arith.constant 1 : index
      %c0_651 = arith.constant 0 : index
      %677 = vector.load %arg13[%c3_648, %c2_649, %c1_650, %c0_651] : memref<6x13x7x128xf32, #tpu.memory_space<vmem>>, vector<1x11x5x128xf32>
      %678 = vector.shape_cast %677 : vector<1x11x5x128xf32> to vector<11x5x128xf32>
      %c3_652 = arith.constant 3 : index
      %c2_653 = arith.constant 2 : index
      %c1_654 = arith.constant 1 : index
      %c0_655 = arith.constant 0 : index
      %679 = vector.load %arg14[%c3_652, %c2_653, %c1_654, %c0_655] : memref<6x13x6x128xf32, #tpu.memory_space<vmem>>, vector<1x11x5x128xf32>
      %680 = vector.shape_cast %679 : vector<1x11x5x128xf32> to vector<11x5x128xf32>
      %c27_i32_656 = arith.constant 27 : i32
      %681 = arith.addi %263, %c27_i32_656 : i32
      %c6_i32_657 = arith.constant 6 : i32
      %682 = arith.addi %681, %c6_i32_657 : i32
      %c0_i32_658 = arith.constant 0 : i32
      %683 = arith.addi %682, %c0_i32_658 : i32
      %684 = arith.index_cast %683 : i32 to index
      %685 = memref.load %arg4[%684] : memref<864xf32, #tpu.memory_space<smem>>
      %c1_i32_659 = arith.constant 1 : i32
      %686 = arith.addi %682, %c1_i32_659 : i32
      %687 = arith.index_cast %686 : i32 to index
      %688 = memref.load %arg4[%687] : memref<864xf32, #tpu.memory_space<smem>>
      %c2_i32_660 = arith.constant 2 : i32
      %689 = arith.addi %682, %c2_i32_660 : i32
      %690 = arith.index_cast %689 : i32 to index
      %691 = memref.load %arg4[%690] : memref<864xf32, #tpu.memory_space<smem>>
      %692 = vector.broadcast %685 : f32 to vector<11x5x128xf32>
      %693 = arith.mulf %692, %674 : vector<11x5x128xf32>
      %694 = arith.addf %663, %693 : vector<11x5x128xf32>
      %695 = vector.broadcast %688 : f32 to vector<11x5x128xf32>
      %696 = arith.mulf %695, %676 : vector<11x5x128xf32>
      %697 = arith.addf %694, %696 : vector<11x5x128xf32>
      %698 = vector.broadcast %691 : f32 to vector<11x5x128xf32>
      %699 = arith.mulf %698, %678 : vector<11x5x128xf32>
      %700 = arith.addf %697, %699 : vector<11x5x128xf32>
      %701 = vector.broadcast %685 : f32 to vector<11x5x128xf32>
      %702 = arith.mulf %701, %676 : vector<11x5x128xf32>
      %703 = arith.addf %672, %702 : vector<11x5x128xf32>
      %704 = vector.broadcast %688 : f32 to vector<11x5x128xf32>
      %705 = arith.mulf %704, %678 : vector<11x5x128xf32>
      %706 = arith.addf %703, %705 : vector<11x5x128xf32>
      %707 = vector.broadcast %691 : f32 to vector<11x5x128xf32>
      %708 = arith.mulf %707, %680 : vector<11x5x128xf32>
      %709 = arith.addf %706, %708 : vector<11x5x128xf32>
      %c4_661 = arith.constant 4 : index
      %c0_662 = arith.constant 0 : index
      %c0_663 = arith.constant 0 : index
      %c0_664 = arith.constant 0 : index
      %710 = vector.load %arg13[%c4_661, %c0_662, %c0_663, %c0_664] : memref<6x13x7x128xf32, #tpu.memory_space<vmem>>, vector<1x11x5x128xf32>
      %711 = vector.shape_cast %710 : vector<1x11x5x128xf32> to vector<11x5x128xf32>
      %c4_665 = arith.constant 4 : index
      %c0_666 = arith.constant 0 : index
      %c0_667 = arith.constant 0 : index
      %c0_668 = arith.constant 0 : index
      %712 = vector.load %arg14[%c4_665, %c0_666, %c0_667, %c0_668] : memref<6x13x6x128xf32, #tpu.memory_space<vmem>>, vector<1x11x5x128xf32>
      %713 = vector.shape_cast %712 : vector<1x11x5x128xf32> to vector<11x5x128xf32>
      %c4_669 = arith.constant 4 : index
      %c0_670 = arith.constant 0 : index
      %c1_671 = arith.constant 1 : index
      %c0_672 = arith.constant 0 : index
      %714 = vector.load %arg13[%c4_669, %c0_670, %c1_671, %c0_672] : memref<6x13x7x128xf32, #tpu.memory_space<vmem>>, vector<1x11x5x128xf32>
      %715 = vector.shape_cast %714 : vector<1x11x5x128xf32> to vector<11x5x128xf32>
      %c4_673 = arith.constant 4 : index
      %c0_674 = arith.constant 0 : index
      %c1_675 = arith.constant 1 : index
      %c0_676 = arith.constant 0 : index
      %716 = vector.load %arg14[%c4_673, %c0_674, %c1_675, %c0_676] : memref<6x13x6x128xf32, #tpu.memory_space<vmem>>, vector<1x11x5x128xf32>
      %717 = vector.shape_cast %716 : vector<1x11x5x128xf32> to vector<11x5x128xf32>
      %c36_i32 = arith.constant 36 : i32
      %718 = arith.addi %263, %c36_i32 : i32
      %c0_i32_677 = arith.constant 0 : i32
      %719 = arith.addi %718, %c0_i32_677 : i32
      %c0_i32_678 = arith.constant 0 : i32
      %720 = arith.addi %719, %c0_i32_678 : i32
      %721 = arith.index_cast %720 : i32 to index
      %722 = memref.load %arg4[%721] : memref<864xf32, #tpu.memory_space<smem>>
      %c1_i32_679 = arith.constant 1 : i32
      %723 = arith.addi %719, %c1_i32_679 : i32
      %724 = arith.index_cast %723 : i32 to index
      %725 = memref.load %arg4[%724] : memref<864xf32, #tpu.memory_space<smem>>
      %c2_i32_680 = arith.constant 2 : i32
      %726 = arith.addi %719, %c2_i32_680 : i32
      %727 = arith.index_cast %726 : i32 to index
      %728 = memref.load %arg4[%727] : memref<864xf32, #tpu.memory_space<smem>>
      %729 = vector.broadcast %722 : f32 to vector<11x5x128xf32>
      %730 = arith.mulf %729, %711 : vector<11x5x128xf32>
      %731 = arith.addf %700, %730 : vector<11x5x128xf32>
      %732 = vector.broadcast %725 : f32 to vector<11x5x128xf32>
      %733 = arith.mulf %732, %713 : vector<11x5x128xf32>
      %734 = arith.addf %731, %733 : vector<11x5x128xf32>
      %735 = vector.broadcast %728 : f32 to vector<11x5x128xf32>
      %736 = arith.mulf %735, %715 : vector<11x5x128xf32>
      %737 = arith.addf %734, %736 : vector<11x5x128xf32>
      %738 = vector.broadcast %722 : f32 to vector<11x5x128xf32>
      %739 = arith.mulf %738, %713 : vector<11x5x128xf32>
      %740 = arith.addf %709, %739 : vector<11x5x128xf32>
      %741 = vector.broadcast %725 : f32 to vector<11x5x128xf32>
      %742 = arith.mulf %741, %715 : vector<11x5x128xf32>
      %743 = arith.addf %740, %742 : vector<11x5x128xf32>
      %744 = vector.broadcast %728 : f32 to vector<11x5x128xf32>
      %745 = arith.mulf %744, %717 : vector<11x5x128xf32>
      %746 = arith.addf %743, %745 : vector<11x5x128xf32>
      %c4_681 = arith.constant 4 : index
      %c1_682 = arith.constant 1 : index
      %c0_683 = arith.constant 0 : index
      %c0_684 = arith.constant 0 : index
      %747 = vector.load %arg13[%c4_681, %c1_682, %c0_683, %c0_684] : memref<6x13x7x128xf32, #tpu.memory_space<vmem>>, vector<1x11x5x128xf32>
      %748 = vector.shape_cast %747 : vector<1x11x5x128xf32> to vector<11x5x128xf32>
      %c4_685 = arith.constant 4 : index
      %c1_686 = arith.constant 1 : index
      %c0_687 = arith.constant 0 : index
      %c0_688 = arith.constant 0 : index
      %749 = vector.load %arg14[%c4_685, %c1_686, %c0_687, %c0_688] : memref<6x13x6x128xf32, #tpu.memory_space<vmem>>, vector<1x11x5x128xf32>
      %750 = vector.shape_cast %749 : vector<1x11x5x128xf32> to vector<11x5x128xf32>
      %c4_689 = arith.constant 4 : index
      %c1_690 = arith.constant 1 : index
      %c1_691 = arith.constant 1 : index
      %c0_692 = arith.constant 0 : index
      %751 = vector.load %arg13[%c4_689, %c1_690, %c1_691, %c0_692] : memref<6x13x7x128xf32, #tpu.memory_space<vmem>>, vector<1x11x5x128xf32>
      %752 = vector.shape_cast %751 : vector<1x11x5x128xf32> to vector<11x5x128xf32>
      %c4_693 = arith.constant 4 : index
      %c1_694 = arith.constant 1 : index
      %c1_695 = arith.constant 1 : index
      %c0_696 = arith.constant 0 : index
      %753 = vector.load %arg14[%c4_693, %c1_694, %c1_695, %c0_696] : memref<6x13x6x128xf32, #tpu.memory_space<vmem>>, vector<1x11x5x128xf32>
      %754 = vector.shape_cast %753 : vector<1x11x5x128xf32> to vector<11x5x128xf32>
      %c36_i32_697 = arith.constant 36 : i32
      %755 = arith.addi %263, %c36_i32_697 : i32
      %c3_i32_698 = arith.constant 3 : i32
      %756 = arith.addi %755, %c3_i32_698 : i32
      %c0_i32_699 = arith.constant 0 : i32
      %757 = arith.addi %756, %c0_i32_699 : i32
      %758 = arith.index_cast %757 : i32 to index
      %759 = memref.load %arg4[%758] : memref<864xf32, #tpu.memory_space<smem>>
      %c1_i32_700 = arith.constant 1 : i32
      %760 = arith.addi %756, %c1_i32_700 : i32
      %761 = arith.index_cast %760 : i32 to index
      %762 = memref.load %arg4[%761] : memref<864xf32, #tpu.memory_space<smem>>
      %c2_i32_701 = arith.constant 2 : i32
      %763 = arith.addi %756, %c2_i32_701 : i32
      %764 = arith.index_cast %763 : i32 to index
      %765 = memref.load %arg4[%764] : memref<864xf32, #tpu.memory_space<smem>>
      %766 = vector.broadcast %759 : f32 to vector<11x5x128xf32>
      %767 = arith.mulf %766, %748 : vector<11x5x128xf32>
      %768 = arith.addf %737, %767 : vector<11x5x128xf32>
      %769 = vector.broadcast %762 : f32 to vector<11x5x128xf32>
      %770 = arith.mulf %769, %750 : vector<11x5x128xf32>
      %771 = arith.addf %768, %770 : vector<11x5x128xf32>
      %772 = vector.broadcast %765 : f32 to vector<11x5x128xf32>
      %773 = arith.mulf %772, %752 : vector<11x5x128xf32>
      %774 = arith.addf %771, %773 : vector<11x5x128xf32>
      %775 = vector.broadcast %759 : f32 to vector<11x5x128xf32>
      %776 = arith.mulf %775, %750 : vector<11x5x128xf32>
      %777 = arith.addf %746, %776 : vector<11x5x128xf32>
      %778 = vector.broadcast %762 : f32 to vector<11x5x128xf32>
      %779 = arith.mulf %778, %752 : vector<11x5x128xf32>
      %780 = arith.addf %777, %779 : vector<11x5x128xf32>
      %781 = vector.broadcast %765 : f32 to vector<11x5x128xf32>
      %782 = arith.mulf %781, %754 : vector<11x5x128xf32>
      %783 = arith.addf %780, %782 : vector<11x5x128xf32>
      %c4_702 = arith.constant 4 : index
      %c2_703 = arith.constant 2 : index
      %c0_704 = arith.constant 0 : index
      %c0_705 = arith.constant 0 : index
      %784 = vector.load %arg13[%c4_702, %c2_703, %c0_704, %c0_705] : memref<6x13x7x128xf32, #tpu.memory_space<vmem>>, vector<1x11x5x128xf32>
      %785 = vector.shape_cast %784 : vector<1x11x5x128xf32> to vector<11x5x128xf32>
      %c4_706 = arith.constant 4 : index
      %c2_707 = arith.constant 2 : index
      %c0_708 = arith.constant 0 : index
      %c0_709 = arith.constant 0 : index
      %786 = vector.load %arg14[%c4_706, %c2_707, %c0_708, %c0_709] : memref<6x13x6x128xf32, #tpu.memory_space<vmem>>, vector<1x11x5x128xf32>
      %787 = vector.shape_cast %786 : vector<1x11x5x128xf32> to vector<11x5x128xf32>
      %c4_710 = arith.constant 4 : index
      %c2_711 = arith.constant 2 : index
      %c1_712 = arith.constant 1 : index
      %c0_713 = arith.constant 0 : index
      %788 = vector.load %arg13[%c4_710, %c2_711, %c1_712, %c0_713] : memref<6x13x7x128xf32, #tpu.memory_space<vmem>>, vector<1x11x5x128xf32>
      %789 = vector.shape_cast %788 : vector<1x11x5x128xf32> to vector<11x5x128xf32>
      %c4_714 = arith.constant 4 : index
      %c2_715 = arith.constant 2 : index
      %c1_716 = arith.constant 1 : index
      %c0_717 = arith.constant 0 : index
      %790 = vector.load %arg14[%c4_714, %c2_715, %c1_716, %c0_717] : memref<6x13x6x128xf32, #tpu.memory_space<vmem>>, vector<1x11x5x128xf32>
      %791 = vector.shape_cast %790 : vector<1x11x5x128xf32> to vector<11x5x128xf32>
      %c36_i32_718 = arith.constant 36 : i32
      %792 = arith.addi %263, %c36_i32_718 : i32
      %c6_i32_719 = arith.constant 6 : i32
      %793 = arith.addi %792, %c6_i32_719 : i32
      %c0_i32_720 = arith.constant 0 : i32
      %794 = arith.addi %793, %c0_i32_720 : i32
      %795 = arith.index_cast %794 : i32 to index
      %796 = memref.load %arg4[%795] : memref<864xf32, #tpu.memory_space<smem>>
      %c1_i32_721 = arith.constant 1 : i32
      %797 = arith.addi %793, %c1_i32_721 : i32
      %798 = arith.index_cast %797 : i32 to index
      %799 = memref.load %arg4[%798] : memref<864xf32, #tpu.memory_space<smem>>
      %c2_i32_722 = arith.constant 2 : i32
      %800 = arith.addi %793, %c2_i32_722 : i32
      %801 = arith.index_cast %800 : i32 to index
      %802 = memref.load %arg4[%801] : memref<864xf32, #tpu.memory_space<smem>>
      %803 = vector.broadcast %796 : f32 to vector<11x5x128xf32>
      %804 = arith.mulf %803, %785 : vector<11x5x128xf32>
      %805 = arith.addf %774, %804 : vector<11x5x128xf32>
      %806 = vector.broadcast %799 : f32 to vector<11x5x128xf32>
      %807 = arith.mulf %806, %787 : vector<11x5x128xf32>
      %808 = arith.addf %805, %807 : vector<11x5x128xf32>
      %809 = vector.broadcast %802 : f32 to vector<11x5x128xf32>
      %810 = arith.mulf %809, %789 : vector<11x5x128xf32>
      %811 = arith.addf %808, %810 : vector<11x5x128xf32>
      %812 = vector.broadcast %796 : f32 to vector<11x5x128xf32>
      %813 = arith.mulf %812, %787 : vector<11x5x128xf32>
      %814 = arith.addf %783, %813 : vector<11x5x128xf32>
      %815 = vector.broadcast %799 : f32 to vector<11x5x128xf32>
      %816 = arith.mulf %815, %789 : vector<11x5x128xf32>
      %817 = arith.addf %814, %816 : vector<11x5x128xf32>
      %818 = vector.broadcast %802 : f32 to vector<11x5x128xf32>
      %819 = arith.mulf %818, %791 : vector<11x5x128xf32>
      %820 = arith.addf %817, %819 : vector<11x5x128xf32>
      %c5_723 = arith.constant 5 : index
      %c0_724 = arith.constant 0 : index
      %c0_725 = arith.constant 0 : index
      %c0_726 = arith.constant 0 : index
      %821 = vector.load %arg13[%c5_723, %c0_724, %c0_725, %c0_726] : memref<6x13x7x128xf32, #tpu.memory_space<vmem>>, vector<1x11x5x128xf32>
      %822 = vector.shape_cast %821 : vector<1x11x5x128xf32> to vector<11x5x128xf32>
      %c5_727 = arith.constant 5 : index
      %c0_728 = arith.constant 0 : index
      %c0_729 = arith.constant 0 : index
      %c0_730 = arith.constant 0 : index
      %823 = vector.load %arg14[%c5_727, %c0_728, %c0_729, %c0_730] : memref<6x13x6x128xf32, #tpu.memory_space<vmem>>, vector<1x11x5x128xf32>
      %824 = vector.shape_cast %823 : vector<1x11x5x128xf32> to vector<11x5x128xf32>
      %c5_731 = arith.constant 5 : index
      %c0_732 = arith.constant 0 : index
      %c1_733 = arith.constant 1 : index
      %c0_734 = arith.constant 0 : index
      %825 = vector.load %arg13[%c5_731, %c0_732, %c1_733, %c0_734] : memref<6x13x7x128xf32, #tpu.memory_space<vmem>>, vector<1x11x5x128xf32>
      %826 = vector.shape_cast %825 : vector<1x11x5x128xf32> to vector<11x5x128xf32>
      %c5_735 = arith.constant 5 : index
      %c0_736 = arith.constant 0 : index
      %c1_737 = arith.constant 1 : index
      %c0_738 = arith.constant 0 : index
      %827 = vector.load %arg14[%c5_735, %c0_736, %c1_737, %c0_738] : memref<6x13x6x128xf32, #tpu.memory_space<vmem>>, vector<1x11x5x128xf32>
      %828 = vector.shape_cast %827 : vector<1x11x5x128xf32> to vector<11x5x128xf32>
      %c45_i32 = arith.constant 45 : i32
      %829 = arith.addi %263, %c45_i32 : i32
      %c0_i32_739 = arith.constant 0 : i32
      %830 = arith.addi %829, %c0_i32_739 : i32
      %c0_i32_740 = arith.constant 0 : i32
      %831 = arith.addi %830, %c0_i32_740 : i32
      %832 = arith.index_cast %831 : i32 to index
      %833 = memref.load %arg4[%832] : memref<864xf32, #tpu.memory_space<smem>>
      %c1_i32_741 = arith.constant 1 : i32
      %834 = arith.addi %830, %c1_i32_741 : i32
      %835 = arith.index_cast %834 : i32 to index
      %836 = memref.load %arg4[%835] : memref<864xf32, #tpu.memory_space<smem>>
      %c2_i32_742 = arith.constant 2 : i32
      %837 = arith.addi %830, %c2_i32_742 : i32
      %838 = arith.index_cast %837 : i32 to index
      %839 = memref.load %arg4[%838] : memref<864xf32, #tpu.memory_space<smem>>
      %840 = vector.broadcast %833 : f32 to vector<11x5x128xf32>
      %841 = arith.mulf %840, %822 : vector<11x5x128xf32>
      %842 = arith.addf %811, %841 : vector<11x5x128xf32>
      %843 = vector.broadcast %836 : f32 to vector<11x5x128xf32>
      %844 = arith.mulf %843, %824 : vector<11x5x128xf32>
      %845 = arith.addf %842, %844 : vector<11x5x128xf32>
      %846 = vector.broadcast %839 : f32 to vector<11x5x128xf32>
      %847 = arith.mulf %846, %826 : vector<11x5x128xf32>
      %848 = arith.addf %845, %847 : vector<11x5x128xf32>
      %849 = vector.broadcast %833 : f32 to vector<11x5x128xf32>
      %850 = arith.mulf %849, %824 : vector<11x5x128xf32>
      %851 = arith.addf %820, %850 : vector<11x5x128xf32>
      %852 = vector.broadcast %836 : f32 to vector<11x5x128xf32>
      %853 = arith.mulf %852, %826 : vector<11x5x128xf32>
      %854 = arith.addf %851, %853 : vector<11x5x128xf32>
      %855 = vector.broadcast %839 : f32 to vector<11x5x128xf32>
      %856 = arith.mulf %855, %828 : vector<11x5x128xf32>
      %857 = arith.addf %854, %856 : vector<11x5x128xf32>
      %c5_743 = arith.constant 5 : index
      %c1_744 = arith.constant 1 : index
      %c0_745 = arith.constant 0 : index
      %c0_746 = arith.constant 0 : index
      %858 = vector.load %arg13[%c5_743, %c1_744, %c0_745, %c0_746] : memref<6x13x7x128xf32, #tpu.memory_space<vmem>>, vector<1x11x5x128xf32>
      %859 = vector.shape_cast %858 : vector<1x11x5x128xf32> to vector<11x5x128xf32>
      %c5_747 = arith.constant 5 : index
      %c1_748 = arith.constant 1 : index
      %c0_749 = arith.constant 0 : index
      %c0_750 = arith.constant 0 : index
      %860 = vector.load %arg14[%c5_747, %c1_748, %c0_749, %c0_750] : memref<6x13x6x128xf32, #tpu.memory_space<vmem>>, vector<1x11x5x128xf32>
      %861 = vector.shape_cast %860 : vector<1x11x5x128xf32> to vector<11x5x128xf32>
      %c5_751 = arith.constant 5 : index
      %c1_752 = arith.constant 1 : index
      %c1_753 = arith.constant 1 : index
      %c0_754 = arith.constant 0 : index
      %862 = vector.load %arg13[%c5_751, %c1_752, %c1_753, %c0_754] : memref<6x13x7x128xf32, #tpu.memory_space<vmem>>, vector<1x11x5x128xf32>
      %863 = vector.shape_cast %862 : vector<1x11x5x128xf32> to vector<11x5x128xf32>
      %c5_755 = arith.constant 5 : index
      %c1_756 = arith.constant 1 : index
      %c1_757 = arith.constant 1 : index
      %c0_758 = arith.constant 0 : index
      %864 = vector.load %arg14[%c5_755, %c1_756, %c1_757, %c0_758] : memref<6x13x6x128xf32, #tpu.memory_space<vmem>>, vector<1x11x5x128xf32>
      %865 = vector.shape_cast %864 : vector<1x11x5x128xf32> to vector<11x5x128xf32>
      %c45_i32_759 = arith.constant 45 : i32
      %866 = arith.addi %263, %c45_i32_759 : i32
      %c3_i32_760 = arith.constant 3 : i32
      %867 = arith.addi %866, %c3_i32_760 : i32
      %c0_i32_761 = arith.constant 0 : i32
      %868 = arith.addi %867, %c0_i32_761 : i32
      %869 = arith.index_cast %868 : i32 to index
      %870 = memref.load %arg4[%869] : memref<864xf32, #tpu.memory_space<smem>>
      %c1_i32_762 = arith.constant 1 : i32
      %871 = arith.addi %867, %c1_i32_762 : i32
      %872 = arith.index_cast %871 : i32 to index
      %873 = memref.load %arg4[%872] : memref<864xf32, #tpu.memory_space<smem>>
      %c2_i32_763 = arith.constant 2 : i32
      %874 = arith.addi %867, %c2_i32_763 : i32
      %875 = arith.index_cast %874 : i32 to index
      %876 = memref.load %arg4[%875] : memref<864xf32, #tpu.memory_space<smem>>
      %877 = vector.broadcast %870 : f32 to vector<11x5x128xf32>
      %878 = arith.mulf %877, %859 : vector<11x5x128xf32>
      %879 = arith.addf %848, %878 : vector<11x5x128xf32>
      %880 = vector.broadcast %873 : f32 to vector<11x5x128xf32>
      %881 = arith.mulf %880, %861 : vector<11x5x128xf32>
      %882 = arith.addf %879, %881 : vector<11x5x128xf32>
      %883 = vector.broadcast %876 : f32 to vector<11x5x128xf32>
      %884 = arith.mulf %883, %863 : vector<11x5x128xf32>
      %885 = arith.addf %882, %884 : vector<11x5x128xf32>
      %886 = vector.broadcast %870 : f32 to vector<11x5x128xf32>
      %887 = arith.mulf %886, %861 : vector<11x5x128xf32>
      %888 = arith.addf %857, %887 : vector<11x5x128xf32>
      %889 = vector.broadcast %873 : f32 to vector<11x5x128xf32>
      %890 = arith.mulf %889, %863 : vector<11x5x128xf32>
      %891 = arith.addf %888, %890 : vector<11x5x128xf32>
      %892 = vector.broadcast %876 : f32 to vector<11x5x128xf32>
      %893 = arith.mulf %892, %865 : vector<11x5x128xf32>
      %894 = arith.addf %891, %893 : vector<11x5x128xf32>
      %c5_764 = arith.constant 5 : index
      %c2_765 = arith.constant 2 : index
      %c0_766 = arith.constant 0 : index
      %c0_767 = arith.constant 0 : index
      %895 = vector.load %arg13[%c5_764, %c2_765, %c0_766, %c0_767] : memref<6x13x7x128xf32, #tpu.memory_space<vmem>>, vector<1x11x5x128xf32>
      %896 = vector.shape_cast %895 : vector<1x11x5x128xf32> to vector<11x5x128xf32>
      %c5_768 = arith.constant 5 : index
      %c2_769 = arith.constant 2 : index
      %c0_770 = arith.constant 0 : index
      %c0_771 = arith.constant 0 : index
      %897 = vector.load %arg14[%c5_768, %c2_769, %c0_770, %c0_771] : memref<6x13x6x128xf32, #tpu.memory_space<vmem>>, vector<1x11x5x128xf32>
      %898 = vector.shape_cast %897 : vector<1x11x5x128xf32> to vector<11x5x128xf32>
      %c5_772 = arith.constant 5 : index
      %c2_773 = arith.constant 2 : index
      %c1_774 = arith.constant 1 : index
      %c0_775 = arith.constant 0 : index
      %899 = vector.load %arg13[%c5_772, %c2_773, %c1_774, %c0_775] : memref<6x13x7x128xf32, #tpu.memory_space<vmem>>, vector<1x11x5x128xf32>
      %900 = vector.shape_cast %899 : vector<1x11x5x128xf32> to vector<11x5x128xf32>
      %c5_776 = arith.constant 5 : index
      %c2_777 = arith.constant 2 : index
      %c1_778 = arith.constant 1 : index
      %c0_779 = arith.constant 0 : index
      %901 = vector.load %arg14[%c5_776, %c2_777, %c1_778, %c0_779] : memref<6x13x6x128xf32, #tpu.memory_space<vmem>>, vector<1x11x5x128xf32>
      %902 = vector.shape_cast %901 : vector<1x11x5x128xf32> to vector<11x5x128xf32>
      %c45_i32_780 = arith.constant 45 : i32
      %903 = arith.addi %263, %c45_i32_780 : i32
      %c6_i32_781 = arith.constant 6 : i32
      %904 = arith.addi %903, %c6_i32_781 : i32
      %c0_i32_782 = arith.constant 0 : i32
      %905 = arith.addi %904, %c0_i32_782 : i32
      %906 = arith.index_cast %905 : i32 to index
      %907 = memref.load %arg4[%906] : memref<864xf32, #tpu.memory_space<smem>>
      %c1_i32_783 = arith.constant 1 : i32
      %908 = arith.addi %904, %c1_i32_783 : i32
      %909 = arith.index_cast %908 : i32 to index
      %910 = memref.load %arg4[%909] : memref<864xf32, #tpu.memory_space<smem>>
      %c2_i32_784 = arith.constant 2 : i32
      %911 = arith.addi %904, %c2_i32_784 : i32
      %912 = arith.index_cast %911 : i32 to index
      %913 = memref.load %arg4[%912] : memref<864xf32, #tpu.memory_space<smem>>
      %914 = vector.broadcast %907 : f32 to vector<11x5x128xf32>
      %915 = arith.mulf %914, %896 : vector<11x5x128xf32>
      %916 = arith.addf %885, %915 : vector<11x5x128xf32>
      %917 = vector.broadcast %910 : f32 to vector<11x5x128xf32>
      %918 = arith.mulf %917, %898 : vector<11x5x128xf32>
      %919 = arith.addf %916, %918 : vector<11x5x128xf32>
      %920 = vector.broadcast %913 : f32 to vector<11x5x128xf32>
      %921 = arith.mulf %920, %900 : vector<11x5x128xf32>
      %922 = arith.addf %919, %921 : vector<11x5x128xf32>
      %923 = vector.broadcast %907 : f32 to vector<11x5x128xf32>
      %924 = arith.mulf %923, %898 : vector<11x5x128xf32>
      %925 = arith.addf %894, %924 : vector<11x5x128xf32>
      %926 = vector.broadcast %910 : f32 to vector<11x5x128xf32>
      %927 = arith.mulf %926, %900 : vector<11x5x128xf32>
      %928 = arith.addf %925, %927 : vector<11x5x128xf32>
      %929 = vector.broadcast %913 : f32 to vector<11x5x128xf32>
      %930 = arith.mulf %929, %902 : vector<11x5x128xf32>
      %931 = arith.addf %928, %930 : vector<11x5x128xf32>
      %932 = arith.index_cast %arg17 : i32 to index
      %933 = memref.load %arg5[%932] : memref<16xf32, #tpu.memory_space<smem>>
      %934 = arith.maximumf %922, %931 : vector<11x5x128xf32>
      %935 = vector.broadcast %933 : f32 to vector<11x5x128xf32>
      %936 = arith.addf %934, %935 : vector<11x5x128xf32>
      %cst_785 = arith.constant 0.000000e+00 : f32
      %937 = vector.broadcast %cst_785 : f32 to vector<11x5x128xf32>
      %938 = arith.maximumf %936, %937 : vector<11x5x128xf32>
      %939 = vector.extract_strided_slice %938 {offsets = [0, 0, 0], sizes = [10, 5, 128], strides = [1, 1, 1]} : vector<11x5x128xf32> to vector<10x5x128xf32>
      %940 = vector.shape_cast %939 : vector<10x5x128xf32> to vector<5x2x5x128xf32>
      %941 = vector.extract_strided_slice %940 {offsets = [0, 0, 0, 0], sizes = [5, 1, 5, 128], strides = [1, 1, 1, 1]} : vector<5x2x5x128xf32> to vector<5x1x5x128xf32>
      %942 = vector.shape_cast %941 : vector<5x1x5x128xf32> to vector<5x5x128xf32>
      %943 = vector.extract_strided_slice %940 {offsets = [0, 1, 0, 0], sizes = [5, 1, 5, 128], strides = [1, 1, 1, 1]} : vector<5x2x5x128xf32> to vector<5x1x5x128xf32>
      %944 = vector.shape_cast %943 : vector<5x1x5x128xf32> to vector<5x5x128xf32>
      %945 = arith.maximumf %942, %944 : vector<5x5x128xf32>
      %946 = arith.index_cast %arg17 : i32 to index
      %c0_786 = arith.constant 0 : index
      %c0_787 = arith.constant 0 : index
      %c0_788 = arith.constant 0 : index
      %947 = vector.load %arg15[%946, %c0_786, %c0_787, %c0_788] : memref<16x5x5x128xf32, #tpu.memory_space<vmem>>, vector<1x5x5x128xf32>
      %948 = vector.shape_cast %947 : vector<1x5x5x128xf32> to vector<5x5x128xf32>
      %949 = vector.shape_cast %945 : vector<5x5x128xf32> to vector<1x5x5x128xf32>
      tpu.vector_store %arg15[%946, %c0_786, %c0_787, %c0_788], %949 {strides = array<i32>} : memref<16x5x5x128xf32, #tpu.memory_space<vmem>>, vector<1x5x5x128xf32>,
    }
    %c16_i32_3 = arith.constant 16 : i32
    %c0 = arith.constant 0 : index
    %c0_4 = arith.constant 0 : index
    %c0_5 = arith.constant 0 : index
    %c0_6 = arith.constant 0 : index
    %2 = vector.load %arg15[%c0, %c0_4, %c0_5, %c0_6] : memref<16x5x5x128xf32, #tpu.memory_space<vmem>>, vector<1x1x5x128xf32>
    %3 = vector.shape_cast %2 : vector<1x1x5x128xf32> to vector<5x128xf32>
    %c0_7 = arith.constant 0 : index
    %c0_8 = arith.constant 0 : index
    %4 = vector.load %arg16[%c0_7, %c0_8] : memref<400x128xf32, #tpu.memory_space<vmem>>, vector<5x128xf32>
    tpu.vector_store %arg16[%c0_7, %c0_8], %3 {strides = array<i32>} : memref<400x128xf32, #tpu.memory_space<vmem>>, vector<5x128xf32>,
    %c0_9 = arith.constant 0 : index
    %c1 = arith.constant 1 : index
    %c0_10 = arith.constant 0 : index
    %c0_11 = arith.constant 0 : index
    %5 = vector.load %arg15[%c0_9, %c1, %c0_10, %c0_11] : memref<16x5x5x128xf32, #tpu.memory_space<vmem>>, vector<1x1x5x128xf32>
    %6 = vector.shape_cast %5 : vector<1x1x5x128xf32> to vector<5x128xf32>
    %c5 = arith.constant 5 : index
    %c0_12 = arith.constant 0 : index
    %7 = vector.load %arg16[%c5, %c0_12] : memref<400x128xf32, #tpu.memory_space<vmem>>, vector<5x128xf32>
    tpu.vector_store %arg16[%c5, %c0_12], %6 {strides = array<i32>} : memref<400x128xf32, #tpu.memory_space<vmem>>, vector<5x128xf32>,
    %c0_13 = arith.constant 0 : index
    %c2 = arith.constant 2 : index
    %c0_14 = arith.constant 0 : index
    %c0_15 = arith.constant 0 : index
    %8 = vector.load %arg15[%c0_13, %c2, %c0_14, %c0_15] : memref<16x5x5x128xf32, #tpu.memory_space<vmem>>, vector<1x1x5x128xf32>
    %9 = vector.shape_cast %8 : vector<1x1x5x128xf32> to vector<5x128xf32>
    %c10 = arith.constant 10 : index
    %c0_16 = arith.constant 0 : index
    %10 = vector.load %arg16[%c10, %c0_16] : memref<400x128xf32, #tpu.memory_space<vmem>>, vector<5x128xf32>
    tpu.vector_store %arg16[%c10, %c0_16], %9 {strides = array<i32>} : memref<400x128xf32, #tpu.memory_space<vmem>>, vector<5x128xf32>,
    %c0_17 = arith.constant 0 : index
    %c3 = arith.constant 3 : index
    %c0_18 = arith.constant 0 : index
    %c0_19 = arith.constant 0 : index
    %11 = vector.load %arg15[%c0_17, %c3, %c0_18, %c0_19] : memref<16x5x5x128xf32, #tpu.memory_space<vmem>>, vector<1x1x5x128xf32>
    %12 = vector.shape_cast %11 : vector<1x1x5x128xf32> to vector<5x128xf32>
    %c15 = arith.constant 15 : index
    %c0_20 = arith.constant 0 : index
    %13 = vector.load %arg16[%c15, %c0_20] : memref<400x128xf32, #tpu.memory_space<vmem>>, vector<5x128xf32>
    tpu.vector_store %arg16[%c15, %c0_20], %12 {strides = array<i32>} : memref<400x128xf32, #tpu.memory_space<vmem>>, vector<5x128xf32>,
    %c0_21 = arith.constant 0 : index
    %c4 = arith.constant 4 : index
    %c0_22 = arith.constant 0 : index
    %c0_23 = arith.constant 0 : index
    %14 = vector.load %arg15[%c0_21, %c4, %c0_22, %c0_23] : memref<16x5x5x128xf32, #tpu.memory_space<vmem>>, vector<1x1x5x128xf32>
    %15 = vector.shape_cast %14 : vector<1x1x5x128xf32> to vector<5x128xf32>
    %c20 = arith.constant 20 : index
    %c0_24 = arith.constant 0 : index
    %16 = vector.load %arg16[%c20, %c0_24] : memref<400x128xf32, #tpu.memory_space<vmem>>, vector<5x128xf32>
    tpu.vector_store %arg16[%c20, %c0_24], %15 {strides = array<i32>} : memref<400x128xf32, #tpu.memory_space<vmem>>, vector<5x128xf32>,
    %c1_25 = arith.constant 1 : index
    %c0_26 = arith.constant 0 : index
    %c0_27 = arith.constant 0 : index
    %c0_28 = arith.constant 0 : index
    %17 = vector.load %arg15[%c1_25, %c0_26, %c0_27, %c0_28] : memref<16x5x5x128xf32, #tpu.memory_space<vmem>>, vector<1x1x5x128xf32>
    %18 = vector.shape_cast %17 : vector<1x1x5x128xf32> to vector<5x128xf32>
    %c25 = arith.constant 25 : index
    %c0_29 = arith.constant 0 : index
    %19 = vector.load %arg16[%c25, %c0_29] : memref<400x128xf32, #tpu.memory_space<vmem>>, vector<5x128xf32>
    tpu.vector_store %arg16[%c25, %c0_29], %18 {strides = array<i32>} : memref<400x128xf32, #tpu.memory_space<vmem>>, vector<5x128xf32>,
    %c1_30 = arith.constant 1 : index
    %c1_31 = arith.constant 1 : index
    %c0_32 = arith.constant 0 : index
    %c0_33 = arith.constant 0 : index
    %20 = vector.load %arg15[%c1_30, %c1_31, %c0_32, %c0_33] : memref<16x5x5x128xf32, #tpu.memory_space<vmem>>, vector<1x1x5x128xf32>
    %21 = vector.shape_cast %20 : vector<1x1x5x128xf32> to vector<5x128xf32>
    %c30 = arith.constant 30 : index
    %c0_34 = arith.constant 0 : index
    %22 = vector.load %arg16[%c30, %c0_34] : memref<400x128xf32, #tpu.memory_space<vmem>>, vector<5x128xf32>
    tpu.vector_store %arg16[%c30, %c0_34], %21 {strides = array<i32>} : memref<400x128xf32, #tpu.memory_space<vmem>>, vector<5x128xf32>,
    %c1_35 = arith.constant 1 : index
    %c2_36 = arith.constant 2 : index
    %c0_37 = arith.constant 0 : index
    %c0_38 = arith.constant 0 : index
    %23 = vector.load %arg15[%c1_35, %c2_36, %c0_37, %c0_38] : memref<16x5x5x128xf32, #tpu.memory_space<vmem>>, vector<1x1x5x128xf32>
    %24 = vector.shape_cast %23 : vector<1x1x5x128xf32> to vector<5x128xf32>
    %c35 = arith.constant 35 : index
    %c0_39 = arith.constant 0 : index
    %25 = vector.load %arg16[%c35, %c0_39] : memref<400x128xf32, #tpu.memory_space<vmem>>, vector<5x128xf32>
    tpu.vector_store %arg16[%c35, %c0_39], %24 {strides = array<i32>} : memref<400x128xf32, #tpu.memory_space<vmem>>, vector<5x128xf32>,
    %c1_40 = arith.constant 1 : index
    %c3_41 = arith.constant 3 : index
    %c0_42 = arith.constant 0 : index
    %c0_43 = arith.constant 0 : index
    %26 = vector.load %arg15[%c1_40, %c3_41, %c0_42, %c0_43] : memref<16x5x5x128xf32, #tpu.memory_space<vmem>>, vector<1x1x5x128xf32>
    %27 = vector.shape_cast %26 : vector<1x1x5x128xf32> to vector<5x128xf32>
    %c40 = arith.constant 40 : index
    %c0_44 = arith.constant 0 : index
    %28 = vector.load %arg16[%c40, %c0_44] : memref<400x128xf32, #tpu.memory_space<vmem>>, vector<5x128xf32>
    tpu.vector_store %arg16[%c40, %c0_44], %27 {strides = array<i32>} : memref<400x128xf32, #tpu.memory_space<vmem>>, vector<5x128xf32>,
    %c1_45 = arith.constant 1 : index
    %c4_46 = arith.constant 4 : index
    %c0_47 = arith.constant 0 : index
    %c0_48 = arith.constant 0 : index
    %29 = vector.load %arg15[%c1_45, %c4_46, %c0_47, %c0_48] : memref<16x5x5x128xf32, #tpu.memory_space<vmem>>, vector<1x1x5x128xf32>
    %30 = vector.shape_cast %29 : vector<1x1x5x128xf32> to vector<5x128xf32>
    %c45 = arith.constant 45 : index
    %c0_49 = arith.constant 0 : index
    %31 = vector.load %arg16[%c45, %c0_49] : memref<400x128xf32, #tpu.memory_space<vmem>>, vector<5x128xf32>
    tpu.vector_store %arg16[%c45, %c0_49], %30 {strides = array<i32>} : memref<400x128xf32, #tpu.memory_space<vmem>>, vector<5x128xf32>,
    %c2_50 = arith.constant 2 : index
    %c0_51 = arith.constant 0 : index
    %c0_52 = arith.constant 0 : index
    %c0_53 = arith.constant 0 : index
    %32 = vector.load %arg15[%c2_50, %c0_51, %c0_52, %c0_53] : memref<16x5x5x128xf32, #tpu.memory_space<vmem>>, vector<1x1x5x128xf32>
    %33 = vector.shape_cast %32 : vector<1x1x5x128xf32> to vector<5x128xf32>
    %c50 = arith.constant 50 : index
    %c0_54 = arith.constant 0 : index
    %34 = vector.load %arg16[%c50, %c0_54] : memref<400x128xf32, #tpu.memory_space<vmem>>, vector<5x128xf32>
    tpu.vector_store %arg16[%c50, %c0_54], %33 {strides = array<i32>} : memref<400x128xf32, #tpu.memory_space<vmem>>, vector<5x128xf32>,
    %c2_55 = arith.constant 2 : index
    %c1_56 = arith.constant 1 : index
    %c0_57 = arith.constant 0 : index
    %c0_58 = arith.constant 0 : index
    %35 = vector.load %arg15[%c2_55, %c1_56, %c0_57, %c0_58] : memref<16x5x5x128xf32, #tpu.memory_space<vmem>>, vector<1x1x5x128xf32>
    %36 = vector.shape_cast %35 : vector<1x1x5x128xf32> to vector<5x128xf32>
    %c55 = arith.constant 55 : index
    %c0_59 = arith.constant 0 : index
    %37 = vector.load %arg16[%c55, %c0_59] : memref<400x128xf32, #tpu.memory_space<vmem>>, vector<5x128xf32>
    tpu.vector_store %arg16[%c55, %c0_59], %36 {strides = array<i32>} : memref<400x128xf32, #tpu.memory_space<vmem>>, vector<5x128xf32>,
    %c2_60 = arith.constant 2 : index
    %c2_61 = arith.constant 2 : index
    %c0_62 = arith.constant 0 : index
    %c0_63 = arith.constant 0 : index
    %38 = vector.load %arg15[%c2_60, %c2_61, %c0_62, %c0_63] : memref<16x5x5x128xf32, #tpu.memory_space<vmem>>, vector<1x1x5x128xf32>
    %39 = vector.shape_cast %38 : vector<1x1x5x128xf32> to vector<5x128xf32>
    %c60 = arith.constant 60 : index
    %c0_64 = arith.constant 0 : index
    %40 = vector.load %arg16[%c60, %c0_64] : memref<400x128xf32, #tpu.memory_space<vmem>>, vector<5x128xf32>
    tpu.vector_store %arg16[%c60, %c0_64], %39 {strides = array<i32>} : memref<400x128xf32, #tpu.memory_space<vmem>>, vector<5x128xf32>,
    %c2_65 = arith.constant 2 : index
    %c3_66 = arith.constant 3 : index
    %c0_67 = arith.constant 0 : index
    %c0_68 = arith.constant 0 : index
    %41 = vector.load %arg15[%c2_65, %c3_66, %c0_67, %c0_68] : memref<16x5x5x128xf32, #tpu.memory_space<vmem>>, vector<1x1x5x128xf32>
    %42 = vector.shape_cast %41 : vector<1x1x5x128xf32> to vector<5x128xf32>
    %c65 = arith.constant 65 : index
    %c0_69 = arith.constant 0 : index
    %43 = vector.load %arg16[%c65, %c0_69] : memref<400x128xf32, #tpu.memory_space<vmem>>, vector<5x128xf32>
    tpu.vector_store %arg16[%c65, %c0_69], %42 {strides = array<i32>} : memref<400x128xf32, #tpu.memory_space<vmem>>, vector<5x128xf32>,
    %c2_70 = arith.constant 2 : index
    %c4_71 = arith.constant 4 : index
    %c0_72 = arith.constant 0 : index
    %c0_73 = arith.constant 0 : index
    %44 = vector.load %arg15[%c2_70, %c4_71, %c0_72, %c0_73] : memref<16x5x5x128xf32, #tpu.memory_space<vmem>>, vector<1x1x5x128xf32>
    %45 = vector.shape_cast %44 : vector<1x1x5x128xf32> to vector<5x128xf32>
    %c70 = arith.constant 70 : index
    %c0_74 = arith.constant 0 : index
    %46 = vector.load %arg16[%c70, %c0_74] : memref<400x128xf32, #tpu.memory_space<vmem>>, vector<5x128xf32>
    tpu.vector_store %arg16[%c70, %c0_74], %45 {strides = array<i32>} : memref<400x128xf32, #tpu.memory_space<vmem>>, vector<5x128xf32>,
    %c3_75 = arith.constant 3 : index
    %c0_76 = arith.constant 0 : index
    %c0_77 = arith.constant 0 : index
    %c0_78 = arith.constant 0 : index
    %47 = vector.load %arg15[%c3_75, %c0_76, %c0_77, %c0_78] : memref<16x5x5x128xf32, #tpu.memory_space<vmem>>, vector<1x1x5x128xf32>
    %48 = vector.shape_cast %47 : vector<1x1x5x128xf32> to vector<5x128xf32>
    %c75 = arith.constant 75 : index
    %c0_79 = arith.constant 0 : index
    %49 = vector.load %arg16[%c75, %c0_79] : memref<400x128xf32, #tpu.memory_space<vmem>>, vector<5x128xf32>
    tpu.vector_store %arg16[%c75, %c0_79], %48 {strides = array<i32>} : memref<400x128xf32, #tpu.memory_space<vmem>>, vector<5x128xf32>,
    %c3_80 = arith.constant 3 : index
    %c1_81 = arith.constant 1 : index
    %c0_82 = arith.constant 0 : index
    %c0_83 = arith.constant 0 : index
    %50 = vector.load %arg15[%c3_80, %c1_81, %c0_82, %c0_83] : memref<16x5x5x128xf32, #tpu.memory_space<vmem>>, vector<1x1x5x128xf32>
    %51 = vector.shape_cast %50 : vector<1x1x5x128xf32> to vector<5x128xf32>
    %c80 = arith.constant 80 : index
    %c0_84 = arith.constant 0 : index
    %52 = vector.load %arg16[%c80, %c0_84] : memref<400x128xf32, #tpu.memory_space<vmem>>, vector<5x128xf32>
    tpu.vector_store %arg16[%c80, %c0_84], %51 {strides = array<i32>} : memref<400x128xf32, #tpu.memory_space<vmem>>, vector<5x128xf32>,
    %c3_85 = arith.constant 3 : index
    %c2_86 = arith.constant 2 : index
    %c0_87 = arith.constant 0 : index
    %c0_88 = arith.constant 0 : index
    %53 = vector.load %arg15[%c3_85, %c2_86, %c0_87, %c0_88] : memref<16x5x5x128xf32, #tpu.memory_space<vmem>>, vector<1x1x5x128xf32>
    %54 = vector.shape_cast %53 : vector<1x1x5x128xf32> to vector<5x128xf32>
    %c85 = arith.constant 85 : index
    %c0_89 = arith.constant 0 : index
    %55 = vector.load %arg16[%c85, %c0_89] : memref<400x128xf32, #tpu.memory_space<vmem>>, vector<5x128xf32>
    tpu.vector_store %arg16[%c85, %c0_89], %54 {strides = array<i32>} : memref<400x128xf32, #tpu.memory_space<vmem>>, vector<5x128xf32>,
    %c3_90 = arith.constant 3 : index
    %c3_91 = arith.constant 3 : index
    %c0_92 = arith.constant 0 : index
    %c0_93 = arith.constant 0 : index
    %56 = vector.load %arg15[%c3_90, %c3_91, %c0_92, %c0_93] : memref<16x5x5x128xf32, #tpu.memory_space<vmem>>, vector<1x1x5x128xf32>
    %57 = vector.shape_cast %56 : vector<1x1x5x128xf32> to vector<5x128xf32>
    %c90 = arith.constant 90 : index
    %c0_94 = arith.constant 0 : index
    %58 = vector.load %arg16[%c90, %c0_94] : memref<400x128xf32, #tpu.memory_space<vmem>>, vector<5x128xf32>
    tpu.vector_store %arg16[%c90, %c0_94], %57 {strides = array<i32>} : memref<400x128xf32, #tpu.memory_space<vmem>>, vector<5x128xf32>,
    %c3_95 = arith.constant 3 : index
    %c4_96 = arith.constant 4 : index
    %c0_97 = arith.constant 0 : index
    %c0_98 = arith.constant 0 : index
    %59 = vector.load %arg15[%c3_95, %c4_96, %c0_97, %c0_98] : memref<16x5x5x128xf32, #tpu.memory_space<vmem>>, vector<1x1x5x128xf32>
    %60 = vector.shape_cast %59 : vector<1x1x5x128xf32> to vector<5x128xf32>
    %c95 = arith.constant 95 : index
    %c0_99 = arith.constant 0 : index
    %61 = vector.load %arg16[%c95, %c0_99] : memref<400x128xf32, #tpu.memory_space<vmem>>, vector<5x128xf32>
    tpu.vector_store %arg16[%c95, %c0_99], %60 {strides = array<i32>} : memref<400x128xf32, #tpu.memory_space<vmem>>, vector<5x128xf32>,
    %c4_100 = arith.constant 4 : index
    %c0_101 = arith.constant 0 : index
    %c0_102 = arith.constant 0 : index
    %c0_103 = arith.constant 0 : index
    %62 = vector.load %arg15[%c4_100, %c0_101, %c0_102, %c0_103] : memref<16x5x5x128xf32, #tpu.memory_space<vmem>>, vector<1x1x5x128xf32>
    %63 = vector.shape_cast %62 : vector<1x1x5x128xf32> to vector<5x128xf32>
    %c100 = arith.constant 100 : index
    %c0_104 = arith.constant 0 : index
    %64 = vector.load %arg16[%c100, %c0_104] : memref<400x128xf32, #tpu.memory_space<vmem>>, vector<5x128xf32>
    tpu.vector_store %arg16[%c100, %c0_104], %63 {strides = array<i32>} : memref<400x128xf32, #tpu.memory_space<vmem>>, vector<5x128xf32>,
    %c4_105 = arith.constant 4 : index
    %c1_106 = arith.constant 1 : index
    %c0_107 = arith.constant 0 : index
    %c0_108 = arith.constant 0 : index
    %65 = vector.load %arg15[%c4_105, %c1_106, %c0_107, %c0_108] : memref<16x5x5x128xf32, #tpu.memory_space<vmem>>, vector<1x1x5x128xf32>
    %66 = vector.shape_cast %65 : vector<1x1x5x128xf32> to vector<5x128xf32>
    %c105 = arith.constant 105 : index
    %c0_109 = arith.constant 0 : index
    %67 = vector.load %arg16[%c105, %c0_109] : memref<400x128xf32, #tpu.memory_space<vmem>>, vector<5x128xf32>
    tpu.vector_store %arg16[%c105, %c0_109], %66 {strides = array<i32>} : memref<400x128xf32, #tpu.memory_space<vmem>>, vector<5x128xf32>,
    %c4_110 = arith.constant 4 : index
    %c2_111 = arith.constant 2 : index
    %c0_112 = arith.constant 0 : index
    %c0_113 = arith.constant 0 : index
    %68 = vector.load %arg15[%c4_110, %c2_111, %c0_112, %c0_113] : memref<16x5x5x128xf32, #tpu.memory_space<vmem>>, vector<1x1x5x128xf32>
    %69 = vector.shape_cast %68 : vector<1x1x5x128xf32> to vector<5x128xf32>
    %c110 = arith.constant 110 : index
    %c0_114 = arith.constant 0 : index
    %70 = vector.load %arg16[%c110, %c0_114] : memref<400x128xf32, #tpu.memory_space<vmem>>, vector<5x128xf32>
    tpu.vector_store %arg16[%c110, %c0_114], %69 {strides = array<i32>} : memref<400x128xf32, #tpu.memory_space<vmem>>, vector<5x128xf32>,
    %c4_115 = arith.constant 4 : index
    %c3_116 = arith.constant 3 : index
    %c0_117 = arith.constant 0 : index
    %c0_118 = arith.constant 0 : index
    %71 = vector.load %arg15[%c4_115, %c3_116, %c0_117, %c0_118] : memref<16x5x5x128xf32, #tpu.memory_space<vmem>>, vector<1x1x5x128xf32>
    %72 = vector.shape_cast %71 : vector<1x1x5x128xf32> to vector<5x128xf32>
    %c115 = arith.constant 115 : index
    %c0_119 = arith.constant 0 : index
    %73 = vector.load %arg16[%c115, %c0_119] : memref<400x128xf32, #tpu.memory_space<vmem>>, vector<5x128xf32>
    tpu.vector_store %arg16[%c115, %c0_119], %72 {strides = array<i32>} : memref<400x128xf32, #tpu.memory_space<vmem>>, vector<5x128xf32>,
    %c4_120 = arith.constant 4 : index
    %c4_121 = arith.constant 4 : index
    %c0_122 = arith.constant 0 : index
    %c0_123 = arith.constant 0 : index
    %74 = vector.load %arg15[%c4_120, %c4_121, %c0_122, %c0_123] : memref<16x5x5x128xf32, #tpu.memory_space<vmem>>, vector<1x1x5x128xf32>
    %75 = vector.shape_cast %74 : vector<1x1x5x128xf32> to vector<5x128xf32>
    %c120 = arith.constant 120 : index
    %c0_124 = arith.constant 0 : index
    %76 = vector.load %arg16[%c120, %c0_124] : memref<400x128xf32, #tpu.memory_space<vmem>>, vector<5x128xf32>
    tpu.vector_store %arg16[%c120, %c0_124], %75 {strides = array<i32>} : memref<400x128xf32, #tpu.memory_space<vmem>>, vector<5x128xf32>,
    %c5_125 = arith.constant 5 : index
    %c0_126 = arith.constant 0 : index
    %c0_127 = arith.constant 0 : index
    %c0_128 = arith.constant 0 : index
    %77 = vector.load %arg15[%c5_125, %c0_126, %c0_127, %c0_128] : memref<16x5x5x128xf32, #tpu.memory_space<vmem>>, vector<1x1x5x128xf32>
    %78 = vector.shape_cast %77 : vector<1x1x5x128xf32> to vector<5x128xf32>
    %c125 = arith.constant 125 : index
    %c0_129 = arith.constant 0 : index
    %79 = vector.load %arg16[%c125, %c0_129] : memref<400x128xf32, #tpu.memory_space<vmem>>, vector<5x128xf32>
    tpu.vector_store %arg16[%c125, %c0_129], %78 {strides = array<i32>} : memref<400x128xf32, #tpu.memory_space<vmem>>, vector<5x128xf32>,
    %c5_130 = arith.constant 5 : index
    %c1_131 = arith.constant 1 : index
    %c0_132 = arith.constant 0 : index
    %c0_133 = arith.constant 0 : index
    %80 = vector.load %arg15[%c5_130, %c1_131, %c0_132, %c0_133] : memref<16x5x5x128xf32, #tpu.memory_space<vmem>>, vector<1x1x5x128xf32>
    %81 = vector.shape_cast %80 : vector<1x1x5x128xf32> to vector<5x128xf32>
    %c130 = arith.constant 130 : index
    %c0_134 = arith.constant 0 : index
    %82 = vector.load %arg16[%c130, %c0_134] : memref<400x128xf32, #tpu.memory_space<vmem>>, vector<5x128xf32>
    tpu.vector_store %arg16[%c130, %c0_134], %81 {strides = array<i32>} : memref<400x128xf32, #tpu.memory_space<vmem>>, vector<5x128xf32>,
    %c5_135 = arith.constant 5 : index
    %c2_136 = arith.constant 2 : index
    %c0_137 = arith.constant 0 : index
    %c0_138 = arith.constant 0 : index
    %83 = vector.load %arg15[%c5_135, %c2_136, %c0_137, %c0_138] : memref<16x5x5x128xf32, #tpu.memory_space<vmem>>, vector<1x1x5x128xf32>
    %84 = vector.shape_cast %83 : vector<1x1x5x128xf32> to vector<5x128xf32>
    %c135 = arith.constant 135 : index
    %c0_139 = arith.constant 0 : index
    %85 = vector.load %arg16[%c135, %c0_139] : memref<400x128xf32, #tpu.memory_space<vmem>>, vector<5x128xf32>
    tpu.vector_store %arg16[%c135, %c0_139], %84 {strides = array<i32>} : memref<400x128xf32, #tpu.memory_space<vmem>>, vector<5x128xf32>,
    %c5_140 = arith.constant 5 : index
    %c3_141 = arith.constant 3 : index
    %c0_142 = arith.constant 0 : index
    %c0_143 = arith.constant 0 : index
    %86 = vector.load %arg15[%c5_140, %c3_141, %c0_142, %c0_143] : memref<16x5x5x128xf32, #tpu.memory_space<vmem>>, vector<1x1x5x128xf32>
    %87 = vector.shape_cast %86 : vector<1x1x5x128xf32> to vector<5x128xf32>
    %c140 = arith.constant 140 : index
    %c0_144 = arith.constant 0 : index
    %88 = vector.load %arg16[%c140, %c0_144] : memref<400x128xf32, #tpu.memory_space<vmem>>, vector<5x128xf32>
    tpu.vector_store %arg16[%c140, %c0_144], %87 {strides = array<i32>} : memref<400x128xf32, #tpu.memory_space<vmem>>, vector<5x128xf32>,
    %c5_145 = arith.constant 5 : index
    %c4_146 = arith.constant 4 : index
    %c0_147 = arith.constant 0 : index
    %c0_148 = arith.constant 0 : index
    %89 = vector.load %arg15[%c5_145, %c4_146, %c0_147, %c0_148] : memref<16x5x5x128xf32, #tpu.memory_space<vmem>>, vector<1x1x5x128xf32>
    %90 = vector.shape_cast %89 : vector<1x1x5x128xf32> to vector<5x128xf32>
    %c145 = arith.constant 145 : index
    %c0_149 = arith.constant 0 : index
    %91 = vector.load %arg16[%c145, %c0_149] : memref<400x128xf32, #tpu.memory_space<vmem>>, vector<5x128xf32>
    tpu.vector_store %arg16[%c145, %c0_149], %90 {strides = array<i32>} : memref<400x128xf32, #tpu.memory_space<vmem>>, vector<5x128xf32>,
    %c6 = arith.constant 6 : index
    %c0_150 = arith.constant 0 : index
    %c0_151 = arith.constant 0 : index
    %c0_152 = arith.constant 0 : index
    %92 = vector.load %arg15[%c6, %c0_150, %c0_151, %c0_152] : memref<16x5x5x128xf32, #tpu.memory_space<vmem>>, vector<1x1x5x128xf32>
    %93 = vector.shape_cast %92 : vector<1x1x5x128xf32> to vector<5x128xf32>
    %c150 = arith.constant 150 : index
    %c0_153 = arith.constant 0 : index
    %94 = vector.load %arg16[%c150, %c0_153] : memref<400x128xf32, #tpu.memory_space<vmem>>, vector<5x128xf32>
    tpu.vector_store %arg16[%c150, %c0_153], %93 {strides = array<i32>} : memref<400x128xf32, #tpu.memory_space<vmem>>, vector<5x128xf32>,
    %c6_154 = arith.constant 6 : index
    %c1_155 = arith.constant 1 : index
    %c0_156 = arith.constant 0 : index
    %c0_157 = arith.constant 0 : index
    %95 = vector.load %arg15[%c6_154, %c1_155, %c0_156, %c0_157] : memref<16x5x5x128xf32, #tpu.memory_space<vmem>>, vector<1x1x5x128xf32>
    %96 = vector.shape_cast %95 : vector<1x1x5x128xf32> to vector<5x128xf32>
    %c155 = arith.constant 155 : index
    %c0_158 = arith.constant 0 : index
    %97 = vector.load %arg16[%c155, %c0_158] : memref<400x128xf32, #tpu.memory_space<vmem>>, vector<5x128xf32>
    tpu.vector_store %arg16[%c155, %c0_158], %96 {strides = array<i32>} : memref<400x128xf32, #tpu.memory_space<vmem>>, vector<5x128xf32>,
    %c6_159 = arith.constant 6 : index
    %c2_160 = arith.constant 2 : index
    %c0_161 = arith.constant 0 : index
    %c0_162 = arith.constant 0 : index
    %98 = vector.load %arg15[%c6_159, %c2_160, %c0_161, %c0_162] : memref<16x5x5x128xf32, #tpu.memory_space<vmem>>, vector<1x1x5x128xf32>
    %99 = vector.shape_cast %98 : vector<1x1x5x128xf32> to vector<5x128xf32>
    %c160 = arith.constant 160 : index
    %c0_163 = arith.constant 0 : index
    %100 = vector.load %arg16[%c160, %c0_163] : memref<400x128xf32, #tpu.memory_space<vmem>>, vector<5x128xf32>
    tpu.vector_store %arg16[%c160, %c0_163], %99 {strides = array<i32>} : memref<400x128xf32, #tpu.memory_space<vmem>>, vector<5x128xf32>,
    %c6_164 = arith.constant 6 : index
    %c3_165 = arith.constant 3 : index
    %c0_166 = arith.constant 0 : index
    %c0_167 = arith.constant 0 : index
    %101 = vector.load %arg15[%c6_164, %c3_165, %c0_166, %c0_167] : memref<16x5x5x128xf32, #tpu.memory_space<vmem>>, vector<1x1x5x128xf32>
    %102 = vector.shape_cast %101 : vector<1x1x5x128xf32> to vector<5x128xf32>
    %c165 = arith.constant 165 : index
    %c0_168 = arith.constant 0 : index
    %103 = vector.load %arg16[%c165, %c0_168] : memref<400x128xf32, #tpu.memory_space<vmem>>, vector<5x128xf32>
    tpu.vector_store %arg16[%c165, %c0_168], %102 {strides = array<i32>} : memref<400x128xf32, #tpu.memory_space<vmem>>, vector<5x128xf32>,
    %c6_169 = arith.constant 6 : index
    %c4_170 = arith.constant 4 : index
    %c0_171 = arith.constant 0 : index
    %c0_172 = arith.constant 0 : index
    %104 = vector.load %arg15[%c6_169, %c4_170, %c0_171, %c0_172] : memref<16x5x5x128xf32, #tpu.memory_space<vmem>>, vector<1x1x5x128xf32>
    %105 = vector.shape_cast %104 : vector<1x1x5x128xf32> to vector<5x128xf32>
    %c170 = arith.constant 170 : index
    %c0_173 = arith.constant 0 : index
    %106 = vector.load %arg16[%c170, %c0_173] : memref<400x128xf32, #tpu.memory_space<vmem>>, vector<5x128xf32>
    tpu.vector_store %arg16[%c170, %c0_173], %105 {strides = array<i32>} : memref<400x128xf32, #tpu.memory_space<vmem>>, vector<5x128xf32>,
    %c7 = arith.constant 7 : index
    %c0_174 = arith.constant 0 : index
    %c0_175 = arith.constant 0 : index
    %c0_176 = arith.constant 0 : index
    %107 = vector.load %arg15[%c7, %c0_174, %c0_175, %c0_176] : memref<16x5x5x128xf32, #tpu.memory_space<vmem>>, vector<1x1x5x128xf32>
    %108 = vector.shape_cast %107 : vector<1x1x5x128xf32> to vector<5x128xf32>
    %c175 = arith.constant 175 : index
    %c0_177 = arith.constant 0 : index
    %109 = vector.load %arg16[%c175, %c0_177] : memref<400x128xf32, #tpu.memory_space<vmem>>, vector<5x128xf32>
    tpu.vector_store %arg16[%c175, %c0_177], %108 {strides = array<i32>} : memref<400x128xf32, #tpu.memory_space<vmem>>, vector<5x128xf32>,
    %c7_178 = arith.constant 7 : index
    %c1_179 = arith.constant 1 : index
    %c0_180 = arith.constant 0 : index
    %c0_181 = arith.constant 0 : index
    %110 = vector.load %arg15[%c7_178, %c1_179, %c0_180, %c0_181] : memref<16x5x5x128xf32, #tpu.memory_space<vmem>>, vector<1x1x5x128xf32>
    %111 = vector.shape_cast %110 : vector<1x1x5x128xf32> to vector<5x128xf32>
    %c180 = arith.constant 180 : index
    %c0_182 = arith.constant 0 : index
    %112 = vector.load %arg16[%c180, %c0_182] : memref<400x128xf32, #tpu.memory_space<vmem>>, vector<5x128xf32>
    tpu.vector_store %arg16[%c180, %c0_182], %111 {strides = array<i32>} : memref<400x128xf32, #tpu.memory_space<vmem>>, vector<5x128xf32>,
    %c7_183 = arith.constant 7 : index
    %c2_184 = arith.constant 2 : index
    %c0_185 = arith.constant 0 : index
    %c0_186 = arith.constant 0 : index
    %113 = vector.load %arg15[%c7_183, %c2_184, %c0_185, %c0_186] : memref<16x5x5x128xf32, #tpu.memory_space<vmem>>, vector<1x1x5x128xf32>
    %114 = vector.shape_cast %113 : vector<1x1x5x128xf32> to vector<5x128xf32>
    %c185 = arith.constant 185 : index
    %c0_187 = arith.constant 0 : index
    %115 = vector.load %arg16[%c185, %c0_187] : memref<400x128xf32, #tpu.memory_space<vmem>>, vector<5x128xf32>
    tpu.vector_store %arg16[%c185, %c0_187], %114 {strides = array<i32>} : memref<400x128xf32, #tpu.memory_space<vmem>>, vector<5x128xf32>,
    %c7_188 = arith.constant 7 : index
    %c3_189 = arith.constant 3 : index
    %c0_190 = arith.constant 0 : index
    %c0_191 = arith.constant 0 : index
    %116 = vector.load %arg15[%c7_188, %c3_189, %c0_190, %c0_191] : memref<16x5x5x128xf32, #tpu.memory_space<vmem>>, vector<1x1x5x128xf32>
    %117 = vector.shape_cast %116 : vector<1x1x5x128xf32> to vector<5x128xf32>
    %c190 = arith.constant 190 : index
    %c0_192 = arith.constant 0 : index
    %118 = vector.load %arg16[%c190, %c0_192] : memref<400x128xf32, #tpu.memory_space<vmem>>, vector<5x128xf32>
    tpu.vector_store %arg16[%c190, %c0_192], %117 {strides = array<i32>} : memref<400x128xf32, #tpu.memory_space<vmem>>, vector<5x128xf32>,
    %c7_193 = arith.constant 7 : index
    %c4_194 = arith.constant 4 : index
    %c0_195 = arith.constant 0 : index
    %c0_196 = arith.constant 0 : index
    %119 = vector.load %arg15[%c7_193, %c4_194, %c0_195, %c0_196] : memref<16x5x5x128xf32, #tpu.memory_space<vmem>>, vector<1x1x5x128xf32>
    %120 = vector.shape_cast %119 : vector<1x1x5x128xf32> to vector<5x128xf32>
    %c195 = arith.constant 195 : index
    %c0_197 = arith.constant 0 : index
    %121 = vector.load %arg16[%c195, %c0_197] : memref<400x128xf32, #tpu.memory_space<vmem>>, vector<5x128xf32>
    tpu.vector_store %arg16[%c195, %c0_197], %120 {strides = array<i32>} : memref<400x128xf32, #tpu.memory_space<vmem>>, vector<5x128xf32>,
    %c8 = arith.constant 8 : index
    %c0_198 = arith.constant 0 : index
    %c0_199 = arith.constant 0 : index
    %c0_200 = arith.constant 0 : index
    %122 = vector.load %arg15[%c8, %c0_198, %c0_199, %c0_200] : memref<16x5x5x128xf32, #tpu.memory_space<vmem>>, vector<1x1x5x128xf32>
    %123 = vector.shape_cast %122 : vector<1x1x5x128xf32> to vector<5x128xf32>
    %c200 = arith.constant 200 : index
    %c0_201 = arith.constant 0 : index
    %124 = vector.load %arg16[%c200, %c0_201] : memref<400x128xf32, #tpu.memory_space<vmem>>, vector<5x128xf32>
    tpu.vector_store %arg16[%c200, %c0_201], %123 {strides = array<i32>} : memref<400x128xf32, #tpu.memory_space<vmem>>, vector<5x128xf32>,
    %c8_202 = arith.constant 8 : index
    %c1_203 = arith.constant 1 : index
    %c0_204 = arith.constant 0 : index
    %c0_205 = arith.constant 0 : index
    %125 = vector.load %arg15[%c8_202, %c1_203, %c0_204, %c0_205] : memref<16x5x5x128xf32, #tpu.memory_space<vmem>>, vector<1x1x5x128xf32>
    %126 = vector.shape_cast %125 : vector<1x1x5x128xf32> to vector<5x128xf32>
    %c205 = arith.constant 205 : index
    %c0_206 = arith.constant 0 : index
    %127 = vector.load %arg16[%c205, %c0_206] : memref<400x128xf32, #tpu.memory_space<vmem>>, vector<5x128xf32>
    tpu.vector_store %arg16[%c205, %c0_206], %126 {strides = array<i32>} : memref<400x128xf32, #tpu.memory_space<vmem>>, vector<5x128xf32>,
    %c8_207 = arith.constant 8 : index
    %c2_208 = arith.constant 2 : index
    %c0_209 = arith.constant 0 : index
    %c0_210 = arith.constant 0 : index
    %128 = vector.load %arg15[%c8_207, %c2_208, %c0_209, %c0_210] : memref<16x5x5x128xf32, #tpu.memory_space<vmem>>, vector<1x1x5x128xf32>
    %129 = vector.shape_cast %128 : vector<1x1x5x128xf32> to vector<5x128xf32>
    %c210 = arith.constant 210 : index
    %c0_211 = arith.constant 0 : index
    %130 = vector.load %arg16[%c210, %c0_211] : memref<400x128xf32, #tpu.memory_space<vmem>>, vector<5x128xf32>
    tpu.vector_store %arg16[%c210, %c0_211], %129 {strides = array<i32>} : memref<400x128xf32, #tpu.memory_space<vmem>>, vector<5x128xf32>,
    %c8_212 = arith.constant 8 : index
    %c3_213 = arith.constant 3 : index
    %c0_214 = arith.constant 0 : index
    %c0_215 = arith.constant 0 : index
    %131 = vector.load %arg15[%c8_212, %c3_213, %c0_214, %c0_215] : memref<16x5x5x128xf32, #tpu.memory_space<vmem>>, vector<1x1x5x128xf32>
    %132 = vector.shape_cast %131 : vector<1x1x5x128xf32> to vector<5x128xf32>
    %c215 = arith.constant 215 : index
    %c0_216 = arith.constant 0 : index
    %133 = vector.load %arg16[%c215, %c0_216] : memref<400x128xf32, #tpu.memory_space<vmem>>, vector<5x128xf32>
    tpu.vector_store %arg16[%c215, %c0_216], %132 {strides = array<i32>} : memref<400x128xf32, #tpu.memory_space<vmem>>, vector<5x128xf32>,
    %c8_217 = arith.constant 8 : index
    %c4_218 = arith.constant 4 : index
    %c0_219 = arith.constant 0 : index
    %c0_220 = arith.constant 0 : index
    %134 = vector.load %arg15[%c8_217, %c4_218, %c0_219, %c0_220] : memref<16x5x5x128xf32, #tpu.memory_space<vmem>>, vector<1x1x5x128xf32>
    %135 = vector.shape_cast %134 : vector<1x1x5x128xf32> to vector<5x128xf32>
    %c220 = arith.constant 220 : index
    %c0_221 = arith.constant 0 : index
    %136 = vector.load %arg16[%c220, %c0_221] : memref<400x128xf32, #tpu.memory_space<vmem>>, vector<5x128xf32>
    tpu.vector_store %arg16[%c220, %c0_221], %135 {strides = array<i32>} : memref<400x128xf32, #tpu.memory_space<vmem>>, vector<5x128xf32>,
    %c9 = arith.constant 9 : index
    %c0_222 = arith.constant 0 : index
    %c0_223 = arith.constant 0 : index
    %c0_224 = arith.constant 0 : index
    %137 = vector.load %arg15[%c9, %c0_222, %c0_223, %c0_224] : memref<16x5x5x128xf32, #tpu.memory_space<vmem>>, vector<1x1x5x128xf32>
    %138 = vector.shape_cast %137 : vector<1x1x5x128xf32> to vector<5x128xf32>
    %c225 = arith.constant 225 : index
    %c0_225 = arith.constant 0 : index
    %139 = vector.load %arg16[%c225, %c0_225] : memref<400x128xf32, #tpu.memory_space<vmem>>, vector<5x128xf32>
    tpu.vector_store %arg16[%c225, %c0_225], %138 {strides = array<i32>} : memref<400x128xf32, #tpu.memory_space<vmem>>, vector<5x128xf32>,
    %c9_226 = arith.constant 9 : index
    %c1_227 = arith.constant 1 : index
    %c0_228 = arith.constant 0 : index
    %c0_229 = arith.constant 0 : index
    %140 = vector.load %arg15[%c9_226, %c1_227, %c0_228, %c0_229] : memref<16x5x5x128xf32, #tpu.memory_space<vmem>>, vector<1x1x5x128xf32>
    %141 = vector.shape_cast %140 : vector<1x1x5x128xf32> to vector<5x128xf32>
    %c230 = arith.constant 230 : index
    %c0_230 = arith.constant 0 : index
    %142 = vector.load %arg16[%c230, %c0_230] : memref<400x128xf32, #tpu.memory_space<vmem>>, vector<5x128xf32>
    tpu.vector_store %arg16[%c230, %c0_230], %141 {strides = array<i32>} : memref<400x128xf32, #tpu.memory_space<vmem>>, vector<5x128xf32>,
    %c9_231 = arith.constant 9 : index
    %c2_232 = arith.constant 2 : index
    %c0_233 = arith.constant 0 : index
    %c0_234 = arith.constant 0 : index
    %143 = vector.load %arg15[%c9_231, %c2_232, %c0_233, %c0_234] : memref<16x5x5x128xf32, #tpu.memory_space<vmem>>, vector<1x1x5x128xf32>
    %144 = vector.shape_cast %143 : vector<1x1x5x128xf32> to vector<5x128xf32>
    %c235 = arith.constant 235 : index
    %c0_235 = arith.constant 0 : index
    %145 = vector.load %arg16[%c235, %c0_235] : memref<400x128xf32, #tpu.memory_space<vmem>>, vector<5x128xf32>
    tpu.vector_store %arg16[%c235, %c0_235], %144 {strides = array<i32>} : memref<400x128xf32, #tpu.memory_space<vmem>>, vector<5x128xf32>,
    %c9_236 = arith.constant 9 : index
    %c3_237 = arith.constant 3 : index
    %c0_238 = arith.constant 0 : index
    %c0_239 = arith.constant 0 : index
    %146 = vector.load %arg15[%c9_236, %c3_237, %c0_238, %c0_239] : memref<16x5x5x128xf32, #tpu.memory_space<vmem>>, vector<1x1x5x128xf32>
    %147 = vector.shape_cast %146 : vector<1x1x5x128xf32> to vector<5x128xf32>
    %c240 = arith.constant 240 : index
    %c0_240 = arith.constant 0 : index
    %148 = vector.load %arg16[%c240, %c0_240] : memref<400x128xf32, #tpu.memory_space<vmem>>, vector<5x128xf32>
    tpu.vector_store %arg16[%c240, %c0_240], %147 {strides = array<i32>} : memref<400x128xf32, #tpu.memory_space<vmem>>, vector<5x128xf32>,
    %c9_241 = arith.constant 9 : index
    %c4_242 = arith.constant 4 : index
    %c0_243 = arith.constant 0 : index
    %c0_244 = arith.constant 0 : index
    %149 = vector.load %arg15[%c9_241, %c4_242, %c0_243, %c0_244] : memref<16x5x5x128xf32, #tpu.memory_space<vmem>>, vector<1x1x5x128xf32>
    %150 = vector.shape_cast %149 : vector<1x1x5x128xf32> to vector<5x128xf32>
    %c245 = arith.constant 245 : index
    %c0_245 = arith.constant 0 : index
    %151 = vector.load %arg16[%c245, %c0_245] : memref<400x128xf32, #tpu.memory_space<vmem>>, vector<5x128xf32>
    tpu.vector_store %arg16[%c245, %c0_245], %150 {strides = array<i32>} : memref<400x128xf32, #tpu.memory_space<vmem>>, vector<5x128xf32>,
    %c10_246 = arith.constant 10 : index
    %c0_247 = arith.constant 0 : index
    %c0_248 = arith.constant 0 : index
    %c0_249 = arith.constant 0 : index
    %152 = vector.load %arg15[%c10_246, %c0_247, %c0_248, %c0_249] : memref<16x5x5x128xf32, #tpu.memory_space<vmem>>, vector<1x1x5x128xf32>
    %153 = vector.shape_cast %152 : vector<1x1x5x128xf32> to vector<5x128xf32>
    %c250 = arith.constant 250 : index
    %c0_250 = arith.constant 0 : index
    %154 = vector.load %arg16[%c250, %c0_250] : memref<400x128xf32, #tpu.memory_space<vmem>>, vector<5x128xf32>
    tpu.vector_store %arg16[%c250, %c0_250], %153 {strides = array<i32>} : memref<400x128xf32, #tpu.memory_space<vmem>>, vector<5x128xf32>,
    %c10_251 = arith.constant 10 : index
    %c1_252 = arith.constant 1 : index
    %c0_253 = arith.constant 0 : index
    %c0_254 = arith.constant 0 : index
    %155 = vector.load %arg15[%c10_251, %c1_252, %c0_253, %c0_254] : memref<16x5x5x128xf32, #tpu.memory_space<vmem>>, vector<1x1x5x128xf32>
    %156 = vector.shape_cast %155 : vector<1x1x5x128xf32> to vector<5x128xf32>
    %c255 = arith.constant 255 : index
    %c0_255 = arith.constant 0 : index
    %157 = vector.load %arg16[%c255, %c0_255] : memref<400x128xf32, #tpu.memory_space<vmem>>, vector<5x128xf32>
    tpu.vector_store %arg16[%c255, %c0_255], %156 {strides = array<i32>} : memref<400x128xf32, #tpu.memory_space<vmem>>, vector<5x128xf32>,
    %c10_256 = arith.constant 10 : index
    %c2_257 = arith.constant 2 : index
    %c0_258 = arith.constant 0 : index
    %c0_259 = arith.constant 0 : index
    %158 = vector.load %arg15[%c10_256, %c2_257, %c0_258, %c0_259] : memref<16x5x5x128xf32, #tpu.memory_space<vmem>>, vector<1x1x5x128xf32>
    %159 = vector.shape_cast %158 : vector<1x1x5x128xf32> to vector<5x128xf32>
    %c260 = arith.constant 260 : index
    %c0_260 = arith.constant 0 : index
    %160 = vector.load %arg16[%c260, %c0_260] : memref<400x128xf32, #tpu.memory_space<vmem>>, vector<5x128xf32>
    tpu.vector_store %arg16[%c260, %c0_260], %159 {strides = array<i32>} : memref<400x128xf32, #tpu.memory_space<vmem>>, vector<5x128xf32>,
    %c10_261 = arith.constant 10 : index
    %c3_262 = arith.constant 3 : index
    %c0_263 = arith.constant 0 : index
    %c0_264 = arith.constant 0 : index
    %161 = vector.load %arg15[%c10_261, %c3_262, %c0_263, %c0_264] : memref<16x5x5x128xf32, #tpu.memory_space<vmem>>, vector<1x1x5x128xf32>
    %162 = vector.shape_cast %161 : vector<1x1x5x128xf32> to vector<5x128xf32>
    %c265 = arith.constant 265 : index
    %c0_265 = arith.constant 0 : index
    %163 = vector.load %arg16[%c265, %c0_265] : memref<400x128xf32, #tpu.memory_space<vmem>>, vector<5x128xf32>
    tpu.vector_store %arg16[%c265, %c0_265], %162 {strides = array<i32>} : memref<400x128xf32, #tpu.memory_space<vmem>>, vector<5x128xf32>,
    %c10_266 = arith.constant 10 : index
    %c4_267 = arith.constant 4 : index
    %c0_268 = arith.constant 0 : index
    %c0_269 = arith.constant 0 : index
    %164 = vector.load %arg15[%c10_266, %c4_267, %c0_268, %c0_269] : memref<16x5x5x128xf32, #tpu.memory_space<vmem>>, vector<1x1x5x128xf32>
    %165 = vector.shape_cast %164 : vector<1x1x5x128xf32> to vector<5x128xf32>
    %c270 = arith.constant 270 : index
    %c0_270 = arith.constant 0 : index
    %166 = vector.load %arg16[%c270, %c0_270] : memref<400x128xf32, #tpu.memory_space<vmem>>, vector<5x128xf32>
    tpu.vector_store %arg16[%c270, %c0_270], %165 {strides = array<i32>} : memref<400x128xf32, #tpu.memory_space<vmem>>, vector<5x128xf32>,
    %c11 = arith.constant 11 : index
    %c0_271 = arith.constant 0 : index
    %c0_272 = arith.constant 0 : index
    %c0_273 = arith.constant 0 : index
    %167 = vector.load %arg15[%c11, %c0_271, %c0_272, %c0_273] : memref<16x5x5x128xf32, #tpu.memory_space<vmem>>, vector<1x1x5x128xf32>
    %168 = vector.shape_cast %167 : vector<1x1x5x128xf32> to vector<5x128xf32>
    %c275 = arith.constant 275 : index
    %c0_274 = arith.constant 0 : index
    %169 = vector.load %arg16[%c275, %c0_274] : memref<400x128xf32, #tpu.memory_space<vmem>>, vector<5x128xf32>
    tpu.vector_store %arg16[%c275, %c0_274], %168 {strides = array<i32>} : memref<400x128xf32, #tpu.memory_space<vmem>>, vector<5x128xf32>,
    %c11_275 = arith.constant 11 : index
    %c1_276 = arith.constant 1 : index
    %c0_277 = arith.constant 0 : index
    %c0_278 = arith.constant 0 : index
    %170 = vector.load %arg15[%c11_275, %c1_276, %c0_277, %c0_278] : memref<16x5x5x128xf32, #tpu.memory_space<vmem>>, vector<1x1x5x128xf32>
    %171 = vector.shape_cast %170 : vector<1x1x5x128xf32> to vector<5x128xf32>
    %c280 = arith.constant 280 : index
    %c0_279 = arith.constant 0 : index
    %172 = vector.load %arg16[%c280, %c0_279] : memref<400x128xf32, #tpu.memory_space<vmem>>, vector<5x128xf32>
    tpu.vector_store %arg16[%c280, %c0_279], %171 {strides = array<i32>} : memref<400x128xf32, #tpu.memory_space<vmem>>, vector<5x128xf32>,
    %c11_280 = arith.constant 11 : index
    %c2_281 = arith.constant 2 : index
    %c0_282 = arith.constant 0 : index
    %c0_283 = arith.constant 0 : index
    %173 = vector.load %arg15[%c11_280, %c2_281, %c0_282, %c0_283] : memref<16x5x5x128xf32, #tpu.memory_space<vmem>>, vector<1x1x5x128xf32>
    %174 = vector.shape_cast %173 : vector<1x1x5x128xf32> to vector<5x128xf32>
    %c285 = arith.constant 285 : index
    %c0_284 = arith.constant 0 : index
    %175 = vector.load %arg16[%c285, %c0_284] : memref<400x128xf32, #tpu.memory_space<vmem>>, vector<5x128xf32>
    tpu.vector_store %arg16[%c285, %c0_284], %174 {strides = array<i32>} : memref<400x128xf32, #tpu.memory_space<vmem>>, vector<5x128xf32>,
    %c11_285 = arith.constant 11 : index
    %c3_286 = arith.constant 3 : index
    %c0_287 = arith.constant 0 : index
    %c0_288 = arith.constant 0 : index
    %176 = vector.load %arg15[%c11_285, %c3_286, %c0_287, %c0_288] : memref<16x5x5x128xf32, #tpu.memory_space<vmem>>, vector<1x1x5x128xf32>
    %177 = vector.shape_cast %176 : vector<1x1x5x128xf32> to vector<5x128xf32>
    %c290 = arith.constant 290 : index
    %c0_289 = arith.constant 0 : index
    %178 = vector.load %arg16[%c290, %c0_289] : memref<400x128xf32, #tpu.memory_space<vmem>>, vector<5x128xf32>
    tpu.vector_store %arg16[%c290, %c0_289], %177 {strides = array<i32>} : memref<400x128xf32, #tpu.memory_space<vmem>>, vector<5x128xf32>,
    %c11_290 = arith.constant 11 : index
    %c4_291 = arith.constant 4 : index
    %c0_292 = arith.constant 0 : index
    %c0_293 = arith.constant 0 : index
    %179 = vector.load %arg15[%c11_290, %c4_291, %c0_292, %c0_293] : memref<16x5x5x128xf32, #tpu.memory_space<vmem>>, vector<1x1x5x128xf32>
    %180 = vector.shape_cast %179 : vector<1x1x5x128xf32> to vector<5x128xf32>
    %c295 = arith.constant 295 : index
    %c0_294 = arith.constant 0 : index
    %181 = vector.load %arg16[%c295, %c0_294] : memref<400x128xf32, #tpu.memory_space<vmem>>, vector<5x128xf32>
    tpu.vector_store %arg16[%c295, %c0_294], %180 {strides = array<i32>} : memref<400x128xf32, #tpu.memory_space<vmem>>, vector<5x128xf32>,
    %c12 = arith.constant 12 : index
    %c0_295 = arith.constant 0 : index
    %c0_296 = arith.constant 0 : index
    %c0_297 = arith.constant 0 : index
    %182 = vector.load %arg15[%c12, %c0_295, %c0_296, %c0_297] : memref<16x5x5x128xf32, #tpu.memory_space<vmem>>, vector<1x1x5x128xf32>
    %183 = vector.shape_cast %182 : vector<1x1x5x128xf32> to vector<5x128xf32>
    %c300 = arith.constant 300 : index
    %c0_298 = arith.constant 0 : index
    %184 = vector.load %arg16[%c300, %c0_298] : memref<400x128xf32, #tpu.memory_space<vmem>>, vector<5x128xf32>
    tpu.vector_store %arg16[%c300, %c0_298], %183 {strides = array<i32>} : memref<400x128xf32, #tpu.memory_space<vmem>>, vector<5x128xf32>,
    %c12_299 = arith.constant 12 : index
    %c1_300 = arith.constant 1 : index
    %c0_301 = arith.constant 0 : index
    %c0_302 = arith.constant 0 : index
    %185 = vector.load %arg15[%c12_299, %c1_300, %c0_301, %c0_302] : memref<16x5x5x128xf32, #tpu.memory_space<vmem>>, vector<1x1x5x128xf32>
    %186 = vector.shape_cast %185 : vector<1x1x5x128xf32> to vector<5x128xf32>
    %c305 = arith.constant 305 : index
    %c0_303 = arith.constant 0 : index
    %187 = vector.load %arg16[%c305, %c0_303] : memref<400x128xf32, #tpu.memory_space<vmem>>, vector<5x128xf32>
    tpu.vector_store %arg16[%c305, %c0_303], %186 {strides = array<i32>} : memref<400x128xf32, #tpu.memory_space<vmem>>, vector<5x128xf32>,
    %c12_304 = arith.constant 12 : index
    %c2_305 = arith.constant 2 : index
    %c0_306 = arith.constant 0 : index
    %c0_307 = arith.constant 0 : index
    %188 = vector.load %arg15[%c12_304, %c2_305, %c0_306, %c0_307] : memref<16x5x5x128xf32, #tpu.memory_space<vmem>>, vector<1x1x5x128xf32>
    %189 = vector.shape_cast %188 : vector<1x1x5x128xf32> to vector<5x128xf32>
    %c310 = arith.constant 310 : index
    %c0_308 = arith.constant 0 : index
    %190 = vector.load %arg16[%c310, %c0_308] : memref<400x128xf32, #tpu.memory_space<vmem>>, vector<5x128xf32>
    tpu.vector_store %arg16[%c310, %c0_308], %189 {strides = array<i32>} : memref<400x128xf32, #tpu.memory_space<vmem>>, vector<5x128xf32>,
    %c12_309 = arith.constant 12 : index
    %c3_310 = arith.constant 3 : index
    %c0_311 = arith.constant 0 : index
    %c0_312 = arith.constant 0 : index
    %191 = vector.load %arg15[%c12_309, %c3_310, %c0_311, %c0_312] : memref<16x5x5x128xf32, #tpu.memory_space<vmem>>, vector<1x1x5x128xf32>
    %192 = vector.shape_cast %191 : vector<1x1x5x128xf32> to vector<5x128xf32>
    %c315 = arith.constant 315 : index
    %c0_313 = arith.constant 0 : index
    %193 = vector.load %arg16[%c315, %c0_313] : memref<400x128xf32, #tpu.memory_space<vmem>>, vector<5x128xf32>
    tpu.vector_store %arg16[%c315, %c0_313], %192 {strides = array<i32>} : memref<400x128xf32, #tpu.memory_space<vmem>>, vector<5x128xf32>,
    %c12_314 = arith.constant 12 : index
    %c4_315 = arith.constant 4 : index
    %c0_316 = arith.constant 0 : index
    %c0_317 = arith.constant 0 : index
    %194 = vector.load %arg15[%c12_314, %c4_315, %c0_316, %c0_317] : memref<16x5x5x128xf32, #tpu.memory_space<vmem>>, vector<1x1x5x128xf32>
    %195 = vector.shape_cast %194 : vector<1x1x5x128xf32> to vector<5x128xf32>
    %c320 = arith.constant 320 : index
    %c0_318 = arith.constant 0 : index
    %196 = vector.load %arg16[%c320, %c0_318] : memref<400x128xf32, #tpu.memory_space<vmem>>, vector<5x128xf32>
    tpu.vector_store %arg16[%c320, %c0_318], %195 {strides = array<i32>} : memref<400x128xf32, #tpu.memory_space<vmem>>, vector<5x128xf32>,
    %c13 = arith.constant 13 : index
    %c0_319 = arith.constant 0 : index
    %c0_320 = arith.constant 0 : index
    %c0_321 = arith.constant 0 : index
    %197 = vector.load %arg15[%c13, %c0_319, %c0_320, %c0_321] : memref<16x5x5x128xf32, #tpu.memory_space<vmem>>, vector<1x1x5x128xf32>
    %198 = vector.shape_cast %197 : vector<1x1x5x128xf32> to vector<5x128xf32>
    %c325 = arith.constant 325 : index
    %c0_322 = arith.constant 0 : index
    %199 = vector.load %arg16[%c325, %c0_322] : memref<400x128xf32, #tpu.memory_space<vmem>>, vector<5x128xf32>
    tpu.vector_store %arg16[%c325, %c0_322], %198 {strides = array<i32>} : memref<400x128xf32, #tpu.memory_space<vmem>>, vector<5x128xf32>,
    %c13_323 = arith.constant 13 : index
    %c1_324 = arith.constant 1 : index
    %c0_325 = arith.constant 0 : index
    %c0_326 = arith.constant 0 : index
    %200 = vector.load %arg15[%c13_323, %c1_324, %c0_325, %c0_326] : memref<16x5x5x128xf32, #tpu.memory_space<vmem>>, vector<1x1x5x128xf32>
    %201 = vector.shape_cast %200 : vector<1x1x5x128xf32> to vector<5x128xf32>
    %c330 = arith.constant 330 : index
    %c0_327 = arith.constant 0 : index
    %202 = vector.load %arg16[%c330, %c0_327] : memref<400x128xf32, #tpu.memory_space<vmem>>, vector<5x128xf32>
    tpu.vector_store %arg16[%c330, %c0_327], %201 {strides = array<i32>} : memref<400x128xf32, #tpu.memory_space<vmem>>, vector<5x128xf32>,
    %c13_328 = arith.constant 13 : index
    %c2_329 = arith.constant 2 : index
    %c0_330 = arith.constant 0 : index
    %c0_331 = arith.constant 0 : index
    %203 = vector.load %arg15[%c13_328, %c2_329, %c0_330, %c0_331] : memref<16x5x5x128xf32, #tpu.memory_space<vmem>>, vector<1x1x5x128xf32>
    %204 = vector.shape_cast %203 : vector<1x1x5x128xf32> to vector<5x128xf32>
    %c335 = arith.constant 335 : index
    %c0_332 = arith.constant 0 : index
    %205 = vector.load %arg16[%c335, %c0_332] : memref<400x128xf32, #tpu.memory_space<vmem>>, vector<5x128xf32>
    tpu.vector_store %arg16[%c335, %c0_332], %204 {strides = array<i32>} : memref<400x128xf32, #tpu.memory_space<vmem>>, vector<5x128xf32>,
    %c13_333 = arith.constant 13 : index
    %c3_334 = arith.constant 3 : index
    %c0_335 = arith.constant 0 : index
    %c0_336 = arith.constant 0 : index
    %206 = vector.load %arg15[%c13_333, %c3_334, %c0_335, %c0_336] : memref<16x5x5x128xf32, #tpu.memory_space<vmem>>, vector<1x1x5x128xf32>
    %207 = vector.shape_cast %206 : vector<1x1x5x128xf32> to vector<5x128xf32>
    %c340 = arith.constant 340 : index
    %c0_337 = arith.constant 0 : index
    %208 = vector.load %arg16[%c340, %c0_337] : memref<400x128xf32, #tpu.memory_space<vmem>>, vector<5x128xf32>
    tpu.vector_store %arg16[%c340, %c0_337], %207 {strides = array<i32>} : memref<400x128xf32, #tpu.memory_space<vmem>>, vector<5x128xf32>,
    %c13_338 = arith.constant 13 : index
    %c4_339 = arith.constant 4 : index
    %c0_340 = arith.constant 0 : index
    %c0_341 = arith.constant 0 : index
    %209 = vector.load %arg15[%c13_338, %c4_339, %c0_340, %c0_341] : memref<16x5x5x128xf32, #tpu.memory_space<vmem>>, vector<1x1x5x128xf32>
    %210 = vector.shape_cast %209 : vector<1x1x5x128xf32> to vector<5x128xf32>
    %c345 = arith.constant 345 : index
    %c0_342 = arith.constant 0 : index
    %211 = vector.load %arg16[%c345, %c0_342] : memref<400x128xf32, #tpu.memory_space<vmem>>, vector<5x128xf32>
    tpu.vector_store %arg16[%c345, %c0_342], %210 {strides = array<i32>} : memref<400x128xf32, #tpu.memory_space<vmem>>, vector<5x128xf32>,
    %c14 = arith.constant 14 : index
    %c0_343 = arith.constant 0 : index
    %c0_344 = arith.constant 0 : index
    %c0_345 = arith.constant 0 : index
    %212 = vector.load %arg15[%c14, %c0_343, %c0_344, %c0_345] : memref<16x5x5x128xf32, #tpu.memory_space<vmem>>, vector<1x1x5x128xf32>
    %213 = vector.shape_cast %212 : vector<1x1x5x128xf32> to vector<5x128xf32>
    %c350 = arith.constant 350 : index
    %c0_346 = arith.constant 0 : index
    %214 = vector.load %arg16[%c350, %c0_346] : memref<400x128xf32, #tpu.memory_space<vmem>>, vector<5x128xf32>
    tpu.vector_store %arg16[%c350, %c0_346], %213 {strides = array<i32>} : memref<400x128xf32, #tpu.memory_space<vmem>>, vector<5x128xf32>,
    %c14_347 = arith.constant 14 : index
    %c1_348 = arith.constant 1 : index
    %c0_349 = arith.constant 0 : index
    %c0_350 = arith.constant 0 : index
    %215 = vector.load %arg15[%c14_347, %c1_348, %c0_349, %c0_350] : memref<16x5x5x128xf32, #tpu.memory_space<vmem>>, vector<1x1x5x128xf32>
    %216 = vector.shape_cast %215 : vector<1x1x5x128xf32> to vector<5x128xf32>
    %c355 = arith.constant 355 : index
    %c0_351 = arith.constant 0 : index
    %217 = vector.load %arg16[%c355, %c0_351] : memref<400x128xf32, #tpu.memory_space<vmem>>, vector<5x128xf32>
    tpu.vector_store %arg16[%c355, %c0_351], %216 {strides = array<i32>} : memref<400x128xf32, #tpu.memory_space<vmem>>, vector<5x128xf32>,
    %c14_352 = arith.constant 14 : index
    %c2_353 = arith.constant 2 : index
    %c0_354 = arith.constant 0 : index
    %c0_355 = arith.constant 0 : index
    %218 = vector.load %arg15[%c14_352, %c2_353, %c0_354, %c0_355] : memref<16x5x5x128xf32, #tpu.memory_space<vmem>>, vector<1x1x5x128xf32>
    %219 = vector.shape_cast %218 : vector<1x1x5x128xf32> to vector<5x128xf32>
    %c360 = arith.constant 360 : index
    %c0_356 = arith.constant 0 : index
    %220 = vector.load %arg16[%c360, %c0_356] : memref<400x128xf32, #tpu.memory_space<vmem>>, vector<5x128xf32>
    tpu.vector_store %arg16[%c360, %c0_356], %219 {strides = array<i32>} : memref<400x128xf32, #tpu.memory_space<vmem>>, vector<5x128xf32>,
    %c14_357 = arith.constant 14 : index
    %c3_358 = arith.constant 3 : index
    %c0_359 = arith.constant 0 : index
    %c0_360 = arith.constant 0 : index
    %221 = vector.load %arg15[%c14_357, %c3_358, %c0_359, %c0_360] : memref<16x5x5x128xf32, #tpu.memory_space<vmem>>, vector<1x1x5x128xf32>
    %222 = vector.shape_cast %221 : vector<1x1x5x128xf32> to vector<5x128xf32>
    %c365 = arith.constant 365 : index
    %c0_361 = arith.constant 0 : index
    %223 = vector.load %arg16[%c365, %c0_361] : memref<400x128xf32, #tpu.memory_space<vmem>>, vector<5x128xf32>
    tpu.vector_store %arg16[%c365, %c0_361], %222 {strides = array<i32>} : memref<400x128xf32, #tpu.memory_space<vmem>>, vector<5x128xf32>,
    %c14_362 = arith.constant 14 : index
    %c4_363 = arith.constant 4 : index
    %c0_364 = arith.constant 0 : index
    %c0_365 = arith.constant 0 : index
    %224 = vector.load %arg15[%c14_362, %c4_363, %c0_364, %c0_365] : memref<16x5x5x128xf32, #tpu.memory_space<vmem>>, vector<1x1x5x128xf32>
    %225 = vector.shape_cast %224 : vector<1x1x5x128xf32> to vector<5x128xf32>
    %c370 = arith.constant 370 : index
    %c0_366 = arith.constant 0 : index
    %226 = vector.load %arg16[%c370, %c0_366] : memref<400x128xf32, #tpu.memory_space<vmem>>, vector<5x128xf32>
    tpu.vector_store %arg16[%c370, %c0_366], %225 {strides = array<i32>} : memref<400x128xf32, #tpu.memory_space<vmem>>, vector<5x128xf32>,
    %c15_367 = arith.constant 15 : index
    %c0_368 = arith.constant 0 : index
    %c0_369 = arith.constant 0 : index
    %c0_370 = arith.constant 0 : index
    %227 = vector.load %arg15[%c15_367, %c0_368, %c0_369, %c0_370] : memref<16x5x5x128xf32, #tpu.memory_space<vmem>>, vector<1x1x5x128xf32>
    %228 = vector.shape_cast %227 : vector<1x1x5x128xf32> to vector<5x128xf32>
    %c375 = arith.constant 375 : index
    %c0_371 = arith.constant 0 : index
    %229 = vector.load %arg16[%c375, %c0_371] : memref<400x128xf32, #tpu.memory_space<vmem>>, vector<5x128xf32>
    tpu.vector_store %arg16[%c375, %c0_371], %228 {strides = array<i32>} : memref<400x128xf32, #tpu.memory_space<vmem>>, vector<5x128xf32>,
    %c15_372 = arith.constant 15 : index
    %c1_373 = arith.constant 1 : index
    %c0_374 = arith.constant 0 : index
    %c0_375 = arith.constant 0 : index
    %230 = vector.load %arg15[%c15_372, %c1_373, %c0_374, %c0_375] : memref<16x5x5x128xf32, #tpu.memory_space<vmem>>, vector<1x1x5x128xf32>
    %231 = vector.shape_cast %230 : vector<1x1x5x128xf32> to vector<5x128xf32>
    %c380 = arith.constant 380 : index
    %c0_376 = arith.constant 0 : index
    %232 = vector.load %arg16[%c380, %c0_376] : memref<400x128xf32, #tpu.memory_space<vmem>>, vector<5x128xf32>
    tpu.vector_store %arg16[%c380, %c0_376], %231 {strides = array<i32>} : memref<400x128xf32, #tpu.memory_space<vmem>>, vector<5x128xf32>,
    %c15_377 = arith.constant 15 : index
    %c2_378 = arith.constant 2 : index
    %c0_379 = arith.constant 0 : index
    %c0_380 = arith.constant 0 : index
    %233 = vector.load %arg15[%c15_377, %c2_378, %c0_379, %c0_380] : memref<16x5x5x128xf32, #tpu.memory_space<vmem>>, vector<1x1x5x128xf32>
    %234 = vector.shape_cast %233 : vector<1x1x5x128xf32> to vector<5x128xf32>
    %c385 = arith.constant 385 : index
    %c0_381 = arith.constant 0 : index
    %235 = vector.load %arg16[%c385, %c0_381] : memref<400x128xf32, #tpu.memory_space<vmem>>, vector<5x128xf32>
    tpu.vector_store %arg16[%c385, %c0_381], %234 {strides = array<i32>} : memref<400x128xf32, #tpu.memory_space<vmem>>, vector<5x128xf32>,
    %c15_382 = arith.constant 15 : index
    %c3_383 = arith.constant 3 : index
    %c0_384 = arith.constant 0 : index
    %c0_385 = arith.constant 0 : index
    %236 = vector.load %arg15[%c15_382, %c3_383, %c0_384, %c0_385] : memref<16x5x5x128xf32, #tpu.memory_space<vmem>>, vector<1x1x5x128xf32>
    %237 = vector.shape_cast %236 : vector<1x1x5x128xf32> to vector<5x128xf32>
    %c390 = arith.constant 390 : index
    %c0_386 = arith.constant 0 : index
    %238 = vector.load %arg16[%c390, %c0_386] : memref<400x128xf32, #tpu.memory_space<vmem>>, vector<5x128xf32>
    tpu.vector_store %arg16[%c390, %c0_386], %237 {strides = array<i32>} : memref<400x128xf32, #tpu.memory_space<vmem>>, vector<5x128xf32>,
    %c15_387 = arith.constant 15 : index
    %c4_388 = arith.constant 4 : index
    %c0_389 = arith.constant 0 : index
    %c0_390 = arith.constant 0 : index
    %239 = vector.load %arg15[%c15_387, %c4_388, %c0_389, %c0_390] : memref<16x5x5x128xf32, #tpu.memory_space<vmem>>, vector<1x1x5x128xf32>
    %240 = vector.shape_cast %239 : vector<1x1x5x128xf32> to vector<5x128xf32>
    %c395 = arith.constant 395 : index
    %c0_391 = arith.constant 0 : index
    %241 = vector.load %arg16[%c395, %c0_391] : memref<400x128xf32, #tpu.memory_space<vmem>>, vector<5x128xf32>
    tpu.vector_store %arg16[%c395, %c0_391], %240 {strides = array<i32>} : memref<400x128xf32, #tpu.memory_space<vmem>>, vector<5x128xf32>,
    %c0_392 = arith.constant 0 : index
    %c0_393 = arith.constant 0 : index
    %242 = vector.load %arg16[%c0_392, %c0_393] : memref<400x128xf32, #tpu.memory_space<vmem>>, vector<400x128xf32>
    %c0_394 = arith.constant 0 : index
    %c0_395 = arith.constant 0 : index
    %243 = vector.load %arg6[%c0_394, %c0_395] : memref<128x400xf32, #tpu.memory_space<vmem>>, vector<128x400xf32>
    %cst = arith.constant dense<0.000000e+00> : vector<128x128xf32>
    %244 = tpu.matmul %243, %242, %cst {dimension_numbers = #tpu.dot_dimension_numbers<[1], [0], [0], [1], [0, 0, 1, 1], [], []>} : vector<128x400xf32>, vector<400x128xf32>, vector<128x128xf32> -> vector<128x128xf32>
    %c0_396 = arith.constant 0 : index
    %c0_397 = arith.constant 0 : index
    %245 = vector.load %arg7[%c0_396, %c0_397] : memref<128x1xf32, #tpu.memory_space<vmem>>, vector<128x1xf32>
    %246 = vector.broadcast %245 : vector<128x1xf32> to vector<128x128xf32>
    %247 = arith.addf %244, %246 : vector<128x128xf32>
    %cst_398 = arith.constant 0.000000e+00 : f32
    %248 = vector.broadcast %cst_398 : f32 to vector<128x128xf32>
    %249 = arith.maximumf %247, %248 : vector<128x128xf32>
    %c0_399 = arith.constant 0 : index
    %c0_400 = arith.constant 0 : index
    %250 = vector.load %arg8[%c0_399, %c0_400] : memref<128x128xf32, #tpu.memory_space<vmem>>, vector<128x128xf32>
    %cst_401 = arith.constant dense<0.000000e+00> : vector<128x128xf32>
    %251 = tpu.matmul %250, %249, %cst_401 {dimension_numbers = #tpu.dot_dimension_numbers<[1], [0], [0], [1], [0, 0, 1, 1], [], []>} : vector<128x128xf32>, vector<128x128xf32>, vector<128x128xf32> -> vector<128x128xf32>
    %c0_402 = arith.constant 0 : index
    %c0_403 = arith.constant 0 : index
    %252 = vector.load %arg9[%c0_402, %c0_403] : memref<128x1xf32, #tpu.memory_space<vmem>>, vector<128x1xf32>
    %253 = vector.broadcast %252 : vector<128x1xf32> to vector<128x128xf32>
    %254 = arith.addf %251, %253 : vector<128x128xf32>
    %cst_404 = arith.constant 0.000000e+00 : f32
    %255 = vector.broadcast %cst_404 : f32 to vector<128x128xf32>
    %256 = arith.maximumf %254, %255 : vector<128x128xf32>
    %c0_405 = arith.constant 0 : index
    %c0_406 = arith.constant 0 : index
    %257 = vector.load %arg10[%c0_405, %c0_406] : memref<10x128xf32, #tpu.memory_space<vmem>>, vector<10x128xf32>
    %cst_407 = arith.constant dense<0.000000e+00> : vector<10x128xf32>
    %258 = tpu.matmul %257, %256, %cst_407 {dimension_numbers = #tpu.dot_dimension_numbers<[1], [0], [0], [1], [0, 0, 1, 1], [], []>} : vector<10x128xf32>, vector<128x128xf32>, vector<10x128xf32> -> vector<10x128xf32>
    %c0_408 = arith.constant 0 : index
    %c0_409 = arith.constant 0 : index
    %259 = vector.load %arg11[%c0_408, %c0_409] : memref<10x1xf32, #tpu.memory_space<vmem>>, vector<10x1xf32>
    %260 = vector.broadcast %259 : vector<10x1xf32> to vector<10x128xf32>
    %261 = arith.addf %258, %260 : vector<10x128xf32>
    %c0_410 = arith.constant 0 : index
    %c0_411 = arith.constant 0 : index
    %262 = vector.load %arg12[%c0_410, %c0_411] : memref<10x128xf32, #tpu.memory_space<vmem>>, vector<10x128xf32>
    tpu.vector_store %arg12[%c0_410, %c0_411], %261 {strides = array<i32>} : memref<10x128xf32, #tpu.memory_space<vmem>>, vector<10x128xf32>,
    return
  }
  func.func @transform_0(%arg0: i32) -> (i32, i32, i32, i32) {
    %c0_i32 = arith.constant 0 : i32
    %c0_i32_0 = arith.constant 0 : i32
    %c0_i32_1 = arith.constant 0 : i32
    %c0_i32_2 = arith.constant 0 : i32
    return %c0_i32, %c0_i32_0, %c0_i32_1, %arg0 : i32, i32, i32, i32
  }
  func.func @transform_1(%arg0: i32) -> i32 {
    %c0_i32 = arith.constant 0 : i32
    %c0_i32_0 = arith.constant 0 : i32
    return %c0_i32 : i32
  }
  func.func @transform_2(%arg0: i32) -> i32 {
    %c0_i32 = arith.constant 0 : i32
    %c0_i32_0 = arith.constant 0 : i32
    return %c0_i32 : i32
  }
  func.func @transform_3(%arg0: i32) -> i32 {
    %c0_i32 = arith.constant 0 : i32
    %c0_i32_0 = arith.constant 0 : i32
    return %c0_i32 : i32
  }
  func.func @transform_4(%arg0: i32) -> i32 {
    %c0_i32 = arith.constant 0 : i32
    %c0_i32_0 = arith.constant 0 : i32
    return %c0_i32 : i32
  }
  func.func @transform_5(%arg0: i32) -> (i32, i32) {
    %c0_i32 = arith.constant 0 : i32
    %c0_i32_0 = arith.constant 0 : i32
    %c0_i32_1 = arith.constant 0 : i32
    return %c0_i32, %c0_i32_0 : i32, i32
  }
  func.func @transform_6(%arg0: i32) -> (i32, i32) {
    %c0_i32 = arith.constant 0 : i32
    %c0_i32_0 = arith.constant 0 : i32
    %c0_i32_1 = arith.constant 0 : i32
    return %c0_i32, %c0_i32_0 : i32, i32
  }
  func.func @transform_7(%arg0: i32) -> (i32, i32) {
    %c0_i32 = arith.constant 0 : i32
    %c0_i32_0 = arith.constant 0 : i32
    %c0_i32_1 = arith.constant 0 : i32
    return %c0_i32, %c0_i32_0 : i32, i32
  }
  func.func @transform_8(%arg0: i32) -> (i32, i32) {
    %c0_i32 = arith.constant 0 : i32
    %c0_i32_0 = arith.constant 0 : i32
    %c0_i32_1 = arith.constant 0 : i32
    return %c0_i32, %c0_i32_0 : i32, i32
  }
  func.func @transform_9(%arg0: i32) -> (i32, i32) {
    %c0_i32 = arith.constant 0 : i32
    %c0_i32_0 = arith.constant 0 : i32
    %c0_i32_1 = arith.constant 0 : i32
    return %c0_i32, %c0_i32_0 : i32, i32
  }
  func.func @transform_10(%arg0: i32) -> (i32, i32) {
    %c0_i32 = arith.constant 0 : i32
    %c0_i32_0 = arith.constant 0 : i32
    %c0_i32_1 = arith.constant 0 : i32
    return %c0_i32, %c0_i32_0 : i32, i32
  }
  func.func @transform_11(%arg0: i32) -> (i32, i32) {
    %c0_i32 = arith.constant 0 : i32
    %c0_i32_0 = arith.constant 0 : i32
    return %c0_i32, %arg0 : i32, i32
  }
}

</mosaic_0001>

<llo_original>
// kernel: lenet_forward.1
$region0: #{lenet_forward.1}
  #allocation0 [shape = 'u32[]', space=smem, size = 0x4, offset = 0x4, fixed_abs, tag = 'smem constant byte address 0x4 - core index']
  #allocation1 [shape = 'u32[144,128]{1,0:T(1,128)}', space=vmem, size = 0x12000, scoped, tag = 'internal scratch']
  #allocation2 [shape = 'f32[6,13,7,128]{3,2,1,0:T(8,128)}', space=vmem, size = 0x4e000, scoped, tag = 'scratch operand']
  #allocation3 [shape = 'f32[6,13,6,128]{3,2,1,0:T(8,128)}', space=vmem, size = 0x4e000, scoped, tag = 'scratch operand']
  #allocation4 [shape = 'f32[16,5,5,128]{3,2,1,0:T(8,128)}', space=vmem, size = 0x50000, scoped, tag = 'scratch operand']
  #allocation5 [shape = 'f32[400,128]{1,0:T(8,128)}', space=vmem, size = 0x32000, scoped, tag = 'scratch operand']
  %s0 = inlined_call_operand.vmem [shape: f32[4,28,7,128], index: 0, kind: input, shape index: {}]
  %s1 = inlined_call_operand.vmem [shape: f32[54], index: 1, kind: input, shape index: {}]
  %s2 = inlined_call_operand.vmem [shape: f32[6], index: 2, kind: input, shape index: {}]
  %s3 = inlined_call_operand.vmem [shape: f32[864], index: 3, kind: input, shape index: {}]
  %s4 = inlined_call_operand.vmem [shape: f32[16], index: 4, kind: input, shape index: {}]
  %s5 = inlined_call_operand.vmem [shape: f32[128,400], index: 5, kind: input, shape index: {}]
  %s6 = inlined_call_operand.vmem [shape: f32[128,1], index: 6, kind: input, shape index: {}]
  %s7 = inlined_call_operand.vmem [shape: f32[128,128], index: 7, kind: input, shape index: {}]
  %s8 = inlined_call_operand.vmem [shape: f32[128,1], index: 8, kind: input, shape index: {}]
  %s9 = inlined_call_operand.vmem [shape: f32[10,128], index: 9, kind: input, shape index: {}]
  %s10 = inlined_call_operand.vmem [shape: f32[10,1], index: 10, kind: input, shape index: {}]
  %s11 = inlined_call_operand.vmem [shape: f32[10,128], index: 11, kind: output, shape index: {}]
  %s12 = sld [smem:[#allocation0]]
  $region84: #{lenet_forward.1} parent=0
    _
  %s14 = ssub.s32 1, %s12
  %s15 = scalar_select 0, %s14, %s12
  $region1: #{lenet_forward.1} parent=0
    #allocation6 [shape = 'u8[512]{0}', space=smem, size = 0x200, scoped, tag = 'input window, operand 1, single buffered']
    #allocation7 [shape = 's32[1]{0}', space=sflag, size = 0x4, scoped, tag = 'scoped memory for lenet_forward.1']
    #allocation8 [shape = 'u8[512]{0}', space=smem, size = 0x200, scoped, tag = 'input window, operand 2, single buffered']
    #allocation9 [shape = 's32[1]{0}', space=sflag, size = 0x4, scoped, tag = 'scoped memory for lenet_forward.1']
    #allocation10 [shape = 'u8[3584]{0}', space=smem, size = 0xe00, scoped, tag = 'input window, operand 3, single buffered']
    #allocation11 [shape = 'u8[512]{0}', space=smem, size = 0x200, scoped, tag = 'input window, operand 4, single buffered']
    #allocation12 [shape = 's32[1]{0}', space=sflag, size = 0x4, scoped, tag = 'scoped memory for lenet_forward.1']
    %16 = vsyncpa [#allocation7], 0
    %17 = vsyncpa [#allocation9], 0
    %18 = vsyncpa [#allocation12], 0
    // Predicated region
    $region2: #{lenet_forward.1} parent=1 // pred_check
      _
    $region3: #{lenet_forward.1} parent=1 // pred_check_branch
      %20 = sbr.rel (0) target = $region5
    $region4: #{lenet_forward.1} parent=1 // pred_region
      _
    $region5: #{lenet_forward.1} parent=1 // pred_fallthru
      _
    // Predicated region
    $region6: #{lenet_forward.1} parent=1 // pred_check
      _
    $region7: #{lenet_forward.1} parent=1 // pred_check_branch
      %22 = sbr.rel (0) target = $region9
    $region8: #{lenet_forward.1} parent=1 // pred_region
      %s24 = ssub.s32 16, 16
      %25 = vsyncadd [#allocation7], %s24
      %s27 = sshll.u32 %s1, 4
      %s28 = int_to_ptr.vmem [resolvable:$true] %s27
      %30 = dma.vmem_to_smem %s28, 16, [#allocation6], [#allocation7]
    $region9: #{lenet_forward.1} parent=1 // pred_fallthru
      _
    // Predicated region
    $region10: #{lenet_forward.1} parent=1 // pred_check
      _
    $region11: #{lenet_forward.1} parent=1 // pred_check_branch
      %32 = sbr.rel (0) target = $region13
    $region12: #{lenet_forward.1} parent=1 // pred_region
      %s34 = ssub.s32 16, 16
      %35 = vsyncadd [#allocation9], %s34
      %s37 = sshll.u32 %s2, 4
      %s38 = int_to_ptr.vmem [resolvable:$true] %s37
      %40 = dma.vmem_to_smem %s38, 16, [#allocation8], [#allocation9]
    $region13: #{lenet_forward.1} parent=1 // pred_fallthru
      _
    // Predicated region
    $region14: #{lenet_forward.1} parent=1 // pred_check
      _
    $region15: #{lenet_forward.1} parent=1 // pred_check_branch
      %42 = sbr.rel (0) target = $region17
    $region16: #{lenet_forward.1} parent=1 // pred_region
      %s44 = ssub.s32 112, 112
      %45 = vsyncadd [#allocation9], %s44
      %s47 = sshll.u32 %s3, 4
      %s48 = int_to_ptr.vmem [resolvable:$true] %s47
      %50 = dma.vmem_to_smem %s48, 112, [#allocation10], [#allocation9]
    $region17: #{lenet_forward.1} parent=1 // pred_fallthru
      _
    // Predicated region
    $region18: #{lenet_forward.1} parent=1 // pred_check
      _
    $region19: #{lenet_forward.1} parent=1 // pred_check_branch
      %52 = sbr.rel (0) target = $region21
    $region20: #{lenet_forward.1} parent=1 // pred_region
      %s54 = ssub.s32 16, 16
      %55 = vsyncadd [#allocation12], %s54
      %s57 = sshll.u32 %s4, 4
      %s58 = int_to_ptr.vmem [resolvable:$true] %s57
      %60 = dma.vmem_to_smem %s58, 16, [#allocation11], [#allocation12]
    $region21: #{lenet_forward.1} parent=1 // pred_fallthru
      _
    // Predicated region
    $region22: #{lenet_forward.1} parent=1 // pred_check
      _
    $region23: #{lenet_forward.1} parent=1 // pred_check_branch
      %62 = sbr.rel (0) target = $region25
    $region24: #{lenet_forward.1} parent=1 // pred_region
      _
    $region25: #{lenet_forward.1} parent=1 // pred_fallthru
      _
    // Predicated region
    $region26: #{lenet_forward.1} parent=1 // pred_check
      _
    $region27: #{lenet_forward.1} parent=1 // pred_check_branch
      %64 = sbr.rel (0) target = $region29
    $region28: #{lenet_forward.1} parent=1 // pred_region
      _
    $region29: #{lenet_forward.1} parent=1 // pred_fallthru
      _
    // Predicated region
    $region30: #{lenet_forward.1} parent=1 // pred_check
      _
    $region31: #{lenet_forward.1} parent=1 // pred_check_branch
      %66 = sbr.rel (0) target = $region33
    $region32: #{lenet_forward.1} parent=1 // pred_region
      _
    $region33: #{lenet_forward.1} parent=1 // pred_fallthru
      _
    // Predicated region
    $region34: #{lenet_forward.1} parent=1 // pred_check
      _
    $region35: #{lenet_forward.1} parent=1 // pred_check_branch
      %68 = sbr.rel (0) target = $region37
    $region36: #{lenet_forward.1} parent=1 // pred_region
      _
    $region37: #{lenet_forward.1} parent=1 // pred_fallthru
      _
    // Predicated region
    $region38: #{lenet_forward.1} parent=1 // pred_check
      _
    $region39: #{lenet_forward.1} parent=1 // pred_check_branch
      %70 = sbr.rel (0) target = $region41
    $region40: #{lenet_forward.1} parent=1 // pred_region
      _
    $region41: #{lenet_forward.1} parent=1 // pred_fallthru
      _
    // Predicated region
    $region42: #{lenet_forward.1} parent=1 // pred_check
      _
    $region43: #{lenet_forward.1} parent=1 // pred_check_branch
      %72 = sbr.rel (0) target = $region45
    $region44: #{lenet_forward.1} parent=1 // pred_region
      _
    $region45: #{lenet_forward.1} parent=1 // pred_fallthru
      _
    // Predicated region
    $region46: #{lenet_forward.1} parent=1 // pred_check
      _
    $region47: #{lenet_forward.1} parent=1 // pred_check_branch
      %74 = sbr.rel (0) target = $region49
    $region48: #{lenet_forward.1} parent=1 // pred_region
      %75 = dma.done [#allocation7], 16
    $region49: #{lenet_forward.1} parent=1 // pred_fallthru
      _
    // Predicated region
    $region50: #{lenet_forward.1} parent=1 // pred_check
      _
    $region51: #{lenet_forward.1} parent=1 // pred_check_branch
      %77 = sbr.rel (0) target = $region53
    $region52: #{lenet_forward.1} parent=1 // pred_region
      %78 = dma.done [#allocation9], 16
    $region53: #{lenet_forward.1} parent=1 // pred_fallthru
      _
    // Predicated region
    $region54: #{lenet_forward.1} parent=1 // pred_check
      _
    $region55: #{lenet_forward.1} parent=1 // pred_check_branch
      %80 = sbr.rel (0) target = $region57
    $region56: #{lenet_forward.1} parent=1 // pred_region
      %81 = dma.done [#allocation9], 112
    $region57: #{lenet_forward.1} parent=1 // pred_fallthru
      _
    // Predicated region
    $region58: #{lenet_forward.1} parent=1 // pred_check
      _
    $region59: #{lenet_forward.1} parent=1 // pred_check_branch
      %83 = sbr.rel (0) target = $region61
    $region60: #{lenet_forward.1} parent=1 // pred_region
      %84 = dma.done [#allocation12], 16
    $region61: #{lenet_forward.1} parent=1 // pred_fallthru
      _
    %85 = sfence
    loop: start=0, step=1, limit=6
    $region62: #{lenet_forward.1} parent=1 // loop_pre_header
      _
    $region63: #{lenet_forward.1} parent=1 // loop_header
      %s87 = sphi 0, %s91
      %p88 = scmp.ge.s32.totalorder %s87, 6
    $region64: #{lenet_forward.1} parent=1 // loop_header_branch
      %90 = sbr.rel (%p88) target = $region68
    $region65: #{lenet_forward.1} parent=1 // loop_body
      %s92 = smul.u32 %s87, 9
      %s93 = sld [smem:[#allocation6 + %s92]]
      %v94 = vld [vmem:[%s0] sm:$0x7f]
      %v95 = vld [vmem:[%s0 + $0x8] sm:$0x7f]
      %v96 = vld [vmem:[%s0 + $0x10] sm:$0x7f]
      %v97 = vld [vmem:[%s0 + $0x18] sm:$0x7f]
      %v98 = vld [vmem:[%s0 + $0x20] sm:$0x7f]
      %v99 = vld [vmem:[%s0 + $0x28] sm:$0x7f]
      %v100 = vld [vmem:[%s0 + $0x30] sm:$0x7f]
      %v101 = vld [vmem:[%s0 + $0x38] sm:$0x7f]
      %v102 = vld [vmem:[%s0 + $0x40] sm:$0x7f]
      %v103 = vld [vmem:[%s0 + $0x48] sm:$0x7f]
      %v104 = vld [vmem:[%s0 + $0x50] sm:$0x7f]
      %v105 = vld [vmem:[%s0 + $0x58] sm:$0x7f]
      %v106 = vld [vmem:[%s0 + $0x60] sm:$0x7f]
      %v107 = vld [vmem:[%s0 + $0x68] sm:$0x7f]
      %v108 = vld [vmem:[%s0 + $0x70] sm:$0x7f]
      %v109 = vld [vmem:[%s0 + $0x78] sm:$0x7f]
      %v110 = vld [vmem:[%s0 + $0x80] sm:$0x7f]
      %v111 = vld [vmem:[%s0 + $0x88] sm:$0x7f]
      %v112 = vld [vmem:[%s0 + $0x90] sm:$0x7f]
      %v113 = vld [vmem:[%s0 + $0x98] sm:$0x7f]
      %v114 = vld [vmem:[%s0 + $0xa0] sm:$0x7f]
      %v115 = vld [vmem:[%s0 + $0xa8] sm:$0x7f]
      %v116 = vld [vmem:[%s0 + $0xb0] sm:$0x7f]
      %v117 = vld [vmem:[%s0 + $0xb8] sm:$0x7f]
      %v118 = vld [vmem:[%s0 + $0xc0] sm:$0x7f]
      %v119 = vld [vmem:[%s0 + $0xc8] sm:$0x7f]
      %v120 = vstv %s93
      %v121 = vmul.f32 %v120, %v94
      %v122 = vmul.f32 %v120, %v95
      %v123 = vmul.f32 %v120, %v96
      %v124 = vmul.f32 %v120, %v97
      %v125 = vmul.f32 %v120, %v98
      %v126 = vmul.f32 %v120, %v99
      %v127 = vmul.f32 %v120, %v100
      %v128 = vmul.f32 %v120, %v101
      %v129 = vmul.f32 %v120, %v102
      %v130 = vmul.f32 %v120, %v103
      %v131 = vmul.f32 %v120, %v104
      %v132 = vmul.f32 %v120, %v105
      %v133 = vmul.f32 %v120, %v106
      %v134 = vmul.f32 %v120, %v107
      %v135 = vmul.f32 %v120, %v108
      %v136 = vmul.f32 %v120, %v109
      %v137 = vmul.f32 %v120, %v110
      %v138 = vmul.f32 %v120, %v111
      %v139 = vmul.f32 %v120, %v112
      %v140 = vmul.f32 %v120, %v113
      %v141 = vmul.f32 %v120, %v114
      %v142 = vmul.f32 %v120, %v115
      %v143 = vmul.f32 %v120, %v116
      %v144 = vmul.f32 %v120, %v117
      %v145 = vmul.f32 %v120, %v118
      %v146 = vmul.f32 %v120, %v119
      %v147 = vadd.f32 %v121, 0.0
      %v148 = vadd.f32 %v122, 0.0
      %v149 = vadd.f32 %v123, 0.0
      %v150 = vadd.f32 %v124, 0.0
      %v151 = vadd.f32 %v125, 0.0
      %v152 = vadd.f32 %v126, 0.0
      %v153 = vadd.f32 %v127, 0.0
      %v154 = vadd.f32 %v128, 0.0
      %v155 = vadd.f32 %v129, 0.0
      %v156 = vadd.f32 %v130, 0.0
      %v157 = vadd.f32 %v131, 0.0
      %v158 = vadd.f32 %v132, 0.0
      %v159 = vadd.f32 %v133, 0.0
      %v160 = vadd.f32 %v134, 0.0
      %v161 = vadd.f32 %v135, 0.0
      %v162 = vadd.f32 %v136, 0.0
      %v163 = vadd.f32 %v137, 0.0
      %v164 = vadd.f32 %v138, 0.0
      %v165 = vadd.f32 %v139, 0.0
      %v166 = vadd.f32 %v140, 0.0
      %v167 = vadd.f32 %v141, 0.0
      %v168 = vadd.f32 %v142, 0.0
      %v169 = vadd.f32 %v143, 0.0
      %v170 = vadd.f32 %v144, 0.0
      %v171 = vadd.f32 %v145, 0.0
      %v172 = vadd.f32 %v146, 0.0
      %s173 = sadd.s32 %s92, 1
      %s174 = sld [smem:[#allocation6 + %s173]]
      %s175 = scalar_lea.vmem %s0, 224
      %v176 = vld [vmem:[%s175] sm:$0x7f]
      %v177 = vld [vmem:[%s175 + $0x8] sm:$0x7f]
      %v178 = vld [vmem:[%s175 + $0x10] sm:$0x7f]
      %v179 = vld [vmem:[%s175 + $0x18] sm:$0x7f]
      %v180 = vld [vmem:[%s175 + $0x20] sm:$0x7f]
      %v181 = vld [vmem:[%s175 + $0x28] sm:$0x7f]
      %v182 = vld [vmem:[%s175 + $0x30] sm:$0x7f]
      %v183 = vld [vmem:[%s175 + $0x38] sm:$0x7f]
      %v184 = vld [vmem:[%s175 + $0x40] sm:$0x7f]
      %v185 = vld [vmem:[%s175 + $0x48] sm:$0x7f]
      %v186 = vld [vmem:[%s175 + $0x50] sm:$0x7f]
      %v187 = vld [vmem:[%s175 + $0x58] sm:$0x7f]
      %v188 = vld [vmem:[%s175 + $0x60] sm:$0x7f]
      %v189 = vld [vmem:[%s175 + $0x68] sm:$0x7f]
      %v190 = vld [vmem:[%s175 + $0x70] sm:$0x7f]
      %v191 = vld [vmem:[%s175 + $0x78] sm:$0x7f]
      %v192 = vld [vmem:[%s175 + $0x80] sm:$0x7f]
      %v193 = vld [vmem:[%s175 + $0x88] sm:$0x7f]
      %v194 = vld [vmem:[%s175 + $0x90] sm:$0x7f]
      %v195 = vld [vmem:[%s175 + $0x98] sm:$0x7f]
      %v196 = vld [vmem:[%s175 + $0xa0] sm:$0x7f]
      %v197 = vld [vmem:[%s175 + $0xa8] sm:$0x7f]
      %v198 = vld [vmem:[%s175 + $0xb0] sm:$0x7f]
      %v199 = vld [vmem:[%s175 + $0xb8] sm:$0x7f]
      %v200 = vld [vmem:[%s175 + $0xc0] sm:$0x7f]
      %v201 = vld [vmem:[%s175 + $0xc8] sm:$0x7f]
      %v202 = vstv %s174
      %v203 = vmul.f32 %v202, %v176
      %v204 = vmul.f32 %v202, %v177
      %v205 = vmul.f32 %v202, %v178
      %v206 = vmul.f32 %v202, %v179
      %v207 = vmul.f32 %v202, %v180
      %v208 = vmul.f32 %v202, %v181
      %v209 = vmul.f32 %v202, %v182
      %v210 = vmul.f32 %v202, %v183
      %v211 = vmul.f32 %v202, %v184
      %v212 = vmul.f32 %v202, %v185
      %v213 = vmul.f32 %v202, %v186
      %v214 = vmul.f32 %v202, %v187
      %v215 = vmul.f32 %v202, %v188
      %v216 = vmul.f32 %v202, %v189
      %v217 = vmul.f32 %v202, %v190
      %v218 = vmul.f32 %v202, %v191
      %v219 = vmul.f32 %v202, %v192
      %v220 = vmul.f32 %v202, %v193
      %v221 = vmul.f32 %v202, %v194
      %v222 = vmul.f32 %v202, %v195
      %v223 = vmul.f32 %v202, %v196
      %v224 = vmul.f32 %v202, %v197
      %v225 = vmul.f32 %v202, %v198
      %v226 = vmul.f32 %v202, %v199
      %v227 = vmul.f32 %v202, %v200
      %v228 = vmul.f32 %v202, %v201
      %v229 = vadd.f32 %v147, %v203
      %v230 = vadd.f32 %v148, %v204
      %v231 = vadd.f32 %v149, %v205
      %v232 = vadd.f32 %v150, %v206
      %v233 = vadd.f32 %v151, %v207
      %v234 = vadd.f32 %v152, %v208
      %v235 = vadd.f32 %v153, %v209
      %v236 = vadd.f32 %v154, %v210
      %v237 = vadd.f32 %v155, %v211
      %v238 = vadd.f32 %v156, %v212
      %v239 = vadd.f32 %v157, %v213
      %v240 = vadd.f32 %v158, %v214
      %v241 = vadd.f32 %v159, %v215
      %v242 = vadd.f32 %v160, %v216
      %v243 = vadd.f32 %v161, %v217
      %v244 = vadd.f32 %v162, %v218
      %v245 = vadd.f32 %v163, %v219
      %v246 = vadd.f32 %v164, %v220
      %v247 = vadd.f32 %v165, %v221
      %v248 = vadd.f32 %v166, %v222
      %v249 = vadd.f32 %v167, %v223
      %v250 = vadd.f32 %v168, %v224
      %v251 = vadd.f32 %v169, %v225
      %v252 = vadd.f32 %v170, %v226
      %v253 = vadd.f32 %v171, %v227
      %v254 = vadd.f32 %v172, %v228
      %s255 = sadd.s32 %s92, 2
      %s256 = sld [smem:[#allocation6 + %s255]]
      %s257 = scalar_lea.vmem %s0, 448
      %v258 = vld [vmem:[%s257] sm:$0x7f]
      %v259 = vld [vmem:[%s257 + $0x8] sm:$0x7f]
      %v260 = vld [vmem:[%s257 + $0x10] sm:$0x7f]
      %v261 = vld [vmem:[%s257 + $0x18] sm:$0x7f]
      %v262 = vld [vmem:[%s257 + $0x20] sm:$0x7f]
      %v263 = vld [vmem:[%s257 + $0x28] sm:$0x7f]
      %v264 = vld [vmem:[%s257 + $0x30] sm:$0x7f]
      %v265 = vld [vmem:[%s257 + $0x38] sm:$0x7f]
      %v266 = vld [vmem:[%s257 + $0x40] sm:$0x7f]
      %v267 = vld [vmem:[%s257 + $0x48] sm:$0x7f]
      %v268 = vld [vmem:[%s257 + $0x50] sm:$0x7f]
      %v269 = vld [vmem:[%s257 + $0x58] sm:$0x7f]
      %v270 = vld [vmem:[%s257 + $0x60] sm:$0x7f]
      %v271 = vld [vmem:[%s257 + $0x68] sm:$0x7f]
      %v272 = vld [vmem:[%s257 + $0x70] sm:$0x7f]
      %v273 = vld [vmem:[%s257 + $0x78] sm:$0x7f]
      %v274 = vld [vmem:[%s257 + $0x80] sm:$0x7f]
      %v275 = vld [vmem:[%s257 + $0x88] sm:$0x7f]
      %v276 = vld [vmem:[%s257 + $0x90] sm:$0x7f]
      %v277 = vld [vmem:[%s257 + $0x98] sm:$0x7f]
      %v278 = vld [vmem:[%s257 + $0xa0] sm:$0x7f]
      %v279 = vld [vmem:[%s257 + $0xa8] sm:$0x7f]
      %v280 = vld [vmem:[%s257 + $0xb0] sm:$0x7f]
      %v281 = vld [vmem:[%s257 + $0xb8] sm:$0x7f]
      %v282 = vld [vmem:[%s257 + $0xc0] sm:$0x7f]
      %v283 = vld [vmem:[%s257 + $0xc8] sm:$0x7f]
      %v284 = vstv %s256
      %v285 = vmul.f32 %v284, %v258
      %v286 = vmul.f32 %v284, %v259
      %v287 = vmul.f32 %v284, %v260
      %v288 = vmul.f32 %v284, %v261
      %v289 = vmul.f32 %v284, %v262
      %v290 = vmul.f32 %v284, %v263
      %v291 = vmul.f32 %v284, %v264
      %v292 = vmul.f32 %v284, %v265
      %v293 = vmul.f32 %v284, %v266
      %v294 = vmul.f32 %v284, %v267
      %v295 = vmul.f32 %v284, %v268
      %v296 = vmul.f32 %v284, %v269
      %v297 = vmul.f32 %v284, %v270
      %v298 = vmul.f32 %v284, %v271
      %v299 = vmul.f32 %v284, %v272
      %v300 = vmul.f32 %v284, %v273
      %v301 = vmul.f32 %v284, %v274
      %v302 = vmul.f32 %v284, %v275
      %v303 = vmul.f32 %v284, %v276
      %v304 = vmul.f32 %v284, %v277
      %v305 = vmul.f32 %v284, %v278
      %v306 = vmul.f32 %v284, %v279
      %v307 = vmul.f32 %v284, %v280
      %v308 = vmul.f32 %v284, %v281
      %v309 = vmul.f32 %v284, %v282
      %v310 = vmul.f32 %v284, %v283
      %v311 = vadd.f32 %v229, %v285
      %v312 = vadd.f32 %v230, %v286
      %v313 = vadd.f32 %v231, %v287
      %v314 = vadd.f32 %v232, %v288
      %v315 = vadd.f32 %v233, %v289
      %v316 = vadd.f32 %v234, %v290
      %v317 = vadd.f32 %v235, %v291
      %v318 = vadd.f32 %v236, %v292
      %v319 = vadd.f32 %v237, %v293
      %v320 = vadd.f32 %v238, %v294
      %v321 = vadd.f32 %v239, %v295
      %v322 = vadd.f32 %v240, %v296
      %v323 = vadd.f32 %v241, %v297
      %v324 = vadd.f32 %v242, %v298
      %v325 = vadd.f32 %v243, %v299
      %v326 = vadd.f32 %v244, %v300
      %v327 = vadd.f32 %v245, %v301
      %v328 = vadd.f32 %v246, %v302
      %v329 = vadd.f32 %v247, %v303
      %v330 = vadd.f32 %v248, %v304
      %v331 = vadd.f32 %v249, %v305
      %v332 = vadd.f32 %v250, %v306
      %v333 = vadd.f32 %v251, %v307
      %v334 = vadd.f32 %v252, %v308
      %v335 = vadd.f32 %v253, %v309
      %v336 = vadd.f32 %v254, %v310
      %s337 = sadd.s32 %s92, 3
      %s338 = sld [smem:[#allocation6 + %s337]]
      %s339 = scalar_lea.vmem %s0, 8
      %v340 = vld [vmem:[%s339] sm:$0x7f]
      %v341 = vld [vmem:[%s339 + $0x8] sm:$0x7f]
      %v342 = vld [vmem:[%s339 + $0x10] sm:$0x7f]
      %v343 = vld [vmem:[%s339 + $0x18] sm:$0x7f]
      %v344 = vld [vmem:[%s339 + $0x20] sm:$0x7f]
      %v345 = vld [vmem:[%s339 + $0x28] sm:$0x7f]
      %v346 = vld [vmem:[%s339 + $0x30] sm:$0x7f]
      %v347 = vld [vmem:[%s339 + $0x38] sm:$0x7f]
      %v348 = vld [vmem:[%s339 + $0x40] sm:$0x7f]
      %v349 = vld [vmem:[%s339 + $0x48] sm:$0x7f]
      %v350 = vld [vmem:[%s339 + $0x50] sm:$0x7f]
      %v351 = vld [vmem:[%s339 + $0x58] sm:$0x7f]
      %v352 = vld [vmem:[%s339 + $0x60] sm:$0x7f]
      %v353 = vld [vmem:[%s339 + $0x68] sm:$0x7f]
      %v354 = vld [vmem:[%s339 + $0x70] sm:$0x7f]
      %v355 = vld [vmem:[%s339 + $0x78] sm:$0x7f]
      %v356 = vld [vmem:[%s339 + $0x80] sm:$0x7f]
      %v357 = vld [vmem:[%s339 + $0x88] sm:$0x7f]
      %v358 = vld [vmem:[%s339 + $0x90] sm:$0x7f]
      %v359 = vld [vmem:[%s339 + $0x98] sm:$0x7f]
      %v360 = vld [vmem:[%s339 + $0xa0] sm:$0x7f]
      %v361 = vld [vmem:[%s339 + $0xa8] sm:$0x7f]
      %v362 = vld [vmem:[%s339 + $0xb0] sm:$0x7f]
      %v363 = vld [vmem:[%s339 + $0xb8] sm:$0x7f]
      %v364 = vld [vmem:[%s339 + $0xc0] sm:$0x7f]
      %v365 = vld [vmem:[%s339 + $0xc8] sm:$0x7f]
      %v366 = vstv %s338
      %v367 = vmul.f32 %v366, %v340
      %v368 = vmul.f32 %v366, %v341
      %v369 = vmul.f32 %v366, %v342
      %v370 = vmul.f32 %v366, %v343
      %v371 = vmul.f32 %v366, %v344
      %v372 = vmul.f32 %v366, %v345
      %v373 = vmul.f32 %v366, %v346
      %v374 = vmul.f32 %v366, %v347
      %v375 = vmul.f32 %v366, %v348
      %v376 = vmul.f32 %v366, %v349
      %v377 = vmul.f32 %v366, %v350
      %v378 = vmul.f32 %v366, %v351
      %v379 = vmul.f32 %v366, %v352
      %v380 = vmul.f32 %v366, %v353
      %v381 = vmul.f32 %v366, %v354
      %v382 = vmul.f32 %v366, %v355
      %v383 = vmul.f32 %v366, %v356
      %v384 = vmul.f32 %v366, %v357
      %v385 = vmul.f32 %v366, %v358
      %v386 = vmul.f32 %v366, %v359
      %v387 = vmul.f32 %v366, %v360
      %v388 = vmul.f32 %v366, %v361
      %v389 = vmul.f32 %v366, %v362
      %v390 = vmul.f32 %v366, %v363
      %v391 = vmul.f32 %v366, %v364
      %v392 = vmul.f32 %v366, %v365
      %v393 = vadd.f32 %v311, %v367
      %v394 = vadd.f32 %v312, %v368
      %v395 = vadd.f32 %v313, %v369
      %v396 = vadd.f32 %v314, %v370
      %v397 = vadd.f32 %v315, %v371
      %v398 = vadd.f32 %v316, %v372
      %v399 = vadd.f32 %v317, %v373
      %v400 = vadd.f32 %v318, %v374
      %v401 = vadd.f32 %v319, %v375
      %v402 = vadd.f32 %v320, %v376
      %v403 = vadd.f32 %v321, %v377
      %v404 = vadd.f32 %v322, %v378
      %v405 = vadd.f32 %v323, %v379
      %v406 = vadd.f32 %v324, %v380
      %v407 = vadd.f32 %v325, %v381
      %v408 = vadd.f32 %v326, %v382
      %v409 = vadd.f32 %v327, %v383
      %v410 = vadd.f32 %v328, %v384
      %v411 = vadd.f32 %v329, %v385
      %v412 = vadd.f32 %v330, %v386
      %v413 = vadd.f32 %v331, %v387
      %v414 = vadd.f32 %v332, %v388
      %v415 = vadd.f32 %v333, %v389
      %v416 = vadd.f32 %v334, %v390
      %v417 = vadd.f32 %v335, %v391
      %v418 = vadd.f32 %v336, %v392
      %s419 = sadd.s32 %s92, 4
      %s420 = sld [smem:[#allocation6 + %s419]]
      %s421 = scalar_lea.vmem %s0, 232
      %v422 = vld [vmem:[%s421] sm:$0x7f]
      %v423 = vld [vmem:[%s421 + $0x8] sm:$0x7f]
      %v424 = vld [vmem:[%s421 + $0x10] sm:$0x7f]
      %v425 = vld [vmem:[%s421 + $0x18] sm:$0x7f]
      %v426 = vld [vmem:[%s421 + $0x20] sm:$0x7f]
      %v427 = vld [vmem:[%s421 + $0x28] sm:$0x7f]
      %v428 = vld [vmem:[%s421 + $0x30] sm:$0x7f]
      %v429 = vld [vmem:[%s421 + $0x38] sm:$0x7f]
      %v430 = vld [vmem:[%s421 + $0x40] sm:$0x7f]
      %v431 = vld [vmem:[%s421 + $0x48] sm:$0x7f]
      %v432 = vld [vmem:[%s421 + $0x50] sm:$0x7f]
      %v433 = vld [vmem:[%s421 + $0x58] sm:$0x7f]
      %v434 = vld [vmem:[%s421 + $0x60] sm:$0x7f]
      %v435 = vld [vmem:[%s421 + $0x68] sm:$0x7f]
      %v436 = vld [vmem:[%s421 + $0x70] sm:$0x7f]
      %v437 = vld [vmem:[%s421 + $0x78] sm:$0x7f]
      %v438 = vld [vmem:[%s421 + $0x80] sm:$0x7f]
      %v439 = vld [vmem:[%s421 + $0x88] sm:$0x7f]
      %v440 = vld [vmem:[%s421 + $0x90] sm:$0x7f]
      %v441 = vld [vmem:[%s421 + $0x98] sm:$0x7f]
      %v442 = vld [vmem:[%s421 + $0xa0] sm:$0x7f]
      %v443 = vld [vmem:[%s421 + $0xa8] sm:$0x7f]
      %v444 = vld [vmem:[%s421 + $0xb0] sm:$0x7f]
      %v445 = vld [vmem:[%s421 + $0xb8] sm:$0x7f]
      %v446 = vld [vmem:[%s421 + $0xc0] sm:$0x7f]
      %v447 = vld [vmem:[%s421 + $0xc8] sm:$0x7f]
      %v448 = vstv %s420
      %v449 = vmul.f32 %v448, %v422
      %v450 = vmul.f32 %v448, %v423
      %v451 = vmul.f32 %v448, %v424
      %v452 = vmul.f32 %v448, %v425
      %v453 = vmul.f32 %v448, %v426
      %v454 = vmul.f32 %v448, %v427
      %v455 = vmul.f32 %v448, %v428
      %v456 = vmul.f32 %v448, %v429
      %v457 = vmul.f32 %v448, %v430
      %v458 = vmul.f32 %v448, %v431
      %v459 = vmul.f32 %v448, %v432
      %v460 = vmul.f32 %v448, %v433
      %v461 = vmul.f32 %v448, %v434
      %v462 = vmul.f32 %v448, %v435
      %v463 = vmul.f32 %v448, %v436
      %v464 = vmul.f32 %v448, %v437
      %v465 = vmul.f32 %v448, %v438
      %v466 = vmul.f32 %v448, %v439
      %v467 = vmul.f32 %v448, %v440
      %v468 = vmul.f32 %v448, %v441
      %v469 = vmul.f32 %v448, %v442
      %v470 = vmul.f32 %v448, %v443
      %v471 = vmul.f32 %v448, %v444
      %v472 = vmul.f32 %v448, %v445
      %v473 = vmul.f32 %v448, %v446
      %v474 = vmul.f32 %v448, %v447
      %v475 = vadd.f32 %v393, %v449
      %v476 = vadd.f32 %v394, %v450
      %v477 = vadd.f32 %v395, %v451
      %v478 = vadd.f32 %v396, %v452
      %v479 = vadd.f32 %v397, %v453
      %v480 = vadd.f32 %v398, %v454
      %v481 = vadd.f32 %v399, %v455
      %v482 = vadd.f32 %v400, %v456
      %v483 = vadd.f32 %v401, %v457
      %v484 = vadd.f32 %v402, %v458
      %v485 = vadd.f32 %v403, %v459
      %v486 = vadd.f32 %v404, %v460
      %v487 = vadd.f32 %v405, %v461
      %v488 = vadd.f32 %v406, %v462
      %v489 = vadd.f32 %v407, %v463
      %v490 = vadd.f32 %v408, %v464
      %v491 = vadd.f32 %v409, %v465
      %v492 = vadd.f32 %v410, %v466
      %v493 = vadd.f32 %v411, %v467
      %v494 = vadd.f32 %v412, %v468
      %v495 = vadd.f32 %v413, %v469
      %v496 = vadd.f32 %v414, %v470
      %v497 = vadd.f32 %v415, %v471
      %v498 = vadd.f32 %v416, %v472
      %v499 = vadd.f32 %v417, %v473
      %v500 = vadd.f32 %v418, %v474
      %s501 = sadd.s32 %s92, 5
      %s502 = sld [smem:[#allocation6 + %s501]]
      %s503 = scalar_lea.vmem %s0, 456
      %v504 = vld [vmem:[%s503] sm:$0x7f]
      %v505 = vld [vmem:[%s503 + $0x8] sm:$0x7f]
      %v506 = vld [vmem:[%s503 + $0x10] sm:$0x7f]
      %v507 = vld [vmem:[%s503 + $0x18] sm:$0x7f]
      %v508 = vld [vmem:[%s503 + $0x20] sm:$0x7f]
      %v509 = vld [vmem:[%s503 + $0x28] sm:$0x7f]
      %v510 = vld [vmem:[%s503 + $0x30] sm:$0x7f]
      %v511 = vld [vmem:[%s503 + $0x38] sm:$0x7f]
      %v512 = vld [vmem:[%s503 + $0x40] sm:$0x7f]
      %v513 = vld [vmem:[%s503 + $0x48] sm:$0x7f]
      %v514 = vld [vmem:[%s503 + $0x50] sm:$0x7f]
      %v515 = vld [vmem:[%s503 + $0x58] sm:$0x7f]
      %v516 = vld [vmem:[%s503 + $0x60] sm:$0x7f]
      %v517 = vld [vmem:[%s503 + $0x68] sm:$0x7f]
      %v518 = vld [vmem:[%s503 + $0x70] sm:$0x7f]
      %v519 = vld [vmem:[%s503 + $0x78] sm:$0x7f]
      %v520 = vld [vmem:[%s503 + $0x80] sm:$0x7f]
      %v521 = vld [vmem:[%s503 + $0x88] sm:$0x7f]
      %v522 = vld [vmem:[%s503 + $0x90] sm:$0x7f]
      %v523 = vld [vmem:[%s503 + $0x98] sm:$0x7f]
      %v524 = vld [vmem:[%s503 + $0xa0] sm:$0x7f]
      %v525 = vld [vmem:[%s503 + $0xa8] sm:$0x7f]
      %v526 = vld [vmem:[%s503 + $0xb0] sm:$0x7f]
      %v527 = vld [vmem:[%s503 + $0xb8] sm:$0x7f]
      %v528 = vld [vmem:[%s503 + $0xc0] sm:$0x7f]
      %v529 = vld [vmem:[%s503 + $0xc8] sm:$0x7f]
      %v530 = vstv %s502
      %v531 = vmul.f32 %v530, %v504
      %v532 = vmul.f32 %v530, %v505
      %v533 = vmul.f32 %v530, %v506
      %v534 = vmul.f32 %v530, %v507
      %v535 = vmul.f32 %v530, %v508
      %v536 = vmul.f32 %v530, %v509
      %v537 = vmul.f32 %v530, %v510
      %v538 = vmul.f32 %v530, %v511
      %v539 = vmul.f32 %v530, %v512
      %v540 = vmul.f32 %v530, %v513
      %v541 = vmul.f32 %v530, %v514
      %v542 = vmul.f32 %v530, %v515
      %v543 = vmul.f32 %v530, %v516
      %v544 = vmul.f32 %v530, %v517
      %v545 = vmul.f32 %v530, %v518
      %v546 = vmul.f32 %v530, %v519
      %v547 = vmul.f32 %v530, %v520
      %v548 = vmul.f32 %v530, %v521
      %v549 = vmul.f32 %v530, %v522
      %v550 = vmul.f32 %v530, %v523
      %v551 = vmul.f32 %v530, %v524
      %v552 = vmul.f32 %v530, %v525
      %v553 = vmul.f32 %v530, %v526
      %v554 = vmul.f32 %v530, %v527
      %v555 = vmul.f32 %v530, %v528
      %v556 = vmul.f32 %v530, %v529
      %v557 = vadd.f32 %v475, %v531
      %v558 = vadd.f32 %v476, %v532
      %v559 = vadd.f32 %v477, %v533
      %v560 = vadd.f32 %v478, %v534
      %v561 = vadd.f32 %v479, %v535
      %v562 = vadd.f32 %v480, %v536
      %v563 = vadd.f32 %v481, %v537
      %v564 = vadd.f32 %v482, %v538
      %v565 = vadd.f32 %v483, %v539
      %v566 = vadd.f32 %v484, %v540
      %v567 = vadd.f32 %v485, %v541
      %v568 = vadd.f32 %v486, %v542
      %v569 = vadd.f32 %v487, %v543
      %v570 = vadd.f32 %v488, %v544
      %v571 = vadd.f32 %v489, %v545
      %v572 = vadd.f32 %v490, %v546
      %v573 = vadd.f32 %v491, %v547
      %v574 = vadd.f32 %v492, %v548
      %v575 = vadd.f32 %v493, %v549
      %v576 = vadd.f32 %v494, %v550
      %v577 = vadd.f32 %v495, %v551
      %v578 = vadd.f32 %v496, %v552
      %v579 = vadd.f32 %v497, %v553
      %v580 = vadd.f32 %v498, %v554
      %v581 = vadd.f32 %v499, %v555
      %v582 = vadd.f32 %v500, %v556
      %s583 = sadd.s32 %s92, 6
      %s584 = sld [smem:[#allocation6 + %s583]]
      %s585 = scalar_lea.vmem %s0, 16
      %v586 = vld [vmem:[%s585] sm:$0x7f]
      %v587 = vld [vmem:[%s585 + $0x8] sm:$0x7f]
      %v588 = vld [vmem:[%s585 + $0x10] sm:$0x7f]
      %v589 = vld [vmem:[%s585 + $0x18] sm:$0x7f]
      %v590 = vld [vmem:[%s585 + $0x20] sm:$0x7f]
      %v591 = vld [vmem:[%s585 + $0x28] sm:$0x7f]
      %v592 = vld [vmem:[%s585 + $0x30] sm:$0x7f]
      %v593 = vld [vmem:[%s585 + $0x38] sm:$0x7f]
      %v594 = vld [vmem:[%s585 + $0x40] sm:$0x7f]
      %v595 = vld [vmem:[%s585 + $0x48] sm:$0x7f]
      %v596 = vld [vmem:[%s585 + $0x50] sm:$0x7f]
      %v597 = vld [vmem:[%s585 + $0x58] sm:$0x7f]
      %v598 = vld [vmem:[%s585 + $0x60] sm:$0x7f]
      %v599 = vld [vmem:[%s585 + $0x68] sm:$0x7f]
      %v600 = vld [vmem:[%s585 + $0x70] sm:$0x7f]
      %v601 = vld [vmem:[%s585 + $0x78] sm:$0x7f]
      %v602 = vld [vmem:[%s585 + $0x80] sm:$0x7f]
      %v603 = vld [vmem:[%s585 + $0x88] sm:$0x7f]
      %v604 = vld [vmem:[%s585 + $0x90] sm:$0x7f]
      %v605 = vld [vmem:[%s585 + $0x98] sm:$0x7f]
      %v606 = vld [vmem:[%s585 + $0xa0] sm:$0x7f]
      %v607 = vld [vmem:[%s585 + $0xa8] sm:$0x7f]
      %v608 = vld [vmem:[%s585 + $0xb0] sm:$0x7f]
      %v609 = vld [vmem:[%s585 + $0xb8] sm:$0x7f]
      %v610 = vld [vmem:[%s585 + $0xc0] sm:$0x7f]
      %v611 = vld [vmem:[%s585 + $0xc8] sm:$0x7f]
      %v612 = vstv %s584
      %v613 = vmul.f32 %v612, %v586
      %v614 = vmul.f32 %v612, %v587
      %v615 = vmul.f32 %v612, %v588
      %v616 = vmul.f32 %v612, %v589
      %v617 = vmul.f32 %v612, %v590
      %v618 = vmul.f32 %v612, %v591
      %v619 = vmul.f32 %v612, %v592
      %v620 = vmul.f32 %v612, %v593
      %v621 = vmul.f32 %v612, %v594
      %v622 = vmul.f32 %v612, %v595
      %v623 = vmul.f32 %v612, %v596
      %v624 = vmul.f32 %v612, %v597
      %v625 = vmul.f32 %v612, %v598
      %v626 = vmul.f32 %v612, %v599
      %v627 = vmul.f32 %v612, %v600
      %v628 = vmul.f32 %v612, %v601
      %v629 = vmul.f32 %v612, %v602
      %v630 = vmul.f32 %v612, %v603
      %v631 = vmul.f32 %v612, %v604
      %v632 = vmul.f32 %v612, %v605
      %v633 = vmul.f32 %v612, %v606
      %v634 = vmul.f32 %v612, %v607
      %v635 = vmul.f32 %v612, %v608
      %v636 = vmul.f32 %v612, %v609
      %v637 = vmul.f32 %v612, %v610
      %v638 = vmul.f32 %v612, %v611
      %v639 = vadd.f32 %v557, %v613
      %v640 = vadd.f32 %v558, %v614
      %v641 = vadd.f32 %v559, %v615
      %v642 = vadd.f32 %v560, %v616
      %v643 = vadd.f32 %v561, %v617
      %v644 = vadd.f32 %v562, %v618
      %v645 = vadd.f32 %v563, %v619
      %v646 = vadd.f32 %v564, %v620
      %v647 = vadd.f32 %v565, %v621
      %v648 = vadd.f32 %v566, %v622
      %v649 = vadd.f32 %v567, %v623
      %v650 = vadd.f32 %v568, %v624
      %v651 = vadd.f32 %v569, %v625
      %v652 = vadd.f32 %v570, %v626
      %v653 = vadd.f32 %v571, %v627
      %v654 = vadd.f32 %v572, %v628
      %v655 = vadd.f32 %v573, %v629
      %v656 = vadd.f32 %v574, %v630
      %v657 = vadd.f32 %v575, %v631
      %v658 = vadd.f32 %v576, %v632
      %v659 = vadd.f32 %v577, %v633
      %v660 = vadd.f32 %v578, %v634
      %v661 = vadd.f32 %v579, %v635
      %v662 = vadd.f32 %v580, %v636
      %v663 = vadd.f32 %v581, %v637
      %v664 = vadd.f32 %v582, %v638
      %s665 = sadd.s32 %s92, 7
      %s666 = sld [smem:[#allocation6 + %s665]]
      %s667 = scalar_lea.vmem %s0, 240
      %v668 = vld [vmem:[%s667] sm:$0x7f]
      %v669 = vld [vmem:[%s667 + $0x8] sm:$0x7f]
      %v670 = vld [vmem:[%s667 + $0x10] sm:$0x7f]
      %v671 = vld [vmem:[%s667 + $0x18] sm:$0x7f]
      %v672 = vld [vmem:[%s667 + $0x20] sm:$0x7f]
      %v673 = vld [vmem:[%s667 + $0x28] sm:$0x7f]
      %v674 = vld [vmem:[%s667 + $0x30] sm:$0x7f]
      %v675 = vld [vmem:[%s667 + $0x38] sm:$0x7f]
      %v676 = vld [vmem:[%s667 + $0x40] sm:$0x7f]
      %v677 = vld [vmem:[%s667 + $0x48] sm:$0x7f]
      %v678 = vld [vmem:[%s667 + $0x50] sm:$0x7f]
      %v679 = vld [vmem:[%s667 + $0x58] sm:$0x7f]
      %v680 = vld [vmem:[%s667 + $0x60] sm:$0x7f]
      %v681 = vld [vmem:[%s667 + $0x68] sm:$0x7f]
      %v682 = vld [vmem:[%s667 + $0x70] sm:$0x7f]
      %v683 = vld [vmem:[%s667 + $0x78] sm:$0x7f]
      %v684 = vld [vmem:[%s667 + $0x80] sm:$0x7f]
      %v685 = vld [vmem:[%s667 + $0x88] sm:$0x7f]
      %v686 = vld [vmem:[%s667 + $0x90] sm:$0x7f]
      %v687 = vld [vmem:[%s667 + $0x98] sm:$0x7f]
      %v688 = vld [vmem:[%s667 + $0xa0] sm:$0x7f]
      %v689 = vld [vmem:[%s667 + $0xa8] sm:$0x7f]
      %v690 = vld [vmem:[%s667 + $0xb0] sm:$0x7f]
      %v691 = vld [vmem:[%s667 + $0xb8] sm:$0x7f]
      %v692 = vld [vmem:[%s667 + $0xc0] sm:$0x7f]
      %v693 = vld [vmem:[%s667 + $0xc8] sm:$0x7f]
      %v694 = vstv %s666
      %v695 = vmul.f32 %v694, %v668
      %v696 = vmul.f32 %v694, %v669
      %v697 = vmul.f32 %v694, %v670
      %v698 = vmul.f32 %v694, %v671
      %v699 = vmul.f32 %v694, %v672
      %v700 = vmul.f32 %v694, %v673
      %v701 = vmul.f32 %v694, %v674
      %v702 = vmul.f32 %v694, %v675
      %v703 = vmul.f32 %v694, %v676
      %v704 = vmul.f32 %v694, %v677
      %v705 = vmul.f32 %v694, %v678
      %v706 = vmul.f32 %v694, %v679
      %v707 = vmul.f32 %v694, %v680
      %v708 = vmul.f32 %v694, %v681
      %v709 = vmul.f32 %v694, %v682
      %v710 = vmul.f32 %v694, %v683
      %v711 = vmul.f32 %v694, %v684
      %v712 = vmul.f32 %v694, %v685
      %v713 = vmul.f32 %v694, %v686
      %v714 = vmul.f32 %v694, %v687
      %v715 = vmul.f32 %v694, %v688
      %v716 = vmul.f32 %v694, %v689
      %v717 = vmul.f32 %v694, %v690
      %v718 = vmul.f32 %v694, %v691
      %v719 = vmul.f32 %v694, %v692
      %v720 = vmul.f32 %v694, %v693
      %v721 = vadd.f32 %v639, %v695
      %v722 = vadd.f32 %v640, %v696
      %v723 = vadd.f32 %v641, %v697
      %v724 = vadd.f32 %v642, %v698
      %v725 = vadd.f32 %v643, %v699
      %v726 = vadd.f32 %v644, %v700
      %v727 = vadd.f32 %v645, %v701
      %v728 = vadd.f32 %v646, %v702
      %v729 = vadd.f32 %v647, %v703
      %v730 = vadd.f32 %v648, %v704
      %v731 = vadd.f32 %v649, %v705
      %v732 = vadd.f32 %v650, %v706
      %v733 = vadd.f32 %v651, %v707
      %v734 = vadd.f32 %v652, %v708
      %v735 = vadd.f32 %v653, %v709
      %v736 = vadd.f32 %v654, %v710
      %v737 = vadd.f32 %v655, %v711
      %v738 = vadd.f32 %v656, %v712
      %v739 = vadd.f32 %v657, %v713
      %v740 = vadd.f32 %v658, %v714
      %v741 = vadd.f32 %v659, %v715
      %v742 = vadd.f32 %v660, %v716
      %v743 = vadd.f32 %v661, %v717
      %v744 = vadd.f32 %v662, %v718
      %v745 = vadd.f32 %v663, %v719
      %v746 = vadd.f32 %v664, %v720
      %s747 = sadd.s32 %s92, 8
      %s748 = sld [smem:[#allocation6 + %s747]]
      %s749 = scalar_lea.vmem %s0, 464
      %v750 = vld [vmem:[%s749] sm:$0x7f]
      %v751 = vld [vmem:[%s749 + $0x8] sm:$0x7f]
      %v752 = vld [vmem:[%s749 + $0x10] sm:$0x7f]
      %v753 = vld [vmem:[%s749 + $0x18] sm:$0x7f]
      %v754 = vld [vmem:[%s749 + $0x20] sm:$0x7f]
      %v755 = vld [vmem:[%s749 + $0x28] sm:$0x7f]
      %v756 = vld [vmem:[%s749 + $0x30] sm:$0x7f]
      %v757 = vld [vmem:[%s749 + $0x38] sm:$0x7f]
      %v758 = vld [vmem:[%s749 + $0x40] sm:$0x7f]
      %v759 = vld [vmem:[%s749 + $0x48] sm:$0x7f]
      %v760 = vld [vmem:[%s749 + $0x50] sm:$0x7f]
      %v761 = vld [vmem:[%s749 + $0x58] sm:$0x7f]
      %v762 = vld [vmem:[%s749 + $0x60] sm:$0x7f]
      %v763 = vld [vmem:[%s749 + $0x68] sm:$0x7f]
      %v764 = vld [vmem:[%s749 + $0x70] sm:$0x7f]
      %v765 = vld [vmem:[%s749 + $0x78] sm:$0x7f]
      %v766 = vld [vmem:[%s749 + $0x80] sm:$0x7f]
      %v767 = vld [vmem:[%s749 + $0x88] sm:$0x7f]
      %v768 = vld [vmem:[%s749 + $0x90] sm:$0x7f]
      %v769 = vld [vmem:[%s749 + $0x98] sm:$0x7f]
      %v770 = vld [vmem:[%s749 + $0xa0] sm:$0x7f]
      %v771 = vld [vmem:[%s749 + $0xa8] sm:$0x7f]
      %v772 = vld [vmem:[%s749 + $0xb0] sm:$0x7f]
      %v773 = vld [vmem:[%s749 + $0xb8] sm:$0x7f]
      %v774 = vld [vmem:[%s749 + $0xc0] sm:$0x7f]
      %v775 = vld [vmem:[%s749 + $0xc8] sm:$0x7f]
      %v776 = vstv %s748
      %v777 = vmul.f32 %v776, %v750
      %v778 = vmul.f32 %v776, %v751
      %v779 = vmul.f32 %v776, %v752
      %v780 = vmul.f32 %v776, %v753
      %v781 = vmul.f32 %v776, %v754
      %v782 = vmul.f32 %v776, %v755
      %v783 = vmul.f32 %v776, %v756
      %v784 = vmul.f32 %v776, %v757
      %v785 = vmul.f32 %v776, %v758
      %v786 = vmul.f32 %v776, %v759
      %v787 = vmul.f32 %v776, %v760
      %v788 = vmul.f32 %v776, %v761
      %v789 = vmul.f32 %v776, %v762
      %v790 = vmul.f32 %v776, %v763
      %v791 = vmul.f32 %v776, %v764
      %v792 = vmul.f32 %v776, %v765
      %v793 = vmul.f32 %v776, %v766
      %v794 = vmul.f32 %v776, %v767
      %v795 = vmul.f32 %v776, %v768
      %v796 = vmul.f32 %v776, %v769
      %v797 = vmul.f32 %v776, %v770
      %v798 = vmul.f32 %v776, %v771
      %v799 = vmul.f32 %v776, %v772
      %v800 = vmul.f32 %v776, %v773
      %v801 = vmul.f32 %v776, %v774
      %v802 = vmul.f32 %v776, %v775
      %v803 = vadd.f32 %v721, %v777
      %v804 = vadd.f32 %v722, %v778
      %v805 = vadd.f32 %v723, %v779
      %v806 = vadd.f32 %v724, %v780
      %v807 = vadd.f32 %v725, %v781
      %v808 = vadd.f32 %v726, %v782
      %v809 = vadd.f32 %v727, %v783
      %v810 = vadd.f32 %v728, %v784
      %v811 = vadd.f32 %v729, %v785
      %v812 = vadd.f32 %v730, %v786
      %v813 = vadd.f32 %v731, %v787
      %v814 = vadd.f32 %v732, %v788
      %v815 = vadd.f32 %v733, %v789
      %v816 = vadd.f32 %v734, %v790
      %v817 = vadd.f32 %v735, %v791
      %v818 = vadd.f32 %v736, %v792
      %v819 = vadd.f32 %v737, %v793
      %v820 = vadd.f32 %v738, %v794
      %v821 = vadd.f32 %v739, %v795
      %v822 = vadd.f32 %v740, %v796
      %v823 = vadd.f32 %v741, %v797
      %v824 = vadd.f32 %v742, %v798
      %v825 = vadd.f32 %v743, %v799
      %v826 = vadd.f32 %v744, %v800
      %v827 = vadd.f32 %v745, %v801
      %v828 = vadd.f32 %v746, %v802
      %v829 = vmul.f32 %v120, %v176
      %v830 = vmul.f32 %v120, %v177
      %v831 = vmul.f32 %v120, %v178
      %v832 = vmul.f32 %v120, %v179
      %v833 = vmul.f32 %v120, %v180
      %v834 = vmul.f32 %v120, %v181
      %v835 = vmul.f32 %v120, %v182
      %v836 = vmul.f32 %v120, %v183
      %v837 = vmul.f32 %v120, %v184
      %v838 = vmul.f32 %v120, %v185
      %v839 = vmul.f32 %v120, %v186
      %v840 = vmul.f32 %v120, %v187
      %v841 = vmul.f32 %v120, %v188
      %v842 = vmul.f32 %v120, %v189
      %v843 = vmul.f32 %v120, %v190
      %v844 = vmul.f32 %v120, %v191
      %v845 = vmul.f32 %v120, %v192
      %v846 = vmul.f32 %v120, %v193
      %v847 = vmul.f32 %v120, %v194
      %v848 = vmul.f32 %v120, %v195
      %v849 = vmul.f32 %v120, %v196
      %v850 = vmul.f32 %v120, %v197
      %v851 = vmul.f32 %v120, %v198
      %v852 = vmul.f32 %v120, %v199
      %v853 = vmul.f32 %v120, %v200
      %v854 = vmul.f32 %v120, %v201
      %v855 = vadd.f32 %v829, 0.0
      %v856 = vadd.f32 %v830, 0.0
      %v857 = vadd.f32 %v831, 0.0
      %v858 = vadd.f32 %v832, 0.0
      %v859 = vadd.f32 %v833, 0.0
      %v860 = vadd.f32 %v834, 0.0
      %v861 = vadd.f32 %v835, 0.0
      %v862 = vadd.f32 %v836, 0.0
      %v863 = vadd.f32 %v837, 0.0
      %v864 = vadd.f32 %v838, 0.0
      %v865 = vadd.f32 %v839, 0.0
      %v866 = vadd.f32 %v840, 0.0
      %v867 = vadd.f32 %v841, 0.0
      %v868 = vadd.f32 %v842, 0.0
      %v869 = vadd.f32 %v843, 0.0
      %v870 = vadd.f32 %v844, 0.0
      %v871 = vadd.f32 %v845, 0.0
      %v872 = vadd.f32 %v846, 0.0
      %v873 = vadd.f32 %v847, 0.0
      %v874 = vadd.f32 %v848, 0.0
      %v875 = vadd.f32 %v849, 0.0
      %v876 = vadd.f32 %v850, 0.0
      %v877 = vadd.f32 %v851, 0.0
      %v878 = vadd.f32 %v852, 0.0
      %v879 = vadd.f32 %v853, 0.0
      %v880 = vadd.f32 %v854, 0.0
      %v881 = vmul.f32 %v202, %v258
      %v882 = vmul.f32 %v202, %v259
      %v883 = vmul.f32 %v202, %v260
      %v884 = vmul.f32 %v202, %v261
      %v885 = vmul.f32 %v202, %v262
      %v886 = vmul.f32 %v202, %v263
      %v887 = vmul.f32 %v202, %v264
      %v888 = vmul.f32 %v202, %v265
      %v889 = vmul.f32 %v202, %v266
      %v890 = vmul.f32 %v202, %v267
      %v891 = vmul.f32 %v202, %v268
      %v892 = vmul.f32 %v202, %v269
      %v893 = vmul.f32 %v202, %v270
      %v894 = vmul.f32 %v202, %v271
      %v895 = vmul.f32 %v202, %v272
      %v896 = vmul.f32 %v202, %v273
      %v897 = vmul.f32 %v202, %v274
      %v898 = vmul.f32 %v202, %v275
      %v899 = vmul.f32 %v202, %v276
      %v900 = vmul.f32 %v202, %v277
      %v901 = vmul.f32 %v202, %v278
      %v902 = vmul.f32 %v202, %v279
      %v903 = vmul.f32 %v202, %v280
      %v904 = vmul.f32 %v202, %v281
      %v905 = vmul.f32 %v202, %v282
      %v906 = vmul.f32 %v202, %v283
      %v907 = vadd.f32 %v855, %v881
      %v908 = vadd.f32 %v856, %v882
      %v909 = vadd.f32 %v857, %v883
      %v910 = vadd.f32 %v858, %v884
      %v911 = vadd.f32 %v859, %v885
      %v912 = vadd.f32 %v860, %v886
      %v913 = vadd.f32 %v861, %v887
      %v914 = vadd.f32 %v862, %v888
      %v915 = vadd.f32 %v863, %v889
      %v916 = vadd.f32 %v864, %v890
      %v917 = vadd.f32 %v865, %v891
      %v918 = vadd.f32 %v866, %v892
      %v919 = vadd.f32 %v867, %v893
      %v920 = vadd.f32 %v868, %v894
      %v921 = vadd.f32 %v869, %v895
      %v922 = vadd.f32 %v870, %v896
      %v923 = vadd.f32 %v871, %v897
      %v924 = vadd.f32 %v872, %v898
      %v925 = vadd.f32 %v873, %v899
      %v926 = vadd.f32 %v874, %v900
      %v927 = vadd.f32 %v875, %v901
      %v928 = vadd.f32 %v876, %v902
      %v929 = vadd.f32 %v877, %v903
      %v930 = vadd.f32 %v878, %v904
      %v931 = vadd.f32 %v879, %v905
      %v932 = vadd.f32 %v880, %v906
      %s933 = scalar_lea.vmem %s0, 672
      %v934 = vld [vmem:[%s933] sm:$0x7f]
      %v935 = vld [vmem:[%s933 + $0x8] sm:$0x7f]
      %v936 = vld [vmem:[%s933 + $0x10] sm:$0x7f]
      %v937 = vld [vmem:[%s933 + $0x18] sm:$0x7f]
      %v938 = vld [vmem:[%s933 + $0x20] sm:$0x7f]
      %v939 = vld [vmem:[%s933 + $0x28] sm:$0x7f]
      %v940 = vld [vmem:[%s933 + $0x30] sm:$0x7f]
      %v941 = vld [vmem:[%s933 + $0x38] sm:$0x7f]
      %v942 = vld [vmem:[%s933 + $0x40] sm:$0x7f]
      %v943 = vld [vmem:[%s933 + $0x48] sm:$0x7f]
      %v944 = vld [vmem:[%s933 + $0x50] sm:$0x7f]
      %v945 = vld [vmem:[%s933 + $0x58] sm:$0x7f]
      %v946 = vld [vmem:[%s933 + $0x60] sm:$0x7f]
      %v947 = vld [vmem:[%s933 + $0x68] sm:$0x7f]
      %v948 = vld [vmem:[%s933 + $0x70] sm:$0x7f]
      %v949 = vld [vmem:[%s933 + $0x78] sm:$0x7f]
      %v950 = vld [vmem:[%s933 + $0x80] sm:$0x7f]
      %v951 = vld [vmem:[%s933 + $0x88] sm:$0x7f]
      %v952 = vld [vmem:[%s933 + $0x90] sm:$0x7f]
      %v953 = vld [vmem:[%s933 + $0x98] sm:$0x7f]
      %v954 = vld [vmem:[%s933 + $0xa0] sm:$0x7f]
      %v955 = vld [vmem:[%s933 + $0xa8] sm:$0x7f]
      %v956 = vld [vmem:[%s933 + $0xb0] sm:$0x7f]
      %v957 = vld [vmem:[%s933 + $0xb8] sm:$0x7f]
      %v958 = vld [vmem:[%s933 + $0xc0] sm:$0x7f]
      %v959 = vld [vmem:[%s933 + $0xc8] sm:$0x7f]
      %v960 = vmul.f32 %v284, %v934
      %v961 = vmul.f32 %v284, %v935
      %v962 = vmul.f32 %v284, %v936
      %v963 = vmul.f32 %v284, %v937
      %v964 = vmul.f32 %v284, %v938
      %v965 = vmul.f32 %v284, %v939
      %v966 = vmul.f32 %v284, %v940
      %v967 = vmul.f32 %v284, %v941
      %v968 = vmul.f32 %v284, %v942
      %v969 = vmul.f32 %v284, %v943
      %v970 = vmul.f32 %v284, %v944
      %v971 = vmul.f32 %v284, %v945
      %v972 = vmul.f32 %v284, %v946
      %v973 = vmul.f32 %v284, %v947
      %v974 = vmul.f32 %v284, %v948
      %v975 = vmul.f32 %v284, %v949
      %v976 = vmul.f32 %v284, %v950
      %v977 = vmul.f32 %v284, %v951
      %v978 = vmul.f32 %v284, %v952
      %v979 = vmul.f32 %v284, %v953
      %v980 = vmul.f32 %v284, %v954
      %v981 = vmul.f32 %v284, %v955
      %v982 = vmul.f32 %v284, %v956
      %v983 = vmul.f32 %v284, %v957
      %v984 = vmul.f32 %v284, %v958
      %v985 = vmul.f32 %v284, %v959
      %v986 = vadd.f32 %v907, %v960
      %v987 = vadd.f32 %v908, %v961
      %v988 = vadd.f32 %v909, %v962
      %v989 = vadd.f32 %v910, %v963
      %v990 = vadd.f32 %v911, %v964
      %v991 = vadd.f32 %v912, %v965
      %v992 = vadd.f32 %v913, %v966
      %v993 = vadd.f32 %v914, %v967
      %v994 = vadd.f32 %v915, %v968
      %v995 = vadd.f32 %v916, %v969
      %v996 = vadd.f32 %v917, %v970
      %v997 = vadd.f32 %v918, %v971
      %v998 = vadd.f32 %v919, %v972
      %v999 = vadd.f32 %v920, %v973
      %v1000 = vadd.f32 %v921, %v974
      %v1001 = vadd.f32 %v922, %v975
      %v1002 = vadd.f32 %v923, %v976
      %v1003 = vadd.f32 %v924, %v977
      %v1004 = vadd.f32 %v925, %v978
      %v1005 = vadd.f32 %v926, %v979
      %v1006 = vadd.f32 %v927, %v980
      %v1007 = vadd.f32 %v928, %v981
      %v1008 = vadd.f32 %v929, %v982
      %v1009 = vadd.f32 %v930, %v983
      %v1010 = vadd.f32 %v931, %v984
      %v1011 = vadd.f32 %v932, %v985
      %v1012 = vmul.f32 %v366, %v422
      %v1013 = vmul.f32 %v366, %v423
      %v1014 = vmul.f32 %v366, %v424
      %v1015 = vmul.f32 %v366, %v425
      %v1016 = vmul.f32 %v366, %v426
      %v1017 = vmul.f32 %v366, %v427
      %v1018 = vmul.f32 %v366, %v428
      %v1019 = vmul.f32 %v366, %v429
      %v1020 = vmul.f32 %v366, %v430
      %v1021 = vmul.f32 %v366, %v431
      %v1022 = vmul.f32 %v366, %v432
      %v1023 = vmul.f32 %v366, %v433
      %v1024 = vmul.f32 %v366, %v434
      %v1025 = vmul.f32 %v366, %v435
      %v1026 = vmul.f32 %v366, %v436
      %v1027 = vmul.f32 %v366, %v437
      %v1028 = vmul.f32 %v366, %v438
      %v1029 = vmul.f32 %v366, %v439
      %v1030 = vmul.f32 %v366, %v440
      %v1031 = vmul.f32 %v366, %v441
      %v1032 = vmul.f32 %v366, %v442
      %v1033 = vmul.f32 %v366, %v443
      %v1034 = vmul.f32 %v366, %v444
      %v1035 = vmul.f32 %v366, %v445
      %v1036 = vmul.f32 %v366, %v446
      %v1037 = vmul.f32 %v366, %v447
      %v1038 = vadd.f32 %v986, %v1012
      %v1039 = vadd.f32 %v987, %v1013
      %v1040 = vadd.f32 %v988, %v1014
      %v1041 = vadd.f32 %v989, %v1015
      %v1042 = vadd.f32 %v990, %v1016
      %v1043 = vadd.f32 %v991, %v1017
      %v1044 = vadd.f32 %v992, %v1018
      %v1045 = vadd.f32 %v993, %v1019
      %v1046 = vadd.f32 %v994, %v1020
      %v1047 = vadd.f32 %v995, %v1021
      %v1048 = vadd.f32 %v996, %v1022
      %v1049 = vadd.f32 %v997, %v1023
      %v1050 = vadd.f32 %v998, %v1024
      %v1051 = vadd.f32 %v999, %v1025
      %v1052 = vadd.f32 %v1000, %v1026
      %v1053 = vadd.f32 %v1001, %v1027
      %v1054 = vadd.f32 %v1002, %v1028
      %v1055 = vadd.f32 %v1003, %v1029
      %v1056 = vadd.f32 %v1004, %v1030
      %v1057 = vadd.f32 %v1005, %v1031
      %v1058 = vadd.f32 %v1006, %v1032
      %v1059 = vadd.f32 %v1007, %v1033
      %v1060 = vadd.f32 %v1008, %v1034
      %v1061 = vadd.f32 %v1009, %v1035
      %v1062 = vadd.f32 %v1010, %v1036
      %v1063 = vadd.f32 %v1011, %v1037
      %v1064 = vmul.f32 %v448, %v504
      %v1065 = vmul.f32 %v448, %v505
      %v1066 = vmul.f32 %v448, %v506
      %v1067 = vmul.f32 %v448, %v507
      %v1068 = vmul.f32 %v448, %v508
      %v1069 = vmul.f32 %v448, %v509
      %v1070 = vmul.f32 %v448, %v510
      %v1071 = vmul.f32 %v448, %v511
      %v1072 = vmul.f32 %v448, %v512
      %v1073 = vmul.f32 %v448, %v513
      %v1074 = vmul.f32 %v448, %v514
      %v1075 = vmul.f32 %v448, %v515
      %v1076 = vmul.f32 %v448, %v516
      %v1077 = vmul.f32 %v448, %v517
      %v1078 = vmul.f32 %v448, %v518
      %v1079 = vmul.f32 %v448, %v519
      %v1080 = vmul.f32 %v448, %v520
      %v1081 = vmul.f32 %v448, %v521
      %v1082 = vmul.f32 %v448, %v522
      %v1083 = vmul.f32 %v448, %v523
      %v1084 = vmul.f32 %v448, %v524
      %v1085 = vmul.f32 %v448, %v525
      %v1086 = vmul.f32 %v448, %v526
      %v1087 = vmul.f32 %v448, %v527
      %v1088 = vmul.f32 %v448, %v528
      %v1089 = vmul.f32 %v448, %v529
      %v1090 = vadd.f32 %v1038, %v1064
      %v1091 = vadd.f32 %v1039, %v1065
      %v1092 = vadd.f32 %v1040, %v1066
      %v1093 = vadd.f32 %v1041, %v1067
      %v1094 = vadd.f32 %v1042, %v1068
      %v1095 = vadd.f32 %v1043, %v1069
      %v1096 = vadd.f32 %v1044, %v1070
      %v1097 = vadd.f32 %v1045, %v1071
      %v1098 = vadd.f32 %v1046, %v1072
      %v1099 = vadd.f32 %v1047, %v1073
      %v1100 = vadd.f32 %v1048, %v1074
      %v1101 = vadd.f32 %v1049, %v1075
      %v1102 = vadd.f32 %v1050, %v1076
      %v1103 = vadd.f32 %v1051, %v1077
      %v1104 = vadd.f32 %v1052, %v1078
      %v1105 = vadd.f32 %v1053, %v1079
      %v1106 = vadd.f32 %v1054, %v1080
      %v1107 = vadd.f32 %v1055, %v1081
      %v1108 = vadd.f32 %v1056, %v1082
      %v1109 = vadd.f32 %v1057, %v1083
      %v1110 = vadd.f32 %v1058, %v1084
      %v1111 = vadd.f32 %v1059, %v1085
      %v1112 = vadd.f32 %v1060, %v1086
      %v1113 = vadd.f32 %v1061, %v1087
      %v1114 = vadd.f32 %v1062, %v1088
      %v1115 = vadd.f32 %v1063, %v1089
      %s1116 = scalar_lea.vmem %s0, 680
      %v1117 = vld [vmem:[%s1116] sm:$0x7f]
      %v1118 = vld [vmem:[%s1116 + $0x8] sm:$0x7f]
      %v1119 = vld [vmem:[%s1116 + $0x10] sm:$0x7f]
      %v1120 = vld [vmem:[%s1116 + $0x18] sm:$0x7f]
      %v1121 = vld [vmem:[%s1116 + $0x20] sm:$0x7f]
      %v1122 = vld [vmem:[%s1116 + $0x28] sm:$0x7f]
      %v1123 = vld [vmem:[%s1116 + $0x30] sm:$0x7f]
      %v1124 = vld [vmem:[%s1116 + $0x38] sm:$0x7f]
      %v1125 = vld [vmem:[%s1116 + $0x40] sm:$0x7f]
      %v1126 = vld [vmem:[%s1116 + $0x48] sm:$0x7f]
      %v1127 = vld [vmem:[%s1116 + $0x50] sm:$0x7f]
      %v1128 = vld [vmem:[%s1116 + $0x58] sm:$0x7f]
      %v1129 = vld [vmem:[%s1116 + $0x60] sm:$0x7f]
      %v1130 = vld [vmem:[%s1116 + $0x68] sm:$0x7f]
      %v1131 = vld [vmem:[%s1116 + $0x70] sm:$0x7f]
      %v1132 = vld [vmem:[%s1116 + $0x78] sm:$0x7f]
      %v1133 = vld [vmem:[%s1116 + $0x80] sm:$0x7f]
      %v1134 = vld [vmem:[%s1116 + $0x88] sm:$0x7f]
      %v1135 = vld [vmem:[%s1116 + $0x90] sm:$0x7f]
      %v1136 = vld [vmem:[%s1116 + $0x98] sm:$0x7f]
      %v1137 = vld [vmem:[%s1116 + $0xa0] sm:$0x7f]
      %v1138 = vld [vmem:[%s1116 + $0xa8] sm:$0x7f]
      %v1139 = vld [vmem:[%s1116 + $0xb0] sm:$0x7f]
      %v1140 = vld [vmem:[%s1116 + $0xb8] sm:$0x7f]
      %v1141 = vld [vmem:[%s1116 + $0xc0] sm:$0x7f]
      %v1142 = vld [vmem:[%s1116 + $0xc8] sm:$0x7f]
      %v1143 = vmul.f32 %v530, %v1117
      %v1144 = vmul.f32 %v530, %v1118
      %v1145 = vmul.f32 %v530, %v1119
      %v1146 = vmul.f32 %v530, %v1120
      %v1147 = vmul.f32 %v530, %v1121
      %v1148 = vmul.f32 %v530, %v1122
      %v1149 = vmul.f32 %v530, %v1123
      %v1150 = vmul.f32 %v530, %v1124
      %v1151 = vmul.f32 %v530, %v1125
      %v1152 = vmul.f32 %v530, %v1126
      %v1153 = vmul.f32 %v530, %v1127
      %v1154 = vmul.f32 %v530, %v1128
      %v1155 = vmul.f32 %v530, %v1129
      %v1156 = vmul.f32 %v530, %v1130
      %v1157 = vmul.f32 %v530, %v1131
      %v1158 = vmul.f32 %v530, %v1132
      %v1159 = vmul.f32 %v530, %v1133
      %v1160 = vmul.f32 %v530, %v1134
      %v1161 = vmul.f32 %v530, %v1135
      %v1162 = vmul.f32 %v530, %v1136
      %v1163 = vmul.f32 %v530, %v1137
      %v1164 = vmul.f32 %v530, %v1138
      %v1165 = vmul.f32 %v530, %v1139
      %v1166 = vmul.f32 %v530, %v1140
      %v1167 = vmul.f32 %v530, %v1141
      %v1168 = vmul.f32 %v530, %v1142
      %v1169 = vadd.f32 %v1090, %v1143
      %v1170 = vadd.f32 %v1091, %v1144
      %v1171 = vadd.f32 %v1092, %v1145
      %v1172 = vadd.f32 %v1093, %v1146
      %v1173 = vadd.f32 %v1094, %v1147
      %v1174 = vadd.f32 %v1095, %v1148
      %v1175 = vadd.f32 %v1096, %v1149
      %v1176 = vadd.f32 %v1097, %v1150
      %v1177 = vadd.f32 %v1098, %v1151
      %v1178 = vadd.f32 %v1099, %v1152
      %v1179 = vadd.f32 %v1100, %v1153
      %v1180 = vadd.f32 %v1101, %v1154
      %v1181 = vadd.f32 %v1102, %v1155
      %v1182 = vadd.f32 %v1103, %v1156
      %v1183 = vadd.f32 %v1104, %v1157
      %v1184 = vadd.f32 %v1105, %v1158
      %v1185 = vadd.f32 %v1106, %v1159
      %v1186 = vadd.f32 %v1107, %v1160
      %v1187 = vadd.f32 %v1108, %v1161
      %v1188 = vadd.f32 %v1109, %v1162
      %v1189 = vadd.f32 %v1110, %v1163
      %v1190 = vadd.f32 %v1111, %v1164
      %v1191 = vadd.f32 %v1112, %v1165
      %v1192 = vadd.f32 %v1113, %v1166
      %v1193 = vadd.f32 %v1114, %v1167
      %v1194 = vadd.f32 %v1115, %v1168
      %v1195 = vmul.f32 %v612, %v668
      %v1196 = vmul.f32 %v612, %v669
      %v1197 = vmul.f32 %v612, %v670
      %v1198 = vmul.f32 %v612, %v671
      %v1199 = vmul.f32 %v612, %v672
      %v1200 = vmul.f32 %v612, %v673
      %v1201 = vmul.f32 %v612, %v674
      %v1202 = vmul.f32 %v612, %v675
      %v1203 = vmul.f32 %v612, %v676
      %v1204 = vmul.f32 %v612, %v677
      %v1205 = vmul.f32 %v612, %v678
      %v1206 = vmul.f32 %v612, %v679
      %v1207 = vmul.f32 %v612, %v680
      %v1208 = vmul.f32 %v612, %v681
      %v1209 = vmul.f32 %v612, %v682
      %v1210 = vmul.f32 %v612, %v683
      %v1211 = vmul.f32 %v612, %v684
      %v1212 = vmul.f32 %v612, %v685
      %v1213 = vmul.f32 %v612, %v686
      %v1214 = vmul.f32 %v612, %v687
      %v1215 = vmul.f32 %v612, %v688
      %v1216 = vmul.f32 %v612, %v689
      %v1217 = vmul.f32 %v612, %v690
      %v1218 = vmul.f32 %v612, %v691
      %v1219 = vmul.f32 %v612, %v692
      %v1220 = vmul.f32 %v612, %v693
      %v1221 = vadd.f32 %v1169, %v1195
      %v1222 = vadd.f32 %v1170, %v1196
      %v1223 = vadd.f32 %v1171, %v1197
      %v1224 = vadd.f32 %v1172, %v1198
      %v1225 = vadd.f32 %v1173, %v1199
      %v1226 = vadd.f32 %v1174, %v1200
      %v1227 = vadd.f32 %v1175, %v1201
      %v1228 = vadd.f32 %v1176, %v1202
      %v1229 = vadd.f32 %v1177, %v1203
      %v1230 = vadd.f32 %v1178, %v1204
      %v1231 = vadd.f32 %v1179, %v1205
      %v1232 = vadd.f32 %v1180, %v1206
      %v1233 = vadd.f32 %v1181, %v1207
      %v1234 = vadd.f32 %v1182, %v1208
      %v1235 = vadd.f32 %v1183, %v1209
      %v1236 = vadd.f32 %v1184, %v1210
      %v1237 = vadd.f32 %v1185, %v1211
      %v1238 = vadd.f32 %v1186, %v1212
      %v1239 = vadd.f32 %v1187, %v1213
      %v1240 = vadd.f32 %v1188, %v1214
      %v1241 = vadd.f32 %v1189, %v1215
      %v1242 = vadd.f32 %v1190, %v1216
      %v1243 = vadd.f32 %v1191, %v1217
      %v1244 = vadd.f32 %v1192, %v1218
      %v1245 = vadd.f32 %v1193, %v1219
      %v1246 = vadd.f32 %v1194, %v1220
      %v1247 = vmul.f32 %v694, %v750
      %v1248 = vmul.f32 %v694, %v751
      %v1249 = vmul.f32 %v694, %v752
      %v1250 = vmul.f32 %v694, %v753
      %v1251 = vmul.f32 %v694, %v754
      %v1252 = vmul.f32 %v694, %v755
      %v1253 = vmul.f32 %v694, %v756
      %v1254 = vmul.f32 %v694, %v757
      %v1255 = vmul.f32 %v694, %v758
      %v1256 = vmul.f32 %v694, %v759
      %v1257 = vmul.f32 %v694, %v760
      %v1258 = vmul.f32 %v694, %v761
      %v1259 = vmul.f32 %v694, %v762
      %v1260 = vmul.f32 %v694, %v763
      %v1261 = vmul.f32 %v694, %v764
      %v1262 = vmul.f32 %v694, %v765
      %v1263 = vmul.f32 %v694, %v766
      %v1264 = vmul.f32 %v694, %v767
      %v1265 = vmul.f32 %v694, %v768
      %v1266 = vmul.f32 %v694, %v769
      %v1267 = vmul.f32 %v694, %v770
      %v1268 = vmul.f32 %v694, %v771
      %v1269 = vmul.f32 %v694, %v772
      %v1270 = vmul.f32 %v694, %v773
      %v1271 = vmul.f32 %v694, %v774
      %v1272 = vmul.f32 %v694, %v775
      %v1273 = vadd.f32 %v1221, %v1247
      %v1274 = vadd.f32 %v1222, %v1248
      %v1275 = vadd.f32 %v1223, %v1249
      %v1276 = vadd.f32 %v1224, %v1250
      %v1277 = vadd.f32 %v1225, %v1251
      %v1278 = vadd.f32 %v1226, %v1252
      %v1279 = vadd.f32 %v1227, %v1253
      %v1280 = vadd.f32 %v1228, %v1254
      %v1281 = vadd.f32 %v1229, %v1255
      %v1282 = vadd.f32 %v1230, %v1256
      %v1283 = vadd.f32 %v1231, %v1257
      %v1284 = vadd.f32 %v1232, %v1258
      %v1285 = vadd.f32 %v1233, %v1259
      %v1286 = vadd.f32 %v1234, %v1260
      %v1287 = vadd.f32 %v1235, %v1261
      %v1288 = vadd.f32 %v1236, %v1262
      %v1289 = vadd.f32 %v1237, %v1263
      %v1290 = vadd.f32 %v1238, %v1264
      %v1291 = vadd.f32 %v1239, %v1265
      %v1292 = vadd.f32 %v1240, %v1266
      %v1293 = vadd.f32 %v1241, %v1267
      %v1294 = vadd.f32 %v1242, %v1268
      %v1295 = vadd.f32 %v1243, %v1269
      %v1296 = vadd.f32 %v1244, %v1270
      %v1297 = vadd.f32 %v1245, %v1271
      %v1298 = vadd.f32 %v1246, %v1272
      %s1299 = scalar_lea.vmem %s0, 688
      %v1300 = vld [vmem:[%s1299] sm:$0x7f]
      %v1301 = vld [vmem:[%s1299 + $0x8] sm:$0x7f]
      %v1302 = vld [vmem:[%s1299 + $0x10] sm:$0x7f]
      %v1303 = vld [vmem:[%s1299 + $0x18] sm:$0x7f]
      %v1304 = vld [vmem:[%s1299 + $0x20] sm:$0x7f]
      %v1305 = vld [vmem:[%s1299 + $0x28] sm:$0x7f]
      %v1306 = vld [vmem:[%s1299 + $0x30] sm:$0x7f]
      %v1307 = vld [vmem:[%s1299 + $0x38] sm:$0x7f]
      %v1308 = vld [vmem:[%s1299 + $0x40] sm:$0x7f]
      %v1309 = vld [vmem:[%s1299 + $0x48] sm:$0x7f]
      %v1310 = vld [vmem:[%s1299 + $0x50] sm:$0x7f]
      %v1311 = vld [vmem:[%s1299 + $0x58] sm:$0x7f]
      %v1312 = vld [vmem:[%s1299 + $0x60] sm:$0x7f]
      %v1313 = vld [vmem:[%s1299 + $0x68] sm:$0x7f]
      %v1314 = vld [vmem:[%s1299 + $0x70] sm:$0x7f]
      %v1315 = vld [vmem:[%s1299 + $0x78] sm:$0x7f]
      %v1316 = vld [vmem:[%s1299 + $0x80] sm:$0x7f]
      %v1317 = vld [vmem:[%s1299 + $0x88] sm:$0x7f]
      %v1318 = vld [vmem:[%s1299 + $0x90] sm:$0x7f]
      %v1319 = vld [vmem:[%s1299 + $0x98] sm:$0x7f]
      %v1320 = vld [vmem:[%s1299 + $0xa0] sm:$0x7f]
      %v1321 = vld [vmem:[%s1299 + $0xa8] sm:$0x7f]
      %v1322 = vld [vmem:[%s1299 + $0xb0] sm:$0x7f]
      %v1323 = vld [vmem:[%s1299 + $0xb8] sm:$0x7f]
      %v1324 = vld [vmem:[%s1299 + $0xc0] sm:$0x7f]
      %v1325 = vld [vmem:[%s1299 + $0xc8] sm:$0x7f]
      %v1326 = vmul.f32 %v776, %v1300
      %v1327 = vmul.f32 %v776, %v1301
      %v1328 = vmul.f32 %v776, %v1302
      %v1329 = vmul.f32 %v776, %v1303
      %v1330 = vmul.f32 %v776, %v1304
      %v1331 = vmul.f32 %v776, %v1305
      %v1332 = vmul.f32 %v776, %v1306
      %v1333 = vmul.f32 %v776, %v1307
      %v1334 = vmul.f32 %v776, %v1308
      %v1335 = vmul.f32 %v776, %v1309
      %v1336 = vmul.f32 %v776, %v1310
      %v1337 = vmul.f32 %v776, %v1311
      %v1338 = vmul.f32 %v776, %v1312
      %v1339 = vmul.f32 %v776, %v1313
      %v1340 = vmul.f32 %v776, %v1314
      %v1341 = vmul.f32 %v776, %v1315
      %v1342 = vmul.f32 %v776, %v1316
      %v1343 = vmul.f32 %v776, %v1317
      %v1344 = vmul.f32 %v776, %v1318
      %v1345 = vmul.f32 %v776, %v1319
      %v1346 = vmul.f32 %v776, %v1320
      %v1347 = vmul.f32 %v776, %v1321
      %v1348 = vmul.f32 %v776, %v1322
      %v1349 = vmul.f32 %v776, %v1323
      %v1350 = vmul.f32 %v776, %v1324
      %v1351 = vmul.f32 %v776, %v1325
      %v1352 = vadd.f32 %v1273, %v1326
      %v1353 = vadd.f32 %v1274, %v1327
      %v1354 = vadd.f32 %v1275, %v1328
      %v1355 = vadd.f32 %v1276, %v1329
      %v1356 = vadd.f32 %v1277, %v1330
      %v1357 = vadd.f32 %v1278, %v1331
      %v1358 = vadd.f32 %v1279, %v1332
      %v1359 = vadd.f32 %v1280, %v1333
      %v1360 = vadd.f32 %v1281, %v1334
      %v1361 = vadd.f32 %v1282, %v1335
      %v1362 = vadd.f32 %v1283, %v1336
      %v1363 = vadd.f32 %v1284, %v1337
      %v1364 = vadd.f32 %v1285, %v1338
      %v1365 = vadd.f32 %v1286, %v1339
      %v1366 = vadd.f32 %v1287, %v1340
      %v1367 = vadd.f32 %v1288, %v1341
      %v1368 = vadd.f32 %v1289, %v1342
      %v1369 = vadd.f32 %v1290, %v1343
      %v1370 = vadd.f32 %v1291, %v1344
      %v1371 = vadd.f32 %v1292, %v1345
      %v1372 = vadd.f32 %v1293, %v1346
      %v1373 = vadd.f32 %v1294, %v1347
      %v1374 = vadd.f32 %v1295, %v1348
      %v1375 = vadd.f32 %v1296, %v1349
      %v1376 = vadd.f32 %v1297, %v1350
      %v1377 = vadd.f32 %v1298, %v1351
      %v1378 = vld [vmem:[%s257] sm:$0x3f]
      %v1379 = vld [vmem:[%s257 + $0x8] sm:$0x3f]
      %v1380 = vld [vmem:[%s257 + $0x10] sm:$0x3f]
      %v1381 = vld [vmem:[%s257 + $0x18] sm:$0x3f]
      %v1382 = vld [vmem:[%s257 + $0x20] sm:$0x3f]
      %v1383 = vld [vmem:[%s257 + $0x28] sm:$0x3f]
      %v1384 = vld [vmem:[%s257 + $0x30] sm:$0x3f]
      %v1385 = vld [vmem:[%s257 + $0x38] sm:$0x3f]
      %v1386 = vld [vmem:[%s257 + $0x40] sm:$0x3f]
      %v1387 = vld [vmem:[%s257 + $0x48] sm:$0x3f]
      %v1388 = vld [vmem:[%s257 + $0x50] sm:$0x3f]
      %v1389 = vld [vmem:[%s257 + $0x58] sm:$0x3f]
      %v1390 = vld [vmem:[%s257 + $0x60] sm:$0x3f]
      %v1391 = vld [vmem:[%s257 + $0x68] sm:$0x3f]
      %v1392 = vld [vmem:[%s257 + $0x70] sm:$0x3f]
      %v1393 = vld [vmem:[%s257 + $0x78] sm:$0x3f]
      %v1394 = vld [vmem:[%s257 + $0x80] sm:$0x3f]
      %v1395 = vld [vmem:[%s257 + $0x88] sm:$0x3f]
      %v1396 = vld [vmem:[%s257 + $0x90] sm:$0x3f]
      %v1397 = vld [vmem:[%s257 + $0x98] sm:$0x3f]
      %v1398 = vld [vmem:[%s257 + $0xa0] sm:$0x3f]
      %v1399 = vld [vmem:[%s257 + $0xa8] sm:$0x3f]
      %v1400 = vld [vmem:[%s257 + $0xb0] sm:$0x3f]
      %v1401 = vld [vmem:[%s257 + $0xb8] sm:$0x3f]
      %v1402 = vld [vmem:[%s257 + $0xc0] sm:$0x3f]
      %v1403 = vld [vmem:[%s257 + $0xc8] sm:$0x3f]
      %v1404 = vmul.f32 %v120, %v1378
      %v1405 = vmul.f32 %v120, %v1379
      %v1406 = vmul.f32 %v120, %v1380
      %v1407 = vmul.f32 %v120, %v1381
      %v1408 = vmul.f32 %v120, %v1382
      %v1409 = vmul.f32 %v120, %v1383
      %v1410 = vmul.f32 %v120, %v1384
      %v1411 = vmul.f32 %v120, %v1385
      %v1412 = vmul.f32 %v120, %v1386
      %v1413 = vmul.f32 %v120, %v1387
      %v1414 = vmul.f32 %v120, %v1388
      %v1415 = vmul.f32 %v120, %v1389
      %v1416 = vmul.f32 %v120, %v1390
      %v1417 = vmul.f32 %v120, %v1391
      %v1418 = vmul.f32 %v120, %v1392
      %v1419 = vmul.f32 %v120, %v1393
      %v1420 = vmul.f32 %v120, %v1394
      %v1421 = vmul.f32 %v120, %v1395
      %v1422 = vmul.f32 %v120, %v1396
      %v1423 = vmul.f32 %v120, %v1397
      %v1424 = vmul.f32 %v120, %v1398
      %v1425 = vmul.f32 %v120, %v1399
      %v1426 = vmul.f32 %v120, %v1400
      %v1427 = vmul.f32 %v120, %v1401
      %v1428 = vmul.f32 %v120, %v1402
      %v1429 = vmul.f32 %v120, %v1403
      %v1430 = vadd.f32 %v1404, 0.0
      %v1431 = vadd.f32 %v1405, 0.0
      %v1432 = vadd.f32 %v1406, 0.0
      %v1433 = vadd.f32 %v1407, 0.0
      %v1434 = vadd.f32 %v1408, 0.0
      %v1435 = vadd.f32 %v1409, 0.0
      %v1436 = vadd.f32 %v1410, 0.0
      %v1437 = vadd.f32 %v1411, 0.0
      %v1438 = vadd.f32 %v1412, 0.0
      %v1439 = vadd.f32 %v1413, 0.0
      %v1440 = vadd.f32 %v1414, 0.0
      %v1441 = vadd.f32 %v1415, 0.0
      %v1442 = vadd.f32 %v1416, 0.0
      %v1443 = vadd.f32 %v1417, 0.0
      %v1444 = vadd.f32 %v1418, 0.0
      %v1445 = vadd.f32 %v1419, 0.0
      %v1446 = vadd.f32 %v1420, 0.0
      %v1447 = vadd.f32 %v1421, 0.0
      %v1448 = vadd.f32 %v1422, 0.0
      %v1449 = vadd.f32 %v1423, 0.0
      %v1450 = vadd.f32 %v1424, 0.0
      %v1451 = vadd.f32 %v1425, 0.0
      %v1452 = vadd.f32 %v1426, 0.0
      %v1453 = vadd.f32 %v1427, 0.0
      %v1454 = vadd.f32 %v1428, 0.0
      %v1455 = vadd.f32 %v1429, 0.0
      %v1456 = vld [vmem:[%s933] sm:$0x3f]
      %v1457 = vld [vmem:[%s933 + $0x8] sm:$0x3f]
      %v1458 = vld [vmem:[%s933 + $0x10] sm:$0x3f]
      %v1459 = vld [vmem:[%s933 + $0x18] sm:$0x3f]
      %v1460 = vld [vmem:[%s933 + $0x20] sm:$0x3f]
      %v1461 = vld [vmem:[%s933 + $0x28] sm:$0x3f]
      %v1462 = vld [vmem:[%s933 + $0x30] sm:$0x3f]
      %v1463 = vld [vmem:[%s933 + $0x38] sm:$0x3f]
      %v1464 = vld [vmem:[%s933 + $0x40] sm:$0x3f]
      %v1465 = vld [vmem:[%s933 + $0x48] sm:$0x3f]
      %v1466 = vld [vmem:[%s933 + $0x50] sm:$0x3f]
      %v1467 = vld [vmem:[%s933 + $0x58] sm:$0x3f]
      %v1468 = vld [vmem:[%s933 + $0x60] sm:$0x3f]
      %v1469 = vld [vmem:[%s933 + $0x68] sm:$0x3f]
      %v1470 = vld [vmem:[%s933 + $0x70] sm:$0x3f]
      %v1471 = vld [vmem:[%s933 + $0x78] sm:$0x3f]
      %v1472 = vld [vmem:[%s933 + $0x80] sm:$0x3f]
      %v1473 = vld [vmem:[%s933 + $0x88] sm:$0x3f]
      %v1474 = vld [vmem:[%s933 + $0x90] sm:$0x3f]
      %v1475 = vld [vmem:[%s933 + $0x98] sm:$0x3f]
      %v1476 = vld [vmem:[%s933 + $0xa0] sm:$0x3f]
      %v1477 = vld [vmem:[%s933 + $0xa8] sm:$0x3f]
      %v1478 = vld [vmem:[%s933 + $0xb0] sm:$0x3f]
      %v1479 = vld [vmem:[%s933 + $0xb8] sm:$0x3f]
      %v1480 = vld [vmem:[%s933 + $0xc0] sm:$0x3f]
      %v1481 = vld [vmem:[%s933 + $0xc8] sm:$0x3f]
      %v1482 = vmul.f32 %v202, %v1456
      %v1483 = vmul.f32 %v202, %v1457
      %v1484 = vmul.f32 %v202, %v1458
      %v1485 = vmul.f32 %v202, %v1459
      %v1486 = vmul.f32 %v202, %v1460
      %v1487 = vmul.f32 %v202, %v1461
      %v1488 = vmul.f32 %v202, %v1462
      %v1489 = vmul.f32 %v202, %v1463
      %v1490 = vmul.f32 %v202, %v1464
      %v1491 = vmul.f32 %v202, %v1465
      %v1492 = vmul.f32 %v202, %v1466
      %v1493 = vmul.f32 %v202, %v1467
      %v1494 = vmul.f32 %v202, %v1468
      %v1495 = vmul.f32 %v202, %v1469
      %v1496 = vmul.f32 %v202, %v1470
      %v1497 = vmul.f32 %v202, %v1471
      %v1498 = vmul.f32 %v202, %v1472
      %v1499 = vmul.f32 %v202, %v1473
      %v1500 = vmul.f32 %v202, %v1474
      %v1501 = vmul.f32 %v202, %v1475
      %v1502 = vmul.f32 %v202, %v1476
      %v1503 = vmul.f32 %v202, %v1477
      %v1504 = vmul.f32 %v202, %v1478
      %v1505 = vmul.f32 %v202, %v1479
      %v1506 = vmul.f32 %v202, %v1480
      %v1507 = vmul.f32 %v202, %v1481
      %v1508 = vadd.f32 %v1430, %v1482
      %v1509 = vadd.f32 %v1431, %v1483
      %v1510 = vadd.f32 %v1432, %v1484
      %v1511 = vadd.f32 %v1433, %v1485
      %v1512 = vadd.f32 %v1434, %v1486
      %v1513 = vadd.f32 %v1435, %v1487
      %v1514 = vadd.f32 %v1436, %v1488
      %v1515 = vadd.f32 %v1437, %v1489
      %v1516 = vadd.f32 %v1438, %v1490
      %v1517 = vadd.f32 %v1439, %v1491
      %v1518 = vadd.f32 %v1440, %v1492
      %v1519 = vadd.f32 %v1441, %v1493
      %v1520 = vadd.f32 %v1442, %v1494
      %v1521 = vadd.f32 %v1443, %v1495
      %v1522 = vadd.f32 %v1444, %v1496
      %v1523 = vadd.f32 %v1445, %v1497
      %v1524 = vadd.f32 %v1446, %v1498
      %v1525 = vadd.f32 %v1447, %v1499
      %v1526 = vadd.f32 %v1448, %v1500
      %v1527 = vadd.f32 %v1449, %v1501
      %v1528 = vadd.f32 %v1450, %v1502
      %v1529 = vadd.f32 %v1451, %v1503
      %v1530 = vadd.f32 %v1452, %v1504
      %v1531 = vadd.f32 %v1453, %v1505
      %v1532 = vadd.f32 %v1454, %v1506
      %v1533 = vadd.f32 %v1455, %v1507
      %v1534 = vld [vmem:[%s0 + $0x1] sm:$0x3f]
      %v1535 = vld [vmem:[%s0 + $0x9] sm:$0x3f]
      %v1536 = vld [vmem:[%s0 + $0x11] sm:$0x3f]
      %v1537 = vld [vmem:[%s0 + $0x19] sm:$0x3f]
      %v1538 = vld [vmem:[%s0 + $0x21] sm:$0x3f]
      %v1539 = vld [vmem:[%s0 + $0x29] sm:$0x3f]
      %v1540 = vld [vmem:[%s0 + $0x31] sm:$0x3f]
      %v1541 = vld [vmem:[%s0 + $0x39] sm:$0x3f]
      %v1542 = vld [vmem:[%s0 + $0x41] sm:$0x3f]
      %v1543 = vld [vmem:[%s0 + $0x49] sm:$0x3f]
      %v1544 = vld [vmem:[%s0 + $0x51] sm:$0x3f]
      %v1545 = vld [vmem:[%s0 + $0x59] sm:$0x3f]
      %v1546 = vld [vmem:[%s0 + $0x61] sm:$0x3f]
      %v1547 = vld [vmem:[%s0 + $0x69] sm:$0x3f]
      %v1548 = vld [vmem:[%s0 + $0x71] sm:$0x3f]
      %v1549 = vld [vmem:[%s0 + $0x79] sm:$0x3f]
      %v1550 = vld [vmem:[%s0 + $0x81] sm:$0x3f]
      %v1551 = vld [vmem:[%s0 + $0x89] sm:$0x3f]
      %v1552 = vld [vmem:[%s0 + $0x91] sm:$0x3f]
      %v1553 = vld [vmem:[%s0 + $0x99] sm:$0x3f]
      %v1554 = vld [vmem:[%s0 + $0xa1] sm:$0x3f]
      %v1555 = vld [vmem:[%s0 + $0xa9] sm:$0x3f]
      %v1556 = vld [vmem:[%s0 + $0xb1] sm:$0x3f]
      %v1557 = vld [vmem:[%s0 + $0xb9] sm:$0x3f]
      %v1558 = vld [vmem:[%s0 + $0xc1] sm:$0x3f]
      %v1559 = vld [vmem:[%s0 + $0xc9] sm:$0x3f]
      %v1560 = vmul.f32 %v284, %v1534
      %v1561 = vmul.f32 %v284, %v1535
      %v1562 = vmul.f32 %v284, %v1536
      %v1563 = vmul.f32 %v284, %v1537
      %v1564 = vmul.f32 %v284, %v1538
      %v1565 = vmul.f32 %v284, %v1539
      %v1566 = vmul.f32 %v284, %v1540
      %v1567 = vmul.f32 %v284, %v1541
      %v1568 = vmul.f32 %v284, %v1542
      %v1569 = vmul.f32 %v284, %v1543
      %v1570 = vmul.f32 %v284, %v1544
      %v1571 = vmul.f32 %v284, %v1545
      %v1572 = vmul.f32 %v284, %v1546
      %v1573 = vmul.f32 %v284, %v1547
      %v1574 = vmul.f32 %v284, %v1548
      %v1575 = vmul.f32 %v284, %v1549
      %v1576 = vmul.f32 %v284, %v1550
      %v1577 = vmul.f32 %v284, %v1551
      %v1578 = vmul.f32 %v284, %v1552
      %v1579 = vmul.f32 %v284, %v1553
      %v1580 = vmul.f32 %v284, %v1554
      %v1581 = vmul.f32 %v284, %v1555
      %v1582 = vmul.f32 %v284, %v1556
      %v1583 = vmul.f32 %v284, %v1557
      %v1584 = vmul.f32 %v284, %v1558
      %v1585 = vmul.f32 %v284, %v1559
      %v1586 = vadd.f32 %v1508, %v1560
      %v1587 = vadd.f32 %v1509, %v1561
      %v1588 = vadd.f32 %v1510, %v1562
      %v1589 = vadd.f32 %v1511, %v1563
      %v1590 = vadd.f32 %v1512, %v1564
      %v1591 = vadd.f32 %v1513, %v1565
      %v1592 = vadd.f32 %v1514, %v1566
      %v1593 = vadd.f32 %v1515, %v1567
      %v1594 = vadd.f32 %v1516, %v1568
      %v1595 = vadd.f32 %v1517, %v1569
      %v1596 = vadd.f32 %v1518, %v1570
      %v1597 = vadd.f32 %v1519, %v1571
      %v1598 = vadd.f32 %v1520, %v1572
      %v1599 = vadd.f32 %v1521, %v1573
      %v1600 = vadd.f32 %v1522, %v1574
      %v1601 = vadd.f32 %v1523, %v1575
      %v1602 = vadd.f32 %v1524, %v1576
      %v1603 = vadd.f32 %v1525, %v1577
      %v1604 = vadd.f32 %v1526, %v1578
      %v1605 = vadd.f32 %v1527, %v1579
      %v1606 = vadd.f32 %v1528, %v1580
      %v1607 = vadd.f32 %v1529, %v1581
      %v1608 = vadd.f32 %v1530, %v1582
      %v1609 = vadd.f32 %v1531, %v1583
      %v1610 = vadd.f32 %v1532, %v1584
      %v1611 = vadd.f32 %v1533, %v1585
      %v1612 = vld [vmem:[%s503] sm:$0x3f]
      %v1613 = vld [vmem:[%s503 + $0x8] sm:$0x3f]
      %v1614 = vld [vmem:[%s503 + $0x10] sm:$0x3f]
      %v1615 = vld [vmem:[%s503 + $0x18] sm:$0x3f]
      %v1616 = vld [vmem:[%s503 + $0x20] sm:$0x3f]
      %v1617 = vld [vmem:[%s503 + $0x28] sm:$0x3f]
      %v1618 = vld [vmem:[%s503 + $0x30] sm:$0x3f]
      %v1619 = vld [vmem:[%s503 + $0x38] sm:$0x3f]
      %v1620 = vld [vmem:[%s503 + $0x40] sm:$0x3f]
      %v1621 = vld [vmem:[%s503 + $0x48] sm:$0x3f]
      %v1622 = vld [vmem:[%s503 + $0x50] sm:$0x3f]
      %v1623 = vld [vmem:[%s503 + $0x58] sm:$0x3f]
      %v1624 = vld [vmem:[%s503 + $0x60] sm:$0x3f]
      %v1625 = vld [vmem:[%s503 + $0x68] sm:$0x3f]
      %v1626 = vld [vmem:[%s503 + $0x70] sm:$0x3f]
      %v1627 = vld [vmem:[%s503 + $0x78] sm:$0x3f]
      %v1628 = vld [vmem:[%s503 + $0x80] sm:$0x3f]
      %v1629 = vld [vmem:[%s503 + $0x88] sm:$0x3f]
      %v1630 = vld [vmem:[%s503 + $0x90] sm:$0x3f]
      %v1631 = vld [vmem:[%s503 + $0x98] sm:$0x3f]
      %v1632 = vld [vmem:[%s503 + $0xa0] sm:$0x3f]
      %v1633 = vld [vmem:[%s503 + $0xa8] sm:$0x3f]
      %v1634 = vld [vmem:[%s503 + $0xb0] sm:$0x3f]
      %v1635 = vld [vmem:[%s503 + $0xb8] sm:$0x3f]
      %v1636 = vld [vmem:[%s503 + $0xc0] sm:$0x3f]
      %v1637 = vld [vmem:[%s503 + $0xc8] sm:$0x3f]
      %v1638 = vmul.f32 %v366, %v1612
      %v1639 = vmul.f32 %v366, %v1613
      %v1640 = vmul.f32 %v366, %v1614
      %v1641 = vmul.f32 %v366, %v1615
      %v1642 = vmul.f32 %v366, %v1616
      %v1643 = vmul.f32 %v366, %v1617
      %v1644 = vmul.f32 %v366, %v1618
      %v1645 = vmul.f32 %v366, %v1619
      %v1646 = vmul.f32 %v366, %v1620
      %v1647 = vmul.f32 %v366, %v1621
      %v1648 = vmul.f32 %v366, %v1622
      %v1649 = vmul.f32 %v366, %v1623
      %v1650 = vmul.f32 %v366, %v1624
      %v1651 = vmul.f32 %v366, %v1625
      %v1652 = vmul.f32 %v366, %v1626
      %v1653 = vmul.f32 %v366, %v1627
      %v1654 = vmul.f32 %v366, %v1628
      %v1655 = vmul.f32 %v366, %v1629
      %v1656 = vmul.f32 %v366, %v1630
      %v1657 = vmul.f32 %v366, %v1631
      %v1658 = vmul.f32 %v366, %v1632
      %v1659 = vmul.f32 %v366, %v1633
      %v1660 = vmul.f32 %v366, %v1634
      %v1661 = vmul.f32 %v366, %v1635
      %v1662 = vmul.f32 %v366, %v1636
      %v1663 = vmul.f32 %v366, %v1637
      %v1664 = vadd.f32 %v1586, %v1638
      %v1665 = vadd.f32 %v1587, %v1639
      %v1666 = vadd.f32 %v1588, %v1640
      %v1667 = vadd.f32 %v1589, %v1641
      %v1668 = vadd.f32 %v1590, %v1642
      %v1669 = vadd.f32 %v1591, %v1643
      %v1670 = vadd.f32 %v1592, %v1644
      %v1671 = vadd.f32 %v1593, %v1645
      %v1672 = vadd.f32 %v1594, %v1646
      %v1673 = vadd.f32 %v1595, %v1647
      %v1674 = vadd.f32 %v1596, %v1648
      %v1675 = vadd.f32 %v1597, %v1649
      %v1676 = vadd.f32 %v1598, %v1650
      %v1677 = vadd.f32 %v1599, %v1651
      %v1678 = vadd.f32 %v1600, %v1652
      %v1679 = vadd.f32 %v1601, %v1653
      %v1680 = vadd.f32 %v1602, %v1654
      %v1681 = vadd.f32 %v1603, %v1655
      %v1682 = vadd.f32 %v1604, %v1656
      %v1683 = vadd.f32 %v1605, %v1657
      %v1684 = vadd.f32 %v1606, %v1658
      %v1685 = vadd.f32 %v1607, %v1659
      %v1686 = vadd.f32 %v1608, %v1660
      %v1687 = vadd.f32 %v1609, %v1661
      %v1688 = vadd.f32 %v1610, %v1662
      %v1689 = vadd.f32 %v1611, %v1663
      %v1690 = vld [vmem:[%s1116] sm:$0x3f]
      %v1691 = vld [vmem:[%s1116 + $0x8] sm:$0x3f]
      %v1692 = vld [vmem:[%s1116 + $0x10] sm:$0x3f]
      %v1693 = vld [vmem:[%s1116 + $0x18] sm:$0x3f]
      %v1694 = vld [vmem:[%s1116 + $0x20] sm:$0x3f]
      %v1695 = vld [vmem:[%s1116 + $0x28] sm:$0x3f]
      %v1696 = vld [vmem:[%s1116 + $0x30] sm:$0x3f]
      %v1697 = vld [vmem:[%s1116 + $0x38] sm:$0x3f]
      %v1698 = vld [vmem:[%s1116 + $0x40] sm:$0x3f]
      %v1699 = vld [vmem:[%s1116 + $0x48] sm:$0x3f]
      %v1700 = vld [vmem:[%s1116 + $0x50] sm:$0x3f]
      %v1701 = vld [vmem:[%s1116 + $0x58] sm:$0x3f]
      %v1702 = vld [vmem:[%s1116 + $0x60] sm:$0x3f]
      %v1703 = vld [vmem:[%s1116 + $0x68] sm:$0x3f]
      %v1704 = vld [vmem:[%s1116 + $0x70] sm:$0x3f]
      %v1705 = vld [vmem:[%s1116 + $0x78] sm:$0x3f]
      %v1706 = vld [vmem:[%s1116 + $0x80] sm:$0x3f]
      %v1707 = vld [vmem:[%s1116 + $0x88] sm:$0x3f]
      %v1708 = vld [vmem:[%s1116 + $0x90] sm:$0x3f]
      %v1709 = vld [vmem:[%s1116 + $0x98] sm:$0x3f]
      %v1710 = vld [vmem:[%s1116 + $0xa0] sm:$0x3f]
      %v1711 = vld [vmem:[%s1116 + $0xa8] sm:$0x3f]
      %v1712 = vld [vmem:[%s1116 + $0xb0] sm:$0x3f]
      %v1713 = vld [vmem:[%s1116 + $0xb8] sm:$0x3f]
      %v1714 = vld [vmem:[%s1116 + $0xc0] sm:$0x3f]
      %v1715 = vld [vmem:[%s1116 + $0xc8] sm:$0x3f]
      %v1716 = vmul.f32 %v448, %v1690
      %v1717 = vmul.f32 %v448, %v1691
      %v1718 = vmul.f32 %v448, %v1692
      %v1719 = vmul.f32 %v448, %v1693
      %v1720 = vmul.f32 %v448, %v1694
      %v1721 = vmul.f32 %v448, %v1695
      %v1722 = vmul.f32 %v448, %v1696
      %v1723 = vmul.f32 %v448, %v1697
      %v1724 = vmul.f32 %v448, %v1698
      %v1725 = vmul.f32 %v448, %v1699
      %v1726 = vmul.f32 %v448, %v1700
      %v1727 = vmul.f32 %v448, %v1701
      %v1728 = vmul.f32 %v448, %v1702
      %v1729 = vmul.f32 %v448, %v1703
      %v1730 = vmul.f32 %v448, %v1704
      %v1731 = vmul.f32 %v448, %v1705
      %v1732 = vmul.f32 %v448, %v1706
      %v1733 = vmul.f32 %v448, %v1707
      %v1734 = vmul.f32 %v448, %v1708
      %v1735 = vmul.f32 %v448, %v1709
      %v1736 = vmul.f32 %v448, %v1710
      %v1737 = vmul.f32 %v448, %v1711
      %v1738 = vmul.f32 %v448, %v1712
      %v1739 = vmul.f32 %v448, %v1713
      %v1740 = vmul.f32 %v448, %v1714
      %v1741 = vmul.f32 %v448, %v1715
      %v1742 = vadd.f32 %v1664, %v1716
      %v1743 = vadd.f32 %v1665, %v1717
      %v1744 = vadd.f32 %v1666, %v1718
      %v1745 = vadd.f32 %v1667, %v1719
      %v1746 = vadd.f32 %v1668, %v1720
      %v1747 = vadd.f32 %v1669, %v1721
      %v1748 = vadd.f32 %v1670, %v1722
      %v1749 = vadd.f32 %v1671, %v1723
      %v1750 = vadd.f32 %v1672, %v1724
      %v1751 = vadd.f32 %v1673, %v1725
      %v1752 = vadd.f32 %v1674, %v1726
      %v1753 = vadd.f32 %v1675, %v1727
      %v1754 = vadd.f32 %v1676, %v1728
      %v1755 = vadd.f32 %v1677, %v1729
      %v1756 = vadd.f32 %v1678, %v1730
      %v1757 = vadd.f32 %v1679, %v1731
      %v1758 = vadd.f32 %v1680, %v1732
      %v1759 = vadd.f32 %v1681, %v1733
      %v1760 = vadd.f32 %v1682, %v1734
      %v1761 = vadd.f32 %v1683, %v1735
      %v1762 = vadd.f32 %v1684, %v1736
      %v1763 = vadd.f32 %v1685, %v1737
      %v1764 = vadd.f32 %v1686, %v1738
      %v1765 = vadd.f32 %v1687, %v1739
      %v1766 = vadd.f32 %v1688, %v1740
      %v1767 = vadd.f32 %v1689, %v1741
      %v1768 = vld [vmem:[%s339 + $0x1] sm:$0x3f]
      %v1769 = vld [vmem:[%s339 + $0x9] sm:$0x3f]
      %v1770 = vld [vmem:[%s339 + $0x11] sm:$0x3f]
      %v1771 = vld [vmem:[%s339 + $0x19] sm:$0x3f]
      %v1772 = vld [vmem:[%s339 + $0x21] sm:$0x3f]
      %v1773 = vld [vmem:[%s339 + $0x29] sm:$0x3f]
      %v1774 = vld [vmem:[%s339 + $0x31] sm:$0x3f]
      %v1775 = vld [vmem:[%s339 + $0x39] sm:$0x3f]
      %v1776 = vld [vmem:[%s339 + $0x41] sm:$0x3f]
      %v1777 = vld [vmem:[%s339 + $0x49] sm:$0x3f]
      %v1778 = vld [vmem:[%s339 + $0x51] sm:$0x3f]
      %v1779 = vld [vmem:[%s339 + $0x59] sm:$0x3f]
      %v1780 = vld [vmem:[%s339 + $0x61] sm:$0x3f]
      %v1781 = vld [vmem:[%s339 + $0x69] sm:$0x3f]
      %v1782 = vld [vmem:[%s339 + $0x71] sm:$0x3f]
      %v1783 = vld [vmem:[%s339 + $0x79] sm:$0x3f]
      %v1784 = vld [vmem:[%s339 + $0x81] sm:$0x3f]
      %v1785 = vld [vmem:[%s339 + $0x89] sm:$0x3f]
      %v1786 = vld [vmem:[%s339 + $0x91] sm:$0x3f]
      %v1787 = vld [vmem:[%s339 + $0x99] sm:$0x3f]
      %v1788 = vld [vmem:[%s339 + $0xa1] sm:$0x3f]
      %v1789 = vld [vmem:[%s339 + $0xa9] sm:$0x3f]
      %v1790 = vld [vmem:[%s339 + $0xb1] sm:$0x3f]
      %v1791 = vld [vmem:[%s339 + $0xb9] sm:$0x3f]
      %v1792 = vld [vmem:[%s339 + $0xc1] sm:$0x3f]
      %v1793 = vld [vmem:[%s339 + $0xc9] sm:$0x3f]
      %v1794 = vmul.f32 %v530, %v1768
      %v1795 = vmul.f32 %v530, %v1769
      %v1796 = vmul.f32 %v530, %v1770
      %v1797 = vmul.f32 %v530, %v1771
      %v1798 = vmul.f32 %v530, %v1772
      %v1799 = vmul.f32 %v530, %v1773
      %v1800 = vmul.f32 %v530, %v1774
      %v1801 = vmul.f32 %v530, %v1775
      %v1802 = vmul.f32 %v530, %v1776
      %v1803 = vmul.f32 %v530, %v1777
      %v1804 = vmul.f32 %v530, %v1778
      %v1805 = vmul.f32 %v530, %v1779
      %v1806 = vmul.f32 %v530, %v1780
      %v1807 = vmul.f32 %v530, %v1781
      %v1808 = vmul.f32 %v530, %v1782
      %v1809 = vmul.f32 %v530, %v1783
      %v1810 = vmul.f32 %v530, %v1784
      %v1811 = vmul.f32 %v530, %v1785
      %v1812 = vmul.f32 %v530, %v1786
      %v1813 = vmul.f32 %v530, %v1787
      %v1814 = vmul.f32 %v530, %v1788
      %v1815 = vmul.f32 %v530, %v1789
      %v1816 = vmul.f32 %v530, %v1790
      %v1817 = vmul.f32 %v530, %v1791
      %v1818 = vmul.f32 %v530, %v1792
      %v1819 = vmul.f32 %v530, %v1793
      %v1820 = vadd.f32 %v1742, %v1794
      %v1821 = vadd.f32 %v1743, %v1795
      %v1822 = vadd.f32 %v1744, %v1796
      %v1823 = vadd.f32 %v1745, %v1797
      %v1824 = vadd.f32 %v1746, %v1798
      %v1825 = vadd.f32 %v1747, %v1799
      %v1826 = vadd.f32 %v1748, %v1800
      %v1827 = vadd.f32 %v1749, %v1801
      %v1828 = vadd.f32 %v1750, %v1802
      %v1829 = vadd.f32 %v1751, %v1803
      %v1830 = vadd.f32 %v1752, %v1804
      %v1831 = vadd.f32 %v1753, %v1805
      %v1832 = vadd.f32 %v1754, %v1806
      %v1833 = vadd.f32 %v1755, %v1807
      %v1834 = vadd.f32 %v1756, %v1808
      %v1835 = vadd.f32 %v1757, %v1809
      %v1836 = vadd.f32 %v1758, %v1810
      %v1837 = vadd.f32 %v1759, %v1811
      %v1838 = vadd.f32 %v1760, %v1812
      %v1839 = vadd.f32 %v1761, %v1813
      %v1840 = vadd.f32 %v1762, %v1814
      %v1841 = vadd.f32 %v1763, %v1815
      %v1842 = vadd.f32 %v1764, %v1816
      %v1843 = vadd.f32 %v1765, %v1817
      %v1844 = vadd.f32 %v1766, %v1818
      %v1845 = vadd.f32 %v1767, %v1819
      %v1846 = vld [vmem:[%s749] sm:$0x3f]
      %v1847 = vld [vmem:[%s749 + $0x8] sm:$0x3f]
      %v1848 = vld [vmem:[%s749 + $0x10] sm:$0x3f]
      %v1849 = vld [vmem:[%s749 + $0x18] sm:$0x3f]
      %v1850 = vld [vmem:[%s749 + $0x20] sm:$0x3f]
      %v1851 = vld [vmem:[%s749 + $0x28] sm:$0x3f]
      %v1852 = vld [vmem:[%s749 + $0x30] sm:$0x3f]
      %v1853 = vld [vmem:[%s749 + $0x38] sm:$0x3f]
      %v1854 = vld [vmem:[%s749 + $0x40] sm:$0x3f]
      %v1855 = vld [vmem:[%s749 + $0x48] sm:$0x3f]
      %v1856 = vld [vmem:[%s749 + $0x50] sm:$0x3f]
      %v1857 = vld [vmem:[%s749 + $0x58] sm:$0x3f]
      %v1858 = vld [vmem:[%s749 + $0x60] sm:$0x3f]
      %v1859 = vld [vmem:[%s749 + $0x68] sm:$0x3f]
      %v1860 = vld [vmem:[%s749 + $0x70] sm:$0x3f]
      %v1861 = vld [vmem:[%s749 + $0x78] sm:$0x3f]
      %v1862 = vld [vmem:[%s749 + $0x80] sm:$0x3f]
      %v1863 = vld [vmem:[%s749 + $0x88] sm:$0x3f]
      %v1864 = vld [vmem:[%s749 + $0x90] sm:$0x3f]
      %v1865 = vld [vmem:[%s749 + $0x98] sm:$0x3f]
      %v1866 = vld [vmem:[%s749 + $0xa0] sm:$0x3f]
      %v1867 = vld [vmem:[%s749 + $0xa8] sm:$0x3f]
      %v1868 = vld [vmem:[%s749 + $0xb0] sm:$0x3f]
      %v1869 = vld [vmem:[%s749 + $0xb8] sm:$0x3f]
      %v1870 = vld [vmem:[%s749 + $0xc0] sm:$0x3f]
      %v1871 = vld [vmem:[%s749 + $0xc8] sm:$0x3f]
      %v1872 = vmul.f32 %v612, %v1846
      %v1873 = vmul.f32 %v612, %v1847
      %v1874 = vmul.f32 %v612, %v1848
      %v1875 = vmul.f32 %v612, %v1849
      %v1876 = vmul.f32 %v612, %v1850
      %v1877 = vmul.f32 %v612, %v1851
      %v1878 = vmul.f32 %v612, %v1852
      %v1879 = vmul.f32 %v612, %v1853
      %v1880 = vmul.f32 %v612, %v1854
      %v1881 = vmul.f32 %v612, %v1855
      %v1882 = vmul.f32 %v612, %v1856
      %v1883 = vmul.f32 %v612, %v1857
      %v1884 = vmul.f32 %v612, %v1858
      %v1885 = vmul.f32 %v612, %v1859
      %v1886 = vmul.f32 %v612, %v1860
      %v1887 = vmul.f32 %v612, %v1861
      %v1888 = vmul.f32 %v612, %v1862
      %v1889 = vmul.f32 %v612, %v1863
      %v1890 = vmul.f32 %v612, %v1864
      %v1891 = vmul.f32 %v612, %v1865
      %v1892 = vmul.f32 %v612, %v1866
      %v1893 = vmul.f32 %v612, %v1867
      %v1894 = vmul.f32 %v612, %v1868
      %v1895 = vmul.f32 %v612, %v1869
      %v1896 = vmul.f32 %v612, %v1870
      %v1897 = vmul.f32 %v612, %v1871
      %v1898 = vadd.f32 %v1820, %v1872
      %v1899 = vadd.f32 %v1821, %v1873
      %v1900 = vadd.f32 %v1822, %v1874
      %v1901 = vadd.f32 %v1823, %v1875
      %v1902 = vadd.f32 %v1824, %v1876
      %v1903 = vadd.f32 %v1825, %v1877
      %v1904 = vadd.f32 %v1826, %v1878
      %v1905 = vadd.f32 %v1827, %v1879
      %v1906 = vadd.f32 %v1828, %v1880
      %v1907 = vadd.f32 %v1829, %v1881
      %v1908 = vadd.f32 %v1830, %v1882
      %v1909 = vadd.f32 %v1831, %v1883
      %v1910 = vadd.f32 %v1832, %v1884
      %v1911 = vadd.f32 %v1833, %v1885
      %v1912 = vadd.f32 %v1834, %v1886
      %v1913 = vadd.f32 %v1835, %v1887
      %v1914 = vadd.f32 %v1836, %v1888
      %v1915 = vadd.f32 %v1837, %v1889
      %v1916 = vadd.f32 %v1838, %v1890
      %v1917 = vadd.f32 %v1839, %v1891
      %v1918 = vadd.f32 %v1840, %v1892
      %v1919 = vadd.f32 %v1841, %v1893
      %v1920 = vadd.f32 %v1842, %v1894
      %v1921 = vadd.f32 %v1843, %v1895
      %v1922 = vadd.f32 %v1844, %v1896
      %v1923 = vadd.f32 %v1845, %v1897
      %v1924 = vld [vmem:[%s1299] sm:$0x3f]
      %v1925 = vld [vmem:[%s1299 + $0x8] sm:$0x3f]
      %v1926 = vld [vmem:[%s1299 + $0x10] sm:$0x3f]
      %v1927 = vld [vmem:[%s1299 + $0x18] sm:$0x3f]
      %v1928 = vld [vmem:[%s1299 + $0x20] sm:$0x3f]
      %v1929 = vld [vmem:[%s1299 + $0x28] sm:$0x3f]
      %v1930 = vld [vmem:[%s1299 + $0x30] sm:$0x3f]
      %v1931 = vld [vmem:[%s1299 + $0x38] sm:$0x3f]
      %v1932 = vld [vmem:[%s1299 + $0x40] sm:$0x3f]
      %v1933 = vld [vmem:[%s1299 + $0x48] sm:$0x3f]
      %v1934 = vld [vmem:[%s1299 + $0x50] sm:$0x3f]
      %v1935 = vld [vmem:[%s1299 + $0x58] sm:$0x3f]
      %v1936 = vld [vmem:[%s1299 + $0x60] sm:$0x3f]
      %v1937 = vld [vmem:[%s1299 + $0x68] sm:$0x3f]
      %v1938 = vld [vmem:[%s1299 + $0x70] sm:$0x3f]
      %v1939 = vld [vmem:[%s1299 + $0x78] sm:$0x3f]
      %v1940 = vld [vmem:[%s1299 + $0x80] sm:$0x3f]
      %v1941 = vld [vmem:[%s1299 + $0x88] sm:$0x3f]
      %v1942 = vld [vmem:[%s1299 + $0x90] sm:$0x3f]
      %v1943 = vld [vmem:[%s1299 + $0x98] sm:$0x3f]
      %v1944 = vld [vmem:[%s1299 + $0xa0] sm:$0x3f]
      %v1945 = vld [vmem:[%s1299 + $0xa8] sm:$0x3f]
      %v1946 = vld [vmem:[%s1299 + $0xb0] sm:$0x3f]
      %v1947 = vld [vmem:[%s1299 + $0xb8] sm:$0x3f]
      %v1948 = vld [vmem:[%s1299 + $0xc0] sm:$0x3f]
      %v1949 = vld [vmem:[%s1299 + $0xc8] sm:$0x3f]
      %v1950 = vmul.f32 %v694, %v1924
      %v1951 = vmul.f32 %v694, %v1925
      %v1952 = vmul.f32 %v694, %v1926
      %v1953 = vmul.f32 %v694, %v1927
      %v1954 = vmul.f32 %v694, %v1928
      %v1955 = vmul.f32 %v694, %v1929
      %v1956 = vmul.f32 %v694, %v1930
      %v1957 = vmul.f32 %v694, %v1931
      %v1958 = vmul.f32 %v694, %v1932
      %v1959 = vmul.f32 %v694, %v1933
      %v1960 = vmul.f32 %v694, %v1934
      %v1961 = vmul.f32 %v694, %v1935
      %v1962 = vmul.f32 %v694, %v1936
      %v1963 = vmul.f32 %v694, %v1937
      %v1964 = vmul.f32 %v694, %v1938
      %v1965 = vmul.f32 %v694, %v1939
      %v1966 = vmul.f32 %v694, %v1940
      %v1967 = vmul.f32 %v694, %v1941
      %v1968 = vmul.f32 %v694, %v1942
      %v1969 = vmul.f32 %v694, %v1943
      %v1970 = vmul.f32 %v694, %v1944
      %v1971 = vmul.f32 %v694, %v1945
      %v1972 = vmul.f32 %v694, %v1946
      %v1973 = vmul.f32 %v694, %v1947
      %v1974 = vmul.f32 %v694, %v1948
      %v1975 = vmul.f32 %v694, %v1949
      %v1976 = vadd.f32 %v1898, %v1950
      %v1977 = vadd.f32 %v1899, %v1951
      %v1978 = vadd.f32 %v1900, %v1952
      %v1979 = vadd.f32 %v1901, %v1953
      %v1980 = vadd.f32 %v1902, %v1954
      %v1981 = vadd.f32 %v1903, %v1955
      %v1982 = vadd.f32 %v1904, %v1956
      %v1983 = vadd.f32 %v1905, %v1957
      %v1984 = vadd.f32 %v1906, %v1958
      %v1985 = vadd.f32 %v1907, %v1959
      %v1986 = vadd.f32 %v1908, %v1960
      %v1987 = vadd.f32 %v1909, %v1961
      %v1988 = vadd.f32 %v1910, %v1962
      %v1989 = vadd.f32 %v1911, %v1963
      %v1990 = vadd.f32 %v1912, %v1964
      %v1991 = vadd.f32 %v1913, %v1965
      %v1992 = vadd.f32 %v1914, %v1966
      %v1993 = vadd.f32 %v1915, %v1967
      %v1994 = vadd.f32 %v1916, %v1968
      %v1995 = vadd.f32 %v1917, %v1969
      %v1996 = vadd.f32 %v1918, %v1970
      %v1997 = vadd.f32 %v1919, %v1971
      %v1998 = vadd.f32 %v1920, %v1972
      %v1999 = vadd.f32 %v1921, %v1973
      %v2000 = vadd.f32 %v1922, %v1974
      %v2001 = vadd.f32 %v1923, %v1975
      %v2002 = vld [vmem:[%s585 + $0x1] sm:$0x3f]
      %v2003 = vld [vmem:[%s585 + $0x9] sm:$0x3f]
      %v2004 = vld [vmem:[%s585 + $0x11] sm:$0x3f]
      %v2005 = vld [vmem:[%s585 + $0x19] sm:$0x3f]
      %v2006 = vld [vmem:[%s585 + $0x21] sm:$0x3f]
      %v2007 = vld [vmem:[%s585 + $0x29] sm:$0x3f]
      %v2008 = vld [vmem:[%s585 + $0x31] sm:$0x3f]
      %v2009 = vld [vmem:[%s585 + $0x39] sm:$0x3f]
      %v2010 = vld [vmem:[%s585 + $0x41] sm:$0x3f]
      %v2011 = vld [vmem:[%s585 + $0x49] sm:$0x3f]
      %v2012 = vld [vmem:[%s585 + $0x51] sm:$0x3f]
      %v2013 = vld [vmem:[%s585 + $0x59] sm:$0x3f]
      %v2014 = vld [vmem:[%s585 + $0x61] sm:$0x3f]
      %v2015 = vld [vmem:[%s585 + $0x69] sm:$0x3f]
      %v2016 = vld [vmem:[%s585 + $0x71] sm:$0x3f]
      %v2017 = vld [vmem:[%s585 + $0x79] sm:$0x3f]
      %v2018 = vld [vmem:[%s585 + $0x81] sm:$0x3f]
      %v2019 = vld [vmem:[%s585 + $0x89] sm:$0x3f]
      %v2020 = vld [vmem:[%s585 + $0x91] sm:$0x3f]
      %v2021 = vld [vmem:[%s585 + $0x99] sm:$0x3f]
      %v2022 = vld [vmem:[%s585 + $0xa1] sm:$0x3f]
      %v2023 = vld [vmem:[%s585 + $0xa9] sm:$0x3f]
      %v2024 = vld [vmem:[%s585 + $0xb1] sm:$0x3f]
      %v2025 = vld [vmem:[%s585 + $0xb9] sm:$0x3f]
      %v2026 = vld [vmem:[%s585 + $0xc1] sm:$0x3f]
      %v2027 = vld [vmem:[%s585 + $0xc9] sm:$0x3f]
      %v2028 = vmul.f32 %v776, %v2002
      %v2029 = vmul.f32 %v776, %v2003
      %v2030 = vmul.f32 %v776, %v2004
      %v2031 = vmul.f32 %v776, %v2005
      %v2032 = vmul.f32 %v776, %v2006
      %v2033 = vmul.f32 %v776, %v2007
      %v2034 = vmul.f32 %v776, %v2008
      %v2035 = vmul.f32 %v776, %v2009
      %v2036 = vmul.f32 %v776, %v2010
      %v2037 = vmul.f32 %v776, %v2011
      %v2038 = vmul.f32 %v776, %v2012
      %v2039 = vmul.f32 %v776, %v2013
      %v2040 = vmul.f32 %v776, %v2014
      %v2041 = vmul.f32 %v776, %v2015
      %v2042 = vmul.f32 %v776, %v2016
      %v2043 = vmul.f32 %v776, %v2017
      %v2044 = vmul.f32 %v776, %v2018
      %v2045 = vmul.f32 %v776, %v2019
      %v2046 = vmul.f32 %v776, %v2020
      %v2047 = vmul.f32 %v776, %v2021
      %v2048 = vmul.f32 %v776, %v2022
      %v2049 = vmul.f32 %v776, %v2023
      %v2050 = vmul.f32 %v776, %v2024
      %v2051 = vmul.f32 %v776, %v2025
      %v2052 = vmul.f32 %v776, %v2026
      %v2053 = vmul.f32 %v776, %v2027
      %v2054 = vadd.f32 %v1976, %v2028
      %v2055 = vadd.f32 %v1977, %v2029
      %v2056 = vadd.f32 %v1978, %v2030
      %v2057 = vadd.f32 %v1979, %v2031
      %v2058 = vadd.f32 %v1980, %v2032
      %v2059 = vadd.f32 %v1981, %v2033
      %v2060 = vadd.f32 %v1982, %v2034
      %v2061 = vadd.f32 %v1983, %v2035
      %v2062 = vadd.f32 %v1984, %v2036
      %v2063 = vadd.f32 %v1985, %v2037
      %v2064 = vadd.f32 %v1986, %v2038
      %v2065 = vadd.f32 %v1987, %v2039
      %v2066 = vadd.f32 %v1988, %v2040
      %v2067 = vadd.f32 %v1989, %v2041
      %v2068 = vadd.f32 %v1990, %v2042
      %v2069 = vadd.f32 %v1991, %v2043
      %v2070 = vadd.f32 %v1992, %v2044
      %v2071 = vadd.f32 %v1993, %v2045
      %v2072 = vadd.f32 %v1994, %v2046
      %v2073 = vadd.f32 %v1995, %v2047
      %v2074 = vadd.f32 %v1996, %v2048
      %v2075 = vadd.f32 %v1997, %v2049
      %v2076 = vadd.f32 %v1998, %v2050
      %v2077 = vadd.f32 %v1999, %v2051
      %v2078 = vadd.f32 %v2000, %v2052
      %v2079 = vadd.f32 %v2001, %v2053
      %v2080 = vmul.f32 %v120, %v1456
      %v2081 = vmul.f32 %v120, %v1457
      %v2082 = vmul.f32 %v120, %v1458
      %v2083 = vmul.f32 %v120, %v1459
      %v2084 = vmul.f32 %v120, %v1460
      %v2085 = vmul.f32 %v120, %v1461
      %v2086 = vmul.f32 %v120, %v1462
      %v2087 = vmul.f32 %v120, %v1463
      %v2088 = vmul.f32 %v120, %v1464
      %v2089 = vmul.f32 %v120, %v1465
      %v2090 = vmul.f32 %v120, %v1466
      %v2091 = vmul.f32 %v120, %v1467
      %v2092 = vmul.f32 %v120, %v1468
      %v2093 = vmul.f32 %v120, %v1469
      %v2094 = vmul.f32 %v120, %v1470
      %v2095 = vmul.f32 %v120, %v1471
      %v2096 = vmul.f32 %v120, %v1472
      %v2097 = vmul.f32 %v120, %v1473
      %v2098 = vmul.f32 %v120, %v1474
      %v2099 = vmul.f32 %v120, %v1475
      %v2100 = vmul.f32 %v120, %v1476
      %v2101 = vmul.f32 %v120, %v1477
      %v2102 = vmul.f32 %v120, %v1478
      %v2103 = vmul.f32 %v120, %v1479
      %v2104 = vmul.f32 %v120, %v1480
      %v2105 = vmul.f32 %v120, %v1481
      %v2106 = vadd.f32 %v2080, 0.0
      %v2107 = vadd.f32 %v2081, 0.0
      %v2108 = vadd.f32 %v2082, 0.0
      %v2109 = vadd.f32 %v2083, 0.0
      %v2110 = vadd.f32 %v2084, 0.0
      %v2111 = vadd.f32 %v2085, 0.0
      %v2112 = vadd.f32 %v2086, 0.0
      %v2113 = vadd.f32 %v2087, 0.0
      %v2114 = vadd.f32 %v2088, 0.0
      %v2115 = vadd.f32 %v2089, 0.0
      %v2116 = vadd.f32 %v2090, 0.0
      %v2117 = vadd.f32 %v2091, 0.0
      %v2118 = vadd.f32 %v2092, 0.0
      %v2119 = vadd.f32 %v2093, 0.0
      %v2120 = vadd.f32 %v2094, 0.0
      %v2121 = vadd.f32 %v2095, 0.0
      %v2122 = vadd.f32 %v2096, 0.0
      %v2123 = vadd.f32 %v2097, 0.0
      %v2124 = vadd.f32 %v2098, 0.0
      %v2125 = vadd.f32 %v2099, 0.0
      %v2126 = vadd.f32 %v2100, 0.0
      %v2127 = vadd.f32 %v2101, 0.0
      %v2128 = vadd.f32 %v2102, 0.0
      %v2129 = vadd.f32 %v2103, 0.0
      %v2130 = vadd.f32 %v2104, 0.0
      %v2131 = vadd.f32 %v2105, 0.0
      %v2132 = vmul.f32 %v202, %v1534
      %v2133 = vmul.f32 %v202, %v1535
      %v2134 = vmul.f32 %v202, %v1536
      %v2135 = vmul.f32 %v202, %v1537
      %v2136 = vmul.f32 %v202, %v1538
      %v2137 = vmul.f32 %v202, %v1539
      %v2138 = vmul.f32 %v202, %v1540
      %v2139 = vmul.f32 %v202, %v1541
      %v2140 = vmul.f32 %v202, %v1542
      %v2141 = vmul.f32 %v202, %v1543
      %v2142 = vmul.f32 %v202, %v1544
      %v2143 = vmul.f32 %v202, %v1545
      %v2144 = vmul.f32 %v202, %v1546
      %v2145 = vmul.f32 %v202, %v1547
      %v2146 = vmul.f32 %v202, %v1548
      %v2147 = vmul.f32 %v202, %v1549
      %v2148 = vmul.f32 %v202, %v1550
      %v2149 = vmul.f32 %v202, %v1551
      %v2150 = vmul.f32 %v202, %v1552
      %v2151 = vmul.f32 %v202, %v1553
      %v2152 = vmul.f32 %v202, %v1554
      %v2153 = vmul.f32 %v202, %v1555
      %v2154 = vmul.f32 %v202, %v1556
      %v2155 = vmul.f32 %v202, %v1557
      %v2156 = vmul.f32 %v202, %v1558
      %v2157 = vmul.f32 %v202, %v1559
      %v2158 = vadd.f32 %v2106, %v2132
      %v2159 = vadd.f32 %v2107, %v2133
      %v2160 = vadd.f32 %v2108, %v2134
      %v2161 = vadd.f32 %v2109, %v2135
      %v2162 = vadd.f32 %v2110, %v2136
      %v2163 = vadd.f32 %v2111, %v2137
      %v2164 = vadd.f32 %v2112, %v2138
      %v2165 = vadd.f32 %v2113, %v2139
      %v2166 = vadd.f32 %v2114, %v2140
      %v2167 = vadd.f32 %v2115, %v2141
      %v2168 = vadd.f32 %v2116, %v2142
      %v2169 = vadd.f32 %v2117, %v2143
      %v2170 = vadd.f32 %v2118, %v2144
      %v2171 = vadd.f32 %v2119, %v2145
      %v2172 = vadd.f32 %v2120, %v2146
      %v2173 = vadd.f32 %v2121, %v2147
      %v2174 = vadd.f32 %v2122, %v2148
      %v2175 = vadd.f32 %v2123, %v2149
      %v2176 = vadd.f32 %v2124, %v2150
      %v2177 = vadd.f32 %v2125, %v2151
      %v2178 = vadd.f32 %v2126, %v2152
      %v2179 = vadd.f32 %v2127, %v2153
      %v2180 = vadd.f32 %v2128, %v2154
      %v2181 = vadd.f32 %v2129, %v2155
      %v2182 = vadd.f32 %v2130, %v2156
      %v2183 = vadd.f32 %v2131, %v2157
      %v2184 = vld [vmem:[%s175 + $0x1] sm:$0x3f]
      %v2185 = vld [vmem:[%s175 + $0x9] sm:$0x3f]
      %v2186 = vld [vmem:[%s175 + $0x11] sm:$0x3f]
      %v2187 = vld [vmem:[%s175 + $0x19] sm:$0x3f]
      %v2188 = vld [vmem:[%s175 + $0x21] sm:$0x3f]
      %v2189 = vld [vmem:[%s175 + $0x29] sm:$0x3f]
      %v2190 = vld [vmem:[%s175 + $0x31] sm:$0x3f]
      %v2191 = vld [vmem:[%s175 + $0x39] sm:$0x3f]
      %v2192 = vld [vmem:[%s175 + $0x41] sm:$0x3f]
      %v2193 = vld [vmem:[%s175 + $0x49] sm:$0x3f]
      %v2194 = vld [vmem:[%s175 + $0x51] sm:$0x3f]
      %v2195 = vld [vmem:[%s175 + $0x59] sm:$0x3f]
      %v2196 = vld [vmem:[%s175 + $0x61] sm:$0x3f]
      %v2197 = vld [vmem:[%s175 + $0x69] sm:$0x3f]
      %v2198 = vld [vmem:[%s175 + $0x71] sm:$0x3f]
      %v2199 = vld [vmem:[%s175 + $0x79] sm:$0x3f]
      %v2200 = vld [vmem:[%s175 + $0x81] sm:$0x3f]
      %v2201 = vld [vmem:[%s175 + $0x89] sm:$0x3f]
      %v2202 = vld [vmem:[%s175 + $0x91] sm:$0x3f]
      %v2203 = vld [vmem:[%s175 + $0x99] sm:$0x3f]
      %v2204 = vld [vmem:[%s175 + $0xa1] sm:$0x3f]
      %v2205 = vld [vmem:[%s175 + $0xa9] sm:$0x3f]
      %v2206 = vld [vmem:[%s175 + $0xb1] sm:$0x3f]
      %v2207 = vld [vmem:[%s175 + $0xb9] sm:$0x3f]
      %v2208 = vld [vmem:[%s175 + $0xc1] sm:$0x3f]
      %v2209 = vld [vmem:[%s175 + $0xc9] sm:$0x3f]
      %v2210 = vmul.f32 %v284, %v2184
      %v2211 = vmul.f32 %v284, %v2185
      %v2212 = vmul.f32 %v284, %v2186
      %v2213 = vmul.f32 %v284, %v2187
      %v2214 = vmul.f32 %v284, %v2188
      %v2215 = vmul.f32 %v284, %v2189
      %v2216 = vmul.f32 %v284, %v2190
      %v2217 = vmul.f32 %v284, %v2191
      %v2218 = vmul.f32 %v284, %v2192
      %v2219 = vmul.f32 %v284, %v2193
      %v2220 = vmul.f32 %v284, %v2194
      %v2221 = vmul.f32 %v284, %v2195
      %v2222 = vmul.f32 %v284, %v2196
      %v2223 = vmul.f32 %v284, %v2197
      %v2224 = vmul.f32 %v284, %v2198
      %v2225 = vmul.f32 %v284, %v2199
      %v2226 = vmul.f32 %v284, %v2200
      %v2227 = vmul.f32 %v284, %v2201
      %v2228 = vmul.f32 %v284, %v2202
      %v2229 = vmul.f32 %v284, %v2203
      %v2230 = vmul.f32 %v284, %v2204
      %v2231 = vmul.f32 %v284, %v2205
      %v2232 = vmul.f32 %v284, %v2206
      %v2233 = vmul.f32 %v284, %v2207
      %v2234 = vmul.f32 %v284, %v2208
      %v2235 = vmul.f32 %v284, %v2209
      %v2236 = vadd.f32 %v2158, %v2210
      %v2237 = vadd.f32 %v2159, %v2211
      %v2238 = vadd.f32 %v2160, %v2212
      %v2239 = vadd.f32 %v2161, %v2213
      %v2240 = vadd.f32 %v2162, %v2214
      %v2241 = vadd.f32 %v2163, %v2215
      %v2242 = vadd.f32 %v2164, %v2216
      %v2243 = vadd.f32 %v2165, %v2217
      %v2244 = vadd.f32 %v2166, %v2218
      %v2245 = vadd.f32 %v2167, %v2219
      %v2246 = vadd.f32 %v2168, %v2220
      %v2247 = vadd.f32 %v2169, %v2221
      %v2248 = vadd.f32 %v2170, %v2222
      %v2249 = vadd.f32 %v2171, %v2223
      %v2250 = vadd.f32 %v2172, %v2224
      %v2251 = vadd.f32 %v2173, %v2225
      %v2252 = vadd.f32 %v2174, %v2226
      %v2253 = vadd.f32 %v2175, %v2227
      %v2254 = vadd.f32 %v2176, %v2228
      %v2255 = vadd.f32 %v2177, %v2229
      %v2256 = vadd.f32 %v2178, %v2230
      %v2257 = vadd.f32 %v2179, %v2231
      %v2258 = vadd.f32 %v2180, %v2232
      %v2259 = vadd.f32 %v2181, %v2233
      %v2260 = vadd.f32 %v2182, %v2234
      %v2261 = vadd.f32 %v2183, %v2235
      %v2262 = vmul.f32 %v366, %v1690
      %v2263 = vmul.f32 %v366, %v1691
      %v2264 = vmul.f32 %v366, %v1692
      %v2265 = vmul.f32 %v366, %v1693
      %v2266 = vmul.f32 %v366, %v1694
      %v2267 = vmul.f32 %v366, %v1695
      %v2268 = vmul.f32 %v366, %v1696
      %v2269 = vmul.f32 %v366, %v1697
      %v2270 = vmul.f32 %v366, %v1698
      %v2271 = vmul.f32 %v366, %v1699
      %v2272 = vmul.f32 %v366, %v1700
      %v2273 = vmul.f32 %v366, %v1701
      %v2274 = vmul.f32 %v366, %v1702
      %v2275 = vmul.f32 %v366, %v1703
      %v2276 = vmul.f32 %v366, %v1704
      %v2277 = vmul.f32 %v366, %v1705
      %v2278 = vmul.f32 %v366, %v1706
      %v2279 = vmul.f32 %v366, %v1707
      %v2280 = vmul.f32 %v366, %v1708
      %v2281 = vmul.f32 %v366, %v1709
      %v2282 = vmul.f32 %v366, %v1710
      %v2283 = vmul.f32 %v366, %v1711
      %v2284 = vmul.f32 %v366, %v1712
      %v2285 = vmul.f32 %v366, %v1713
      %v2286 = vmul.f32 %v366, %v1714
      %v2287 = vmul.f32 %v366, %v1715
      %v2288 = vadd.f32 %v2236, %v2262
      %v2289 = vadd.f32 %v2237, %v2263
      %v2290 = vadd.f32 %v2238, %v2264
      %v2291 = vadd.f32 %v2239, %v2265
      %v2292 = vadd.f32 %v2240, %v2266
      %v2293 = vadd.f32 %v2241, %v2267
      %v2294 = vadd.f32 %v2242, %v2268
      %v2295 = vadd.f32 %v2243, %v2269
      %v2296 = vadd.f32 %v2244, %v2270
      %v2297 = vadd.f32 %v2245, %v2271
      %v2298 = vadd.f32 %v2246, %v2272
      %v2299 = vadd.f32 %v2247, %v2273
      %v2300 = vadd.f32 %v2248, %v2274
      %v2301 = vadd.f32 %v2249, %v2275
      %v2302 = vadd.f32 %v2250, %v2276
      %v2303 = vadd.f32 %v2251, %v2277
      %v2304 = vadd.f32 %v2252, %v2278
      %v2305 = vadd.f32 %v2253, %v2279
      %v2306 = vadd.f32 %v2254, %v2280
      %v2307 = vadd.f32 %v2255, %v2281
      %v2308 = vadd.f32 %v2256, %v2282
      %v2309 = vadd.f32 %v2257, %v2283
      %v2310 = vadd.f32 %v2258, %v2284
      %v2311 = vadd.f32 %v2259, %v2285
      %v2312 = vadd.f32 %v2260, %v2286
      %v2313 = vadd.f32 %v2261, %v2287
      %v2314 = vmul.f32 %v448, %v1768
      %v2315 = vmul.f32 %v448, %v1769
      %v2316 = vmul.f32 %v448, %v1770
      %v2317 = vmul.f32 %v448, %v1771
      %v2318 = vmul.f32 %v448, %v1772
      %v2319 = vmul.f32 %v448, %v1773
      %v2320 = vmul.f32 %v448, %v1774
      %v2321 = vmul.f32 %v448, %v1775
      %v2322 = vmul.f32 %v448, %v1776
      %v2323 = vmul.f32 %v448, %v1777
      %v2324 = vmul.f32 %v448, %v1778
      %v2325 = vmul.f32 %v448, %v1779
      %v2326 = vmul.f32 %v448, %v1780
      %v2327 = vmul.f32 %v448, %v1781
      %v2328 = vmul.f32 %v448, %v1782
      %v2329 = vmul.f32 %v448, %v1783
      %v2330 = vmul.f32 %v448, %v1784
      %v2331 = vmul.f32 %v448, %v1785
      %v2332 = vmul.f32 %v448, %v1786
      %v2333 = vmul.f32 %v448, %v1787
      %v2334 = vmul.f32 %v448, %v1788
      %v2335 = vmul.f32 %v448, %v1789
      %v2336 = vmul.f32 %v448, %v1790
      %v2337 = vmul.f32 %v448, %v1791
      %v2338 = vmul.f32 %v448, %v1792
      %v2339 = vmul.f32 %v448, %v1793
      %v2340 = vadd.f32 %v2288, %v2314
      %v2341 = vadd.f32 %v2289, %v2315
      %v2342 = vadd.f32 %v2290, %v2316
      %v2343 = vadd.f32 %v2291, %v2317
      %v2344 = vadd.f32 %v2292, %v2318
      %v2345 = vadd.f32 %v2293, %v2319
      %v2346 = vadd.f32 %v2294, %v2320
      %v2347 = vadd.f32 %v2295, %v2321
      %v2348 = vadd.f32 %v2296, %v2322
      %v2349 = vadd.f32 %v2297, %v2323
      %v2350 = vadd.f32 %v2298, %v2324
      %v2351 = vadd.f32 %v2299, %v2325
      %v2352 = vadd.f32 %v2300, %v2326
      %v2353 = vadd.f32 %v2301, %v2327
      %v2354 = vadd.f32 %v2302, %v2328
      %v2355 = vadd.f32 %v2303, %v2329
      %v2356 = vadd.f32 %v2304, %v2330
      %v2357 = vadd.f32 %v2305, %v2331
      %v2358 = vadd.f32 %v2306, %v2332
      %v2359 = vadd.f32 %v2307, %v2333
      %v2360 = vadd.f32 %v2308, %v2334
      %v2361 = vadd.f32 %v2309, %v2335
      %v2362 = vadd.f32 %v2310, %v2336
      %v2363 = vadd.f32 %v2311, %v2337
      %v2364 = vadd.f32 %v2312, %v2338
      %v2365 = vadd.f32 %v2313, %v2339
      %v2366 = vld [vmem:[%s421 + $0x1] sm:$0x3f]
      %v2367 = vld [vmem:[%s421 + $0x9] sm:$0x3f]
      %v2368 = vld [vmem:[%s421 + $0x11] sm:$0x3f]
      %v2369 = vld [vmem:[%s421 + $0x19] sm:$0x3f]
      %v2370 = vld [vmem:[%s421 + $0x21] sm:$0x3f]
      %v2371 = vld [vmem:[%s421 + $0x29] sm:$0x3f]
      %v2372 = vld [vmem:[%s421 + $0x31] sm:$0x3f]
      %v2373 = vld [vmem:[%s421 + $0x39] sm:$0x3f]
      %v2374 = vld [vmem:[%s421 + $0x41] sm:$0x3f]
      %v2375 = vld [vmem:[%s421 + $0x49] sm:$0x3f]
      %v2376 = vld [vmem:[%s421 + $0x51] sm:$0x3f]
      %v2377 = vld [vmem:[%s421 + $0x59] sm:$0x3f]
      %v2378 = vld [vmem:[%s421 + $0x61] sm:$0x3f]
      %v2379 = vld [vmem:[%s421 + $0x69] sm:$0x3f]
      %v2380 = vld [vmem:[%s421 + $0x71] sm:$0x3f]
      %v2381 = vld [vmem:[%s421 + $0x79] sm:$0x3f]
      %v2382 = vld [vmem:[%s421 + $0x81] sm:$0x3f]
      %v2383 = vld [vmem:[%s421 + $0x89] sm:$0x3f]
      %v2384 = vld [vmem:[%s421 + $0x91] sm:$0x3f]
      %v2385 = vld [vmem:[%s421 + $0x99] sm:$0x3f]
      %v2386 = vld [vmem:[%s421 + $0xa1] sm:$0x3f]
      %v2387 = vld [vmem:[%s421 + $0xa9] sm:$0x3f]
      %v2388 = vld [vmem:[%s421 + $0xb1] sm:$0x3f]
      %v2389 = vld [vmem:[%s421 + $0xb9] sm:$0x3f]
      %v2390 = vld [vmem:[%s421 + $0xc1] sm:$0x3f]
      %v2391 = vld [vmem:[%s421 + $0xc9] sm:$0x3f]
      %v2392 = vmul.f32 %v530, %v2366
      %v2393 = vmul.f32 %v530, %v2367
      %v2394 = vmul.f32 %v530, %v2368
      %v2395 = vmul.f32 %v530, %v2369
      %v2396 = vmul.f32 %v530, %v2370
      %v2397 = vmul.f32 %v530, %v2371
      %v2398 = vmul.f32 %v530, %v2372
      %v2399 = vmul.f32 %v530, %v2373
      %v2400 = vmul.f32 %v530, %v2374
      %v2401 = vmul.f32 %v530, %v2375
      %v2402 = vmul.f32 %v530, %v2376
      %v2403 = vmul.f32 %v530, %v2377
      %v2404 = vmul.f32 %v530, %v2378
      %v2405 = vmul.f32 %v530, %v2379
      %v2406 = vmul.f32 %v530, %v2380
      %v2407 = vmul.f32 %v530, %v2381
      %v2408 = vmul.f32 %v530, %v2382
      %v2409 = vmul.f32 %v530, %v2383
      %v2410 = vmul.f32 %v530, %v2384
      %v2411 = vmul.f32 %v530, %v2385
      %v2412 = vmul.f32 %v530, %v2386
      %v2413 = vmul.f32 %v530, %v2387
      %v2414 = vmul.f32 %v530, %v2388
      %v2415 = vmul.f32 %v530, %v2389
      %v2416 = vmul.f32 %v530, %v2390
      %v2417 = vmul.f32 %v530, %v2391
      %v2418 = vadd.f32 %v2340, %v2392
      %v2419 = vadd.f32 %v2341, %v2393
      %v2420 = vadd.f32 %v2342, %v2394
      %v2421 = vadd.f32 %v2343, %v2395
      %v2422 = vadd.f32 %v2344, %v2396
      %v2423 = vadd.f32 %v2345, %v2397
      %v2424 = vadd.f32 %v2346, %v2398
      %v2425 = vadd.f32 %v2347, %v2399
      %v2426 = vadd.f32 %v2348, %v2400
      %v2427 = vadd.f32 %v2349, %v2401
      %v2428 = vadd.f32 %v2350, %v2402
      %v2429 = vadd.f32 %v2351, %v2403
      %v2430 = vadd.f32 %v2352, %v2404
      %v2431 = vadd.f32 %v2353, %v2405
      %v2432 = vadd.f32 %v2354, %v2406
      %v2433 = vadd.f32 %v2355, %v2407
      %v2434 = vadd.f32 %v2356, %v2408
      %v2435 = vadd.f32 %v2357, %v2409
      %v2436 = vadd.f32 %v2358, %v2410
      %v2437 = vadd.f32 %v2359, %v2411
      %v2438 = vadd.f32 %v2360, %v2412
      %v2439 = vadd.f32 %v2361, %v2413
      %v2440 = vadd.f32 %v2362, %v2414
      %v2441 = vadd.f32 %v2363, %v2415
      %v2442 = vadd.f32 %v2364, %v2416
      %v2443 = vadd.f32 %v2365, %v2417
      %v2444 = vmul.f32 %v612, %v1924
      %v2445 = vmul.f32 %v612, %v1925
      %v2446 = vmul.f32 %v612, %v1926
      %v2447 = vmul.f32 %v612, %v1927
      %v2448 = vmul.f32 %v612, %v1928
      %v2449 = vmul.f32 %v612, %v1929
      %v2450 = vmul.f32 %v612, %v1930
      %v2451 = vmul.f32 %v612, %v1931
      %v2452 = vmul.f32 %v612, %v1932
      %v2453 = vmul.f32 %v612, %v1933
      %v2454 = vmul.f32 %v612, %v1934
      %v2455 = vmul.f32 %v612, %v1935
      %v2456 = vmul.f32 %v612, %v1936
      %v2457 = vmul.f32 %v612, %v1937
      %v2458 = vmul.f32 %v612, %v1938
      %v2459 = vmul.f32 %v612, %v1939
      %v2460 = vmul.f32 %v612, %v1940
      %v2461 = vmul.f32 %v612, %v1941
      %v2462 = vmul.f32 %v612, %v1942
      %v2463 = vmul.f32 %v612, %v1943
      %v2464 = vmul.f32 %v612, %v1944
      %v2465 = vmul.f32 %v612, %v1945
      %v2466 = vmul.f32 %v612, %v1946
      %v2467 = vmul.f32 %v612, %v1947
      %v2468 = vmul.f32 %v612, %v1948
      %v2469 = vmul.f32 %v612, %v1949
      %v2470 = vadd.f32 %v2418, %v2444
      %v2471 = vadd.f32 %v2419, %v2445
      %v2472 = vadd.f32 %v2420, %v2446
      %v2473 = vadd.f32 %v2421, %v2447
      %v2474 = vadd.f32 %v2422, %v2448
      %v2475 = vadd.f32 %v2423, %v2449
      %v2476 = vadd.f32 %v2424, %v2450
      %v2477 = vadd.f32 %v2425, %v2451
      %v2478 = vadd.f32 %v2426, %v2452
      %v2479 = vadd.f32 %v2427, %v2453
      %v2480 = vadd.f32 %v2428, %v2454
      %v2481 = vadd.f32 %v2429, %v2455
      %v2482 = vadd.f32 %v2430, %v2456
      %v2483 = vadd.f32 %v2431, %v2457
      %v2484 = vadd.f32 %v2432, %v2458
      %v2485 = vadd.f32 %v2433, %v2459
      %v2486 = vadd.f32 %v2434, %v2460
      %v2487 = vadd.f32 %v2435, %v2461
      %v2488 = vadd.f32 %v2436, %v2462
      %v2489 = vadd.f32 %v2437, %v2463
      %v2490 = vadd.f32 %v2438, %v2464
      %v2491 = vadd.f32 %v2439, %v2465
      %v2492 = vadd.f32 %v2440, %v2466
      %v2493 = vadd.f32 %v2441, %v2467
      %v2494 = vadd.f32 %v2442, %v2468
      %v2495 = vadd.f32 %v2443, %v2469
      %v2496 = vmul.f32 %v694, %v2002
      %v2497 = vmul.f32 %v694, %v2003
      %v2498 = vmul.f32 %v694, %v2004
      %v2499 = vmul.f32 %v694, %v2005
      %v2500 = vmul.f32 %v694, %v2006
      %v2501 = vmul.f32 %v694, %v2007
      %v2502 = vmul.f32 %v694, %v2008
      %v2503 = vmul.f32 %v694, %v2009
      %v2504 = vmul.f32 %v694, %v2010
      %v2505 = vmul.f32 %v694, %v2011
      %v2506 = vmul.f32 %v694, %v2012
      %v2507 = vmul.f32 %v694, %v2013
      %v2508 = vmul.f32 %v694, %v2014
      %v2509 = vmul.f32 %v694, %v2015
      %v2510 = vmul.f32 %v694, %v2016
      %v2511 = vmul.f32 %v694, %v2017
      %v2512 = vmul.f32 %v694, %v2018
      %v2513 = vmul.f32 %v694, %v2019
      %v2514 = vmul.f32 %v694, %v2020
      %v2515 = vmul.f32 %v694, %v2021
      %v2516 = vmul.f32 %v694, %v2022
      %v2517 = vmul.f32 %v694, %v2023
      %v2518 = vmul.f32 %v694, %v2024
      %v2519 = vmul.f32 %v694, %v2025
      %v2520 = vmul.f32 %v694, %v2026
      %v2521 = vmul.f32 %v694, %v2027
      %v2522 = vadd.f32 %v2470, %v2496
      %v2523 = vadd.f32 %v2471, %v2497
      %v2524 = vadd.f32 %v2472, %v2498
      %v2525 = vadd.f32 %v2473, %v2499
      %v2526 = vadd.f32 %v2474, %v2500
      %v2527 = vadd.f32 %v2475, %v2501
      %v2528 = vadd.f32 %v2476, %v2502
      %v2529 = vadd.f32 %v2477, %v2503
      %v2530 = vadd.f32 %v2478, %v2504
      %v2531 = vadd.f32 %v2479, %v2505
      %v2532 = vadd.f32 %v2480, %v2506
      %v2533 = vadd.f32 %v2481, %v2507
      %v2534 = vadd.f32 %v2482, %v2508
      %v2535 = vadd.f32 %v2483, %v2509
      %v2536 = vadd.f32 %v2484, %v2510
      %v2537 = vadd.f32 %v2485, %v2511
      %v2538 = vadd.f32 %v2486, %v2512
      %v2539 = vadd.f32 %v2487, %v2513
      %v2540 = vadd.f32 %v2488, %v2514
      %v2541 = vadd.f32 %v2489, %v2515
      %v2542 = vadd.f32 %v2490, %v2516
      %v2543 = vadd.f32 %v2491, %v2517
      %v2544 = vadd.f32 %v2492, %v2518
      %v2545 = vadd.f32 %v2493, %v2519
      %v2546 = vadd.f32 %v2494, %v2520
      %v2547 = vadd.f32 %v2495, %v2521
      %v2548 = vld [vmem:[%s667 + $0x1] sm:$0x3f]
      %v2549 = vld [vmem:[%s667 + $0x9] sm:$0x3f]
      %v2550 = vld [vmem:[%s667 + $0x11] sm:$0x3f]
      %v2551 = vld [vmem:[%s667 + $0x19] sm:$0x3f]
      %v2552 = vld [vmem:[%s667 + $0x21] sm:$0x3f]
      %v2553 = vld [vmem:[%s667 + $0x29] sm:$0x3f]
      %v2554 = vld [vmem:[%s667 + $0x31] sm:$0x3f]
      %v2555 = vld [vmem:[%s667 + $0x39] sm:$0x3f]
      %v2556 = vld [vmem:[%s667 + $0x41] sm:$0x3f]
      %v2557 = vld [vmem:[%s667 + $0x49] sm:$0x3f]
      %v2558 = vld [vmem:[%s667 + $0x51] sm:$0x3f]
      %v2559 = vld [vmem:[%s667 + $0x59] sm:$0x3f]
      %v2560 = vld [vmem:[%s667 + $0x61] sm:$0x3f]
      %v2561 = vld [vmem:[%s667 + $0x69] sm:$0x3f]
      %v2562 = vld [vmem:[%s667 + $0x71] sm:$0x3f]
      %v2563 = vld [vmem:[%s667 + $0x79] sm:$0x3f]
      %v2564 = vld [vmem:[%s667 + $0x81] sm:$0x3f]
      %v2565 = vld [vmem:[%s667 + $0x89] sm:$0x3f]
      %v2566 = vld [vmem:[%s667 + $0x91] sm:$0x3f]
      %v2567 = vld [vmem:[%s667 + $0x99] sm:$0x3f]
      %v2568 = vld [vmem:[%s667 + $0xa1] sm:$0x3f]
      %v2569 = vld [vmem:[%s667 + $0xa9] sm:$0x3f]
      %v2570 = vld [vmem:[%s667 + $0xb1] sm:$0x3f]
      %v2571 = vld [vmem:[%s667 + $0xb9] sm:$0x3f]
      %v2572 = vld [vmem:[%s667 + $0xc1] sm:$0x3f]
      %v2573 = vld [vmem:[%s667 + $0xc9] sm:$0x3f]
      %v2574 = vmul.f32 %v776, %v2548
      %v2575 = vmul.f32 %v776, %v2549
      %v2576 = vmul.f32 %v776, %v2550
      %v2577 = vmul.f32 %v776, %v2551
      %v2578 = vmul.f32 %v776, %v2552
      %v2579 = vmul.f32 %v776, %v2553
      %v2580 = vmul.f32 %v776, %v2554
      %v2581 = vmul.f32 %v776, %v2555
      %v2582 = vmul.f32 %v776, %v2556
      %v2583 = vmul.f32 %v776, %v2557
      %v2584 = vmul.f32 %v776, %v2558
      %v2585 = vmul.f32 %v776, %v2559
      %v2586 = vmul.f32 %v776, %v2560
      %v2587 = vmul.f32 %v776, %v2561
      %v2588 = vmul.f32 %v776, %v2562
      %v2589 = vmul.f32 %v776, %v2563
      %v2590 = vmul.f32 %v776, %v2564
      %v2591 = vmul.f32 %v776, %v2565
      %v2592 = vmul.f32 %v776, %v2566
      %v2593 = vmul.f32 %v776, %v2567
      %v2594 = vmul.f32 %v776, %v2568
      %v2595 = vmul.f32 %v776, %v2569
      %v2596 = vmul.f32 %v776, %v2570
      %v2597 = vmul.f32 %v776, %v2571
      %v2598 = vmul.f32 %v776, %v2572
      %v2599 = vmul.f32 %v776, %v2573
      %v2600 = vadd.f32 %v2522, %v2574
      %v2601 = vadd.f32 %v2523, %v2575
      %v2602 = vadd.f32 %v2524, %v2576
      %v2603 = vadd.f32 %v2525, %v2577
      %v2604 = vadd.f32 %v2526, %v2578
      %v2605 = vadd.f32 %v2527, %v2579
      %v2606 = vadd.f32 %v2528, %v2580
      %v2607 = vadd.f32 %v2529, %v2581
      %v2608 = vadd.f32 %v2530, %v2582
      %v2609 = vadd.f32 %v2531, %v2583
      %v2610 = vadd.f32 %v2532, %v2584
      %v2611 = vadd.f32 %v2533, %v2585
      %v2612 = vadd.f32 %v2534, %v2586
      %v2613 = vadd.f32 %v2535, %v2587
      %v2614 = vadd.f32 %v2536, %v2588
      %v2615 = vadd.f32 %v2537, %v2589
      %v2616 = vadd.f32 %v2538, %v2590
      %v2617 = vadd.f32 %v2539, %v2591
      %v2618 = vadd.f32 %v2540, %v2592
      %v2619 = vadd.f32 %v2541, %v2593
      %v2620 = vadd.f32 %v2542, %v2594
      %v2621 = vadd.f32 %v2543, %v2595
      %v2622 = vadd.f32 %v2544, %v2596
      %v2623 = vadd.f32 %v2545, %v2597
      %v2624 = vadd.f32 %v2546, %v2598
      %v2625 = vadd.f32 %v2547, %v2599
      %s2626 = sld [smem:[#allocation8 + %s87]]
      %v2627 = vmax.f32 %v803, %v1352
      %v2628 = vmax.f32 %v804, %v1353
      %v2629 = vmax.f32 %v805, %v1354
      %v2630 = vmax.f32 %v806, %v1355
      %v2631 = vmax.f32 %v807, %v1356
      %v2632 = vmax.f32 %v808, %v1357
      %v2633 = vmax.f32 %v809, %v1358
      %v2634 = vmax.f32 %v810, %v1359
      %v2635 = vmax.f32 %v811, %v1360
      %v2636 = vmax.f32 %v812, %v1361
      %v2637 = vmax.f32 %v813, %v1362
      %v2638 = vmax.f32 %v814, %v1363
      %v2639 = vmax.f32 %v815, %v1364
      %v2640 = vmax.f32 %v816, %v1365
      %v2641 = vmax.f32 %v817, %v1366
      %v2642 = vmax.f32 %v818, %v1367
      %v2643 = vmax.f32 %v819, %v1368
      %v2644 = vmax.f32 %v820, %v1369
      %v2645 = vmax.f32 %v821, %v1370
      %v2646 = vmax.f32 %v822, %v1371
      %v2647 = vmax.f32 %v823, %v1372
      %v2648 = vmax.f32 %v824, %v1373
      %v2649 = vmax.f32 %v825, %v1374
      %v2650 = vmax.f32 %v826, %v1375
      %v2651 = vmax.f32 %v827, %v1376
      %v2652 = vmax.f32 %v828, %v1377
      %v2653 = vstv %s2626
      %v2654 = vadd.f32 %v2627, %v2653
      %v2655 = vadd.f32 %v2628, %v2653
      %v2656 = vadd.f32 %v2629, %v2653
      %v2657 = vadd.f32 %v2630, %v2653
      %v2658 = vadd.f32 %v2631, %v2653
      %v2659 = vadd.f32 %v2632, %v2653
      %v2660 = vadd.f32 %v2633, %v2653
      %v2661 = vadd.f32 %v2634, %v2653
      %v2662 = vadd.f32 %v2635, %v2653
      %v2663 = vadd.f32 %v2636, %v2653
      %v2664 = vadd.f32 %v2637, %v2653
      %v2665 = vadd.f32 %v2638, %v2653
      %v2666 = vadd.f32 %v2639, %v2653
      %v2667 = vadd.f32 %v2640, %v2653
      %v2668 = vadd.f32 %v2641, %v2653
      %v2669 = vadd.f32 %v2642, %v2653
      %v2670 = vadd.f32 %v2643, %v2653
      %v2671 = vadd.f32 %v2644, %v2653
      %v2672 = vadd.f32 %v2645, %v2653
      %v2673 = vadd.f32 %v2646, %v2653
      %v2674 = vadd.f32 %v2647, %v2653
      %v2675 = vadd.f32 %v2648, %v2653
      %v2676 = vadd.f32 %v2649, %v2653
      %v2677 = vadd.f32 %v2650, %v2653
      %v2678 = vadd.f32 %v2651, %v2653
      %v2679 = vadd.f32 %v2652, %v2653
      %v2680 = vmax.f32 %v2654, 0.0
      %v2681 = vmax.f32 %v2655, 0.0
      %v2682 = vmax.f32 %v2656, 0.0
      %v2683 = vmax.f32 %v2657, 0.0
      %v2684 = vmax.f32 %v2658, 0.0
      %v2685 = vmax.f32 %v2659, 0.0
      %v2686 = vmax.f32 %v2660, 0.0
      %v2687 = vmax.f32 %v2661, 0.0
      %v2688 = vmax.f32 %v2662, 0.0
      %v2689 = vmax.f32 %v2663, 0.0
      %v2690 = vmax.f32 %v2664, 0.0
      %v2691 = vmax.f32 %v2665, 0.0
      %v2692 = vmax.f32 %v2666, 0.0
      %v2693 = vmax.f32 %v2667, 0.0
      %v2694 = vmax.f32 %v2668, 0.0
      %v2695 = vmax.f32 %v2669, 0.0
      %v2696 = vmax.f32 %v2670, 0.0
      %v2697 = vmax.f32 %v2671, 0.0
      %v2698 = vmax.f32 %v2672, 0.0
      %v2699 = vmax.f32 %v2673, 0.0
      %v2700 = vmax.f32 %v2674, 0.0
      %v2701 = vmax.f32 %v2675, 0.0
      %v2702 = vmax.f32 %v2676, 0.0
      %v2703 = vmax.f32 %v2677, 0.0
      %v2704 = vmax.f32 %v2678, 0.0
      %v2705 = vmax.f32 %v2679, 0.0
      %v2706 = vmax.f32 %v2054, %v2600
      %v2707 = vmax.f32 %v2055, %v2601
      %v2708 = vmax.f32 %v2056, %v2602
      %v2709 = vmax.f32 %v2057, %v2603
      %v2710 = vmax.f32 %v2058, %v2604
      %v2711 = vmax.f32 %v2059, %v2605
      %v2712 = vmax.f32 %v2060, %v2606
      %v2713 = vmax.f32 %v2061, %v2607
      %v2714 = vmax.f32 %v2062, %v2608
      %v2715 = vmax.f32 %v2063, %v2609
      %v2716 = vmax.f32 %v2064, %v2610
      %v2717 = vmax.f32 %v2065, %v2611
      %v2718 = vmax.f32 %v2066, %v2612
      %v2719 = vmax.f32 %v2067, %v2613
      %v2720 = vmax.f32 %v2068, %v2614
      %v2721 = vmax.f32 %v2069, %v2615
      %v2722 = vmax.f32 %v2070, %v2616
      %v2723 = vmax.f32 %v2071, %v2617
      %v2724 = vmax.f32 %v2072, %v2618
      %v2725 = vmax.f32 %v2073, %v2619
      %v2726 = vmax.f32 %v2074, %v2620
      %v2727 = vmax.f32 %v2075, %v2621
      %v2728 = vmax.f32 %v2076, %v2622
      %v2729 = vmax.f32 %v2077, %v2623
      %v2730 = vmax.f32 %v2078, %v2624
      %v2731 = vmax.f32 %v2079, %v2625
      %v2732 = vadd.f32 %v2706, %v2653
      %v2733 = vadd.f32 %v2707, %v2653
      %v2734 = vadd.f32 %v2708, %v2653
      %v2735 = vadd.f32 %v2709, %v2653
      %v2736 = vadd.f32 %v2710, %v2653
      %v2737 = vadd.f32 %v2711, %v2653
      %v2738 = vadd.f32 %v2712, %v2653
      %v2739 = vadd.f32 %v2713, %v2653
      %v2740 = vadd.f32 %v2714, %v2653
      %v2741 = vadd.f32 %v2715, %v2653
      %v2742 = vadd.f32 %v2716, %v2653
      %v2743 = vadd.f32 %v2717, %v2653
      %v2744 = vadd.f32 %v2718, %v2653
      %v2745 = vadd.f32 %v2719, %v2653
      %v2746 = vadd.f32 %v2720, %v2653
      %v2747 = vadd.f32 %v2721, %v2653
      %v2748 = vadd.f32 %v2722, %v2653
      %v2749 = vadd.f32 %v2723, %v2653
      %v2750 = vadd.f32 %v2724, %v2653
      %v2751 = vadd.f32 %v2725, %v2653
      %v2752 = vadd.f32 %v2726, %v2653
      %v2753 = vadd.f32 %v2727, %v2653
      %v2754 = vadd.f32 %v2728, %v2653
      %v2755 = vadd.f32 %v2729, %v2653
      %v2756 = vadd.f32 %v2730, %v2653
      %v2757 = vadd.f32 %v2731, %v2653
      %v2758 = vmax.f32 %v2732, 0.0
      %v2759 = vmax.f32 %v2733, 0.0
      %v2760 = vmax.f32 %v2734, 0.0
      %v2761 = vmax.f32 %v2735, 0.0
      %v2762 = vmax.f32 %v2736, 0.0
      %v2763 = vmax.f32 %v2737, 0.0
      %v2764 = vmax.f32 %v2738, 0.0
      %v2765 = vmax.f32 %v2739, 0.0
      %v2766 = vmax.f32 %v2740, 0.0
      %v2767 = vmax.f32 %v2741, 0.0
      %v2768 = vmax.f32 %v2742, 0.0
      %v2769 = vmax.f32 %v2743, 0.0
      %v2770 = vmax.f32 %v2744, 0.0
      %v2771 = vmax.f32 %v2745, 0.0
      %v2772 = vmax.f32 %v2746, 0.0
      %v2773 = vmax.f32 %v2747, 0.0
      %v2774 = vmax.f32 %v2748, 0.0
      %v2775 = vmax.f32 %v2749, 0.0
      %v2776 = vmax.f32 %v2750, 0.0
      %v2777 = vmax.f32 %v2751, 0.0
      %v2778 = vmax.f32 %v2752, 0.0
      %v2779 = vmax.f32 %v2753, 0.0
      %v2780 = vmax.f32 %v2754, 0.0
      %v2781 = vmax.f32 %v2755, 0.0
      %v2782 = vmax.f32 %v2756, 0.0
      %v2783 = vmax.f32 %v2757, 0.0
      %v2784 = vmax.f32 %v2680, %v2681
      %v2785 = vmax.f32 %v2682, %v2683
      %v2786 = vmax.f32 %v2684, %v2685
      %v2787 = vmax.f32 %v2686, %v2687
      %v2788 = vmax.f32 %v2688, %v2689
      %v2789 = vmax.f32 %v2690, %v2691
      %v2790 = vmax.f32 %v2692, %v2693
      %v2791 = vmax.f32 %v2694, %v2695
      %v2792 = vmax.f32 %v2696, %v2697
      %v2793 = vmax.f32 %v2698, %v2699
      %v2794 = vmax.f32 %v2700, %v2701
      %v2795 = vmax.f32 %v2702, %v2703
      %v2796 = vmax.f32 %v2704, %v2705
      %s2797 = smul.u32 %s87, 104
      %s2798 = scalar_lea.vmem [#allocation2], %s2797
      %2799 = vst [vmem:[%s2798] sm:$0x7f] %v2784
      %2800 = vst [vmem:[%s2798 + $0x8] sm:$0x7f] %v2785
      %2801 = vst [vmem:[%s2798 + $0x10] sm:$0x7f] %v2786
      %2802 = vst [vmem:[%s2798 + $0x18] sm:$0x7f] %v2787
      %2803 = vst [vmem:[%s2798 + $0x20] sm:$0x7f] %v2788
      %2804 = vst [vmem:[%s2798 + $0x28] sm:$0x7f] %v2789
      %2805 = vst [vmem:[%s2798 + $0x30] sm:$0x7f] %v2790
      %2806 = vst [vmem:[%s2798 + $0x38] sm:$0x7f] %v2791
      %2807 = vst [vmem:[%s2798 + $0x40] sm:$0x7f] %v2792
      %2808 = vst [vmem:[%s2798 + $0x48] sm:$0x7f] %v2793
      %2809 = vst [vmem:[%s2798 + $0x50] sm:$0x7f] %v2794
      %2810 = vst [vmem:[%s2798 + $0x58] sm:$0x7f] %v2795
      %2811 = vst [vmem:[%s2798 + $0x60] sm:$0x7f] %v2796
      %v2812 = vmax.f32 %v2758, %v2759
      %v2813 = vmax.f32 %v2760, %v2761
      %v2814 = vmax.f32 %v2762, %v2763
      %v2815 = vmax.f32 %v2764, %v2765
      %v2816 = vmax.f32 %v2766, %v2767
      %v2817 = vmax.f32 %v2768, %v2769
      %v2818 = vmax.f32 %v2770, %v2771
      %v2819 = vmax.f32 %v2772, %v2773
      %v2820 = vmax.f32 %v2774, %v2775
      %v2821 = vmax.f32 %v2776, %v2777
      %v2822 = vmax.f32 %v2778, %v2779
      %v2823 = vmax.f32 %v2780, %v2781
      %v2824 = vmax.f32 %v2782, %v2783
      %s2825 = scalar_lea.vmem [#allocation3], %s2797
      %2826 = vst [vmem:[%s2825] sm:$0x3f] %v2812
      %2827 = vst [vmem:[%s2825 + $0x8] sm:$0x3f] %v2813
      %2828 = vst [vmem:[%s2825 + $0x10] sm:$0x3f] %v2814
      %2829 = vst [vmem:[%s2825 + $0x18] sm:$0x3f] %v2815
      %2830 = vst [vmem:[%s2825 + $0x20] sm:$0x3f] %v2816
      %2831 = vst [vmem:[%s2825 + $0x28] sm:$0x3f] %v2817
      %2832 = vst [vmem:[%s2825 + $0x30] sm:$0x3f] %v2818
      %2833 = vst [vmem:[%s2825 + $0x38] sm:$0x3f] %v2819
      %2834 = vst [vmem:[%s2825 + $0x40] sm:$0x3f] %v2820
      %2835 = vst [vmem:[%s2825 + $0x48] sm:$0x3f] %v2821
      %2836 = vst [vmem:[%s2825 + $0x50] sm:$0x3f] %v2822
      %2837 = vst [vmem:[%s2825 + $0x58] sm:$0x3f] %v2823
      %2838 = vst [vmem:[%s2825 + $0x60] sm:$0x3f] %v2824
    $region66: #{lenet_forward.1} parent=1 // loop_footer
      %s91 = sadd.s32 1, %s87
    $region67: #{lenet_forward.1} parent=1 // loop_footer_branch
      %86 = sbr.rel target = $region63
    $region68: #{lenet_forward.1} parent=1 // loop_exit
      _
    loop: start=0, step=1, limit=16
    $region69: #{lenet_forward.1} parent=1 // loop_pre_header
      _
    $region70: #{lenet_forward.1} parent=1 // loop_header
      %s2840 = sphi 0, %s2844
      %p2841 = scmp.ge.s32.totalorder %s2840, 16
    $region71: #{lenet_forward.1} parent=1 // loop_header_branch
      %2843 = sbr.rel (%p2841) target = $region75
    $region72: #{lenet_forward.1} parent=1 // loop_body
      %s2845 = smul.u32 %s2840, 54
      %v2846 = vld [vmem:[#allocation2] sm:$0x1f]
      %v2847 = vld [vmem:[#allocation2 + $0x8] sm:$0x1f]
      %v2848 = vld [vmem:[#allocation2 + $0x10] sm:$0x1f]
      %v2849 = vld [vmem:[#allocation2 + $0x18] sm:$0x1f]
      %v2850 = vld [vmem:[#allocation2 + $0x20] sm:$0x1f]
      %v2851 = vld [vmem:[#allocation2 + $0x28] sm:$0x1f]
      %v2852 = vld [vmem:[#allocation2 + $0x30] sm:$0x1f]
      %v2853 = vld [vmem:[#allocation2 + $0x38] sm:$0x1f]
      %v2854 = vld [vmem:[#allocation2 + $0x40] sm:$0x1f]
      %v2855 = vld [vmem:[#allocation2 + $0x48] sm:$0x1f]
      %v2856 = vld [vmem:[#allocation3] sm:$0x1f]
      %v2857 = vld [vmem:[#allocation3 + $0x8] sm:$0x1f]
      %v2858 = vld [vmem:[#allocation3 + $0x10] sm:$0x1f]
      %v2859 = vld [vmem:[#allocation3 + $0x18] sm:$0x1f]
      %v2860 = vld [vmem:[#allocation3 + $0x20] sm:$0x1f]
      %v2861 = vld [vmem:[#allocation3 + $0x28] sm:$0x1f]
      %v2862 = vld [vmem:[#allocation3 + $0x30] sm:$0x1f]
      %v2863 = vld [vmem:[#allocation3 + $0x38] sm:$0x1f]
      %v2864 = vld [vmem:[#allocation3 + $0x40] sm:$0x1f]
      %v2865 = vld [vmem:[#allocation3 + $0x48] sm:$0x1f]
      %v2866 = vld [vmem:[#allocation2 + $0x1] sm:$0x1f]
      %v2867 = vld [vmem:[#allocation2 + $0x9] sm:$0x1f]
      %v2868 = vld [vmem:[#allocation2 + $0x11] sm:$0x1f]
      %v2869 = vld [vmem:[#allocation2 + $0x19] sm:$0x1f]
      %v2870 = vld [vmem:[#allocation2 + $0x21] sm:$0x1f]
      %v2871 = vld [vmem:[#allocation2 + $0x29] sm:$0x1f]
      %v2872 = vld [vmem:[#allocation2 + $0x31] sm:$0x1f]
      %v2873 = vld [vmem:[#allocation2 + $0x39] sm:$0x1f]
      %v2874 = vld [vmem:[#allocation2 + $0x41] sm:$0x1f]
      %v2875 = vld [vmem:[#allocation2 + $0x49] sm:$0x1f]
      %v2876 = vld [vmem:[#allocation3 + $0x1] sm:$0x1f]
      %v2877 = vld [vmem:[#allocation3 + $0x9] sm:$0x1f]
      %v2878 = vld [vmem:[#allocation3 + $0x11] sm:$0x1f]
      %v2879 = vld [vmem:[#allocation3 + $0x19] sm:$0x1f]
      %v2880 = vld [vmem:[#allocation3 + $0x21] sm:$0x1f]
      %v2881 = vld [vmem:[#allocation3 + $0x29] sm:$0x1f]
      %v2882 = vld [vmem:[#allocation3 + $0x31] sm:$0x1f]
      %v2883 = vld [vmem:[#allocation3 + $0x39] sm:$0x1f]
      %v2884 = vld [vmem:[#allocation3 + $0x41] sm:$0x1f]
      %v2885 = vld [vmem:[#allocation3 + $0x49] sm:$0x1f]
      %s2886 = sld [smem:[#allocation10 + %s2845]]
      %s2887 = sadd.s32 %s2845, 1
      %s2888 = sld [smem:[#allocation10 + %s2887]]
      %s2889 = sadd.s32 %s2845, 2
      %s2890 = sld [smem:[#allocation10 + %s2889]]
      %v2891 = vstv %s2886
      %v2892 = vmul.f32 %v2891, %v2846
      %v2893 = vmul.f32 %v2891, %v2847
      %v2894 = vmul.f32 %v2891, %v2848
      %v2895 = vmul.f32 %v2891, %v2849
      %v2896 = vmul.f32 %v2891, %v2850
      %v2897 = vmul.f32 %v2891, %v2851
      %v2898 = vmul.f32 %v2891, %v2852
      %v2899 = vmul.f32 %v2891, %v2853
      %v2900 = vmul.f32 %v2891, %v2854
      %v2901 = vmul.f32 %v2891, %v2855
      %v2902 = vadd.f32 %v2892, 0.0
      %v2903 = vadd.f32 %v2893, 0.0
      %v2904 = vadd.f32 %v2894, 0.0
      %v2905 = vadd.f32 %v2895, 0.0
      %v2906 = vadd.f32 %v2896, 0.0
      %v2907 = vadd.f32 %v2897, 0.0
      %v2908 = vadd.f32 %v2898, 0.0
      %v2909 = vadd.f32 %v2899, 0.0
      %v2910 = vadd.f32 %v2900, 0.0
      %v2911 = vadd.f32 %v2901, 0.0
      %v2912 = vstv %s2888
      %v2913 = vmul.f32 %v2912, %v2856
      %v2914 = vmul.f32 %v2912, %v2857
      %v2915 = vmul.f32 %v2912, %v2858
      %v2916 = vmul.f32 %v2912, %v2859
      %v2917 = vmul.f32 %v2912, %v2860
      %v2918 = vmul.f32 %v2912, %v2861
      %v2919 = vmul.f32 %v2912, %v2862
      %v2920 = vmul.f32 %v2912, %v2863
      %v2921 = vmul.f32 %v2912, %v2864
      %v2922 = vmul.f32 %v2912, %v2865
      %v2923 = vadd.f32 %v2902, %v2913
      %v2924 = vadd.f32 %v2903, %v2914
      %v2925 = vadd.f32 %v2904, %v2915
      %v2926 = vadd.f32 %v2905, %v2916
      %v2927 = vadd.f32 %v2906, %v2917
      %v2928 = vadd.f32 %v2907, %v2918
      %v2929 = vadd.f32 %v2908, %v2919
      %v2930 = vadd.f32 %v2909, %v2920
      %v2931 = vadd.f32 %v2910, %v2921
      %v2932 = vadd.f32 %v2911, %v2922
      %v2933 = vstv %s2890
      %v2934 = vmul.f32 %v2933, %v2866
      %v2935 = vmul.f32 %v2933, %v2867
      %v2936 = vmul.f32 %v2933, %v2868
      %v2937 = vmul.f32 %v2933, %v2869
      %v2938 = vmul.f32 %v2933, %v2870
      %v2939 = vmul.f32 %v2933, %v2871
      %v2940 = vmul.f32 %v2933, %v2872
      %v2941 = vmul.f32 %v2933, %v2873
      %v2942 = vmul.f32 %v2933, %v2874
      %v2943 = vmul.f32 %v2933, %v2875
      %v2944 = vadd.f32 %v2923, %v2934
      %v2945 = vadd.f32 %v2924, %v2935
      %v2946 = vadd.f32 %v2925, %v2936
      %v2947 = vadd.f32 %v2926, %v2937
      %v2948 = vadd.f32 %v2927, %v2938
      %v2949 = vadd.f32 %v2928, %v2939
      %v2950 = vadd.f32 %v2929, %v2940
      %v2951 = vadd.f32 %v2930, %v2941
      %v2952 = vadd.f32 %v2931, %v2942
      %v2953 = vadd.f32 %v2932, %v2943
      %v2954 = vmul.f32 %v2891, %v2856
      %v2955 = vmul.f32 %v2891, %v2857
      %v2956 = vmul.f32 %v2891, %v2858
      %v2957 = vmul.f32 %v2891, %v2859
      %v2958 = vmul.f32 %v2891, %v2860
      %v2959 = vmul.f32 %v2891, %v2861
      %v2960 = vmul.f32 %v2891, %v2862
      %v2961 = vmul.f32 %v2891, %v2863
      %v2962 = vmul.f32 %v2891, %v2864
      %v2963 = vmul.f32 %v2891, %v2865
      %v2964 = vadd.f32 %v2954, 0.0
      %v2965 = vadd.f32 %v2955, 0.0
      %v2966 = vadd.f32 %v2956, 0.0
      %v2967 = vadd.f32 %v2957, 0.0
      %v2968 = vadd.f32 %v2958, 0.0
      %v2969 = vadd.f32 %v2959, 0.0
      %v2970 = vadd.f32 %v2960, 0.0
      %v2971 = vadd.f32 %v2961, 0.0
      %v2972 = vadd.f32 %v2962, 0.0
      %v2973 = vadd.f32 %v2963, 0.0
      %v2974 = vmul.f32 %v2912, %v2866
      %v2975 = vmul.f32 %v2912, %v2867
      %v2976 = vmul.f32 %v2912, %v2868
      %v2977 = vmul.f32 %v2912, %v2869
      %v2978 = vmul.f32 %v2912, %v2870
      %v2979 = vmul.f32 %v2912, %v2871
      %v2980 = vmul.f32 %v2912, %v2872
      %v2981 = vmul.f32 %v2912, %v2873
      %v2982 = vmul.f32 %v2912, %v2874
      %v2983 = vmul.f32 %v2912, %v2875
      %v2984 = vadd.f32 %v2964, %v2974
      %v2985 = vadd.f32 %v2965, %v2975
      %v2986 = vadd.f32 %v2966, %v2976
      %v2987 = vadd.f32 %v2967, %v2977
      %v2988 = vadd.f32 %v2968, %v2978
      %v2989 = vadd.f32 %v2969, %v2979
      %v2990 = vadd.f32 %v2970, %v2980
      %v2991 = vadd.f32 %v2971, %v2981
      %v2992 = vadd.f32 %v2972, %v2982
      %v2993 = vadd.f32 %v2973, %v2983
      %v2994 = vmul.f32 %v2933, %v2876
      %v2995 = vmul.f32 %v2933, %v2877
      %v2996 = vmul.f32 %v2933, %v2878
      %v2997 = vmul.f32 %v2933, %v2879
      %v2998 = vmul.f32 %v2933, %v2880
      %v2999 = vmul.f32 %v2933, %v2881
      %v3000 = vmul.f32 %v2933, %v2882
      %v3001 = vmul.f32 %v2933, %v2883
      %v3002 = vmul.f32 %v2933, %v2884
      %v3003 = vmul.f32 %v2933, %v2885
      %v3004 = vadd.f32 %v2984, %v2994
      %v3005 = vadd.f32 %v2985, %v2995
      %v3006 = vadd.f32 %v2986, %v2996
      %v3007 = vadd.f32 %v2987, %v2997
      %v3008 = vadd.f32 %v2988, %v2998
      %v3009 = vadd.f32 %v2989, %v2999
      %v3010 = vadd.f32 %v2990, %v3000
      %v3011 = vadd.f32 %v2991, %v3001
      %v3012 = vadd.f32 %v2992, %v3002
      %v3013 = vadd.f32 %v2993, %v3003
      %s3014 = scalar_lea.vmem [#allocation2], 8
      %v3015 = vld [vmem:[%s3014] sm:$0x1f]
      %v3016 = vld [vmem:[%s3014 + $0x8] sm:$0x1f]
      %v3017 = vld [vmem:[%s3014 + $0x10] sm:$0x1f]
      %v3018 = vld [vmem:[%s3014 + $0x18] sm:$0x1f]
      %v3019 = vld [vmem:[%s3014 + $0x20] sm:$0x1f]
      %v3020 = vld [vmem:[%s3014 + $0x28] sm:$0x1f]
      %v3021 = vld [vmem:[%s3014 + $0x30] sm:$0x1f]
      %v3022 = vld [vmem:[%s3014 + $0x38] sm:$0x1f]
      %v3023 = vld [vmem:[%s3014 + $0x40] sm:$0x1f]
      %v3024 = vld [vmem:[%s3014 + $0x48] sm:$0x1f]
      %s3025 = scalar_lea.vmem [#allocation3], 8
      %v3026 = vld [vmem:[%s3025] sm:$0x1f]
      %v3027 = vld [vmem:[%s3025 + $0x8] sm:$0x1f]
      %v3028 = vld [vmem:[%s3025 + $0x10] sm:$0x1f]
      %v3029 = vld [vmem:[%s3025 + $0x18] sm:$0x1f]
      %v3030 = vld [vmem:[%s3025 + $0x20] sm:$0x1f]
      %v3031 = vld [vmem:[%s3025 + $0x28] sm:$0x1f]
      %v3032 = vld [vmem:[%s3025 + $0x30] sm:$0x1f]
      %v3033 = vld [vmem:[%s3025 + $0x38] sm:$0x1f]
      %v3034 = vld [vmem:[%s3025 + $0x40] sm:$0x1f]
      %v3035 = vld [vmem:[%s3025 + $0x48] sm:$0x1f]
      %v3036 = vld [vmem:[%s3014 + $0x1] sm:$0x1f]
      %v3037 = vld [vmem:[%s3014 + $0x9] sm:$0x1f]
      %v3038 = vld [vmem:[%s3014 + $0x11] sm:$0x1f]
      %v3039 = vld [vmem:[%s3014 + $0x19] sm:$0x1f]
      %v3040 = vld [vmem:[%s3014 + $0x21] sm:$0x1f]
      %v3041 = vld [vmem:[%s3014 + $0x29] sm:$0x1f]
      %v3042 = vld [vmem:[%s3014 + $0x31] sm:$0x1f]
      %v3043 = vld [vmem:[%s3014 + $0x39] sm:$0x1f]
      %v3044 = vld [vmem:[%s3014 + $0x41] sm:$0x1f]
      %v3045 = vld [vmem:[%s3014 + $0x49] sm:$0x1f]
      %v3046 = vld [vmem:[%s3025 + $0x1] sm:$0x1f]
      %v3047 = vld [vmem:[%s3025 + $0x9] sm:$0x1f]
      %v3048 = vld [vmem:[%s3025 + $0x11] sm:$0x1f]
      %v3049 = vld [vmem:[%s3025 + $0x19] sm:$0x1f]
      %v3050 = vld [vmem:[%s3025 + $0x21] sm:$0x1f]
      %v3051 = vld [vmem:[%s3025 + $0x29] sm:$0x1f]
      %v3052 = vld [vmem:[%s3025 + $0x31] sm:$0x1f]
      %v3053 = vld [vmem:[%s3025 + $0x39] sm:$0x1f]
      %v3054 = vld [vmem:[%s3025 + $0x41] sm:$0x1f]
      %v3055 = vld [vmem:[%s3025 + $0x49] sm:$0x1f]
      %s3056 = sadd.s32 %s2845, 3
      %s3057 = sld [smem:[#allocation10 + %s3056]]
      %s3058 = sadd.s32 %s2845, 4
      %s3059 = sld [smem:[#allocation10 + %s3058]]
      %s3060 = sadd.s32 %s2845, 5
      %s3061 = sld [smem:[#allocation10 + %s3060]]
      %v3062 = vstv %s3057
      %v3063 = vmul.f32 %v3062, %v3015
      %v3064 = vmul.f32 %v3062, %v3016
      %v3065 = vmul.f32 %v3062, %v3017
      %v3066 = vmul.f32 %v3062, %v3018
      %v3067 = vmul.f32 %v3062, %v3019
      %v3068 = vmul.f32 %v3062, %v3020
      %v3069 = vmul.f32 %v3062, %v3021
      %v3070 = vmul.f32 %v3062, %v3022
      %v3071 = vmul.f32 %v3062, %v3023
      %v3072 = vmul.f32 %v3062, %v3024
      %v3073 = vadd.f32 %v2944, %v3063
      %v3074 = vadd.f32 %v2945, %v3064
      %v3075 = vadd.f32 %v2946, %v3065
      %v3076 = vadd.f32 %v2947, %v3066
      %v3077 = vadd.f32 %v2948, %v3067
      %v3078 = vadd.f32 %v2949, %v3068
      %v3079 = vadd.f32 %v2950, %v3069
      %v3080 = vadd.f32 %v2951, %v3070
      %v3081 = vadd.f32 %v2952, %v3071
      %v3082 = vadd.f32 %v2953, %v3072
      %v3083 = vstv %s3059
      %v3084 = vmul.f32 %v3083, %v3026
      %v3085 = vmul.f32 %v3083, %v3027
      %v3086 = vmul.f32 %v3083, %v3028
      %v3087 = vmul.f32 %v3083, %v3029
      %v3088 = vmul.f32 %v3083, %v3030
      %v3089 = vmul.f32 %v3083, %v3031
      %v3090 = vmul.f32 %v3083, %v3032
      %v3091 = vmul.f32 %v3083, %v3033
      %v3092 = vmul.f32 %v3083, %v3034
      %v3093 = vmul.f32 %v3083, %v3035
      %v3094 = vadd.f32 %v3073, %v3084
      %v3095 = vadd.f32 %v3074, %v3085
      %v3096 = vadd.f32 %v3075, %v3086
      %v3097 = vadd.f32 %v3076, %v3087
      %v3098 = vadd.f32 %v3077, %v3088
      %v3099 = vadd.f32 %v3078, %v3089
      %v3100 = vadd.f32 %v3079, %v3090
      %v3101 = vadd.f32 %v3080, %v3091
      %v3102 = vadd.f32 %v3081, %v3092
      %v3103 = vadd.f32 %v3082, %v3093
      %v3104 = vstv %s3061
      %v3105 = vmul.f32 %v3104, %v3036
      %v3106 = vmul.f32 %v3104, %v3037
      %v3107 = vmul.f32 %v3104, %v3038
      %v3108 = vmul.f32 %v3104, %v3039
      %v3109 = vmul.f32 %v3104, %v3040
      %v3110 = vmul.f32 %v3104, %v3041
      %v3111 = vmul.f32 %v3104, %v3042
      %v3112 = vmul.f32 %v3104, %v3043
      %v3113 = vmul.f32 %v3104, %v3044
      %v3114 = vmul.f32 %v3104, %v3045
      %v3115 = vadd.f32 %v3094, %v3105
      %v3116 = vadd.f32 %v3095, %v3106
      %v3117 = vadd.f32 %v3096, %v3107
      %v3118 = vadd.f32 %v3097, %v3108
      %v3119 = vadd.f32 %v3098, %v3109
      %v3120 = vadd.f32 %v3099, %v3110
      %v3121 = vadd.f32 %v3100, %v3111
      %v3122 = vadd.f32 %v3101, %v3112
      %v3123 = vadd.f32 %v3102, %v3113
      %v3124 = vadd.f32 %v3103, %v3114
      %v3125 = vmul.f32 %v3062, %v3026
      %v3126 = vmul.f32 %v3062, %v3027
      %v3127 = vmul.f32 %v3062, %v3028
      %v3128 = vmul.f32 %v3062, %v3029
      %v3129 = vmul.f32 %v3062, %v3030
      %v3130 = vmul.f32 %v3062, %v3031
      %v3131 = vmul.f32 %v3062, %v3032
      %v3132 = vmul.f32 %v3062, %v3033
      %v3133 = vmul.f32 %v3062, %v3034
      %v3134 = vmul.f32 %v3062, %v3035
      %v3135 = vadd.f32 %v3004, %v3125
      %v3136 = vadd.f32 %v3005, %v3126
      %v3137 = vadd.f32 %v3006, %v3127
      %v3138 = vadd.f32 %v3007, %v3128
      %v3139 = vadd.f32 %v3008, %v3129
      %v3140 = vadd.f32 %v3009, %v3130
      %v3141 = vadd.f32 %v3010, %v3131
      %v3142 = vadd.f32 %v3011, %v3132
      %v3143 = vadd.f32 %v3012, %v3133
      %v3144 = vadd.f32 %v3013, %v3134
      %v3145 = vmul.f32 %v3083, %v3036
      %v3146 = vmul.f32 %v3083, %v3037
      %v3147 = vmul.f32 %v3083, %v3038
      %v3148 = vmul.f32 %v3083, %v3039
      %v3149 = vmul.f32 %v3083, %v3040
      %v3150 = vmul.f32 %v3083, %v3041
      %v3151 = vmul.f32 %v3083, %v3042
      %v3152 = vmul.f32 %v3083, %v3043
      %v3153 = vmul.f32 %v3083, %v3044
      %v3154 = vmul.f32 %v3083, %v3045
      %v3155 = vadd.f32 %v3135, %v3145
      %v3156 = vadd.f32 %v3136, %v3146
      %v3157 = vadd.f32 %v3137, %v3147
      %v3158 = vadd.f32 %v3138, %v3148
      %v3159 = vadd.f32 %v3139, %v3149
      %v3160 = vadd.f32 %v3140, %v3150
      %v3161 = vadd.f32 %v3141, %v3151
      %v3162 = vadd.f32 %v3142, %v3152
      %v3163 = vadd.f32 %v3143, %v3153
      %v3164 = vadd.f32 %v3144, %v3154
      %v3165 = vmul.f32 %v3104, %v3046
      %v3166 = vmul.f32 %v3104, %v3047
      %v3167 = vmul.f32 %v3104, %v3048
      %v3168 = vmul.f32 %v3104, %v3049
      %v3169 = vmul.f32 %v3104, %v3050
      %v3170 = vmul.f32 %v3104, %v3051
      %v3171 = vmul.f32 %v3104, %v3052
      %v3172 = vmul.f32 %v3104, %v3053
      %v3173 = vmul.f32 %v3104, %v3054
      %v3174 = vmul.f32 %v3104, %v3055
      %v3175 = vadd.f32 %v3155, %v3165
      %v3176 = vadd.f32 %v3156, %v3166
      %v3177 = vadd.f32 %v3157, %v3167
      %v3178 = vadd.f32 %v3158, %v3168
      %v3179 = vadd.f32 %v3159, %v3169
      %v3180 = vadd.f32 %v3160, %v3170
      %v3181 = vadd.f32 %v3161, %v3171
      %v3182 = vadd.f32 %v3162, %v3172
      %v3183 = vadd.f32 %v3163, %v3173
      %v3184 = vadd.f32 %v3164, %v3174
      %s3185 = scalar_lea.vmem [#allocation2], 16
      %v3186 = vld [vmem:[%s3185] sm:$0x1f]
      %v3187 = vld [vmem:[%s3185 + $0x8] sm:$0x1f]
      %v3188 = vld [vmem:[%s3185 + $0x10] sm:$0x1f]
      %v3189 = vld [vmem:[%s3185 + $0x18] sm:$0x1f]
      %v3190 = vld [vmem:[%s3185 + $0x20] sm:$0x1f]
      %v3191 = vld [vmem:[%s3185 + $0x28] sm:$0x1f]
      %v3192 = vld [vmem:[%s3185 + $0x30] sm:$0x1f]
      %v3193 = vld [vmem:[%s3185 + $0x38] sm:$0x1f]
      %v3194 = vld [vmem:[%s3185 + $0x40] sm:$0x1f]
      %v3195 = vld [vmem:[%s3185 + $0x48] sm:$0x1f]
      %s3196 = scalar_lea.vmem [#allocation3], 16
      %v3197 = vld [vmem:[%s3196] sm:$0x1f]
      %v3198 = vld [vmem:[%s3196 + $0x8] sm:$0x1f]
      %v3199 = vld [vmem:[%s3196 + $0x10] sm:$0x1f]
      %v3200 = vld [vmem:[%s3196 + $0x18] sm:$0x1f]
      %v3201 = vld [vmem:[%s3196 + $0x20] sm:$0x1f]
      %v3202 = vld [vmem:[%s3196 + $0x28] sm:$0x1f]
      %v3203 = vld [vmem:[%s3196 + $0x30] sm:$0x1f]
      %v3204 = vld [vmem:[%s3196 + $0x38] sm:$0x1f]
      %v3205 = vld [vmem:[%s3196 + $0x40] sm:$0x1f]
      %v3206 = vld [vmem:[%s3196 + $0x48] sm:$0x1f]
      %v3207 = vld [vmem:[%s3185 + $0x1] sm:$0x1f]
      %v3208 = vld [vmem:[%s3185 + $0x9] sm:$0x1f]
      %v3209 = vld [vmem:[%s3185 + $0x11] sm:$0x1f]
      %v3210 = vld [vmem:[%s3185 + $0x19] sm:$0x1f]
      %v3211 = vld [vmem:[%s3185 + $0x21] sm:$0x1f]
      %v3212 = vld [vmem:[%s3185 + $0x29] sm:$0x1f]
      %v3213 = vld [vmem:[%s3185 + $0x31] sm:$0x1f]
      %v3214 = vld [vmem:[%s3185 + $0x39] sm:$0x1f]
      %v3215 = vld [vmem:[%s3185 + $0x41] sm:$0x1f]
      %v3216 = vld [vmem:[%s3185 + $0x49] sm:$0x1f]
      %v3217 = vld [vmem:[%s3196 + $0x1] sm:$0x1f]
      %v3218 = vld [vmem:[%s3196 + $0x9] sm:$0x1f]
      %v3219 = vld [vmem:[%s3196 + $0x11] sm:$0x1f]
      %v3220 = vld [vmem:[%s3196 + $0x19] sm:$0x1f]
      %v3221 = vld [vmem:[%s3196 + $0x21] sm:$0x1f]
      %v3222 = vld [vmem:[%s3196 + $0x29] sm:$0x1f]
      %v3223 = vld [vmem:[%s3196 + $0x31] sm:$0x1f]
      %v3224 = vld [vmem:[%s3196 + $0x39] sm:$0x1f]
      %v3225 = vld [vmem:[%s3196 + $0x41] sm:$0x1f]
      %v3226 = vld [vmem:[%s3196 + $0x49] sm:$0x1f]
      %s3227 = sadd.s32 %s2845, 6
      %s3228 = sld [smem:[#allocation10 + %s3227]]
      %s3229 = sadd.s32 %s2845, 7
      %s3230 = sld [smem:[#allocation10 + %s3229]]
      %s3231 = sadd.s32 %s2845, 8
      %s3232 = sld [smem:[#allocation10 + %s3231]]
      %v3233 = vstv %s3228
      %v3234 = vmul.f32 %v3233, %v3186
      %v3235 = vmul.f32 %v3233, %v3187
      %v3236 = vmul.f32 %v3233, %v3188
      %v3237 = vmul.f32 %v3233, %v3189
      %v3238 = vmul.f32 %v3233, %v3190
      %v3239 = vmul.f32 %v3233, %v3191
      %v3240 = vmul.f32 %v3233, %v3192
      %v3241 = vmul.f32 %v3233, %v3193
      %v3242 = vmul.f32 %v3233, %v3194
      %v3243 = vmul.f32 %v3233, %v3195
      %v3244 = vadd.f32 %v3115, %v3234
      %v3245 = vadd.f32 %v3116, %v3235
      %v3246 = vadd.f32 %v3117, %v3236
      %v3247 = vadd.f32 %v3118, %v3237
      %v3248 = vadd.f32 %v3119, %v3238
      %v3249 = vadd.f32 %v3120, %v3239
      %v3250 = vadd.f32 %v3121, %v3240
      %v3251 = vadd.f32 %v3122, %v3241
      %v3252 = vadd.f32 %v3123, %v3242
      %v3253 = vadd.f32 %v3124, %v3243
      %v3254 = vstv %s3230
      %v3255 = vmul.f32 %v3254, %v3197
      %v3256 = vmul.f32 %v3254, %v3198
      %v3257 = vmul.f32 %v3254, %v3199
      %v3258 = vmul.f32 %v3254, %v3200
      %v3259 = vmul.f32 %v3254, %v3201
      %v3260 = vmul.f32 %v3254, %v3202
      %v3261 = vmul.f32 %v3254, %v3203
      %v3262 = vmul.f32 %v3254, %v3204
      %v3263 = vmul.f32 %v3254, %v3205
      %v3264 = vmul.f32 %v3254, %v3206
      %v3265 = vadd.f32 %v3244, %v3255
      %v3266 = vadd.f32 %v3245, %v3256
      %v3267 = vadd.f32 %v3246, %v3257
      %v3268 = vadd.f32 %v3247, %v3258
      %v3269 = vadd.f32 %v3248, %v3259
      %v3270 = vadd.f32 %v3249, %v3260
      %v3271 = vadd.f32 %v3250, %v3261
      %v3272 = vadd.f32 %v3251, %v3262
      %v3273 = vadd.f32 %v3252, %v3263
      %v3274 = vadd.f32 %v3253, %v3264
      %v3275 = vstv %s3232
      %v3276 = vmul.f32 %v3275, %v3207
      %v3277 = vmul.f32 %v3275, %v3208
      %v3278 = vmul.f32 %v3275, %v3209
      %v3279 = vmul.f32 %v3275, %v3210
      %v3280 = vmul.f32 %v3275, %v3211
      %v3281 = vmul.f32 %v3275, %v3212
      %v3282 = vmul.f32 %v3275, %v3213
      %v3283 = vmul.f32 %v3275, %v3214
      %v3284 = vmul.f32 %v3275, %v3215
      %v3285 = vmul.f32 %v3275, %v3216
      %v3286 = vadd.f32 %v3265, %v3276
      %v3287 = vadd.f32 %v3266, %v3277
      %v3288 = vadd.f32 %v3267, %v3278
      %v3289 = vadd.f32 %v3268, %v3279
      %v3290 = vadd.f32 %v3269, %v3280
      %v3291 = vadd.f32 %v3270, %v3281
      %v3292 = vadd.f32 %v3271, %v3282
      %v3293 = vadd.f32 %v3272, %v3283
      %v3294 = vadd.f32 %v3273, %v3284
      %v3295 = vadd.f32 %v3274, %v3285
      %v3296 = vmul.f32 %v3233, %v3197
      %v3297 = vmul.f32 %v3233, %v3198
      %v3298 = vmul.f32 %v3233, %v3199
      %v3299 = vmul.f32 %v3233, %v3200
      %v3300 = vmul.f32 %v3233, %v3201
      %v3301 = vmul.f32 %v3233, %v3202
      %v3302 = vmul.f32 %v3233, %v3203
      %v3303 = vmul.f32 %v3233, %v3204
      %v3304 = vmul.f32 %v3233, %v3205
      %v3305 = vmul.f32 %v3233, %v3206
      %v3306 = vadd.f32 %v3175, %v3296
      %v3307 = vadd.f32 %v3176, %v3297
      %v3308 = vadd.f32 %v3177, %v3298
      %v3309 = vadd.f32 %v3178, %v3299
      %v3310 = vadd.f32 %v3179, %v3300
      %v3311 = vadd.f32 %v3180, %v3301
      %v3312 = vadd.f32 %v3181, %v3302
      %v3313 = vadd.f32 %v3182, %v3303
      %v3314 = vadd.f32 %v3183, %v3304
      %v3315 = vadd.f32 %v3184, %v3305
      %v3316 = vmul.f32 %v3254, %v3207
      %v3317 = vmul.f32 %v3254, %v3208
      %v3318 = vmul.f32 %v3254, %v3209
      %v3319 = vmul.f32 %v3254, %v3210
      %v3320 = vmul.f32 %v3254, %v3211
      %v3321 = vmul.f32 %v3254, %v3212
      %v3322 = vmul.f32 %v3254, %v3213
      %v3323 = vmul.f32 %v3254, %v3214
      %v3324 = vmul.f32 %v3254, %v3215
      %v3325 = vmul.f32 %v3254, %v3216
      %v3326 = vadd.f32 %v3306, %v3316
      %v3327 = vadd.f32 %v3307, %v3317
      %v3328 = vadd.f32 %v3308, %v3318
      %v3329 = vadd.f32 %v3309, %v3319
      %v3330 = vadd.f32 %v3310, %v3320
      %v3331 = vadd.f32 %v3311, %v3321
      %v3332 = vadd.f32 %v3312, %v3322
      %v3333 = vadd.f32 %v3313, %v3323
      %v3334 = vadd.f32 %v3314, %v3324
      %v3335 = vadd.f32 %v3315, %v3325
      %v3336 = vmul.f32 %v3275, %v3217
      %v3337 = vmul.f32 %v3275, %v3218
      %v3338 = vmul.f32 %v3275, %v3219
      %v3339 = vmul.f32 %v3275, %v3220
      %v3340 = vmul.f32 %v3275, %v3221
      %v3341 = vmul.f32 %v3275, %v3222
      %v3342 = vmul.f32 %v3275, %v3223
      %v3343 = vmul.f32 %v3275, %v3224
      %v3344 = vmul.f32 %v3275, %v3225
      %v3345 = vmul.f32 %v3275, %v3226
      %v3346 = vadd.f32 %v3326, %v3336
      %v3347 = vadd.f32 %v3327, %v3337
      %v3348 = vadd.f32 %v3328, %v3338
      %v3349 = vadd.f32 %v3329, %v3339
      %v3350 = vadd.f32 %v3330, %v3340
      %v3351 = vadd.f32 %v3331, %v3341
      %v3352 = vadd.f32 %v3332, %v3342
      %v3353 = vadd.f32 %v3333, %v3343
      %v3354 = vadd.f32 %v3334, %v3344
      %v3355 = vadd.f32 %v3335, %v3345
      %s3356 = scalar_lea.vmem [#allocation2], 104
      %v3357 = vld [vmem:[%s3356] sm:$0x1f]
      %v3358 = vld [vmem:[%s3356 + $0x8] sm:$0x1f]
      %v3359 = vld [vmem:[%s3356 + $0x10] sm:$0x1f]
      %v3360 = vld [vmem:[%s3356 + $0x18] sm:$0x1f]
      %v3361 = vld [vmem:[%s3356 + $0x20] sm:$0x1f]
      %v3362 = vld [vmem:[%s3356 + $0x28] sm:$0x1f]
      %v3363 = vld [vmem:[%s3356 + $0x30] sm:$0x1f]
      %v3364 = vld [vmem:[%s3356 + $0x38] sm:$0x1f]
      %v3365 = vld [vmem:[%s3356 + $0x40] sm:$0x1f]
      %v3366 = vld [vmem:[%s3356 + $0x48] sm:$0x1f]
      %s3367 = scalar_lea.vmem [#allocation3], 104
      %v3368 = vld [vmem:[%s3367] sm:$0x1f]
      %v3369 = vld [vmem:[%s3367 + $0x8] sm:$0x1f]
      %v3370 = vld [vmem:[%s3367 + $0x10] sm:$0x1f]
      %v3371 = vld [vmem:[%s3367 + $0x18] sm:$0x1f]
      %v3372 = vld [vmem:[%s3367 + $0x20] sm:$0x1f]
      %v3373 = vld [vmem:[%s3367 + $0x28] sm:$0x1f]
      %v3374 = vld [vmem:[%s3367 + $0x30] sm:$0x1f]
      %v3375 = vld [vmem:[%s3367 + $0x38] sm:$0x1f]
      %v3376 = vld [vmem:[%s3367 + $0x40] sm:$0x1f]
      %v3377 = vld [vmem:[%s3367 + $0x48] sm:$0x1f]
      %v3378 = vld [vmem:[%s3356 + $0x1] sm:$0x1f]
      %v3379 = vld [vmem:[%s3356 + $0x9] sm:$0x1f]
      %v3380 = vld [vmem:[%s3356 + $0x11] sm:$0x1f]
      %v3381 = vld [vmem:[%s3356 + $0x19] sm:$0x1f]
      %v3382 = vld [vmem:[%s3356 + $0x21] sm:$0x1f]
      %v3383 = vld [vmem:[%s3356 + $0x29] sm:$0x1f]
      %v3384 = vld [vmem:[%s3356 + $0x31] sm:$0x1f]
      %v3385 = vld [vmem:[%s3356 + $0x39] sm:$0x1f]
      %v3386 = vld [vmem:[%s3356 + $0x41] sm:$0x1f]
      %v3387 = vld [vmem:[%s3356 + $0x49] sm:$0x1f]
      %v3388 = vld [vmem:[%s3367 + $0x1] sm:$0x1f]
      %v3389 = vld [vmem:[%s3367 + $0x9] sm:$0x1f]
      %v3390 = vld [vmem:[%s3367 + $0x11] sm:$0x1f]
      %v3391 = vld [vmem:[%s3367 + $0x19] sm:$0x1f]
      %v3392 = vld [vmem:[%s3367 + $0x21] sm:$0x1f]
      %v3393 = vld [vmem:[%s3367 + $0x29] sm:$0x1f]
      %v3394 = vld [vmem:[%s3367 + $0x31] sm:$0x1f]
      %v3395 = vld [vmem:[%s3367 + $0x39] sm:$0x1f]
      %v3396 = vld [vmem:[%s3367 + $0x41] sm:$0x1f]
      %v3397 = vld [vmem:[%s3367 + $0x49] sm:$0x1f]
      %s3398 = sadd.s32 %s2845, 9
      %s3399 = sld [smem:[#allocation10 + %s3398]]
      %s3400 = sadd.s32 %s2845, 10
      %s3401 = sld [smem:[#allocation10 + %s3400]]
      %s3402 = sadd.s32 %s2845, 11
      %s3403 = sld [smem:[#allocation10 + %s3402]]
      %v3404 = vstv %s3399
      %v3405 = vmul.f32 %v3404, %v3357
      %v3406 = vmul.f32 %v3404, %v3358
      %v3407 = vmul.f32 %v3404, %v3359
      %v3408 = vmul.f32 %v3404, %v3360
      %v3409 = vmul.f32 %v3404, %v3361
      %v3410 = vmul.f32 %v3404, %v3362
      %v3411 = vmul.f32 %v3404, %v3363
      %v3412 = vmul.f32 %v3404, %v3364
      %v3413 = vmul.f32 %v3404, %v3365
      %v3414 = vmul.f32 %v3404, %v3366
      %v3415 = vadd.f32 %v3286, %v3405
      %v3416 = vadd.f32 %v3287, %v3406
      %v3417 = vadd.f32 %v3288, %v3407
      %v3418 = vadd.f32 %v3289, %v3408
      %v3419 = vadd.f32 %v3290, %v3409
      %v3420 = vadd.f32 %v3291, %v3410
      %v3421 = vadd.f32 %v3292, %v3411
      %v3422 = vadd.f32 %v3293, %v3412
      %v3423 = vadd.f32 %v3294, %v3413
      %v3424 = vadd.f32 %v3295, %v3414
      %v3425 = vstv %s3401
      %v3426 = vmul.f32 %v3425, %v3368
      %v3427 = vmul.f32 %v3425, %v3369
      %v3428 = vmul.f32 %v3425, %v3370
      %v3429 = vmul.f32 %v3425, %v3371
      %v3430 = vmul.f32 %v3425, %v3372
      %v3431 = vmul.f32 %v3425, %v3373
      %v3432 = vmul.f32 %v3425, %v3374
      %v3433 = vmul.f32 %v3425, %v3375
      %v3434 = vmul.f32 %v3425, %v3376
      %v3435 = vmul.f32 %v3425, %v3377
      %v3436 = vadd.f32 %v3415, %v3426
      %v3437 = vadd.f32 %v3416, %v3427
      %v3438 = vadd.f32 %v3417, %v3428
      %v3439 = vadd.f32 %v3418, %v3429
      %v3440 = vadd.f32 %v3419, %v3430
      %v3441 = vadd.f32 %v3420, %v3431
      %v3442 = vadd.f32 %v3421, %v3432
      %v3443 = vadd.f32 %v3422, %v3433
      %v3444 = vadd.f32 %v3423, %v3434
      %v3445 = vadd.f32 %v3424, %v3435
      %v3446 = vstv %s3403
      %v3447 = vmul.f32 %v3446, %v3378
      %v3448 = vmul.f32 %v3446, %v3379
      %v3449 = vmul.f32 %v3446, %v3380
      %v3450 = vmul.f32 %v3446, %v3381
      %v3451 = vmul.f32 %v3446, %v3382
      %v3452 = vmul.f32 %v3446, %v3383
      %v3453 = vmul.f32 %v3446, %v3384
      %v3454 = vmul.f32 %v3446, %v3385
      %v3455 = vmul.f32 %v3446, %v3386
      %v3456 = vmul.f32 %v3446, %v3387
      %v3457 = vadd.f32 %v3436, %v3447
      %v3458 = vadd.f32 %v3437, %v3448
      %v3459 = vadd.f32 %v3438, %v3449
      %v3460 = vadd.f32 %v3439, %v3450
      %v3461 = vadd.f32 %v3440, %v3451
      %v3462 = vadd.f32 %v3441, %v3452
      %v3463 = vadd.f32 %v3442, %v3453
      %v3464 = vadd.f32 %v3443, %v3454
      %v3465 = vadd.f32 %v3444, %v3455
      %v3466 = vadd.f32 %v3445, %v3456
      %v3467 = vmul.f32 %v3404, %v3368
      %v3468 = vmul.f32 %v3404, %v3369
      %v3469 = vmul.f32 %v3404, %v3370
      %v3470 = vmul.f32 %v3404, %v3371
      %v3471 = vmul.f32 %v3404, %v3372
      %v3472 = vmul.f32 %v3404, %v3373
      %v3473 = vmul.f32 %v3404, %v3374
      %v3474 = vmul.f32 %v3404, %v3375
      %v3475 = vmul.f32 %v3404, %v3376
      %v3476 = vmul.f32 %v3404, %v3377
      %v3477 = vadd.f32 %v3346, %v3467
      %v3478 = vadd.f32 %v3347, %v3468
      %v3479 = vadd.f32 %v3348, %v3469
      %v3480 = vadd.f32 %v3349, %v3470
      %v3481 = vadd.f32 %v3350, %v3471
      %v3482 = vadd.f32 %v3351, %v3472
      %v3483 = vadd.f32 %v3352, %v3473
      %v3484 = vadd.f32 %v3353, %v3474
      %v3485 = vadd.f32 %v3354, %v3475
      %v3486 = vadd.f32 %v3355, %v3476
      %v3487 = vmul.f32 %v3425, %v3378
      %v3488 = vmul.f32 %v3425, %v3379
      %v3489 = vmul.f32 %v3425, %v3380
      %v3490 = vmul.f32 %v3425, %v3381
      %v3491 = vmul.f32 %v3425, %v3382
      %v3492 = vmul.f32 %v3425, %v3383
      %v3493 = vmul.f32 %v3425, %v3384
      %v3494 = vmul.f32 %v3425, %v3385
      %v3495 = vmul.f32 %v3425, %v3386
      %v3496 = vmul.f32 %v3425, %v3387
      %v3497 = vadd.f32 %v3477, %v3487
      %v3498 = vadd.f32 %v3478, %v3488
      %v3499 = vadd.f32 %v3479, %v3489
      %v3500 = vadd.f32 %v3480, %v3490
      %v3501 = vadd.f32 %v3481, %v3491
      %v3502 = vadd.f32 %v3482, %v3492
      %v3503 = vadd.f32 %v3483, %v3493
      %v3504 = vadd.f32 %v3484, %v3494
      %v3505 = vadd.f32 %v3485, %v3495
      %v3506 = vadd.f32 %v3486, %v3496
      %v3507 = vmul.f32 %v3446, %v3388
      %v3508 = vmul.f32 %v3446, %v3389
      %v3509 = vmul.f32 %v3446, %v3390
      %v3510 = vmul.f32 %v3446, %v3391
      %v3511 = vmul.f32 %v3446, %v3392
      %v3512 = vmul.f32 %v3446, %v3393
      %v3513 = vmul.f32 %v3446, %v3394
      %v3514 = vmul.f32 %v3446, %v3395
      %v3515 = vmul.f32 %v3446, %v3396
      %v3516 = vmul.f32 %v3446, %v3397
      %v3517 = vadd.f32 %v3497, %v3507
      %v3518 = vadd.f32 %v3498, %v3508
      %v3519 = vadd.f32 %v3499, %v3509
      %v3520 = vadd.f32 %v3500, %v3510
      %v3521 = vadd.f32 %v3501, %v3511
      %v3522 = vadd.f32 %v3502, %v3512
      %v3523 = vadd.f32 %v3503, %v3513
      %v3524 = vadd.f32 %v3504, %v3514
      %v3525 = vadd.f32 %v3505, %v3515
      %v3526 = vadd.f32 %v3506, %v3516
      %s3527 = scalar_lea.vmem [#allocation2], 112
      %v3528 = vld [vmem:[%s3527] sm:$0x1f]
      %v3529 = vld [vmem:[%s3527 + $0x8] sm:$0x1f]
      %v3530 = vld [vmem:[%s3527 + $0x10] sm:$0x1f]
      %v3531 = vld [vmem:[%s3527 + $0x18] sm:$0x1f]
      %v3532 = vld [vmem:[%s3527 + $0x20] sm:$0x1f]
      %v3533 = vld [vmem:[%s3527 + $0x28] sm:$0x1f]
      %v3534 = vld [vmem:[%s3527 + $0x30] sm:$0x1f]
      %v3535 = vld [vmem:[%s3527 + $0x38] sm:$0x1f]
      %v3536 = vld [vmem:[%s3527 + $0x40] sm:$0x1f]
      %v3537 = vld [vmem:[%s3527 + $0x48] sm:$0x1f]
      %s3538 = scalar_lea.vmem [#allocation3], 112
      %v3539 = vld [vmem:[%s3538] sm:$0x1f]
      %v3540 = vld [vmem:[%s3538 + $0x8] sm:$0x1f]
      %v3541 = vld [vmem:[%s3538 + $0x10] sm:$0x1f]
      %v3542 = vld [vmem:[%s3538 + $0x18] sm:$0x1f]
      %v3543 = vld [vmem:[%s3538 + $0x20] sm:$0x1f]
      %v3544 = vld [vmem:[%s3538 + $0x28] sm:$0x1f]
      %v3545 = vld [vmem:[%s3538 + $0x30] sm:$0x1f]
      %v3546 = vld [vmem:[%s3538 + $0x38] sm:$0x1f]
      %v3547 = vld [vmem:[%s3538 + $0x40] sm:$0x1f]
      %v3548 = vld [vmem:[%s3538 + $0x48] sm:$0x1f]
      %v3549 = vld [vmem:[%s3527 + $0x1] sm:$0x1f]
      %v3550 = vld [vmem:[%s3527 + $0x9] sm:$0x1f]
      %v3551 = vld [vmem:[%s3527 + $0x11] sm:$0x1f]
      %v3552 = vld [vmem:[%s3527 + $0x19] sm:$0x1f]
      %v3553 = vld [vmem:[%s3527 + $0x21] sm:$0x1f]
      %v3554 = vld [vmem:[%s3527 + $0x29] sm:$0x1f]
      %v3555 = vld [vmem:[%s3527 + $0x31] sm:$0x1f]
      %v3556 = vld [vmem:[%s3527 + $0x39] sm:$0x1f]
      %v3557 = vld [vmem:[%s3527 + $0x41] sm:$0x1f]
      %v3558 = vld [vmem:[%s3527 + $0x49] sm:$0x1f]
      %v3559 = vld [vmem:[%s3538 + $0x1] sm:$0x1f]
      %v3560 = vld [vmem:[%s3538 + $0x9] sm:$0x1f]
      %v3561 = vld [vmem:[%s3538 + $0x11] sm:$0x1f]
      %v3562 = vld [vmem:[%s3538 + $0x19] sm:$0x1f]
      %v3563 = vld [vmem:[%s3538 + $0x21] sm:$0x1f]
      %v3564 = vld [vmem:[%s3538 + $0x29] sm:$0x1f]
      %v3565 = vld [vmem:[%s3538 + $0x31] sm:$0x1f]
      %v3566 = vld [vmem:[%s3538 + $0x39] sm:$0x1f]
      %v3567 = vld [vmem:[%s3538 + $0x41] sm:$0x1f]
      %v3568 = vld [vmem:[%s3538 + $0x49] sm:$0x1f]
      %s3569 = sadd.s32 %s2845, 12
      %s3570 = sld [smem:[#allocation10 + %s3569]]
      %s3571 = sadd.s32 %s2845, 13
      %s3572 = sld [smem:[#allocation10 + %s3571]]
      %s3573 = sadd.s32 %s2845, 14
      %s3574 = sld [smem:[#allocation10 + %s3573]]
      %v3575 = vstv %s3570
      %v3576 = vmul.f32 %v3575, %v3528
      %v3577 = vmul.f32 %v3575, %v3529
      %v3578 = vmul.f32 %v3575, %v3530
      %v3579 = vmul.f32 %v3575, %v3531
      %v3580 = vmul.f32 %v3575, %v3532
      %v3581 = vmul.f32 %v3575, %v3533
      %v3582 = vmul.f32 %v3575, %v3534
      %v3583 = vmul.f32 %v3575, %v3535
      %v3584 = vmul.f32 %v3575, %v3536
      %v3585 = vmul.f32 %v3575, %v3537
      %v3586 = vadd.f32 %v3457, %v3576
      %v3587 = vadd.f32 %v3458, %v3577
      %v3588 = vadd.f32 %v3459, %v3578
      %v3589 = vadd.f32 %v3460, %v3579
      %v3590 = vadd.f32 %v3461, %v3580
      %v3591 = vadd.f32 %v3462, %v3581
      %v3592 = vadd.f32 %v3463, %v3582
      %v3593 = vadd.f32 %v3464, %v3583
      %v3594 = vadd.f32 %v3465, %v3584
      %v3595 = vadd.f32 %v3466, %v3585
      %v3596 = vstv %s3572
      %v3597 = vmul.f32 %v3596, %v3539
      %v3598 = vmul.f32 %v3596, %v3540
      %v3599 = vmul.f32 %v3596, %v3541
      %v3600 = vmul.f32 %v3596, %v3542
      %v3601 = vmul.f32 %v3596, %v3543
      %v3602 = vmul.f32 %v3596, %v3544
      %v3603 = vmul.f32 %v3596, %v3545
      %v3604 = vmul.f32 %v3596, %v3546
      %v3605 = vmul.f32 %v3596, %v3547
      %v3606 = vmul.f32 %v3596, %v3548
      %v3607 = vadd.f32 %v3586, %v3597
      %v3608 = vadd.f32 %v3587, %v3598
      %v3609 = vadd.f32 %v3588, %v3599
      %v3610 = vadd.f32 %v3589, %v3600
      %v3611 = vadd.f32 %v3590, %v3601
      %v3612 = vadd.f32 %v3591, %v3602
      %v3613 = vadd.f32 %v3592, %v3603
      %v3614 = vadd.f32 %v3593, %v3604
      %v3615 = vadd.f32 %v3594, %v3605
      %v3616 = vadd.f32 %v3595, %v3606
      %v3617 = vstv %s3574
      %v3618 = vmul.f32 %v3617, %v3549
      %v3619 = vmul.f32 %v3617, %v3550
      %v3620 = vmul.f32 %v3617, %v3551
      %v3621 = vmul.f32 %v3617, %v3552
      %v3622 = vmul.f32 %v3617, %v3553
      %v3623 = vmul.f32 %v3617, %v3554
      %v3624 = vmul.f32 %v3617, %v3555
      %v3625 = vmul.f32 %v3617, %v3556
      %v3626 = vmul.f32 %v3617, %v3557
      %v3627 = vmul.f32 %v3617, %v3558
      %v3628 = vadd.f32 %v3607, %v3618
      %v3629 = vadd.f32 %v3608, %v3619
      %v3630 = vadd.f32 %v3609, %v3620
      %v3631 = vadd.f32 %v3610, %v3621
      %v3632 = vadd.f32 %v3611, %v3622
      %v3633 = vadd.f32 %v3612, %v3623
      %v3634 = vadd.f32 %v3613, %v3624
      %v3635 = vadd.f32 %v3614, %v3625
      %v3636 = vadd.f32 %v3615, %v3626
      %v3637 = vadd.f32 %v3616, %v3627
      %v3638 = vmul.f32 %v3575, %v3539
      %v3639 = vmul.f32 %v3575, %v3540
      %v3640 = vmul.f32 %v3575, %v3541
      %v3641 = vmul.f32 %v3575, %v3542
      %v3642 = vmul.f32 %v3575, %v3543
      %v3643 = vmul.f32 %v3575, %v3544
      %v3644 = vmul.f32 %v3575, %v3545
      %v3645 = vmul.f32 %v3575, %v3546
      %v3646 = vmul.f32 %v3575, %v3547
      %v3647 = vmul.f32 %v3575, %v3548
      %v3648 = vadd.f32 %v3517, %v3638
      %v3649 = vadd.f32 %v3518, %v3639
      %v3650 = vadd.f32 %v3519, %v3640
      %v3651 = vadd.f32 %v3520, %v3641
      %v3652 = vadd.f32 %v3521, %v3642
      %v3653 = vadd.f32 %v3522, %v3643
      %v3654 = vadd.f32 %v3523, %v3644
      %v3655 = vadd.f32 %v3524, %v3645
      %v3656 = vadd.f32 %v3525, %v3646
      %v3657 = vadd.f32 %v3526, %v3647
      %v3658 = vmul.f32 %v3596, %v3549
      %v3659 = vmul.f32 %v3596, %v3550
      %v3660 = vmul.f32 %v3596, %v3551
      %v3661 = vmul.f32 %v3596, %v3552
      %v3662 = vmul.f32 %v3596, %v3553
      %v3663 = vmul.f32 %v3596, %v3554
      %v3664 = vmul.f32 %v3596, %v3555
      %v3665 = vmul.f32 %v3596, %v3556
      %v3666 = vmul.f32 %v3596, %v3557
      %v3667 = vmul.f32 %v3596, %v3558
      %v3668 = vadd.f32 %v3648, %v3658
      %v3669 = vadd.f32 %v3649, %v3659
      %v3670 = vadd.f32 %v3650, %v3660
      %v3671 = vadd.f32 %v3651, %v3661
      %v3672 = vadd.f32 %v3652, %v3662
      %v3673 = vadd.f32 %v3653, %v3663
      %v3674 = vadd.f32 %v3654, %v3664
      %v3675 = vadd.f32 %v3655, %v3665
      %v3676 = vadd.f32 %v3656, %v3666
      %v3677 = vadd.f32 %v3657, %v3667
      %v3678 = vmul.f32 %v3617, %v3559
      %v3679 = vmul.f32 %v3617, %v3560
      %v3680 = vmul.f32 %v3617, %v3561
      %v3681 = vmul.f32 %v3617, %v3562
      %v3682 = vmul.f32 %v3617, %v3563
      %v3683 = vmul.f32 %v3617, %v3564
      %v3684 = vmul.f32 %v3617, %v3565
      %v3685 = vmul.f32 %v3617, %v3566
      %v3686 = vmul.f32 %v3617, %v3567
      %v3687 = vmul.f32 %v3617, %v3568
      %v3688 = vadd.f32 %v3668, %v3678
      %v3689 = vadd.f32 %v3669, %v3679
      %v3690 = vadd.f32 %v3670, %v3680
      %v3691 = vadd.f32 %v3671, %v3681
      %v3692 = vadd.f32 %v3672, %v3682
      %v3693 = vadd.f32 %v3673, %v3683
      %v3694 = vadd.f32 %v3674, %v3684
      %v3695 = vadd.f32 %v3675, %v3685
      %v3696 = vadd.f32 %v3676, %v3686
      %v3697 = vadd.f32 %v3677, %v3687
      %s3698 = scalar_lea.vmem [#allocation2], 120
      %v3699 = vld [vmem:[%s3698] sm:$0x1f]
      %v3700 = vld [vmem:[%s3698 + $0x8] sm:$0x1f]
      %v3701 = vld [vmem:[%s3698 + $0x10] sm:$0x1f]
      %v3702 = vld [vmem:[%s3698 + $0x18] sm:$0x1f]
      %v3703 = vld [vmem:[%s3698 + $0x20] sm:$0x1f]
      %v3704 = vld [vmem:[%s3698 + $0x28] sm:$0x1f]
      %v3705 = vld [vmem:[%s3698 + $0x30] sm:$0x1f]
      %v3706 = vld [vmem:[%s3698 + $0x38] sm:$0x1f]
      %v3707 = vld [vmem:[%s3698 + $0x40] sm:$0x1f]
      %v3708 = vld [vmem:[%s3698 + $0x48] sm:$0x1f]
      %s3709 = scalar_lea.vmem [#allocation3], 120
      %v3710 = vld [vmem:[%s3709] sm:$0x1f]
      %v3711 = vld [vmem:[%s3709 + $0x8] sm:$0x1f]
      %v3712 = vld [vmem:[%s3709 + $0x10] sm:$0x1f]
      %v3713 = vld [vmem:[%s3709 + $0x18] sm:$0x1f]
      %v3714 = vld [vmem:[%s3709 + $0x20] sm:$0x1f]
      %v3715 = vld [vmem:[%s3709 + $0x28] sm:$0x1f]
      %v3716 = vld [vmem:[%s3709 + $0x30] sm:$0x1f]
      %v3717 = vld [vmem:[%s3709 + $0x38] sm:$0x1f]
      %v3718 = vld [vmem:[%s3709 + $0x40] sm:$0x1f]
      %v3719 = vld [vmem:[%s3709 + $0x48] sm:$0x1f]
      %v3720 = vld [vmem:[%s3698 + $0x1] sm:$0x1f]
      %v3721 = vld [vmem:[%s3698 + $0x9] sm:$0x1f]
      %v3722 = vld [vmem:[%s3698 + $0x11] sm:$0x1f]
      %v3723 = vld [vmem:[%s3698 + $0x19] sm:$0x1f]
      %v3724 = vld [vmem:[%s3698 + $0x21] sm:$0x1f]
      %v3725 = vld [vmem:[%s3698 + $0x29] sm:$0x1f]
      %v3726 = vld [vmem:[%s3698 + $0x31] sm:$0x1f]
      %v3727 = vld [vmem:[%s3698 + $0x39] sm:$0x1f]
      %v3728 = vld [vmem:[%s3698 + $0x41] sm:$0x1f]
      %v3729 = vld [vmem:[%s3698 + $0x49] sm:$0x1f]
      %v3730 = vld [vmem:[%s3709 + $0x1] sm:$0x1f]
      %v3731 = vld [vmem:[%s3709 + $0x9] sm:$0x1f]
      %v3732 = vld [vmem:[%s3709 + $0x11] sm:$0x1f]
      %v3733 = vld [vmem:[%s3709 + $0x19] sm:$0x1f]
      %v3734 = vld [vmem:[%s3709 + $0x21] sm:$0x1f]
      %v3735 = vld [vmem:[%s3709 + $0x29] sm:$0x1f]
      %v3736 = vld [vmem:[%s3709 + $0x31] sm:$0x1f]
      %v3737 = vld [vmem:[%s3709 + $0x39] sm:$0x1f]
      %v3738 = vld [vmem:[%s3709 + $0x41] sm:$0x1f]
      %v3739 = vld [vmem:[%s3709 + $0x49] sm:$0x1f]
      %s3740 = sadd.s32 %s2845, 15
      %s3741 = sld [smem:[#allocation10 + %s3740]]
      %s3742 = sadd.s32 %s2845, 16
      %s3743 = sld [smem:[#allocation10 + %s3742]]
      %s3744 = sadd.s32 %s2845, 17
      %s3745 = sld [smem:[#allocation10 + %s3744]]
      %v3746 = vstv %s3741
      %v3747 = vmul.f32 %v3746, %v3699
      %v3748 = vmul.f32 %v3746, %v3700
      %v3749 = vmul.f32 %v3746, %v3701
      %v3750 = vmul.f32 %v3746, %v3702
      %v3751 = vmul.f32 %v3746, %v3703
      %v3752 = vmul.f32 %v3746, %v3704
      %v3753 = vmul.f32 %v3746, %v3705
      %v3754 = vmul.f32 %v3746, %v3706
      %v3755 = vmul.f32 %v3746, %v3707
      %v3756 = vmul.f32 %v3746, %v3708
      %v3757 = vadd.f32 %v3628, %v3747
      %v3758 = vadd.f32 %v3629, %v3748
      %v3759 = vadd.f32 %v3630, %v3749
      %v3760 = vadd.f32 %v3631, %v3750
      %v3761 = vadd.f32 %v3632, %v3751
      %v3762 = vadd.f32 %v3633, %v3752
      %v3763 = vadd.f32 %v3634, %v3753
      %v3764 = vadd.f32 %v3635, %v3754
      %v3765 = vadd.f32 %v3636, %v3755
      %v3766 = vadd.f32 %v3637, %v3756
      %v3767 = vstv %s3743
      %v3768 = vmul.f32 %v3767, %v3710
      %v3769 = vmul.f32 %v3767, %v3711
      %v3770 = vmul.f32 %v3767, %v3712
      %v3771 = vmul.f32 %v3767, %v3713
      %v3772 = vmul.f32 %v3767, %v3714
      %v3773 = vmul.f32 %v3767, %v3715
      %v3774 = vmul.f32 %v3767, %v3716
      %v3775 = vmul.f32 %v3767, %v3717
      %v3776 = vmul.f32 %v3767, %v3718
      %v3777 = vmul.f32 %v3767, %v3719
      %v3778 = vadd.f32 %v3757, %v3768
      %v3779 = vadd.f32 %v3758, %v3769
      %v3780 = vadd.f32 %v3759, %v3770
      %v3781 = vadd.f32 %v3760, %v3771
      %v3782 = vadd.f32 %v3761, %v3772
      %v3783 = vadd.f32 %v3762, %v3773
      %v3784 = vadd.f32 %v3763, %v3774
      %v3785 = vadd.f32 %v3764, %v3775
      %v3786 = vadd.f32 %v3765, %v3776
      %v3787 = vadd.f32 %v3766, %v3777
      %v3788 = vstv %s3745
      %v3789 = vmul.f32 %v3788, %v3720
      %v3790 = vmul.f32 %v3788, %v3721
      %v3791 = vmul.f32 %v3788, %v3722
      %v3792 = vmul.f32 %v3788, %v3723
      %v3793 = vmul.f32 %v3788, %v3724
      %v3794 = vmul.f32 %v3788, %v3725
      %v3795 = vmul.f32 %v3788, %v3726
      %v3796 = vmul.f32 %v3788, %v3727
      %v3797 = vmul.f32 %v3788, %v3728
      %v3798 = vmul.f32 %v3788, %v3729
      %v3799 = vadd.f32 %v3778, %v3789
      %v3800 = vadd.f32 %v3779, %v3790
      %v3801 = vadd.f32 %v3780, %v3791
      %v3802 = vadd.f32 %v3781, %v3792
      %v3803 = vadd.f32 %v3782, %v3793
      %v3804 = vadd.f32 %v3783, %v3794
      %v3805 = vadd.f32 %v3784, %v3795
      %v3806 = vadd.f32 %v3785, %v3796
      %v3807 = vadd.f32 %v3786, %v3797
      %v3808 = vadd.f32 %v3787, %v3798
      %v3809 = vmul.f32 %v3746, %v3710
      %v3810 = vmul.f32 %v3746, %v3711
      %v3811 = vmul.f32 %v3746, %v3712
      %v3812 = vmul.f32 %v3746, %v3713
      %v3813 = vmul.f32 %v3746, %v3714
      %v3814 = vmul.f32 %v3746, %v3715
      %v3815 = vmul.f32 %v3746, %v3716
      %v3816 = vmul.f32 %v3746, %v3717
      %v3817 = vmul.f32 %v3746, %v3718
      %v3818 = vmul.f32 %v3746, %v3719
      %v3819 = vadd.f32 %v3688, %v3809
      %v3820 = vadd.f32 %v3689, %v3810
      %v3821 = vadd.f32 %v3690, %v3811
      %v3822 = vadd.f32 %v3691, %v3812
      %v3823 = vadd.f32 %v3692, %v3813
      %v3824 = vadd.f32 %v3693, %v3814
      %v3825 = vadd.f32 %v3694, %v3815
      %v3826 = vadd.f32 %v3695, %v3816
      %v3827 = vadd.f32 %v3696, %v3817
      %v3828 = vadd.f32 %v3697, %v3818
      %v3829 = vmul.f32 %v3767, %v3720
      %v3830 = vmul.f32 %v3767, %v3721
      %v3831 = vmul.f32 %v3767, %v3722
      %v3832 = vmul.f32 %v3767, %v3723
      %v3833 = vmul.f32 %v3767, %v3724
      %v3834 = vmul.f32 %v3767, %v3725
      %v3835 = vmul.f32 %v3767, %v3726
      %v3836 = vmul.f32 %v3767, %v3727
      %v3837 = vmul.f32 %v3767, %v3728
      %v3838 = vmul.f32 %v3767, %v3729
      %v3839 = vadd.f32 %v3819, %v3829
      %v3840 = vadd.f32 %v3820, %v3830
      %v3841 = vadd.f32 %v3821, %v3831
      %v3842 = vadd.f32 %v3822, %v3832
      %v3843 = vadd.f32 %v3823, %v3833
      %v3844 = vadd.f32 %v3824, %v3834
      %v3845 = vadd.f32 %v3825, %v3835
      %v3846 = vadd.f32 %v3826, %v3836
      %v3847 = vadd.f32 %v3827, %v3837
      %v3848 = vadd.f32 %v3828, %v3838
      %v3849 = vmul.f32 %v3788, %v3730
      %v3850 = vmul.f32 %v3788, %v3731
      %v3851 = vmul.f32 %v3788, %v3732
      %v3852 = vmul.f32 %v3788, %v3733
      %v3853 = vmul.f32 %v3788, %v3734
      %v3854 = vmul.f32 %v3788, %v3735
      %v3855 = vmul.f32 %v3788, %v3736
      %v3856 = vmul.f32 %v3788, %v3737
      %v3857 = vmul.f32 %v3788, %v3738
      %v3858 = vmul.f32 %v3788, %v3739
      %v3859 = vadd.f32 %v3839, %v3849
      %v3860 = vadd.f32 %v3840, %v3850
      %v3861 = vadd.f32 %v3841, %v3851
      %v3862 = vadd.f32 %v3842, %v3852
      %v3863 = vadd.f32 %v3843, %v3853
      %v3864 = vadd.f32 %v3844, %v3854
      %v3865 = vadd.f32 %v3845, %v3855
      %v3866 = vadd.f32 %v3846, %v3856
      %v3867 = vadd.f32 %v3847, %v3857
      %v3868 = vadd.f32 %v3848, %v3858
      %s3869 = scalar_lea.vmem [#allocation2], 208
      %v3870 = vld [vmem:[%s3869] sm:$0x1f]
      %v3871 = vld [vmem:[%s3869 + $0x8] sm:$0x1f]
      %v3872 = vld [vmem:[%s3869 + $0x10] sm:$0x1f]
      %v3873 = vld [vmem:[%s3869 + $0x18] sm:$0x1f]
      %v3874 = vld [vmem:[%s3869 + $0x20] sm:$0x1f]
      %v3875 = vld [vmem:[%s3869 + $0x28] sm:$0x1f]
      %v3876 = vld [vmem:[%s3869 + $0x30] sm:$0x1f]
      %v3877 = vld [vmem:[%s3869 + $0x38] sm:$0x1f]
      %v3878 = vld [vmem:[%s3869 + $0x40] sm:$0x1f]
      %v3879 = vld [vmem:[%s3869 + $0x48] sm:$0x1f]
      %s3880 = scalar_lea.vmem [#allocation3], 208
      %v3881 = vld [vmem:[%s3880] sm:$0x1f]
      %v3882 = vld [vmem:[%s3880 + $0x8] sm:$0x1f]
      %v3883 = vld [vmem:[%s3880 + $0x10] sm:$0x1f]
      %v3884 = vld [vmem:[%s3880 + $0x18] sm:$0x1f]
      %v3885 = vld [vmem:[%s3880 + $0x20] sm:$0x1f]
      %v3886 = vld [vmem:[%s3880 + $0x28] sm:$0x1f]
      %v3887 = vld [vmem:[%s3880 + $0x30] sm:$0x1f]
      %v3888 = vld [vmem:[%s3880 + $0x38] sm:$0x1f]
      %v3889 = vld [vmem:[%s3880 + $0x40] sm:$0x1f]
      %v3890 = vld [vmem:[%s3880 + $0x48] sm:$0x1f]
      %v3891 = vld [vmem:[%s3869 + $0x1] sm:$0x1f]
      %v3892 = vld [vmem:[%s3869 + $0x9] sm:$0x1f]
      %v3893 = vld [vmem:[%s3869 + $0x11] sm:$0x1f]
      %v3894 = vld [vmem:[%s3869 + $0x19] sm:$0x1f]
      %v3895 = vld [vmem:[%s3869 + $0x21] sm:$0x1f]
      %v3896 = vld [vmem:[%s3869 + $0x29] sm:$0x1f]
      %v3897 = vld [vmem:[%s3869 + $0x31] sm:$0x1f]
      %v3898 = vld [vmem:[%s3869 + $0x39] sm:$0x1f]
      %v3899 = vld [vmem:[%s3869 + $0x41] sm:$0x1f]
      %v3900 = vld [vmem:[%s3869 + $0x49] sm:$0x1f]
      %v3901 = vld [vmem:[%s3880 + $0x1] sm:$0x1f]
      %v3902 = vld [vmem:[%s3880 + $0x9] sm:$0x1f]
      %v3903 = vld [vmem:[%s3880 + $0x11] sm:$0x1f]
      %v3904 = vld [vmem:[%s3880 + $0x19] sm:$0x1f]
      %v3905 = vld [vmem:[%s3880 + $0x21] sm:$0x1f]
      %v3906 = vld [vmem:[%s3880 + $0x29] sm:$0x1f]
      %v3907 = vld [vmem:[%s3880 + $0x31] sm:$0x1f]
      %v3908 = vld [vmem:[%s3880 + $0x39] sm:$0x1f]
      %v3909 = vld [vmem:[%s3880 + $0x41] sm:$0x1f]
      %v3910 = vld [vmem:[%s3880 + $0x49] sm:$0x1f]
      %s3911 = sadd.s32 %s2845, 18
      %s3912 = sld [smem:[#allocation10 + %s3911]]
      %s3913 = sadd.s32 %s2845, 19
      %s3914 = sld [smem:[#allocation10 + %s3913]]
      %s3915 = sadd.s32 %s2845, 20
      %s3916 = sld [smem:[#allocation10 + %s3915]]
      %v3917 = vstv %s3912
      %v3918 = vmul.f32 %v3917, %v3870
      %v3919 = vmul.f32 %v3917, %v3871
      %v3920 = vmul.f32 %v3917, %v3872
      %v3921 = vmul.f32 %v3917, %v3873
      %v3922 = vmul.f32 %v3917, %v3874
      %v3923 = vmul.f32 %v3917, %v3875
      %v3924 = vmul.f32 %v3917, %v3876
      %v3925 = vmul.f32 %v3917, %v3877
      %v3926 = vmul.f32 %v3917, %v3878
      %v3927 = vmul.f32 %v3917, %v3879
      %v3928 = vadd.f32 %v3799, %v3918
      %v3929 = vadd.f32 %v3800, %v3919
      %v3930 = vadd.f32 %v3801, %v3920
      %v3931 = vadd.f32 %v3802, %v3921
      %v3932 = vadd.f32 %v3803, %v3922
      %v3933 = vadd.f32 %v3804, %v3923
      %v3934 = vadd.f32 %v3805, %v3924
      %v3935 = vadd.f32 %v3806, %v3925
      %v3936 = vadd.f32 %v3807, %v3926
      %v3937 = vadd.f32 %v3808, %v3927
      %v3938 = vstv %s3914
      %v3939 = vmul.f32 %v3938, %v3881
      %v3940 = vmul.f32 %v3938, %v3882
      %v3941 = vmul.f32 %v3938, %v3883
      %v3942 = vmul.f32 %v3938, %v3884
      %v3943 = vmul.f32 %v3938, %v3885
      %v3944 = vmul.f32 %v3938, %v3886
      %v3945 = vmul.f32 %v3938, %v3887
      %v3946 = vmul.f32 %v3938, %v3888
      %v3947 = vmul.f32 %v3938, %v3889
      %v3948 = vmul.f32 %v3938, %v3890
      %v3949 = vadd.f32 %v3928, %v3939
      %v3950 = vadd.f32 %v3929, %v3940
      %v3951 = vadd.f32 %v3930, %v3941
      %v3952 = vadd.f32 %v3931, %v3942
      %v3953 = vadd.f32 %v3932, %v3943
      %v3954 = vadd.f32 %v3933, %v3944
      %v3955 = vadd.f32 %v3934, %v3945
      %v3956 = vadd.f32 %v3935, %v3946
      %v3957 = vadd.f32 %v3936, %v3947
      %v3958 = vadd.f32 %v3937, %v3948
      %v3959 = vstv %s3916
      %v3960 = vmul.f32 %v3959, %v3891
      %v3961 = vmul.f32 %v3959, %v3892
      %v3962 = vmul.f32 %v3959, %v3893
      %v3963 = vmul.f32 %v3959, %v3894
      %v3964 = vmul.f32 %v3959, %v3895
      %v3965 = vmul.f32 %v3959, %v3896
      %v3966 = vmul.f32 %v3959, %v3897
      %v3967 = vmul.f32 %v3959, %v3898
      %v3968 = vmul.f32 %v3959, %v3899
      %v3969 = vmul.f32 %v3959, %v3900
      %v3970 = vadd.f32 %v3949, %v3960
      %v3971 = vadd.f32 %v3950, %v3961
      %v3972 = vadd.f32 %v3951, %v3962
      %v3973 = vadd.f32 %v3952, %v3963
      %v3974 = vadd.f32 %v3953, %v3964
      %v3975 = vadd.f32 %v3954, %v3965
      %v3976 = vadd.f32 %v3955, %v3966
      %v3977 = vadd.f32 %v3956, %v3967
      %v3978 = vadd.f32 %v3957, %v3968
      %v3979 = vadd.f32 %v3958, %v3969
      %v3980 = vmul.f32 %v3917, %v3881
      %v3981 = vmul.f32 %v3917, %v3882
      %v3982 = vmul.f32 %v3917, %v3883
      %v3983 = vmul.f32 %v3917, %v3884
      %v3984 = vmul.f32 %v3917, %v3885
      %v3985 = vmul.f32 %v3917, %v3886
      %v3986 = vmul.f32 %v3917, %v3887
      %v3987 = vmul.f32 %v3917, %v3888
      %v3988 = vmul.f32 %v3917, %v3889
      %v3989 = vmul.f32 %v3917, %v3890
      %v3990 = vadd.f32 %v3859, %v3980
      %v3991 = vadd.f32 %v3860, %v3981
      %v3992 = vadd.f32 %v3861, %v3982
      %v3993 = vadd.f32 %v3862, %v3983
      %v3994 = vadd.f32 %v3863, %v3984
      %v3995 = vadd.f32 %v3864, %v3985
      %v3996 = vadd.f32 %v3865, %v3986
      %v3997 = vadd.f32 %v3866, %v3987
      %v3998 = vadd.f32 %v3867, %v3988
      %v3999 = vadd.f32 %v3868, %v3989
      %v4000 = vmul.f32 %v3938, %v3891
      %v4001 = vmul.f32 %v3938, %v3892
      %v4002 = vmul.f32 %v3938, %v3893
      %v4003 = vmul.f32 %v3938, %v3894
      %v4004 = vmul.f32 %v3938, %v3895
      %v4005 = vmul.f32 %v3938, %v3896
      %v4006 = vmul.f32 %v3938, %v3897
      %v4007 = vmul.f32 %v3938, %v3898
      %v4008 = vmul.f32 %v3938, %v3899
      %v4009 = vmul.f32 %v3938, %v3900
      %v4010 = vadd.f32 %v3990, %v4000
      %v4011 = vadd.f32 %v3991, %v4001
      %v4012 = vadd.f32 %v3992, %v4002
      %v4013 = vadd.f32 %v3993, %v4003
      %v4014 = vadd.f32 %v3994, %v4004
      %v4015 = vadd.f32 %v3995, %v4005
      %v4016 = vadd.f32 %v3996, %v4006
      %v4017 = vadd.f32 %v3997, %v4007
      %v4018 = vadd.f32 %v3998, %v4008
      %v4019 = vadd.f32 %v3999, %v4009
      %v4020 = vmul.f32 %v3959, %v3901
      %v4021 = vmul.f32 %v3959, %v3902
      %v4022 = vmul.f32 %v3959, %v3903
      %v4023 = vmul.f32 %v3959, %v3904
      %v4024 = vmul.f32 %v3959, %v3905
      %v4025 = vmul.f32 %v3959, %v3906
      %v4026 = vmul.f32 %v3959, %v3907
      %v4027 = vmul.f32 %v3959, %v3908
      %v4028 = vmul.f32 %v3959, %v3909
      %v4029 = vmul.f32 %v3959, %v3910
      %v4030 = vadd.f32 %v4010, %v4020
      %v4031 = vadd.f32 %v4011, %v4021
      %v4032 = vadd.f32 %v4012, %v4022
      %v4033 = vadd.f32 %v4013, %v4023
      %v4034 = vadd.f32 %v4014, %v4024
      %v4035 = vadd.f32 %v4015, %v4025
      %v4036 = vadd.f32 %v4016, %v4026
      %v4037 = vadd.f32 %v4017, %v4027
      %v4038 = vadd.f32 %v4018, %v4028
      %v4039 = vadd.f32 %v4019, %v4029
      %s4040 = scalar_lea.vmem [#allocation2], 216
      %v4041 = vld [vmem:[%s4040] sm:$0x1f]
      %v4042 = vld [vmem:[%s4040 + $0x8] sm:$0x1f]
      %v4043 = vld [vmem:[%s4040 + $0x10] sm:$0x1f]
      %v4044 = vld [vmem:[%s4040 + $0x18] sm:$0x1f]
      %v4045 = vld [vmem:[%s4040 + $0x20] sm:$0x1f]
      %v4046 = vld [vmem:[%s4040 + $0x28] sm:$0x1f]
      %v4047 = vld [vmem:[%s4040 + $0x30] sm:$0x1f]
      %v4048 = vld [vmem:[%s4040 + $0x38] sm:$0x1f]
      %v4049 = vld [vmem:[%s4040 + $0x40] sm:$0x1f]
      %v4050 = vld [vmem:[%s4040 + $0x48] sm:$0x1f]
      %s4051 = scalar_lea.vmem [#allocation3], 216
      %v4052 = vld [vmem:[%s4051] sm:$0x1f]
      %v4053 = vld [vmem:[%s4051 + $0x8] sm:$0x1f]
      %v4054 = vld [vmem:[%s4051 + $0x10] sm:$0x1f]
      %v4055 = vld [vmem:[%s4051 + $0x18] sm:$0x1f]
      %v4056 = vld [vmem:[%s4051 + $0x20] sm:$0x1f]
      %v4057 = vld [vmem:[%s4051 + $0x28] sm:$0x1f]
      %v4058 = vld [vmem:[%s4051 + $0x30] sm:$0x1f]
      %v4059 = vld [vmem:[%s4051 + $0x38] sm:$0x1f]
      %v4060 = vld [vmem:[%s4051 + $0x40] sm:$0x1f]
      %v4061 = vld [vmem:[%s4051 + $0x48] sm:$0x1f]
      %v4062 = vld [vmem:[%s4040 + $0x1] sm:$0x1f]
      %v4063 = vld [vmem:[%s4040 + $0x9] sm:$0x1f]
      %v4064 = vld [vmem:[%s4040 + $0x11] sm:$0x1f]
      %v4065 = vld [vmem:[%s4040 + $0x19] sm:$0x1f]
      %v4066 = vld [vmem:[%s4040 + $0x21] sm:$0x1f]
      %v4067 = vld [vmem:[%s4040 + $0x29] sm:$0x1f]
      %v4068 = vld [vmem:[%s4040 + $0x31] sm:$0x1f]
      %v4069 = vld [vmem:[%s4040 + $0x39] sm:$0x1f]
      %v4070 = vld [vmem:[%s4040 + $0x41] sm:$0x1f]
      %v4071 = vld [vmem:[%s4040 + $0x49] sm:$0x1f]
      %v4072 = vld [vmem:[%s4051 + $0x1] sm:$0x1f]
      %v4073 = vld [vmem:[%s4051 + $0x9] sm:$0x1f]
      %v4074 = vld [vmem:[%s4051 + $0x11] sm:$0x1f]
      %v4075 = vld [vmem:[%s4051 + $0x19] sm:$0x1f]
      %v4076 = vld [vmem:[%s4051 + $0x21] sm:$0x1f]
      %v4077 = vld [vmem:[%s4051 + $0x29] sm:$0x1f]
      %v4078 = vld [vmem:[%s4051 + $0x31] sm:$0x1f]
      %v4079 = vld [vmem:[%s4051 + $0x39] sm:$0x1f]
      %v4080 = vld [vmem:[%s4051 + $0x41] sm:$0x1f]
      %v4081 = vld [vmem:[%s4051 + $0x49] sm:$0x1f]
      %s4082 = sadd.s32 %s2845, 21
      %s4083 = sld [smem:[#allocation10 + %s4082]]
      %s4084 = sadd.s32 %s2845, 22
      %s4085 = sld [smem:[#allocation10 + %s4084]]
      %s4086 = sadd.s32 %s2845, 23
      %s4087 = sld [smem:[#allocation10 + %s4086]]
      %v4088 = vstv %s4083
      %v4089 = vmul.f32 %v4088, %v4041
      %v4090 = vmul.f32 %v4088, %v4042
      %v4091 = vmul.f32 %v4088, %v4043
      %v4092 = vmul.f32 %v4088, %v4044
      %v4093 = vmul.f32 %v4088, %v4045
      %v4094 = vmul.f32 %v4088, %v4046
      %v4095 = vmul.f32 %v4088, %v4047
      %v4096 = vmul.f32 %v4088, %v4048
      %v4097 = vmul.f32 %v4088, %v4049
      %v4098 = vmul.f32 %v4088, %v4050
      %v4099 = vadd.f32 %v3970, %v4089
      %v4100 = vadd.f32 %v3971, %v4090
      %v4101 = vadd.f32 %v3972, %v4091
      %v4102 = vadd.f32 %v3973, %v4092
      %v4103 = vadd.f32 %v3974, %v4093
      %v4104 = vadd.f32 %v3975, %v4094
      %v4105 = vadd.f32 %v3976, %v4095
      %v4106 = vadd.f32 %v3977, %v4096
      %v4107 = vadd.f32 %v3978, %v4097
      %v4108 = vadd.f32 %v3979, %v4098
      %v4109 = vstv %s4085
      %v4110 = vmul.f32 %v4109, %v4052
      %v4111 = vmul.f32 %v4109, %v4053
      %v4112 = vmul.f32 %v4109, %v4054
      %v4113 = vmul.f32 %v4109, %v4055
      %v4114 = vmul.f32 %v4109, %v4056
      %v4115 = vmul.f32 %v4109, %v4057
      %v4116 = vmul.f32 %v4109, %v4058
      %v4117 = vmul.f32 %v4109, %v4059
      %v4118 = vmul.f32 %v4109, %v4060
      %v4119 = vmul.f32 %v4109, %v4061
      %v4120 = vadd.f32 %v4099, %v4110
      %v4121 = vadd.f32 %v4100, %v4111
      %v4122 = vadd.f32 %v4101, %v4112
      %v4123 = vadd.f32 %v4102, %v4113
      %v4124 = vadd.f32 %v4103, %v4114
      %v4125 = vadd.f32 %v4104, %v4115
      %v4126 = vadd.f32 %v4105, %v4116
      %v4127 = vadd.f32 %v4106, %v4117
      %v4128 = vadd.f32 %v4107, %v4118
      %v4129 = vadd.f32 %v4108, %v4119
      %v4130 = vstv %s4087
      %v4131 = vmul.f32 %v4130, %v4062
      %v4132 = vmul.f32 %v4130, %v4063
      %v4133 = vmul.f32 %v4130, %v4064
      %v4134 = vmul.f32 %v4130, %v4065
      %v4135 = vmul.f32 %v4130, %v4066
      %v4136 = vmul.f32 %v4130, %v4067
      %v4137 = vmul.f32 %v4130, %v4068
      %v4138 = vmul.f32 %v4130, %v4069
      %v4139 = vmul.f32 %v4130, %v4070
      %v4140 = vmul.f32 %v4130, %v4071
      %v4141 = vadd.f32 %v4120, %v4131
      %v4142 = vadd.f32 %v4121, %v4132
      %v4143 = vadd.f32 %v4122, %v4133
      %v4144 = vadd.f32 %v4123, %v4134
      %v4145 = vadd.f32 %v4124, %v4135
      %v4146 = vadd.f32 %v4125, %v4136
      %v4147 = vadd.f32 %v4126, %v4137
      %v4148 = vadd.f32 %v4127, %v4138
      %v4149 = vadd.f32 %v4128, %v4139
      %v4150 = vadd.f32 %v4129, %v4140
      %v4151 = vmul.f32 %v4088, %v4052
      %v4152 = vmul.f32 %v4088, %v4053
      %v4153 = vmul.f32 %v4088, %v4054
      %v4154 = vmul.f32 %v4088, %v4055
      %v4155 = vmul.f32 %v4088, %v4056
      %v4156 = vmul.f32 %v4088, %v4057
      %v4157 = vmul.f32 %v4088, %v4058
      %v4158 = vmul.f32 %v4088, %v4059
      %v4159 = vmul.f32 %v4088, %v4060
      %v4160 = vmul.f32 %v4088, %v4061
      %v4161 = vadd.f32 %v4030, %v4151
      %v4162 = vadd.f32 %v4031, %v4152
      %v4163 = vadd.f32 %v4032, %v4153
      %v4164 = vadd.f32 %v4033, %v4154
      %v4165 = vadd.f32 %v4034, %v4155
      %v4166 = vadd.f32 %v4035, %v4156
      %v4167 = vadd.f32 %v4036, %v4157
      %v4168 = vadd.f32 %v4037, %v4158
      %v4169 = vadd.f32 %v4038, %v4159
      %v4170 = vadd.f32 %v4039, %v4160
      %v4171 = vmul.f32 %v4109, %v4062
      %v4172 = vmul.f32 %v4109, %v4063
      %v4173 = vmul.f32 %v4109, %v4064
      %v4174 = vmul.f32 %v4109, %v4065
      %v4175 = vmul.f32 %v4109, %v4066
      %v4176 = vmul.f32 %v4109, %v4067
      %v4177 = vmul.f32 %v4109, %v4068
      %v4178 = vmul.f32 %v4109, %v4069
      %v4179 = vmul.f32 %v4109, %v4070
      %v4180 = vmul.f32 %v4109, %v4071
      %v4181 = vadd.f32 %v4161, %v4171
      %v4182 = vadd.f32 %v4162, %v4172
      %v4183 = vadd.f32 %v4163, %v4173
      %v4184 = vadd.f32 %v4164, %v4174
      %v4185 = vadd.f32 %v4165, %v4175
      %v4186 = vadd.f32 %v4166, %v4176
      %v4187 = vadd.f32 %v4167, %v4177
      %v4188 = vadd.f32 %v4168, %v4178
      %v4189 = vadd.f32 %v4169, %v4179
      %v4190 = vadd.f32 %v4170, %v4180
      %v4191 = vmul.f32 %v4130, %v4072
      %v4192 = vmul.f32 %v4130, %v4073
      %v4193 = vmul.f32 %v4130, %v4074
      %v4194 = vmul.f32 %v4130, %v4075
      %v4195 = vmul.f32 %v4130, %v4076
      %v4196 = vmul.f32 %v4130, %v4077
      %v4197 = vmul.f32 %v4130, %v4078
      %v4198 = vmul.f32 %v4130, %v4079
      %v4199 = vmul.f32 %v4130, %v4080
      %v4200 = vmul.f32 %v4130, %v4081
      %v4201 = vadd.f32 %v4181, %v4191
      %v4202 = vadd.f32 %v4182, %v4192
      %v4203 = vadd.f32 %v4183, %v4193
      %v4204 = vadd.f32 %v4184, %v4194
      %v4205 = vadd.f32 %v4185, %v4195
      %v4206 = vadd.f32 %v4186, %v4196
      %v4207 = vadd.f32 %v4187, %v4197
      %v4208 = vadd.f32 %v4188, %v4198
      %v4209 = vadd.f32 %v4189, %v4199
      %v4210 = vadd.f32 %v4190, %v4200
      %s4211 = scalar_lea.vmem [#allocation2], 224
      %v4212 = vld [vmem:[%s4211] sm:$0x1f]
      %v4213 = vld [vmem:[%s4211 + $0x8] sm:$0x1f]
      %v4214 = vld [vmem:[%s4211 + $0x10] sm:$0x1f]
      %v4215 = vld [vmem:[%s4211 + $0x18] sm:$0x1f]
      %v4216 = vld [vmem:[%s4211 + $0x20] sm:$0x1f]
      %v4217 = vld [vmem:[%s4211 + $0x28] sm:$0x1f]
      %v4218 = vld [vmem:[%s4211 + $0x30] sm:$0x1f]
      %v4219 = vld [vmem:[%s4211 + $0x38] sm:$0x1f]
      %v4220 = vld [vmem:[%s4211 + $0x40] sm:$0x1f]
      %v4221 = vld [vmem:[%s4211 + $0x48] sm:$0x1f]
      %s4222 = scalar_lea.vmem [#allocation3], 224
      %v4223 = vld [vmem:[%s4222] sm:$0x1f]
      %v4224 = vld [vmem:[%s4222 + $0x8] sm:$0x1f]
      %v4225 = vld [vmem:[%s4222 + $0x10] sm:$0x1f]
      %v4226 = vld [vmem:[%s4222 + $0x18] sm:$0x1f]
      %v4227 = vld [vmem:[%s4222 + $0x20] sm:$0x1f]
      %v4228 = vld [vmem:[%s4222 + $0x28] sm:$0x1f]
      %v4229 = vld [vmem:[%s4222 + $0x30] sm:$0x1f]
      %v4230 = vld [vmem:[%s4222 + $0x38] sm:$0x1f]
      %v4231 = vld [vmem:[%s4222 + $0x40] sm:$0x1f]
      %v4232 = vld [vmem:[%s4222 + $0x48] sm:$0x1f]
      %v4233 = vld [vmem:[%s4211 + $0x1] sm:$0x1f]
      %v4234 = vld [vmem:[%s4211 + $0x9] sm:$0x1f]
      %v4235 = vld [vmem:[%s4211 + $0x11] sm:$0x1f]
      %v4236 = vld [vmem:[%s4211 + $0x19] sm:$0x1f]
      %v4237 = vld [vmem:[%s4211 + $0x21] sm:$0x1f]
      %v4238 = vld [vmem:[%s4211 + $0x29] sm:$0x1f]
      %v4239 = vld [vmem:[%s4211 + $0x31] sm:$0x1f]
      %v4240 = vld [vmem:[%s4211 + $0x39] sm:$0x1f]
      %v4241 = vld [vmem:[%s4211 + $0x41] sm:$0x1f]
      %v4242 = vld [vmem:[%s4211 + $0x49] sm:$0x1f]
      %v4243 = vld [vmem:[%s4222 + $0x1] sm:$0x1f]
      %v4244 = vld [vmem:[%s4222 + $0x9] sm:$0x1f]
      %v4245 = vld [vmem:[%s4222 + $0x11] sm:$0x1f]
      %v4246 = vld [vmem:[%s4222 + $0x19] sm:$0x1f]
      %v4247 = vld [vmem:[%s4222 + $0x21] sm:$0x1f]
      %v4248 = vld [vmem:[%s4222 + $0x29] sm:$0x1f]
      %v4249 = vld [vmem:[%s4222 + $0x31] sm:$0x1f]
      %v4250 = vld [vmem:[%s4222 + $0x39] sm:$0x1f]
      %v4251 = vld [vmem:[%s4222 + $0x41] sm:$0x1f]
      %v4252 = vld [vmem:[%s4222 + $0x49] sm:$0x1f]
      %s4253 = sadd.s32 %s2845, 24
      %s4254 = sld [smem:[#allocation10 + %s4253]]
      %s4255 = sadd.s32 %s2845, 25
      %s4256 = sld [smem:[#allocation10 + %s4255]]
      %s4257 = sadd.s32 %s2845, 26
      %s4258 = sld [smem:[#allocation10 + %s4257]]
      %v4259 = vstv %s4254
      %v4260 = vmul.f32 %v4259, %v4212
      %v4261 = vmul.f32 %v4259, %v4213
      %v4262 = vmul.f32 %v4259, %v4214
      %v4263 = vmul.f32 %v4259, %v4215
      %v4264 = vmul.f32 %v4259, %v4216
      %v4265 = vmul.f32 %v4259, %v4217
      %v4266 = vmul.f32 %v4259, %v4218
      %v4267 = vmul.f32 %v4259, %v4219
      %v4268 = vmul.f32 %v4259, %v4220
      %v4269 = vmul.f32 %v4259, %v4221
      %v4270 = vadd.f32 %v4141, %v4260
      %v4271 = vadd.f32 %v4142, %v4261
      %v4272 = vadd.f32 %v4143, %v4262
      %v4273 = vadd.f32 %v4144, %v4263
      %v4274 = vadd.f32 %v4145, %v4264
      %v4275 = vadd.f32 %v4146, %v4265
      %v4276 = vadd.f32 %v4147, %v4266
      %v4277 = vadd.f32 %v4148, %v4267
      %v4278 = vadd.f32 %v4149, %v4268
      %v4279 = vadd.f32 %v4150, %v4269
      %v4280 = vstv %s4256
      %v4281 = vmul.f32 %v4280, %v4223
      %v4282 = vmul.f32 %v4280, %v4224
      %v4283 = vmul.f32 %v4280, %v4225
      %v4284 = vmul.f32 %v4280, %v4226
      %v4285 = vmul.f32 %v4280, %v4227
      %v4286 = vmul.f32 %v4280, %v4228
      %v4287 = vmul.f32 %v4280, %v4229
      %v4288 = vmul.f32 %v4280, %v4230
      %v4289 = vmul.f32 %v4280, %v4231
      %v4290 = vmul.f32 %v4280, %v4232
      %v4291 = vadd.f32 %v4270, %v4281
      %v4292 = vadd.f32 %v4271, %v4282
      %v4293 = vadd.f32 %v4272, %v4283
      %v4294 = vadd.f32 %v4273, %v4284
      %v4295 = vadd.f32 %v4274, %v4285
      %v4296 = vadd.f32 %v4275, %v4286
      %v4297 = vadd.f32 %v4276, %v4287
      %v4298 = vadd.f32 %v4277, %v4288
      %v4299 = vadd.f32 %v4278, %v4289
      %v4300 = vadd.f32 %v4279, %v4290
      %v4301 = vstv %s4258
      %v4302 = vmul.f32 %v4301, %v4233
      %v4303 = vmul.f32 %v4301, %v4234
      %v4304 = vmul.f32 %v4301, %v4235
      %v4305 = vmul.f32 %v4301, %v4236
      %v4306 = vmul.f32 %v4301, %v4237
      %v4307 = vmul.f32 %v4301, %v4238
      %v4308 = vmul.f32 %v4301, %v4239
      %v4309 = vmul.f32 %v4301, %v4240
      %v4310 = vmul.f32 %v4301, %v4241
      %v4311 = vmul.f32 %v4301, %v4242
      %v4312 = vadd.f32 %v4291, %v4302
      %v4313 = vadd.f32 %v4292, %v4303
      %v4314 = vadd.f32 %v4293, %v4304
      %v4315 = vadd.f32 %v4294, %v4305
      %v4316 = vadd.f32 %v4295, %v4306
      %v4317 = vadd.f32 %v4296, %v4307
      %v4318 = vadd.f32 %v4297, %v4308
      %v4319 = vadd.f32 %v4298, %v4309
      %v4320 = vadd.f32 %v4299, %v4310
      %v4321 = vadd.f32 %v4300, %v4311
      %v4322 = vmul.f32 %v4259, %v4223
      %v4323 = vmul.f32 %v4259, %v4224
      %v4324 = vmul.f32 %v4259, %v4225
      %v4325 = vmul.f32 %v4259, %v4226
      %v4326 = vmul.f32 %v4259, %v4227
      %v4327 = vmul.f32 %v4259, %v4228
      %v4328 = vmul.f32 %v4259, %v4229
      %v4329 = vmul.f32 %v4259, %v4230
      %v4330 = vmul.f32 %v4259, %v4231
      %v4331 = vmul.f32 %v4259, %v4232
      %v4332 = vadd.f32 %v4201, %v4322
      %v4333 = vadd.f32 %v4202, %v4323
      %v4334 = vadd.f32 %v4203, %v4324
      %v4335 = vadd.f32 %v4204, %v4325
      %v4336 = vadd.f32 %v4205, %v4326
      %v4337 = vadd.f32 %v4206, %v4327
      %v4338 = vadd.f32 %v4207, %v4328
      %v4339 = vadd.f32 %v4208, %v4329
      %v4340 = vadd.f32 %v4209, %v4330
      %v4341 = vadd.f32 %v4210, %v4331
      %v4342 = vmul.f32 %v4280, %v4233
      %v4343 = vmul.f32 %v4280, %v4234
      %v4344 = vmul.f32 %v4280, %v4235
      %v4345 = vmul.f32 %v4280, %v4236
      %v4346 = vmul.f32 %v4280, %v4237
      %v4347 = vmul.f32 %v4280, %v4238
      %v4348 = vmul.f32 %v4280, %v4239
      %v4349 = vmul.f32 %v4280, %v4240
      %v4350 = vmul.f32 %v4280, %v4241
      %v4351 = vmul.f32 %v4280, %v4242
      %v4352 = vadd.f32 %v4332, %v4342
      %v4353 = vadd.f32 %v4333, %v4343
      %v4354 = vadd.f32 %v4334, %v4344
      %v4355 = vadd.f32 %v4335, %v4345
      %v4356 = vadd.f32 %v4336, %v4346
      %v4357 = vadd.f32 %v4337, %v4347
      %v4358 = vadd.f32 %v4338, %v4348
      %v4359 = vadd.f32 %v4339, %v4349
      %v4360 = vadd.f32 %v4340, %v4350
      %v4361 = vadd.f32 %v4341, %v4351
      %v4362 = vmul.f32 %v4301, %v4243
      %v4363 = vmul.f32 %v4301, %v4244
      %v4364 = vmul.f32 %v4301, %v4245
      %v4365 = vmul.f32 %v4301, %v4246
      %v4366 = vmul.f32 %v4301, %v4247
      %v4367 = vmul.f32 %v4301, %v4248
      %v4368 = vmul.f32 %v4301, %v4249
      %v4369 = vmul.f32 %v4301, %v4250
      %v4370 = vmul.f32 %v4301, %v4251
      %v4371 = vmul.f32 %v4301, %v4252
      %v4372 = vadd.f32 %v4352, %v4362
      %v4373 = vadd.f32 %v4353, %v4363
      %v4374 = vadd.f32 %v4354, %v4364
      %v4375 = vadd.f32 %v4355, %v4365
      %v4376 = vadd.f32 %v4356, %v4366
      %v4377 = vadd.f32 %v4357, %v4367
      %v4378 = vadd.f32 %v4358, %v4368
      %v4379 = vadd.f32 %v4359, %v4369
      %v4380 = vadd.f32 %v4360, %v4370
      %v4381 = vadd.f32 %v4361, %v4371
      %s4382 = scalar_lea.vmem [#allocation2], 312
      %v4383 = vld [vmem:[%s4382] sm:$0x1f]
      %v4384 = vld [vmem:[%s4382 + $0x8] sm:$0x1f]
      %v4385 = vld [vmem:[%s4382 + $0x10] sm:$0x1f]
      %v4386 = vld [vmem:[%s4382 + $0x18] sm:$0x1f]
      %v4387 = vld [vmem:[%s4382 + $0x20] sm:$0x1f]
      %v4388 = vld [vmem:[%s4382 + $0x28] sm:$0x1f]
      %v4389 = vld [vmem:[%s4382 + $0x30] sm:$0x1f]
      %v4390 = vld [vmem:[%s4382 + $0x38] sm:$0x1f]
      %v4391 = vld [vmem:[%s4382 + $0x40] sm:$0x1f]
      %v4392 = vld [vmem:[%s4382 + $0x48] sm:$0x1f]
      %s4393 = scalar_lea.vmem [#allocation3], 312
      %v4394 = vld [vmem:[%s4393] sm:$0x1f]
      %v4395 = vld [vmem:[%s4393 + $0x8] sm:$0x1f]
      %v4396 = vld [vmem:[%s4393 + $0x10] sm:$0x1f]
      %v4397 = vld [vmem:[%s4393 + $0x18] sm:$0x1f]
      %v4398 = vld [vmem:[%s4393 + $0x20] sm:$0x1f]
      %v4399 = vld [vmem:[%s4393 + $0x28] sm:$0x1f]
      %v4400 = vld [vmem:[%s4393 + $0x30] sm:$0x1f]
      %v4401 = vld [vmem:[%s4393 + $0x38] sm:$0x1f]
      %v4402 = vld [vmem:[%s4393 + $0x40] sm:$0x1f]
      %v4403 = vld [vmem:[%s4393 + $0x48] sm:$0x1f]
      %v4404 = vld [vmem:[%s4382 + $0x1] sm:$0x1f]
      %v4405 = vld [vmem:[%s4382 + $0x9] sm:$0x1f]
      %v4406 = vld [vmem:[%s4382 + $0x11] sm:$0x1f]
      %v4407 = vld [vmem:[%s4382 + $0x19] sm:$0x1f]
      %v4408 = vld [vmem:[%s4382 + $0x21] sm:$0x1f]
      %v4409 = vld [vmem:[%s4382 + $0x29] sm:$0x1f]
      %v4410 = vld [vmem:[%s4382 + $0x31] sm:$0x1f]
      %v4411 = vld [vmem:[%s4382 + $0x39] sm:$0x1f]
      %v4412 = vld [vmem:[%s4382 + $0x41] sm:$0x1f]
      %v4413 = vld [vmem:[%s4382 + $0x49] sm:$0x1f]
      %v4414 = vld [vmem:[%s4393 + $0x1] sm:$0x1f]
      %v4415 = vld [vmem:[%s4393 + $0x9] sm:$0x1f]
      %v4416 = vld [vmem:[%s4393 + $0x11] sm:$0x1f]
      %v4417 = vld [vmem:[%s4393 + $0x19] sm:$0x1f]
      %v4418 = vld [vmem:[%s4393 + $0x21] sm:$0x1f]
      %v4419 = vld [vmem:[%s4393 + $0x29] sm:$0x1f]
      %v4420 = vld [vmem:[%s4393 + $0x31] sm:$0x1f]
      %v4421 = vld [vmem:[%s4393 + $0x39] sm:$0x1f]
      %v4422 = vld [vmem:[%s4393 + $0x41] sm:$0x1f]
      %v4423 = vld [vmem:[%s4393 + $0x49] sm:$0x1f]
      %s4424 = sadd.s32 %s2845, 27
      %s4425 = sld [smem:[#allocation10 + %s4424]]
      %s4426 = sadd.s32 %s2845, 28
      %s4427 = sld [smem:[#allocation10 + %s4426]]
      %s4428 = sadd.s32 %s2845, 29
      %s4429 = sld [smem:[#allocation10 + %s4428]]
      %v4430 = vstv %s4425
      %v4431 = vmul.f32 %v4430, %v4383
      %v4432 = vmul.f32 %v4430, %v4384
      %v4433 = vmul.f32 %v4430, %v4385
      %v4434 = vmul.f32 %v4430, %v4386
      %v4435 = vmul.f32 %v4430, %v4387
      %v4436 = vmul.f32 %v4430, %v4388
      %v4437 = vmul.f32 %v4430, %v4389
      %v4438 = vmul.f32 %v4430, %v4390
      %v4439 = vmul.f32 %v4430, %v4391
      %v4440 = vmul.f32 %v4430, %v4392
      %v4441 = vadd.f32 %v4312, %v4431
      %v4442 = vadd.f32 %v4313, %v4432
      %v4443 = vadd.f32 %v4314, %v4433
      %v4444 = vadd.f32 %v4315, %v4434
      %v4445 = vadd.f32 %v4316, %v4435
      %v4446 = vadd.f32 %v4317, %v4436
      %v4447 = vadd.f32 %v4318, %v4437
      %v4448 = vadd.f32 %v4319, %v4438
      %v4449 = vadd.f32 %v4320, %v4439
      %v4450 = vadd.f32 %v4321, %v4440
      %v4451 = vstv %s4427
      %v4452 = vmul.f32 %v4451, %v4394
      %v4453 = vmul.f32 %v4451, %v4395
      %v4454 = vmul.f32 %v4451, %v4396
      %v4455 = vmul.f32 %v4451, %v4397
      %v4456 = vmul.f32 %v4451, %v4398
      %v4457 = vmul.f32 %v4451, %v4399
      %v4458 = vmul.f32 %v4451, %v4400
      %v4459 = vmul.f32 %v4451, %v4401
      %v4460 = vmul.f32 %v4451, %v4402
      %v4461 = vmul.f32 %v4451, %v4403
      %v4462 = vadd.f32 %v4441, %v4452
      %v4463 = vadd.f32 %v4442, %v4453
      %v4464 = vadd.f32 %v4443, %v4454
      %v4465 = vadd.f32 %v4444, %v4455
      %v4466 = vadd.f32 %v4445, %v4456
      %v4467 = vadd.f32 %v4446, %v4457
      %v4468 = vadd.f32 %v4447, %v4458
      %v4469 = vadd.f32 %v4448, %v4459
      %v4470 = vadd.f32 %v4449, %v4460
      %v4471 = vadd.f32 %v4450, %v4461
      %v4472 = vstv %s4429
      %v4473 = vmul.f32 %v4472, %v4404
      %v4474 = vmul.f32 %v4472, %v4405
      %v4475 = vmul.f32 %v4472, %v4406
      %v4476 = vmul.f32 %v4472, %v4407
      %v4477 = vmul.f32 %v4472, %v4408
      %v4478 = vmul.f32 %v4472, %v4409
      %v4479 = vmul.f32 %v4472, %v4410
      %v4480 = vmul.f32 %v4472, %v4411
      %v4481 = vmul.f32 %v4472, %v4412
      %v4482 = vmul.f32 %v4472, %v4413
      %v4483 = vadd.f32 %v4462, %v4473
      %v4484 = vadd.f32 %v4463, %v4474
      %v4485 = vadd.f32 %v4464, %v4475
      %v4486 = vadd.f32 %v4465, %v4476
      %v4487 = vadd.f32 %v4466, %v4477
      %v4488 = vadd.f32 %v4467, %v4478
      %v4489 = vadd.f32 %v4468, %v4479
      %v4490 = vadd.f32 %v4469, %v4480
      %v4491 = vadd.f32 %v4470, %v4481
      %v4492 = vadd.f32 %v4471, %v4482
      %v4493 = vmul.f32 %v4430, %v4394
      %v4494 = vmul.f32 %v4430, %v4395
      %v4495 = vmul.f32 %v4430, %v4396
      %v4496 = vmul.f32 %v4430, %v4397
      %v4497 = vmul.f32 %v4430, %v4398
      %v4498 = vmul.f32 %v4430, %v4399
      %v4499 = vmul.f32 %v4430, %v4400
      %v4500 = vmul.f32 %v4430, %v4401
      %v4501 = vmul.f32 %v4430, %v4402
      %v4502 = vmul.f32 %v4430, %v4403
      %v4503 = vadd.f32 %v4372, %v4493
      %v4504 = vadd.f32 %v4373, %v4494
      %v4505 = vadd.f32 %v4374, %v4495
      %v4506 = vadd.f32 %v4375, %v4496
      %v4507 = vadd.f32 %v4376, %v4497
      %v4508 = vadd.f32 %v4377, %v4498
      %v4509 = vadd.f32 %v4378, %v4499
      %v4510 = vadd.f32 %v4379, %v4500
      %v4511 = vadd.f32 %v4380, %v4501
      %v4512 = vadd.f32 %v4381, %v4502
      %v4513 = vmul.f32 %v4451, %v4404
      %v4514 = vmul.f32 %v4451, %v4405
      %v4515 = vmul.f32 %v4451, %v4406
      %v4516 = vmul.f32 %v4451, %v4407
      %v4517 = vmul.f32 %v4451, %v4408
      %v4518 = vmul.f32 %v4451, %v4409
      %v4519 = vmul.f32 %v4451, %v4410
      %v4520 = vmul.f32 %v4451, %v4411
      %v4521 = vmul.f32 %v4451, %v4412
      %v4522 = vmul.f32 %v4451, %v4413
      %v4523 = vadd.f32 %v4503, %v4513
      %v4524 = vadd.f32 %v4504, %v4514
      %v4525 = vadd.f32 %v4505, %v4515
      %v4526 = vadd.f32 %v4506, %v4516
      %v4527 = vadd.f32 %v4507, %v4517
      %v4528 = vadd.f32 %v4508, %v4518
      %v4529 = vadd.f32 %v4509, %v4519
      %v4530 = vadd.f32 %v4510, %v4520
      %v4531 = vadd.f32 %v4511, %v4521
      %v4532 = vadd.f32 %v4512, %v4522
      %v4533 = vmul.f32 %v4472, %v4414
      %v4534 = vmul.f32 %v4472, %v4415
      %v4535 = vmul.f32 %v4472, %v4416
      %v4536 = vmul.f32 %v4472, %v4417
      %v4537 = vmul.f32 %v4472, %v4418
      %v4538 = vmul.f32 %v4472, %v4419
      %v4539 = vmul.f32 %v4472, %v4420
      %v4540 = vmul.f32 %v4472, %v4421
      %v4541 = vmul.f32 %v4472, %v4422
      %v4542 = vmul.f32 %v4472, %v4423
      %v4543 = vadd.f32 %v4523, %v4533
      %v4544 = vadd.f32 %v4524, %v4534
      %v4545 = vadd.f32 %v4525, %v4535
      %v4546 = vadd.f32 %v4526, %v4536
      %v4547 = vadd.f32 %v4527, %v4537
      %v4548 = vadd.f32 %v4528, %v4538
      %v4549 = vadd.f32 %v4529, %v4539
      %v4550 = vadd.f32 %v4530, %v4540
      %v4551 = vadd.f32 %v4531, %v4541
      %v4552 = vadd.f32 %v4532, %v4542
      %s4553 = scalar_lea.vmem [#allocation2], 320
      %v4554 = vld [vmem:[%s4553] sm:$0x1f]
      %v4555 = vld [vmem:[%s4553 + $0x8] sm:$0x1f]
      %v4556 = vld [vmem:[%s4553 + $0x10] sm:$0x1f]
      %v4557 = vld [vmem:[%s4553 + $0x18] sm:$0x1f]
      %v4558 = vld [vmem:[%s4553 + $0x20] sm:$0x1f]
      %v4559 = vld [vmem:[%s4553 + $0x28] sm:$0x1f]
      %v4560 = vld [vmem:[%s4553 + $0x30] sm:$0x1f]
      %v4561 = vld [vmem:[%s4553 + $0x38] sm:$0x1f]
      %v4562 = vld [vmem:[%s4553 + $0x40] sm:$0x1f]
      %v4563 = vld [vmem:[%s4553 + $0x48] sm:$0x1f]
      %s4564 = scalar_lea.vmem [#allocation3], 320
      %v4565 = vld [vmem:[%s4564] sm:$0x1f]
      %v4566 = vld [vmem:[%s4564 + $0x8] sm:$0x1f]
      %v4567 = vld [vmem:[%s4564 + $0x10] sm:$0x1f]
      %v4568 = vld [vmem:[%s4564 + $0x18] sm:$0x1f]
      %v4569 = vld [vmem:[%s4564 + $0x20] sm:$0x1f]
      %v4570 = vld [vmem:[%s4564 + $0x28] sm:$0x1f]
      %v4571 = vld [vmem:[%s4564 + $0x30] sm:$0x1f]
      %v4572 = vld [vmem:[%s4564 + $0x38] sm:$0x1f]
      %v4573 = vld [vmem:[%s4564 + $0x40] sm:$0x1f]
      %v4574 = vld [vmem:[%s4564 + $0x48] sm:$0x1f]
      %v4575 = vld [vmem:[%s4553 + $0x1] sm:$0x1f]
      %v4576 = vld [vmem:[%s4553 + $0x9] sm:$0x1f]
      %v4577 = vld [vmem:[%s4553 + $0x11] sm:$0x1f]
      %v4578 = vld [vmem:[%s4553 + $0x19] sm:$0x1f]
      %v4579 = vld [vmem:[%s4553 + $0x21] sm:$0x1f]
      %v4580 = vld [vmem:[%s4553 + $0x29] sm:$0x1f]
      %v4581 = vld [vmem:[%s4553 + $0x31] sm:$0x1f]
      %v4582 = vld [vmem:[%s4553 + $0x39] sm:$0x1f]
      %v4583 = vld [vmem:[%s4553 + $0x41] sm:$0x1f]
      %v4584 = vld [vmem:[%s4553 + $0x49] sm:$0x1f]
      %v4585 = vld [vmem:[%s4564 + $0x1] sm:$0x1f]
      %v4586 = vld [vmem:[%s4564 + $0x9] sm:$0x1f]
      %v4587 = vld [vmem:[%s4564 + $0x11] sm:$0x1f]
      %v4588 = vld [vmem:[%s4564 + $0x19] sm:$0x1f]
      %v4589 = vld [vmem:[%s4564 + $0x21] sm:$0x1f]
      %v4590 = vld [vmem:[%s4564 + $0x29] sm:$0x1f]
      %v4591 = vld [vmem:[%s4564 + $0x31] sm:$0x1f]
      %v4592 = vld [vmem:[%s4564 + $0x39] sm:$0x1f]
      %v4593 = vld [vmem:[%s4564 + $0x41] sm:$0x1f]
      %v4594 = vld [vmem:[%s4564 + $0x49] sm:$0x1f]
      %s4595 = sadd.s32 %s2845, 30
      %s4596 = sld [smem:[#allocation10 + %s4595]]
      %s4597 = sadd.s32 %s2845, 31
      %s4598 = sld [smem:[#allocation10 + %s4597]]
      %s4599 = sadd.s32 %s2845, 32
      %s4600 = sld [smem:[#allocation10 + %s4599]]
      %v4601 = vstv %s4596
      %v4602 = vmul.f32 %v4601, %v4554
      %v4603 = vmul.f32 %v4601, %v4555
      %v4604 = vmul.f32 %v4601, %v4556
      %v4605 = vmul.f32 %v4601, %v4557
      %v4606 = vmul.f32 %v4601, %v4558
      %v4607 = vmul.f32 %v4601, %v4559
      %v4608 = vmul.f32 %v4601, %v4560
      %v4609 = vmul.f32 %v4601, %v4561
      %v4610 = vmul.f32 %v4601, %v4562
      %v4611 = vmul.f32 %v4601, %v4563
      %v4612 = vadd.f32 %v4483, %v4602
      %v4613 = vadd.f32 %v4484, %v4603
      %v4614 = vadd.f32 %v4485, %v4604
      %v4615 = vadd.f32 %v4486, %v4605
      %v4616 = vadd.f32 %v4487, %v4606
      %v4617 = vadd.f32 %v4488, %v4607
      %v4618 = vadd.f32 %v4489, %v4608
      %v4619 = vadd.f32 %v4490, %v4609
      %v4620 = vadd.f32 %v4491, %v4610
      %v4621 = vadd.f32 %v4492, %v4611
      %v4622 = vstv %s4598
      %v4623 = vmul.f32 %v4622, %v4565
      %v4624 = vmul.f32 %v4622, %v4566
      %v4625 = vmul.f32 %v4622, %v4567
      %v4626 = vmul.f32 %v4622, %v4568
      %v4627 = vmul.f32 %v4622, %v4569
      %v4628 = vmul.f32 %v4622, %v4570
      %v4629 = vmul.f32 %v4622, %v4571
      %v4630 = vmul.f32 %v4622, %v4572
      %v4631 = vmul.f32 %v4622, %v4573
      %v4632 = vmul.f32 %v4622, %v4574
      %v4633 = vadd.f32 %v4612, %v4623
      %v4634 = vadd.f32 %v4613, %v4624
      %v4635 = vadd.f32 %v4614, %v4625
      %v4636 = vadd.f32 %v4615, %v4626
      %v4637 = vadd.f32 %v4616, %v4627
      %v4638 = vadd.f32 %v4617, %v4628
      %v4639 = vadd.f32 %v4618, %v4629
      %v4640 = vadd.f32 %v4619, %v4630
      %v4641 = vadd.f32 %v4620, %v4631
      %v4642 = vadd.f32 %v4621, %v4632
      %v4643 = vstv %s4600
      %v4644 = vmul.f32 %v4643, %v4575
      %v4645 = vmul.f32 %v4643, %v4576
      %v4646 = vmul.f32 %v4643, %v4577
      %v4647 = vmul.f32 %v4643, %v4578
      %v4648 = vmul.f32 %v4643, %v4579
      %v4649 = vmul.f32 %v4643, %v4580
      %v4650 = vmul.f32 %v4643, %v4581
      %v4651 = vmul.f32 %v4643, %v4582
      %v4652 = vmul.f32 %v4643, %v4583
      %v4653 = vmul.f32 %v4643, %v4584
      %v4654 = vadd.f32 %v4633, %v4644
      %v4655 = vadd.f32 %v4634, %v4645
      %v4656 = vadd.f32 %v4635, %v4646
      %v4657 = vadd.f32 %v4636, %v4647
      %v4658 = vadd.f32 %v4637, %v4648
      %v4659 = vadd.f32 %v4638, %v4649
      %v4660 = vadd.f32 %v4639, %v4650
      %v4661 = vadd.f32 %v4640, %v4651
      %v4662 = vadd.f32 %v4641, %v4652
      %v4663 = vadd.f32 %v4642, %v4653
      %v4664 = vmul.f32 %v4601, %v4565
      %v4665 = vmul.f32 %v4601, %v4566
      %v4666 = vmul.f32 %v4601, %v4567
      %v4667 = vmul.f32 %v4601, %v4568
      %v4668 = vmul.f32 %v4601, %v4569
      %v4669 = vmul.f32 %v4601, %v4570
      %v4670 = vmul.f32 %v4601, %v4571
      %v4671 = vmul.f32 %v4601, %v4572
      %v4672 = vmul.f32 %v4601, %v4573
      %v4673 = vmul.f32 %v4601, %v4574
      %v4674 = vadd.f32 %v4543, %v4664
      %v4675 = vadd.f32 %v4544, %v4665
      %v4676 = vadd.f32 %v4545, %v4666
      %v4677 = vadd.f32 %v4546, %v4667
      %v4678 = vadd.f32 %v4547, %v4668
      %v4679 = vadd.f32 %v4548, %v4669
      %v4680 = vadd.f32 %v4549, %v4670
      %v4681 = vadd.f32 %v4550, %v4671
      %v4682 = vadd.f32 %v4551, %v4672
      %v4683 = vadd.f32 %v4552, %v4673
      %v4684 = vmul.f32 %v4622, %v4575
      %v4685 = vmul.f32 %v4622, %v4576
      %v4686 = vmul.f32 %v4622, %v4577
      %v4687 = vmul.f32 %v4622, %v4578
      %v4688 = vmul.f32 %v4622, %v4579
      %v4689 = vmul.f32 %v4622, %v4580
      %v4690 = vmul.f32 %v4622, %v4581
      %v4691 = vmul.f32 %v4622, %v4582
      %v4692 = vmul.f32 %v4622, %v4583
      %v4693 = vmul.f32 %v4622, %v4584
      %v4694 = vadd.f32 %v4674, %v4684
      %v4695 = vadd.f32 %v4675, %v4685
      %v4696 = vadd.f32 %v4676, %v4686
      %v4697 = vadd.f32 %v4677, %v4687
      %v4698 = vadd.f32 %v4678, %v4688
      %v4699 = vadd.f32 %v4679, %v4689
      %v4700 = vadd.f32 %v4680, %v4690
      %v4701 = vadd.f32 %v4681, %v4691
      %v4702 = vadd.f32 %v4682, %v4692
      %v4703 = vadd.f32 %v4683, %v4693
      %v4704 = vmul.f32 %v4643, %v4585
      %v4705 = vmul.f32 %v4643, %v4586
      %v4706 = vmul.f32 %v4643, %v4587
      %v4707 = vmul.f32 %v4643, %v4588
      %v4708 = vmul.f32 %v4643, %v4589
      %v4709 = vmul.f32 %v4643, %v4590
      %v4710 = vmul.f32 %v4643, %v4591
      %v4711 = vmul.f32 %v4643, %v4592
      %v4712 = vmul.f32 %v4643, %v4593
      %v4713 = vmul.f32 %v4643, %v4594
      %v4714 = vadd.f32 %v4694, %v4704
      %v4715 = vadd.f32 %v4695, %v4705
      %v4716 = vadd.f32 %v4696, %v4706
      %v4717 = vadd.f32 %v4697, %v4707
      %v4718 = vadd.f32 %v4698, %v4708
      %v4719 = vadd.f32 %v4699, %v4709
      %v4720 = vadd.f32 %v4700, %v4710
      %v4721 = vadd.f32 %v4701, %v4711
      %v4722 = vadd.f32 %v4702, %v4712
      %v4723 = vadd.f32 %v4703, %v4713
      %s4724 = scalar_lea.vmem [#allocation2], 328
      %v4725 = vld [vmem:[%s4724] sm:$0x1f]
      %v4726 = vld [vmem:[%s4724 + $0x8] sm:$0x1f]
      %v4727 = vld [vmem:[%s4724 + $0x10] sm:$0x1f]
      %v4728 = vld [vmem:[%s4724 + $0x18] sm:$0x1f]
      %v4729 = vld [vmem:[%s4724 + $0x20] sm:$0x1f]
      %v4730 = vld [vmem:[%s4724 + $0x28] sm:$0x1f]
      %v4731 = vld [vmem:[%s4724 + $0x30] sm:$0x1f]
      %v4732 = vld [vmem:[%s4724 + $0x38] sm:$0x1f]
      %v4733 = vld [vmem:[%s4724 + $0x40] sm:$0x1f]
      %v4734 = vld [vmem:[%s4724 + $0x48] sm:$0x1f]
      %s4735 = scalar_lea.vmem [#allocation3], 328
      %v4736 = vld [vmem:[%s4735] sm:$0x1f]
      %v4737 = vld [vmem:[%s4735 + $0x8] sm:$0x1f]
      %v4738 = vld [vmem:[%s4735 + $0x10] sm:$0x1f]
      %v4739 = vld [vmem:[%s4735 + $0x18] sm:$0x1f]
      %v4740 = vld [vmem:[%s4735 + $0x20] sm:$0x1f]
      %v4741 = vld [vmem:[%s4735 + $0x28] sm:$0x1f]
      %v4742 = vld [vmem:[%s4735 + $0x30] sm:$0x1f]
      %v4743 = vld [vmem:[%s4735 + $0x38] sm:$0x1f]
      %v4744 = vld [vmem:[%s4735 + $0x40] sm:$0x1f]
      %v4745 = vld [vmem:[%s4735 + $0x48] sm:$0x1f]
      %v4746 = vld [vmem:[%s4724 + $0x1] sm:$0x1f]
      %v4747 = vld [vmem:[%s4724 + $0x9] sm:$0x1f]
      %v4748 = vld [vmem:[%s4724 + $0x11] sm:$0x1f]
      %v4749 = vld [vmem:[%s4724 + $0x19] sm:$0x1f]
      %v4750 = vld [vmem:[%s4724 + $0x21] sm:$0x1f]
      %v4751 = vld [vmem:[%s4724 + $0x29] sm:$0x1f]
      %v4752 = vld [vmem:[%s4724 + $0x31] sm:$0x1f]
      %v4753 = vld [vmem:[%s4724 + $0x39] sm:$0x1f]
      %v4754 = vld [vmem:[%s4724 + $0x41] sm:$0x1f]
      %v4755 = vld [vmem:[%s4724 + $0x49] sm:$0x1f]
      %v4756 = vld [vmem:[%s4735 + $0x1] sm:$0x1f]
      %v4757 = vld [vmem:[%s4735 + $0x9] sm:$0x1f]
      %v4758 = vld [vmem:[%s4735 + $0x11] sm:$0x1f]
      %v4759 = vld [vmem:[%s4735 + $0x19] sm:$0x1f]
      %v4760 = vld [vmem:[%s4735 + $0x21] sm:$0x1f]
      %v4761 = vld [vmem:[%s4735 + $0x29] sm:$0x1f]
      %v4762 = vld [vmem:[%s4735 + $0x31] sm:$0x1f]
      %v4763 = vld [vmem:[%s4735 + $0x39] sm:$0x1f]
      %v4764 = vld [vmem:[%s4735 + $0x41] sm:$0x1f]
      %v4765 = vld [vmem:[%s4735 + $0x49] sm:$0x1f]
      %s4766 = sadd.s32 %s2845, 33
      %s4767 = sld [smem:[#allocation10 + %s4766]]
      %s4768 = sadd.s32 %s2845, 34
      %s4769 = sld [smem:[#allocation10 + %s4768]]
      %s4770 = sadd.s32 %s2845, 35
      %s4771 = sld [smem:[#allocation10 + %s4770]]
      %v4772 = vstv %s4767
      %v4773 = vmul.f32 %v4772, %v4725
      %v4774 = vmul.f32 %v4772, %v4726
      %v4775 = vmul.f32 %v4772, %v4727
      %v4776 = vmul.f32 %v4772, %v4728
      %v4777 = vmul.f32 %v4772, %v4729
      %v4778 = vmul.f32 %v4772, %v4730
      %v4779 = vmul.f32 %v4772, %v4731
      %v4780 = vmul.f32 %v4772, %v4732
      %v4781 = vmul.f32 %v4772, %v4733
      %v4782 = vmul.f32 %v4772, %v4734
      %v4783 = vadd.f32 %v4654, %v4773
      %v4784 = vadd.f32 %v4655, %v4774
      %v4785 = vadd.f32 %v4656, %v4775
      %v4786 = vadd.f32 %v4657, %v4776
      %v4787 = vadd.f32 %v4658, %v4777
      %v4788 = vadd.f32 %v4659, %v4778
      %v4789 = vadd.f32 %v4660, %v4779
      %v4790 = vadd.f32 %v4661, %v4780
      %v4791 = vadd.f32 %v4662, %v4781
      %v4792 = vadd.f32 %v4663, %v4782
      %v4793 = vstv %s4769
      %v4794 = vmul.f32 %v4793, %v4736
      %v4795 = vmul.f32 %v4793, %v4737
      %v4796 = vmul.f32 %v4793, %v4738
      %v4797 = vmul.f32 %v4793, %v4739
      %v4798 = vmul.f32 %v4793, %v4740
      %v4799 = vmul.f32 %v4793, %v4741
      %v4800 = vmul.f32 %v4793, %v4742
      %v4801 = vmul.f32 %v4793, %v4743
      %v4802 = vmul.f32 %v4793, %v4744
      %v4803 = vmul.f32 %v4793, %v4745
      %v4804 = vadd.f32 %v4783, %v4794
      %v4805 = vadd.f32 %v4784, %v4795
      %v4806 = vadd.f32 %v4785, %v4796
      %v4807 = vadd.f32 %v4786, %v4797
      %v4808 = vadd.f32 %v4787, %v4798
      %v4809 = vadd.f32 %v4788, %v4799
      %v4810 = vadd.f32 %v4789, %v4800
      %v4811 = vadd.f32 %v4790, %v4801
      %v4812 = vadd.f32 %v4791, %v4802
      %v4813 = vadd.f32 %v4792, %v4803
      %v4814 = vstv %s4771
      %v4815 = vmul.f32 %v4814, %v4746
      %v4816 = vmul.f32 %v4814, %v4747
      %v4817 = vmul.f32 %v4814, %v4748
      %v4818 = vmul.f32 %v4814, %v4749
      %v4819 = vmul.f32 %v4814, %v4750
      %v4820 = vmul.f32 %v4814, %v4751
      %v4821 = vmul.f32 %v4814, %v4752
      %v4822 = vmul.f32 %v4814, %v4753
      %v4823 = vmul.f32 %v4814, %v4754
      %v4824 = vmul.f32 %v4814, %v4755
      %v4825 = vadd.f32 %v4804, %v4815
      %v4826 = vadd.f32 %v4805, %v4816
      %v4827 = vadd.f32 %v4806, %v4817
      %v4828 = vadd.f32 %v4807, %v4818
      %v4829 = vadd.f32 %v4808, %v4819
      %v4830 = vadd.f32 %v4809, %v4820
      %v4831 = vadd.f32 %v4810, %v4821
      %v4832 = vadd.f32 %v4811, %v4822
      %v4833 = vadd.f32 %v4812, %v4823
      %v4834 = vadd.f32 %v4813, %v4824
      %v4835 = vmul.f32 %v4772, %v4736
      %v4836 = vmul.f32 %v4772, %v4737
      %v4837 = vmul.f32 %v4772, %v4738
      %v4838 = vmul.f32 %v4772, %v4739
      %v4839 = vmul.f32 %v4772, %v4740
      %v4840 = vmul.f32 %v4772, %v4741
      %v4841 = vmul.f32 %v4772, %v4742
      %v4842 = vmul.f32 %v4772, %v4743
      %v4843 = vmul.f32 %v4772, %v4744
      %v4844 = vmul.f32 %v4772, %v4745
      %v4845 = vadd.f32 %v4714, %v4835
      %v4846 = vadd.f32 %v4715, %v4836
      %v4847 = vadd.f32 %v4716, %v4837
      %v4848 = vadd.f32 %v4717, %v4838
      %v4849 = vadd.f32 %v4718, %v4839
      %v4850 = vadd.f32 %v4719, %v4840
      %v4851 = vadd.f32 %v4720, %v4841
      %v4852 = vadd.f32 %v4721, %v4842
      %v4853 = vadd.f32 %v4722, %v4843
      %v4854 = vadd.f32 %v4723, %v4844
      %v4855 = vmul.f32 %v4793, %v4746
      %v4856 = vmul.f32 %v4793, %v4747
      %v4857 = vmul.f32 %v4793, %v4748
      %v4858 = vmul.f32 %v4793, %v4749
      %v4859 = vmul.f32 %v4793, %v4750
      %v4860 = vmul.f32 %v4793, %v4751
      %v4861 = vmul.f32 %v4793, %v4752
      %v4862 = vmul.f32 %v4793, %v4753
      %v4863 = vmul.f32 %v4793, %v4754
      %v4864 = vmul.f32 %v4793, %v4755
      %v4865 = vadd.f32 %v4845, %v4855
      %v4866 = vadd.f32 %v4846, %v4856
      %v4867 = vadd.f32 %v4847, %v4857
      %v4868 = vadd.f32 %v4848, %v4858
      %v4869 = vadd.f32 %v4849, %v4859
      %v4870 = vadd.f32 %v4850, %v4860
      %v4871 = vadd.f32 %v4851, %v4861
      %v4872 = vadd.f32 %v4852, %v4862
      %v4873 = vadd.f32 %v4853, %v4863
      %v4874 = vadd.f32 %v4854, %v4864
      %v4875 = vmul.f32 %v4814, %v4756
      %v4876 = vmul.f32 %v4814, %v4757
      %v4877 = vmul.f32 %v4814, %v4758
      %v4878 = vmul.f32 %v4814, %v4759
      %v4879 = vmul.f32 %v4814, %v4760
      %v4880 = vmul.f32 %v4814, %v4761
      %v4881 = vmul.f32 %v4814, %v4762
      %v4882 = vmul.f32 %v4814, %v4763
      %v4883 = vmul.f32 %v4814, %v4764
      %v4884 = vmul.f32 %v4814, %v4765
      %v4885 = vadd.f32 %v4865, %v4875
      %v4886 = vadd.f32 %v4866, %v4876
      %v4887 = vadd.f32 %v4867, %v4877
      %v4888 = vadd.f32 %v4868, %v4878
      %v4889 = vadd.f32 %v4869, %v4879
      %v4890 = vadd.f32 %v4870, %v4880
      %v4891 = vadd.f32 %v4871, %v4881
      %v4892 = vadd.f32 %v4872, %v4882
      %v4893 = vadd.f32 %v4873, %v4883
      %v4894 = vadd.f32 %v4874, %v4884
      %s4895 = scalar_lea.vmem [#allocation2], 416
      %v4896 = vld [vmem:[%s4895] sm:$0x1f]
      %v4897 = vld [vmem:[%s4895 + $0x8] sm:$0x1f]
      %v4898 = vld [vmem:[%s4895 + $0x10] sm:$0x1f]
      %v4899 = vld [vmem:[%s4895 + $0x18] sm:$0x1f]
      %v4900 = vld [vmem:[%s4895 + $0x20] sm:$0x1f]
      %v4901 = vld [vmem:[%s4895 + $0x28] sm:$0x1f]
      %v4902 = vld [vmem:[%s4895 + $0x30] sm:$0x1f]
      %v4903 = vld [vmem:[%s4895 + $0x38] sm:$0x1f]
      %v4904 = vld [vmem:[%s4895 + $0x40] sm:$0x1f]
      %v4905 = vld [vmem:[%s4895 + $0x48] sm:$0x1f]
      %s4906 = scalar_lea.vmem [#allocation3], 416
      %v4907 = vld [vmem:[%s4906] sm:$0x1f]
      %v4908 = vld [vmem:[%s4906 + $0x8] sm:$0x1f]
      %v4909 = vld [vmem:[%s4906 + $0x10] sm:$0x1f]
      %v4910 = vld [vmem:[%s4906 + $0x18] sm:$0x1f]
      %v4911 = vld [vmem:[%s4906 + $0x20] sm:$0x1f]
      %v4912 = vld [vmem:[%s4906 + $0x28] sm:$0x1f]
      %v4913 = vld [vmem:[%s4906 + $0x30] sm:$0x1f]
      %v4914 = vld [vmem:[%s4906 + $0x38] sm:$0x1f]
      %v4915 = vld [vmem:[%s4906 + $0x40] sm:$0x1f]
      %v4916 = vld [vmem:[%s4906 + $0x48] sm:$0x1f]
      %v4917 = vld [vmem:[%s4895 + $0x1] sm:$0x1f]
      %v4918 = vld [vmem:[%s4895 + $0x9] sm:$0x1f]
      %v4919 = vld [vmem:[%s4895 + $0x11] sm:$0x1f]
      %v4920 = vld [vmem:[%s4895 + $0x19] sm:$0x1f]
      %v4921 = vld [vmem:[%s4895 + $0x21] sm:$0x1f]
      %v4922 = vld [vmem:[%s4895 + $0x29] sm:$0x1f]
      %v4923 = vld [vmem:[%s4895 + $0x31] sm:$0x1f]
      %v4924 = vld [vmem:[%s4895 + $0x39] sm:$0x1f]
      %v4925 = vld [vmem:[%s4895 + $0x41] sm:$0x1f]
      %v4926 = vld [vmem:[%s4895 + $0x49] sm:$0x1f]
      %v4927 = vld [vmem:[%s4906 + $0x1] sm:$0x1f]
      %v4928 = vld [vmem:[%s4906 + $0x9] sm:$0x1f]
      %v4929 = vld [vmem:[%s4906 + $0x11] sm:$0x1f]
      %v4930 = vld [vmem:[%s4906 + $0x19] sm:$0x1f]
      %v4931 = vld [vmem:[%s4906 + $0x21] sm:$0x1f]
      %v4932 = vld [vmem:[%s4906 + $0x29] sm:$0x1f]
      %v4933 = vld [vmem:[%s4906 + $0x31] sm:$0x1f]
      %v4934 = vld [vmem:[%s4906 + $0x39] sm:$0x1f]
      %v4935 = vld [vmem:[%s4906 + $0x41] sm:$0x1f]
      %v4936 = vld [vmem:[%s4906 + $0x49] sm:$0x1f]
      %s4937 = sadd.s32 %s2845, 36
      %s4938 = sld [smem:[#allocation10 + %s4937]]
      %s4939 = sadd.s32 %s2845, 37
      %s4940 = sld [smem:[#allocation10 + %s4939]]
      %s4941 = sadd.s32 %s2845, 38
      %s4942 = sld [smem:[#allocation10 + %s4941]]
      %v4943 = vstv %s4938
      %v4944 = vmul.f32 %v4943, %v4896
      %v4945 = vmul.f32 %v4943, %v4897
      %v4946 = vmul.f32 %v4943, %v4898
      %v4947 = vmul.f32 %v4943, %v4899
      %v4948 = vmul.f32 %v4943, %v4900
      %v4949 = vmul.f32 %v4943, %v4901
      %v4950 = vmul.f32 %v4943, %v4902
      %v4951 = vmul.f32 %v4943, %v4903
      %v4952 = vmul.f32 %v4943, %v4904
      %v4953 = vmul.f32 %v4943, %v4905
      %v4954 = vadd.f32 %v4825, %v4944
      %v4955 = vadd.f32 %v4826, %v4945
      %v4956 = vadd.f32 %v4827, %v4946
      %v4957 = vadd.f32 %v4828, %v4947
      %v4958 = vadd.f32 %v4829, %v4948
      %v4959 = vadd.f32 %v4830, %v4949
      %v4960 = vadd.f32 %v4831, %v4950
      %v4961 = vadd.f32 %v4832, %v4951
      %v4962 = vadd.f32 %v4833, %v4952
      %v4963 = vadd.f32 %v4834, %v4953
      %v4964 = vstv %s4940
      %v4965 = vmul.f32 %v4964, %v4907
      %v4966 = vmul.f32 %v4964, %v4908
      %v4967 = vmul.f32 %v4964, %v4909
      %v4968 = vmul.f32 %v4964, %v4910
      %v4969 = vmul.f32 %v4964, %v4911
      %v4970 = vmul.f32 %v4964, %v4912
      %v4971 = vmul.f32 %v4964, %v4913
      %v4972 = vmul.f32 %v4964, %v4914
      %v4973 = vmul.f32 %v4964, %v4915
      %v4974 = vmul.f32 %v4964, %v4916
      %v4975 = vadd.f32 %v4954, %v4965
      %v4976 = vadd.f32 %v4955, %v4966
      %v4977 = vadd.f32 %v4956, %v4967
      %v4978 = vadd.f32 %v4957, %v4968
      %v4979 = vadd.f32 %v4958, %v4969
      %v4980 = vadd.f32 %v4959, %v4970
      %v4981 = vadd.f32 %v4960, %v4971
      %v4982 = vadd.f32 %v4961, %v4972
      %v4983 = vadd.f32 %v4962, %v4973
      %v4984 = vadd.f32 %v4963, %v4974
      %v4985 = vstv %s4942
      %v4986 = vmul.f32 %v4985, %v4917
      %v4987 = vmul.f32 %v4985, %v4918
      %v4988 = vmul.f32 %v4985, %v4919
      %v4989 = vmul.f32 %v4985, %v4920
      %v4990 = vmul.f32 %v4985, %v4921
      %v4991 = vmul.f32 %v4985, %v4922
      %v4992 = vmul.f32 %v4985, %v4923
      %v4993 = vmul.f32 %v4985, %v4924
      %v4994 = vmul.f32 %v4985, %v4925
      %v4995 = vmul.f32 %v4985, %v4926
      %v4996 = vadd.f32 %v4975, %v4986
      %v4997 = vadd.f32 %v4976, %v4987
      %v4998 = vadd.f32 %v4977, %v4988
      %v4999 = vadd.f32 %v4978, %v4989
      %v5000 = vadd.f32 %v4979, %v4990
      %v5001 = vadd.f32 %v4980, %v4991
      %v5002 = vadd.f32 %v4981, %v4992
      %v5003 = vadd.f32 %v4982, %v4993
      %v5004 = vadd.f32 %v4983, %v4994
      %v5005 = vadd.f32 %v4984, %v4995
      %v5006 = vmul.f32 %v4943, %v4907
      %v5007 = vmul.f32 %v4943, %v4908
      %v5008 = vmul.f32 %v4943, %v4909
      %v5009 = vmul.f32 %v4943, %v4910
      %v5010 = vmul.f32 %v4943, %v4911
      %v5011 = vmul.f32 %v4943, %v4912
      %v5012 = vmul.f32 %v4943, %v4913
      %v5013 = vmul.f32 %v4943, %v4914
      %v5014 = vmul.f32 %v4943, %v4915
      %v5015 = vmul.f32 %v4943, %v4916
      %v5016 = vadd.f32 %v4885, %v5006
      %v5017 = vadd.f32 %v4886, %v5007
      %v5018 = vadd.f32 %v4887, %v5008
      %v5019 = vadd.f32 %v4888, %v5009
      %v5020 = vadd.f32 %v4889, %v5010
      %v5021 = vadd.f32 %v4890, %v5011
      %v5022 = vadd.f32 %v4891, %v5012
      %v5023 = vadd.f32 %v4892, %v5013
      %v5024 = vadd.f32 %v4893, %v5014
      %v5025 = vadd.f32 %v4894, %v5015
      %v5026 = vmul.f32 %v4964, %v4917
      %v5027 = vmul.f32 %v4964, %v4918
      %v5028 = vmul.f32 %v4964, %v4919
      %v5029 = vmul.f32 %v4964, %v4920
      %v5030 = vmul.f32 %v4964, %v4921
      %v5031 = vmul.f32 %v4964, %v4922
      %v5032 = vmul.f32 %v4964, %v4923
      %v5033 = vmul.f32 %v4964, %v4924
      %v5034 = vmul.f32 %v4964, %v4925
      %v5035 = vmul.f32 %v4964, %v4926
      %v5036 = vadd.f32 %v5016, %v5026
      %v5037 = vadd.f32 %v5017, %v5027
      %v5038 = vadd.f32 %v5018, %v5028
      %v5039 = vadd.f32 %v5019, %v5029
      %v5040 = vadd.f32 %v5020, %v5030
      %v5041 = vadd.f32 %v5021, %v5031
      %v5042 = vadd.f32 %v5022, %v5032
      %v5043 = vadd.f32 %v5023, %v5033
      %v5044 = vadd.f32 %v5024, %v5034
      %v5045 = vadd.f32 %v5025, %v5035
      %v5046 = vmul.f32 %v4985, %v4927
      %v5047 = vmul.f32 %v4985, %v4928
      %v5048 = vmul.f32 %v4985, %v4929
      %v5049 = vmul.f32 %v4985, %v4930
      %v5050 = vmul.f32 %v4985, %v4931
      %v5051 = vmul.f32 %v4985, %v4932
      %v5052 = vmul.f32 %v4985, %v4933
      %v5053 = vmul.f32 %v4985, %v4934
      %v5054 = vmul.f32 %v4985, %v4935
      %v5055 = vmul.f32 %v4985, %v4936
      %v5056 = vadd.f32 %v5036, %v5046
      %v5057 = vadd.f32 %v5037, %v5047
      %v5058 = vadd.f32 %v5038, %v5048
      %v5059 = vadd.f32 %v5039, %v5049
      %v5060 = vadd.f32 %v5040, %v5050
      %v5061 = vadd.f32 %v5041, %v5051
      %v5062 = vadd.f32 %v5042, %v5052
      %v5063 = vadd.f32 %v5043, %v5053
      %v5064 = vadd.f32 %v5044, %v5054
      %v5065 = vadd.f32 %v5045, %v5055
      %s5066 = scalar_lea.vmem [#allocation2], 424
      %v5067 = vld [vmem:[%s5066] sm:$0x1f]
      %v5068 = vld [vmem:[%s5066 + $0x8] sm:$0x1f]
      %v5069 = vld [vmem:[%s5066 + $0x10] sm:$0x1f]
      %v5070 = vld [vmem:[%s5066 + $0x18] sm:$0x1f]
      %v5071 = vld [vmem:[%s5066 + $0x20] sm:$0x1f]
      %v5072 = vld [vmem:[%s5066 + $0x28] sm:$0x1f]
      %v5073 = vld [vmem:[%s5066 + $0x30] sm:$0x1f]
      %v5074 = vld [vmem:[%s5066 + $0x38] sm:$0x1f]
      %v5075 = vld [vmem:[%s5066 + $0x40] sm:$0x1f]
      %v5076 = vld [vmem:[%s5066 + $0x48] sm:$0x1f]
      %s5077 = scalar_lea.vmem [#allocation3], 424
      %v5078 = vld [vmem:[%s5077] sm:$0x1f]
      %v5079 = vld [vmem:[%s5077 + $0x8] sm:$0x1f]
      %v5080 = vld [vmem:[%s5077 + $0x10] sm:$0x1f]
      %v5081 = vld [vmem:[%s5077 + $0x18] sm:$0x1f]
      %v5082 = vld [vmem:[%s5077 + $0x20] sm:$0x1f]
      %v5083 = vld [vmem:[%s5077 + $0x28] sm:$0x1f]
      %v5084 = vld [vmem:[%s5077 + $0x30] sm:$0x1f]
      %v5085 = vld [vmem:[%s5077 + $0x38] sm:$0x1f]
      %v5086 = vld [vmem:[%s5077 + $0x40] sm:$0x1f]
      %v5087 = vld [vmem:[%s5077 + $0x48] sm:$0x1f]
      %v5088 = vld [vmem:[%s5066 + $0x1] sm:$0x1f]
      %v5089 = vld [vmem:[%s5066 + $0x9] sm:$0x1f]
      %v5090 = vld [vmem:[%s5066 + $0x11] sm:$0x1f]
      %v5091 = vld [vmem:[%s5066 + $0x19] sm:$0x1f]
      %v5092 = vld [vmem:[%s5066 + $0x21] sm:$0x1f]
      %v5093 = vld [vmem:[%s5066 + $0x29] sm:$0x1f]
      %v5094 = vld [vmem:[%s5066 + $0x31] sm:$0x1f]
      %v5095 = vld [vmem:[%s5066 + $0x39] sm:$0x1f]
      %v5096 = vld [vmem:[%s5066 + $0x41] sm:$0x1f]
      %v5097 = vld [vmem:[%s5066 + $0x49] sm:$0x1f]
      %v5098 = vld [vmem:[%s5077 + $0x1] sm:$0x1f]
      %v5099 = vld [vmem:[%s5077 + $0x9] sm:$0x1f]
      %v5100 = vld [vmem:[%s5077 + $0x11] sm:$0x1f]
      %v5101 = vld [vmem:[%s5077 + $0x19] sm:$0x1f]
      %v5102 = vld [vmem:[%s5077 + $0x21] sm:$0x1f]
      %v5103 = vld [vmem:[%s5077 + $0x29] sm:$0x1f]
      %v5104 = vld [vmem:[%s5077 + $0x31] sm:$0x1f]
      %v5105 = vld [vmem:[%s5077 + $0x39] sm:$0x1f]
      %v5106 = vld [vmem:[%s5077 + $0x41] sm:$0x1f]
      %v5107 = vld [vmem:[%s5077 + $0x49] sm:$0x1f]
      %s5108 = sadd.s32 %s2845, 39
      %s5109 = sld [smem:[#allocation10 + %s5108]]
      %s5110 = sadd.s32 %s2845, 40
      %s5111 = sld [smem:[#allocation10 + %s5110]]
      %s5112 = sadd.s32 %s2845, 41
      %s5113 = sld [smem:[#allocation10 + %s5112]]
      %v5114 = vstv %s5109
      %v5115 = vmul.f32 %v5114, %v5067
      %v5116 = vmul.f32 %v5114, %v5068
      %v5117 = vmul.f32 %v5114, %v5069
      %v5118 = vmul.f32 %v5114, %v5070
      %v5119 = vmul.f32 %v5114, %v5071
      %v5120 = vmul.f32 %v5114, %v5072
      %v5121 = vmul.f32 %v5114, %v5073
      %v5122 = vmul.f32 %v5114, %v5074
      %v5123 = vmul.f32 %v5114, %v5075
      %v5124 = vmul.f32 %v5114, %v5076
      %v5125 = vadd.f32 %v4996, %v5115
      %v5126 = vadd.f32 %v4997, %v5116
      %v5127 = vadd.f32 %v4998, %v5117
      %v5128 = vadd.f32 %v4999, %v5118
      %v5129 = vadd.f32 %v5000, %v5119
      %v5130 = vadd.f32 %v5001, %v5120
      %v5131 = vadd.f32 %v5002, %v5121
      %v5132 = vadd.f32 %v5003, %v5122
      %v5133 = vadd.f32 %v5004, %v5123
      %v5134 = vadd.f32 %v5005, %v5124
      %v5135 = vstv %s5111
      %v5136 = vmul.f32 %v5135, %v5078
      %v5137 = vmul.f32 %v5135, %v5079
      %v5138 = vmul.f32 %v5135, %v5080
      %v5139 = vmul.f32 %v5135, %v5081
      %v5140 = vmul.f32 %v5135, %v5082
      %v5141 = vmul.f32 %v5135, %v5083
      %v5142 = vmul.f32 %v5135, %v5084
      %v5143 = vmul.f32 %v5135, %v5085
      %v5144 = vmul.f32 %v5135, %v5086
      %v5145 = vmul.f32 %v5135, %v5087
      %v5146 = vadd.f32 %v5125, %v5136
      %v5147 = vadd.f32 %v5126, %v5137
      %v5148 = vadd.f32 %v5127, %v5138
      %v5149 = vadd.f32 %v5128, %v5139
      %v5150 = vadd.f32 %v5129, %v5140
      %v5151 = vadd.f32 %v5130, %v5141
      %v5152 = vadd.f32 %v5131, %v5142
      %v5153 = vadd.f32 %v5132, %v5143
      %v5154 = vadd.f32 %v5133, %v5144
      %v5155 = vadd.f32 %v5134, %v5145
      %v5156 = vstv %s5113
      %v5157 = vmul.f32 %v5156, %v5088
      %v5158 = vmul.f32 %v5156, %v5089
      %v5159 = vmul.f32 %v5156, %v5090
      %v5160 = vmul.f32 %v5156, %v5091
      %v5161 = vmul.f32 %v5156, %v5092
      %v5162 = vmul.f32 %v5156, %v5093
      %v5163 = vmul.f32 %v5156, %v5094
      %v5164 = vmul.f32 %v5156, %v5095
      %v5165 = vmul.f32 %v5156, %v5096
      %v5166 = vmul.f32 %v5156, %v5097
      %v5167 = vadd.f32 %v5146, %v5157
      %v5168 = vadd.f32 %v5147, %v5158
      %v5169 = vadd.f32 %v5148, %v5159
      %v5170 = vadd.f32 %v5149, %v5160
      %v5171 = vadd.f32 %v5150, %v5161
      %v5172 = vadd.f32 %v5151, %v5162
      %v5173 = vadd.f32 %v5152, %v5163
      %v5174 = vadd.f32 %v5153, %v5164
      %v5175 = vadd.f32 %v5154, %v5165
      %v5176 = vadd.f32 %v5155, %v5166
      %v5177 = vmul.f32 %v5114, %v5078
      %v5178 = vmul.f32 %v5114, %v5079
      %v5179 = vmul.f32 %v5114, %v5080
      %v5180 = vmul.f32 %v5114, %v5081
      %v5181 = vmul.f32 %v5114, %v5082
      %v5182 = vmul.f32 %v5114, %v5083
      %v5183 = vmul.f32 %v5114, %v5084
      %v5184 = vmul.f32 %v5114, %v5085
      %v5185 = vmul.f32 %v5114, %v5086
      %v5186 = vmul.f32 %v5114, %v5087
      %v5187 = vadd.f32 %v5056, %v5177
      %v5188 = vadd.f32 %v5057, %v5178
      %v5189 = vadd.f32 %v5058, %v5179
      %v5190 = vadd.f32 %v5059, %v5180
      %v5191 = vadd.f32 %v5060, %v5181
      %v5192 = vadd.f32 %v5061, %v5182
      %v5193 = vadd.f32 %v5062, %v5183
      %v5194 = vadd.f32 %v5063, %v5184
      %v5195 = vadd.f32 %v5064, %v5185
      %v5196 = vadd.f32 %v5065, %v5186
      %v5197 = vmul.f32 %v5135, %v5088
      %v5198 = vmul.f32 %v5135, %v5089
      %v5199 = vmul.f32 %v5135, %v5090
      %v5200 = vmul.f32 %v5135, %v5091
      %v5201 = vmul.f32 %v5135, %v5092
      %v5202 = vmul.f32 %v5135, %v5093
      %v5203 = vmul.f32 %v5135, %v5094
      %v5204 = vmul.f32 %v5135, %v5095
      %v5205 = vmul.f32 %v5135, %v5096
      %v5206 = vmul.f32 %v5135, %v5097
      %v5207 = vadd.f32 %v5187, %v5197
      %v5208 = vadd.f32 %v5188, %v5198
      %v5209 = vadd.f32 %v5189, %v5199
      %v5210 = vadd.f32 %v5190, %v5200
      %v5211 = vadd.f32 %v5191, %v5201
      %v5212 = vadd.f32 %v5192, %v5202
      %v5213 = vadd.f32 %v5193, %v5203
      %v5214 = vadd.f32 %v5194, %v5204
      %v5215 = vadd.f32 %v5195, %v5205
      %v5216 = vadd.f32 %v5196, %v5206
      %v5217 = vmul.f32 %v5156, %v5098
      %v5218 = vmul.f32 %v5156, %v5099
      %v5219 = vmul.f32 %v5156, %v5100
      %v5220 = vmul.f32 %v5156, %v5101
      %v5221 = vmul.f32 %v5156, %v5102
      %v5222 = vmul.f32 %v5156, %v5103
      %v5223 = vmul.f32 %v5156, %v5104
      %v5224 = vmul.f32 %v5156, %v5105
      %v5225 = vmul.f32 %v5156, %v5106
      %v5226 = vmul.f32 %v5156, %v5107
      %v5227 = vadd.f32 %v5207, %v5217
      %v5228 = vadd.f32 %v5208, %v5218
      %v5229 = vadd.f32 %v5209, %v5219
      %v5230 = vadd.f32 %v5210, %v5220
      %v5231 = vadd.f32 %v5211, %v5221
      %v5232 = vadd.f32 %v5212, %v5222
      %v5233 = vadd.f32 %v5213, %v5223
      %v5234 = vadd.f32 %v5214, %v5224
      %v5235 = vadd.f32 %v5215, %v5225
      %v5236 = vadd.f32 %v5216, %v5226
      %s5237 = scalar_lea.vmem [#allocation2], 432
      %v5238 = vld [vmem:[%s5237] sm:$0x1f]
      %v5239 = vld [vmem:[%s5237 + $0x8] sm:$0x1f]
      %v5240 = vld [vmem:[%s5237 + $0x10] sm:$0x1f]
      %v5241 = vld [vmem:[%s5237 + $0x18] sm:$0x1f]
      %v5242 = vld [vmem:[%s5237 + $0x20] sm:$0x1f]
      %v5243 = vld [vmem:[%s5237 + $0x28] sm:$0x1f]
      %v5244 = vld [vmem:[%s5237 + $0x30] sm:$0x1f]
      %v5245 = vld [vmem:[%s5237 + $0x38] sm:$0x1f]
      %v5246 = vld [vmem:[%s5237 + $0x40] sm:$0x1f]
      %v5247 = vld [vmem:[%s5237 + $0x48] sm:$0x1f]
      %s5248 = scalar_lea.vmem [#allocation3], 432
      %v5249 = vld [vmem:[%s5248] sm:$0x1f]
      %v5250 = vld [vmem:[%s5248 + $0x8] sm:$0x1f]
      %v5251 = vld [vmem:[%s5248 + $0x10] sm:$0x1f]
      %v5252 = vld [vmem:[%s5248 + $0x18] sm:$0x1f]
      %v5253 = vld [vmem:[%s5248 + $0x20] sm:$0x1f]
      %v5254 = vld [vmem:[%s5248 + $0x28] sm:$0x1f]
      %v5255 = vld [vmem:[%s5248 + $0x30] sm:$0x1f]
      %v5256 = vld [vmem:[%s5248 + $0x38] sm:$0x1f]
      %v5257 = vld [vmem:[%s5248 + $0x40] sm:$0x1f]
      %v5258 = vld [vmem:[%s5248 + $0x48] sm:$0x1f]
      %v5259 = vld [vmem:[%s5237 + $0x1] sm:$0x1f]
      %v5260 = vld [vmem:[%s5237 + $0x9] sm:$0x1f]
      %v5261 = vld [vmem:[%s5237 + $0x11] sm:$0x1f]
      %v5262 = vld [vmem:[%s5237 + $0x19] sm:$0x1f]
      %v5263 = vld [vmem:[%s5237 + $0x21] sm:$0x1f]
      %v5264 = vld [vmem:[%s5237 + $0x29] sm:$0x1f]
      %v5265 = vld [vmem:[%s5237 + $0x31] sm:$0x1f]
      %v5266 = vld [vmem:[%s5237 + $0x39] sm:$0x1f]
      %v5267 = vld [vmem:[%s5237 + $0x41] sm:$0x1f]
      %v5268 = vld [vmem:[%s5237 + $0x49] sm:$0x1f]
      %v5269 = vld [vmem:[%s5248 + $0x1] sm:$0x1f]
      %v5270 = vld [vmem:[%s5248 + $0x9] sm:$0x1f]
      %v5271 = vld [vmem:[%s5248 + $0x11] sm:$0x1f]
      %v5272 = vld [vmem:[%s5248 + $0x19] sm:$0x1f]
      %v5273 = vld [vmem:[%s5248 + $0x21] sm:$0x1f]
      %v5274 = vld [vmem:[%s5248 + $0x29] sm:$0x1f]
      %v5275 = vld [vmem:[%s5248 + $0x31] sm:$0x1f]
      %v5276 = vld [vmem:[%s5248 + $0x39] sm:$0x1f]
      %v5277 = vld [vmem:[%s5248 + $0x41] sm:$0x1f]
      %v5278 = vld [vmem:[%s5248 + $0x49] sm:$0x1f]
      %s5279 = sadd.s32 %s2845, 42
      %s5280 = sld [smem:[#allocation10 + %s5279]]
      %s5281 = sadd.s32 %s2845, 43
      %s5282 = sld [smem:[#allocation10 + %s5281]]
      %s5283 = sadd.s32 %s2845, 44
      %s5284 = sld [smem:[#allocation10 + %s5283]]
      %v5285 = vstv %s5280
      %v5286 = vmul.f32 %v5285, %v5238
      %v5287 = vmul.f32 %v5285, %v5239
      %v5288 = vmul.f32 %v5285, %v5240
      %v5289 = vmul.f32 %v5285, %v5241
      %v5290 = vmul.f32 %v5285, %v5242
      %v5291 = vmul.f32 %v5285, %v5243
      %v5292 = vmul.f32 %v5285, %v5244
      %v5293 = vmul.f32 %v5285, %v5245
      %v5294 = vmul.f32 %v5285, %v5246
      %v5295 = vmul.f32 %v5285, %v5247
      %v5296 = vadd.f32 %v5167, %v5286
      %v5297 = vadd.f32 %v5168, %v5287
      %v5298 = vadd.f32 %v5169, %v5288
      %v5299 = vadd.f32 %v5170, %v5289
      %v5300 = vadd.f32 %v5171, %v5290
      %v5301 = vadd.f32 %v5172, %v5291
      %v5302 = vadd.f32 %v5173, %v5292
      %v5303 = vadd.f32 %v5174, %v5293
      %v5304 = vadd.f32 %v5175, %v5294
      %v5305 = vadd.f32 %v5176, %v5295
      %v5306 = vstv %s5282
      %v5307 = vmul.f32 %v5306, %v5249
      %v5308 = vmul.f32 %v5306, %v5250
      %v5309 = vmul.f32 %v5306, %v5251
      %v5310 = vmul.f32 %v5306, %v5252
      %v5311 = vmul.f32 %v5306, %v5253
      %v5312 = vmul.f32 %v5306, %v5254
      %v5313 = vmul.f32 %v5306, %v5255
      %v5314 = vmul.f32 %v5306, %v5256
      %v5315 = vmul.f32 %v5306, %v5257
      %v5316 = vmul.f32 %v5306, %v5258
      %v5317 = vadd.f32 %v5296, %v5307
      %v5318 = vadd.f32 %v5297, %v5308
      %v5319 = vadd.f32 %v5298, %v5309
      %v5320 = vadd.f32 %v5299, %v5310
      %v5321 = vadd.f32 %v5300, %v5311
      %v5322 = vadd.f32 %v5301, %v5312
      %v5323 = vadd.f32 %v5302, %v5313
      %v5324 = vadd.f32 %v5303, %v5314
      %v5325 = vadd.f32 %v5304, %v5315
      %v5326 = vadd.f32 %v5305, %v5316
      %v5327 = vstv %s5284
      %v5328 = vmul.f32 %v5327, %v5259
      %v5329 = vmul.f32 %v5327, %v5260
      %v5330 = vmul.f32 %v5327, %v5261
      %v5331 = vmul.f32 %v5327, %v5262
      %v5332 = vmul.f32 %v5327, %v5263
      %v5333 = vmul.f32 %v5327, %v5264
      %v5334 = vmul.f32 %v5327, %v5265
      %v5335 = vmul.f32 %v5327, %v5266
      %v5336 = vmul.f32 %v5327, %v5267
      %v5337 = vmul.f32 %v5327, %v5268
      %v5338 = vadd.f32 %v5317, %v5328
      %v5339 = vadd.f32 %v5318, %v5329
      %v5340 = vadd.f32 %v5319, %v5330
      %v5341 = vadd.f32 %v5320, %v5331
      %v5342 = vadd.f32 %v5321, %v5332
      %v5343 = vadd.f32 %v5322, %v5333
      %v5344 = vadd.f32 %v5323, %v5334
      %v5345 = vadd.f32 %v5324, %v5335
      %v5346 = vadd.f32 %v5325, %v5336
      %v5347 = vadd.f32 %v5326, %v5337
      %v5348 = vmul.f32 %v5285, %v5249
      %v5349 = vmul.f32 %v5285, %v5250
      %v5350 = vmul.f32 %v5285, %v5251
      %v5351 = vmul.f32 %v5285, %v5252
      %v5352 = vmul.f32 %v5285, %v5253
      %v5353 = vmul.f32 %v5285, %v5254
      %v5354 = vmul.f32 %v5285, %v5255
      %v5355 = vmul.f32 %v5285, %v5256
      %v5356 = vmul.f32 %v5285, %v5257
      %v5357 = vmul.f32 %v5285, %v5258
      %v5358 = vadd.f32 %v5227, %v5348
      %v5359 = vadd.f32 %v5228, %v5349
      %v5360 = vadd.f32 %v5229, %v5350
      %v5361 = vadd.f32 %v5230, %v5351
      %v5362 = vadd.f32 %v5231, %v5352
      %v5363 = vadd.f32 %v5232, %v5353
      %v5364 = vadd.f32 %v5233, %v5354
      %v5365 = vadd.f32 %v5234, %v5355
      %v5366 = vadd.f32 %v5235, %v5356
      %v5367 = vadd.f32 %v5236, %v5357
      %v5368 = vmul.f32 %v5306, %v5259
      %v5369 = vmul.f32 %v5306, %v5260
      %v5370 = vmul.f32 %v5306, %v5261
      %v5371 = vmul.f32 %v5306, %v5262
      %v5372 = vmul.f32 %v5306, %v5263
      %v5373 = vmul.f32 %v5306, %v5264
      %v5374 = vmul.f32 %v5306, %v5265
      %v5375 = vmul.f32 %v5306, %v5266
      %v5376 = vmul.f32 %v5306, %v5267
      %v5377 = vmul.f32 %v5306, %v5268
      %v5378 = vadd.f32 %v5358, %v5368
      %v5379 = vadd.f32 %v5359, %v5369
      %v5380 = vadd.f32 %v5360, %v5370
      %v5381 = vadd.f32 %v5361, %v5371
      %v5382 = vadd.f32 %v5362, %v5372
      %v5383 = vadd.f32 %v5363, %v5373
      %v5384 = vadd.f32 %v5364, %v5374
      %v5385 = vadd.f32 %v5365, %v5375
      %v5386 = vadd.f32 %v5366, %v5376
      %v5387 = vadd.f32 %v5367, %v5377
      %v5388 = vmul.f32 %v5327, %v5269
      %v5389 = vmul.f32 %v5327, %v5270
      %v5390 = vmul.f32 %v5327, %v5271
      %v5391 = vmul.f32 %v5327, %v5272
      %v5392 = vmul.f32 %v5327, %v5273
      %v5393 = vmul.f32 %v5327, %v5274
      %v5394 = vmul.f32 %v5327, %v5275
      %v5395 = vmul.f32 %v5327, %v5276
      %v5396 = vmul.f32 %v5327, %v5277
      %v5397 = vmul.f32 %v5327, %v5278
      %v5398 = vadd.f32 %v5378, %v5388
      %v5399 = vadd.f32 %v5379, %v5389
      %v5400 = vadd.f32 %v5380, %v5390
      %v5401 = vadd.f32 %v5381, %v5391
      %v5402 = vadd.f32 %v5382, %v5392
      %v5403 = vadd.f32 %v5383, %v5393
      %v5404 = vadd.f32 %v5384, %v5394
      %v5405 = vadd.f32 %v5385, %v5395
      %v5406 = vadd.f32 %v5386, %v5396
      %v5407 = vadd.f32 %v5387, %v5397
      %s5408 = scalar_lea.vmem [#allocation2], 520
      %v5409 = vld [vmem:[%s5408] sm:$0x1f]
      %v5410 = vld [vmem:[%s5408 + $0x8] sm:$0x1f]
      %v5411 = vld [vmem:[%s5408 + $0x10] sm:$0x1f]
      %v5412 = vld [vmem:[%s5408 + $0x18] sm:$0x1f]
      %v5413 = vld [vmem:[%s5408 + $0x20] sm:$0x1f]
      %v5414 = vld [vmem:[%s5408 + $0x28] sm:$0x1f]
      %v5415 = vld [vmem:[%s5408 + $0x30] sm:$0x1f]
      %v5416 = vld [vmem:[%s5408 + $0x38] sm:$0x1f]
      %v5417 = vld [vmem:[%s5408 + $0x40] sm:$0x1f]
      %v5418 = vld [vmem:[%s5408 + $0x48] sm:$0x1f]
      %s5419 = scalar_lea.vmem [#allocation3], 520
      %v5420 = vld [vmem:[%s5419] sm:$0x1f]
      %v5421 = vld [vmem:[%s5419 + $0x8] sm:$0x1f]
      %v5422 = vld [vmem:[%s5419 + $0x10] sm:$0x1f]
      %v5423 = vld [vmem:[%s5419 + $0x18] sm:$0x1f]
      %v5424 = vld [vmem:[%s5419 + $0x20] sm:$0x1f]
      %v5425 = vld [vmem:[%s5419 + $0x28] sm:$0x1f]
      %v5426 = vld [vmem:[%s5419 + $0x30] sm:$0x1f]
      %v5427 = vld [vmem:[%s5419 + $0x38] sm:$0x1f]
      %v5428 = vld [vmem:[%s5419 + $0x40] sm:$0x1f]
      %v5429 = vld [vmem:[%s5419 + $0x48] sm:$0x1f]
      %v5430 = vld [vmem:[%s5408 + $0x1] sm:$0x1f]
      %v5431 = vld [vmem:[%s5408 + $0x9] sm:$0x1f]
      %v5432 = vld [vmem:[%s5408 + $0x11] sm:$0x1f]
      %v5433 = vld [vmem:[%s5408 + $0x19] sm:$0x1f]
      %v5434 = vld [vmem:[%s5408 + $0x21] sm:$0x1f]
      %v5435 = vld [vmem:[%s5408 + $0x29] sm:$0x1f]
      %v5436 = vld [vmem:[%s5408 + $0x31] sm:$0x1f]
      %v5437 = vld [vmem:[%s5408 + $0x39] sm:$0x1f]
      %v5438 = vld [vmem:[%s5408 + $0x41] sm:$0x1f]
      %v5439 = vld [vmem:[%s5408 + $0x49] sm:$0x1f]
      %v5440 = vld [vmem:[%s5419 + $0x1] sm:$0x1f]
      %v5441 = vld [vmem:[%s5419 + $0x9] sm:$0x1f]
      %v5442 = vld [vmem:[%s5419 + $0x11] sm:$0x1f]
      %v5443 = vld [vmem:[%s5419 + $0x19] sm:$0x1f]
      %v5444 = vld [vmem:[%s5419 + $0x21] sm:$0x1f]
      %v5445 = vld [vmem:[%s5419 + $0x29] sm:$0x1f]
      %v5446 = vld [vmem:[%s5419 + $0x31] sm:$0x1f]
      %v5447 = vld [vmem:[%s5419 + $0x39] sm:$0x1f]
      %v5448 = vld [vmem:[%s5419 + $0x41] sm:$0x1f]
      %v5449 = vld [vmem:[%s5419 + $0x49] sm:$0x1f]
      %s5450 = sadd.s32 %s2845, 45
      %s5451 = sld [smem:[#allocation10 + %s5450]]
      %s5452 = sadd.s32 %s2845, 46
      %s5453 = sld [smem:[#allocation10 + %s5452]]
      %s5454 = sadd.s32 %s2845, 47
      %s5455 = sld [smem:[#allocation10 + %s5454]]
      %v5456 = vstv %s5451
      %v5457 = vmul.f32 %v5456, %v5409
      %v5458 = vmul.f32 %v5456, %v5410
      %v5459 = vmul.f32 %v5456, %v5411
      %v5460 = vmul.f32 %v5456, %v5412
      %v5461 = vmul.f32 %v5456, %v5413
      %v5462 = vmul.f32 %v5456, %v5414
      %v5463 = vmul.f32 %v5456, %v5415
      %v5464 = vmul.f32 %v5456, %v5416
      %v5465 = vmul.f32 %v5456, %v5417
      %v5466 = vmul.f32 %v5456, %v5418
      %v5467 = vadd.f32 %v5338, %v5457
      %v5468 = vadd.f32 %v5339, %v5458
      %v5469 = vadd.f32 %v5340, %v5459
      %v5470 = vadd.f32 %v5341, %v5460
      %v5471 = vadd.f32 %v5342, %v5461
      %v5472 = vadd.f32 %v5343, %v5462
      %v5473 = vadd.f32 %v5344, %v5463
      %v5474 = vadd.f32 %v5345, %v5464
      %v5475 = vadd.f32 %v5346, %v5465
      %v5476 = vadd.f32 %v5347, %v5466
      %v5477 = vstv %s5453
      %v5478 = vmul.f32 %v5477, %v5420
      %v5479 = vmul.f32 %v5477, %v5421
      %v5480 = vmul.f32 %v5477, %v5422
      %v5481 = vmul.f32 %v5477, %v5423
      %v5482 = vmul.f32 %v5477, %v5424
      %v5483 = vmul.f32 %v5477, %v5425
      %v5484 = vmul.f32 %v5477, %v5426
      %v5485 = vmul.f32 %v5477, %v5427
      %v5486 = vmul.f32 %v5477, %v5428
      %v5487 = vmul.f32 %v5477, %v5429
      %v5488 = vadd.f32 %v5467, %v5478
      %v5489 = vadd.f32 %v5468, %v5479
      %v5490 = vadd.f32 %v5469, %v5480
      %v5491 = vadd.f32 %v5470, %v5481
      %v5492 = vadd.f32 %v5471, %v5482
      %v5493 = vadd.f32 %v5472, %v5483
      %v5494 = vadd.f32 %v5473, %v5484
      %v5495 = vadd.f32 %v5474, %v5485
      %v5496 = vadd.f32 %v5475, %v5486
      %v5497 = vadd.f32 %v5476, %v5487
      %v5498 = vstv %s5455
      %v5499 = vmul.f32 %v5498, %v5430
      %v5500 = vmul.f32 %v5498, %v5431
      %v5501 = vmul.f32 %v5498, %v5432
      %v5502 = vmul.f32 %v5498, %v5433
      %v5503 = vmul.f32 %v5498, %v5434
      %v5504 = vmul.f32 %v5498, %v5435
      %v5505 = vmul.f32 %v5498, %v5436
      %v5506 = vmul.f32 %v5498, %v5437
      %v5507 = vmul.f32 %v5498, %v5438
      %v5508 = vmul.f32 %v5498, %v5439
      %v5509 = vadd.f32 %v5488, %v5499
      %v5510 = vadd.f32 %v5489, %v5500
      %v5511 = vadd.f32 %v5490, %v5501
      %v5512 = vadd.f32 %v5491, %v5502
      %v5513 = vadd.f32 %v5492, %v5503
      %v5514 = vadd.f32 %v5493, %v5504
      %v5515 = vadd.f32 %v5494, %v5505
      %v5516 = vadd.f32 %v5495, %v5506
      %v5517 = vadd.f32 %v5496, %v5507
      %v5518 = vadd.f32 %v5497, %v5508
      %v5519 = vmul.f32 %v5456, %v5420
      %v5520 = vmul.f32 %v5456, %v5421
      %v5521 = vmul.f32 %v5456, %v5422
      %v5522 = vmul.f32 %v5456, %v5423
      %v5523 = vmul.f32 %v5456, %v5424
      %v5524 = vmul.f32 %v5456, %v5425
      %v5525 = vmul.f32 %v5456, %v5426
      %v5526 = vmul.f32 %v5456, %v5427
      %v5527 = vmul.f32 %v5456, %v5428
      %v5528 = vmul.f32 %v5456, %v5429
      %v5529 = vadd.f32 %v5398, %v5519
      %v5530 = vadd.f32 %v5399, %v5520
      %v5531 = vadd.f32 %v5400, %v5521
      %v5532 = vadd.f32 %v5401, %v5522
      %v5533 = vadd.f32 %v5402, %v5523
      %v5534 = vadd.f32 %v5403, %v5524
      %v5535 = vadd.f32 %v5404, %v5525
      %v5536 = vadd.f32 %v5405, %v5526
      %v5537 = vadd.f32 %v5406, %v5527
      %v5538 = vadd.f32 %v5407, %v5528
      %v5539 = vmul.f32 %v5477, %v5430
      %v5540 = vmul.f32 %v5477, %v5431
      %v5541 = vmul.f32 %v5477, %v5432
      %v5542 = vmul.f32 %v5477, %v5433
      %v5543 = vmul.f32 %v5477, %v5434
      %v5544 = vmul.f32 %v5477, %v5435
      %v5545 = vmul.f32 %v5477, %v5436
      %v5546 = vmul.f32 %v5477, %v5437
      %v5547 = vmul.f32 %v5477, %v5438
      %v5548 = vmul.f32 %v5477, %v5439
      %v5549 = vadd.f32 %v5529, %v5539
      %v5550 = vadd.f32 %v5530, %v5540
      %v5551 = vadd.f32 %v5531, %v5541
      %v5552 = vadd.f32 %v5532, %v5542
      %v5553 = vadd.f32 %v5533, %v5543
      %v5554 = vadd.f32 %v5534, %v5544
      %v5555 = vadd.f32 %v5535, %v5545
      %v5556 = vadd.f32 %v5536, %v5546
      %v5557 = vadd.f32 %v5537, %v5547
      %v5558 = vadd.f32 %v5538, %v5548
      %v5559 = vmul.f32 %v5498, %v5440
      %v5560 = vmul.f32 %v5498, %v5441
      %v5561 = vmul.f32 %v5498, %v5442
      %v5562 = vmul.f32 %v5498, %v5443
      %v5563 = vmul.f32 %v5498, %v5444
      %v5564 = vmul.f32 %v5498, %v5445
      %v5565 = vmul.f32 %v5498, %v5446
      %v5566 = vmul.f32 %v5498, %v5447
      %v5567 = vmul.f32 %v5498, %v5448
      %v5568 = vmul.f32 %v5498, %v5449
      %v5569 = vadd.f32 %v5549, %v5559
      %v5570 = vadd.f32 %v5550, %v5560
      %v5571 = vadd.f32 %v5551, %v5561
      %v5572 = vadd.f32 %v5552, %v5562
      %v5573 = vadd.f32 %v5553, %v5563
      %v5574 = vadd.f32 %v5554, %v5564
      %v5575 = vadd.f32 %v5555, %v5565
      %v5576 = vadd.f32 %v5556, %v5566
      %v5577 = vadd.f32 %v5557, %v5567
      %v5578 = vadd.f32 %v5558, %v5568
      %s5579 = scalar_lea.vmem [#allocation2], 528
      %v5580 = vld [vmem:[%s5579] sm:$0x1f]
      %v5581 = vld [vmem:[%s5579 + $0x8] sm:$0x1f]
      %v5582 = vld [vmem:[%s5579 + $0x10] sm:$0x1f]
      %v5583 = vld [vmem:[%s5579 + $0x18] sm:$0x1f]
      %v5584 = vld [vmem:[%s5579 + $0x20] sm:$0x1f]
      %v5585 = vld [vmem:[%s5579 + $0x28] sm:$0x1f]
      %v5586 = vld [vmem:[%s5579 + $0x30] sm:$0x1f]
      %v5587 = vld [vmem:[%s5579 + $0x38] sm:$0x1f]
      %v5588 = vld [vmem:[%s5579 + $0x40] sm:$0x1f]
      %v5589 = vld [vmem:[%s5579 + $0x48] sm:$0x1f]
      %s5590 = scalar_lea.vmem [#allocation3], 528
      %v5591 = vld [vmem:[%s5590] sm:$0x1f]
      %v5592 = vld [vmem:[%s5590 + $0x8] sm:$0x1f]
      %v5593 = vld [vmem:[%s5590 + $0x10] sm:$0x1f]
      %v5594 = vld [vmem:[%s5590 + $0x18] sm:$0x1f]
      %v5595 = vld [vmem:[%s5590 + $0x20] sm:$0x1f]
      %v5596 = vld [vmem:[%s5590 + $0x28] sm:$0x1f]
      %v5597 = vld [vmem:[%s5590 + $0x30] sm:$0x1f]
      %v5598 = vld [vmem:[%s5590 + $0x38] sm:$0x1f]
      %v5599 = vld [vmem:[%s5590 + $0x40] sm:$0x1f]
      %v5600 = vld [vmem:[%s5590 + $0x48] sm:$0x1f]
      %v5601 = vld [vmem:[%s5579 + $0x1] sm:$0x1f]
      %v5602 = vld [vmem:[%s5579 + $0x9] sm:$0x1f]
      %v5603 = vld [vmem:[%s5579 + $0x11] sm:$0x1f]
      %v5604 = vld [vmem:[%s5579 + $0x19] sm:$0x1f]
      %v5605 = vld [vmem:[%s5579 + $0x21] sm:$0x1f]
      %v5606 = vld [vmem:[%s5579 + $0x29] sm:$0x1f]
      %v5607 = vld [vmem:[%s5579 + $0x31] sm:$0x1f]
      %v5608 = vld [vmem:[%s5579 + $0x39] sm:$0x1f]
      %v5609 = vld [vmem:[%s5579 + $0x41] sm:$0x1f]
      %v5610 = vld [vmem:[%s5579 + $0x49] sm:$0x1f]
      %v5611 = vld [vmem:[%s5590 + $0x1] sm:$0x1f]
      %v5612 = vld [vmem:[%s5590 + $0x9] sm:$0x1f]
      %v5613 = vld [vmem:[%s5590 + $0x11] sm:$0x1f]
      %v5614 = vld [vmem:[%s5590 + $0x19] sm:$0x1f]
      %v5615 = vld [vmem:[%s5590 + $0x21] sm:$0x1f]
      %v5616 = vld [vmem:[%s5590 + $0x29] sm:$0x1f]
      %v5617 = vld [vmem:[%s5590 + $0x31] sm:$0x1f]
      %v5618 = vld [vmem:[%s5590 + $0x39] sm:$0x1f]
      %v5619 = vld [vmem:[%s5590 + $0x41] sm:$0x1f]
      %v5620 = vld [vmem:[%s5590 + $0x49] sm:$0x1f]
      %s5621 = sadd.s32 %s2845, 48
      %s5622 = sld [smem:[#allocation10 + %s5621]]
      %s5623 = sadd.s32 %s2845, 49
      %s5624 = sld [smem:[#allocation10 + %s5623]]
      %s5625 = sadd.s32 %s2845, 50
      %s5626 = sld [smem:[#allocation10 + %s5625]]
      %v5627 = vstv %s5622
      %v5628 = vmul.f32 %v5627, %v5580
      %v5629 = vmul.f32 %v5627, %v5581
      %v5630 = vmul.f32 %v5627, %v5582
      %v5631 = vmul.f32 %v5627, %v5583
      %v5632 = vmul.f32 %v5627, %v5584
      %v5633 = vmul.f32 %v5627, %v5585
      %v5634 = vmul.f32 %v5627, %v5586
      %v5635 = vmul.f32 %v5627, %v5587
      %v5636 = vmul.f32 %v5627, %v5588
      %v5637 = vmul.f32 %v5627, %v5589
      %v5638 = vadd.f32 %v5509, %v5628
      %v5639 = vadd.f32 %v5510, %v5629
      %v5640 = vadd.f32 %v5511, %v5630
      %v5641 = vadd.f32 %v5512, %v5631
      %v5642 = vadd.f32 %v5513, %v5632
      %v5643 = vadd.f32 %v5514, %v5633
      %v5644 = vadd.f32 %v5515, %v5634
      %v5645 = vadd.f32 %v5516, %v5635
      %v5646 = vadd.f32 %v5517, %v5636
      %v5647 = vadd.f32 %v5518, %v5637
      %v5648 = vstv %s5624
      %v5649 = vmul.f32 %v5648, %v5591
      %v5650 = vmul.f32 %v5648, %v5592
      %v5651 = vmul.f32 %v5648, %v5593
      %v5652 = vmul.f32 %v5648, %v5594
      %v5653 = vmul.f32 %v5648, %v5595
      %v5654 = vmul.f32 %v5648, %v5596
      %v5655 = vmul.f32 %v5648, %v5597
      %v5656 = vmul.f32 %v5648, %v5598
      %v5657 = vmul.f32 %v5648, %v5599
      %v5658 = vmul.f32 %v5648, %v5600
      %v5659 = vadd.f32 %v5638, %v5649
      %v5660 = vadd.f32 %v5639, %v5650
      %v5661 = vadd.f32 %v5640, %v5651
      %v5662 = vadd.f32 %v5641, %v5652
      %v5663 = vadd.f32 %v5642, %v5653
      %v5664 = vadd.f32 %v5643, %v5654
      %v5665 = vadd.f32 %v5644, %v5655
      %v5666 = vadd.f32 %v5645, %v5656
      %v5667 = vadd.f32 %v5646, %v5657
      %v5668 = vadd.f32 %v5647, %v5658
      %v5669 = vstv %s5626
      %v5670 = vmul.f32 %v5669, %v5601
      %v5671 = vmul.f32 %v5669, %v5602
      %v5672 = vmul.f32 %v5669, %v5603
      %v5673 = vmul.f32 %v5669, %v5604
      %v5674 = vmul.f32 %v5669, %v5605
      %v5675 = vmul.f32 %v5669, %v5606
      %v5676 = vmul.f32 %v5669, %v5607
      %v5677 = vmul.f32 %v5669, %v5608
      %v5678 = vmul.f32 %v5669, %v5609
      %v5679 = vmul.f32 %v5669, %v5610
      %v5680 = vadd.f32 %v5659, %v5670
      %v5681 = vadd.f32 %v5660, %v5671
      %v5682 = vadd.f32 %v5661, %v5672
      %v5683 = vadd.f32 %v5662, %v5673
      %v5684 = vadd.f32 %v5663, %v5674
      %v5685 = vadd.f32 %v5664, %v5675
      %v5686 = vadd.f32 %v5665, %v5676
      %v5687 = vadd.f32 %v5666, %v5677
      %v5688 = vadd.f32 %v5667, %v5678
      %v5689 = vadd.f32 %v5668, %v5679
      %v5690 = vmul.f32 %v5627, %v5591
      %v5691 = vmul.f32 %v5627, %v5592
      %v5692 = vmul.f32 %v5627, %v5593
      %v5693 = vmul.f32 %v5627, %v5594
      %v5694 = vmul.f32 %v5627, %v5595
      %v5695 = vmul.f32 %v5627, %v5596
      %v5696 = vmul.f32 %v5627, %v5597
      %v5697 = vmul.f32 %v5627, %v5598
      %v5698 = vmul.f32 %v5627, %v5599
      %v5699 = vmul.f32 %v5627, %v5600
      %v5700 = vadd.f32 %v5569, %v5690
      %v5701 = vadd.f32 %v5570, %v5691
      %v5702 = vadd.f32 %v5571, %v5692
      %v5703 = vadd.f32 %v5572, %v5693
      %v5704 = vadd.f32 %v5573, %v5694
      %v5705 = vadd.f32 %v5574, %v5695
      %v5706 = vadd.f32 %v5575, %v5696
      %v5707 = vadd.f32 %v5576, %v5697
      %v5708 = vadd.f32 %v5577, %v5698
      %v5709 = vadd.f32 %v5578, %v5699
      %v5710 = vmul.f32 %v5648, %v5601
      %v5711 = vmul.f32 %v5648, %v5602
      %v5712 = vmul.f32 %v5648, %v5603
      %v5713 = vmul.f32 %v5648, %v5604
      %v5714 = vmul.f32 %v5648, %v5605
      %v5715 = vmul.f32 %v5648, %v5606
      %v5716 = vmul.f32 %v5648, %v5607
      %v5717 = vmul.f32 %v5648, %v5608
      %v5718 = vmul.f32 %v5648, %v5609
      %v5719 = vmul.f32 %v5648, %v5610
      %v5720 = vadd.f32 %v5700, %v5710
      %v5721 = vadd.f32 %v5701, %v5711
      %v5722 = vadd.f32 %v5702, %v5712
      %v5723 = vadd.f32 %v5703, %v5713
      %v5724 = vadd.f32 %v5704, %v5714
      %v5725 = vadd.f32 %v5705, %v5715
      %v5726 = vadd.f32 %v5706, %v5716
      %v5727 = vadd.f32 %v5707, %v5717
      %v5728 = vadd.f32 %v5708, %v5718
      %v5729 = vadd.f32 %v5709, %v5719
      %v5730 = vmul.f32 %v5669, %v5611
      %v5731 = vmul.f32 %v5669, %v5612
      %v5732 = vmul.f32 %v5669, %v5613
      %v5733 = vmul.f32 %v5669, %v5614
      %v5734 = vmul.f32 %v5669, %v5615
      %v5735 = vmul.f32 %v5669, %v5616
      %v5736 = vmul.f32 %v5669, %v5617
      %v5737 = vmul.f32 %v5669, %v5618
      %v5738 = vmul.f32 %v5669, %v5619
      %v5739 = vmul.f32 %v5669, %v5620
      %v5740 = vadd.f32 %v5720, %v5730
      %v5741 = vadd.f32 %v5721, %v5731
      %v5742 = vadd.f32 %v5722, %v5732
      %v5743 = vadd.f32 %v5723, %v5733
      %v5744 = vadd.f32 %v5724, %v5734
      %v5745 = vadd.f32 %v5725, %v5735
      %v5746 = vadd.f32 %v5726, %v5736
      %v5747 = vadd.f32 %v5727, %v5737
      %v5748 = vadd.f32 %v5728, %v5738
      %v5749 = vadd.f32 %v5729, %v5739
      %s5750 = scalar_lea.vmem [#allocation2], 536
      %v5751 = vld [vmem:[%s5750] sm:$0x1f]
      %v5752 = vld [vmem:[%s5750 + $0x8] sm:$0x1f]
      %v5753 = vld [vmem:[%s5750 + $0x10] sm:$0x1f]
      %v5754 = vld [vmem:[%s5750 + $0x18] sm:$0x1f]
      %v5755 = vld [vmem:[%s5750 + $0x20] sm:$0x1f]
      %v5756 = vld [vmem:[%s5750 + $0x28] sm:$0x1f]
      %v5757 = vld [vmem:[%s5750 + $0x30] sm:$0x1f]
      %v5758 = vld [vmem:[%s5750 + $0x38] sm:$0x1f]
      %v5759 = vld [vmem:[%s5750 + $0x40] sm:$0x1f]
      %v5760 = vld [vmem:[%s5750 + $0x48] sm:$0x1f]
      %s5761 = scalar_lea.vmem [#allocation3], 536
      %v5762 = vld [vmem:[%s5761] sm:$0x1f]
      %v5763 = vld [vmem:[%s5761 + $0x8] sm:$0x1f]
      %v5764 = vld [vmem:[%s5761 + $0x10] sm:$0x1f]
      %v5765 = vld [vmem:[%s5761 + $0x18] sm:$0x1f]
      %v5766 = vld [vmem:[%s5761 + $0x20] sm:$0x1f]
      %v5767 = vld [vmem:[%s5761 + $0x28] sm:$0x1f]
      %v5768 = vld [vmem:[%s5761 + $0x30] sm:$0x1f]
      %v5769 = vld [vmem:[%s5761 + $0x38] sm:$0x1f]
      %v5770 = vld [vmem:[%s5761 + $0x40] sm:$0x1f]
      %v5771 = vld [vmem:[%s5761 + $0x48] sm:$0x1f]
      %v5772 = vld [vmem:[%s5750 + $0x1] sm:$0x1f]
      %v5773 = vld [vmem:[%s5750 + $0x9] sm:$0x1f]
      %v5774 = vld [vmem:[%s5750 + $0x11] sm:$0x1f]
      %v5775 = vld [vmem:[%s5750 + $0x19] sm:$0x1f]
      %v5776 = vld [vmem:[%s5750 + $0x21] sm:$0x1f]
      %v5777 = vld [vmem:[%s5750 + $0x29] sm:$0x1f]
      %v5778 = vld [vmem:[%s5750 + $0x31] sm:$0x1f]
      %v5779 = vld [vmem:[%s5750 + $0x39] sm:$0x1f]
      %v5780 = vld [vmem:[%s5750 + $0x41] sm:$0x1f]
      %v5781 = vld [vmem:[%s5750 + $0x49] sm:$0x1f]
      %v5782 = vld [vmem:[%s5761 + $0x1] sm:$0x1f]
      %v5783 = vld [vmem:[%s5761 + $0x9] sm:$0x1f]
      %v5784 = vld [vmem:[%s5761 + $0x11] sm:$0x1f]
      %v5785 = vld [vmem:[%s5761 + $0x19] sm:$0x1f]
      %v5786 = vld [vmem:[%s5761 + $0x21] sm:$0x1f]
      %v5787 = vld [vmem:[%s5761 + $0x29] sm:$0x1f]
      %v5788 = vld [vmem:[%s5761 + $0x31] sm:$0x1f]
      %v5789 = vld [vmem:[%s5761 + $0x39] sm:$0x1f]
      %v5790 = vld [vmem:[%s5761 + $0x41] sm:$0x1f]
      %v5791 = vld [vmem:[%s5761 + $0x49] sm:$0x1f]
      %s5792 = sadd.s32 %s2845, 51
      %s5793 = sld [smem:[#allocation10 + %s5792]]
      %s5794 = sadd.s32 %s2845, 52
      %s5795 = sld [smem:[#allocation10 + %s5794]]
      %s5796 = sadd.s32 %s2845, 53
      %s5797 = sld [smem:[#allocation10 + %s5796]]
      %v5798 = vstv %s5793
      %v5799 = vmul.f32 %v5798, %v5751
      %v5800 = vmul.f32 %v5798, %v5752
      %v5801 = vmul.f32 %v5798, %v5753
      %v5802 = vmul.f32 %v5798, %v5754
      %v5803 = vmul.f32 %v5798, %v5755
      %v5804 = vmul.f32 %v5798, %v5756
      %v5805 = vmul.f32 %v5798, %v5757
      %v5806 = vmul.f32 %v5798, %v5758
      %v5807 = vmul.f32 %v5798, %v5759
      %v5808 = vmul.f32 %v5798, %v5760
      %v5809 = vadd.f32 %v5680, %v5799
      %v5810 = vadd.f32 %v5681, %v5800
      %v5811 = vadd.f32 %v5682, %v5801
      %v5812 = vadd.f32 %v5683, %v5802
      %v5813 = vadd.f32 %v5684, %v5803
      %v5814 = vadd.f32 %v5685, %v5804
      %v5815 = vadd.f32 %v5686, %v5805
      %v5816 = vadd.f32 %v5687, %v5806
      %v5817 = vadd.f32 %v5688, %v5807
      %v5818 = vadd.f32 %v5689, %v5808
      %v5819 = vstv %s5795
      %v5820 = vmul.f32 %v5819, %v5762
      %v5821 = vmul.f32 %v5819, %v5763
      %v5822 = vmul.f32 %v5819, %v5764
      %v5823 = vmul.f32 %v5819, %v5765
      %v5824 = vmul.f32 %v5819, %v5766
      %v5825 = vmul.f32 %v5819, %v5767
      %v5826 = vmul.f32 %v5819, %v5768
      %v5827 = vmul.f32 %v5819, %v5769
      %v5828 = vmul.f32 %v5819, %v5770
      %v5829 = vmul.f32 %v5819, %v5771
      %v5830 = vadd.f32 %v5809, %v5820
      %v5831 = vadd.f32 %v5810, %v5821
      %v5832 = vadd.f32 %v5811, %v5822
      %v5833 = vadd.f32 %v5812, %v5823
      %v5834 = vadd.f32 %v5813, %v5824
      %v5835 = vadd.f32 %v5814, %v5825
      %v5836 = vadd.f32 %v5815, %v5826
      %v5837 = vadd.f32 %v5816, %v5827
      %v5838 = vadd.f32 %v5817, %v5828
      %v5839 = vadd.f32 %v5818, %v5829
      %v5840 = vstv %s5797
      %v5841 = vmul.f32 %v5840, %v5772
      %v5842 = vmul.f32 %v5840, %v5773
      %v5843 = vmul.f32 %v5840, %v5774
      %v5844 = vmul.f32 %v5840, %v5775
      %v5845 = vmul.f32 %v5840, %v5776
      %v5846 = vmul.f32 %v5840, %v5777
      %v5847 = vmul.f32 %v5840, %v5778
      %v5848 = vmul.f32 %v5840, %v5779
      %v5849 = vmul.f32 %v5840, %v5780
      %v5850 = vmul.f32 %v5840, %v5781
      %v5851 = vadd.f32 %v5830, %v5841
      %v5852 = vadd.f32 %v5831, %v5842
      %v5853 = vadd.f32 %v5832, %v5843
      %v5854 = vadd.f32 %v5833, %v5844
      %v5855 = vadd.f32 %v5834, %v5845
      %v5856 = vadd.f32 %v5835, %v5846
      %v5857 = vadd.f32 %v5836, %v5847
      %v5858 = vadd.f32 %v5837, %v5848
      %v5859 = vadd.f32 %v5838, %v5849
      %v5860 = vadd.f32 %v5839, %v5850
      %v5861 = vmul.f32 %v5798, %v5762
      %v5862 = vmul.f32 %v5798, %v5763
      %v5863 = vmul.f32 %v5798, %v5764
      %v5864 = vmul.f32 %v5798, %v5765
      %v5865 = vmul.f32 %v5798, %v5766
      %v5866 = vmul.f32 %v5798, %v5767
      %v5867 = vmul.f32 %v5798, %v5768
      %v5868 = vmul.f32 %v5798, %v5769
      %v5869 = vmul.f32 %v5798, %v5770
      %v5870 = vmul.f32 %v5798, %v5771
      %v5871 = vadd.f32 %v5740, %v5861
      %v5872 = vadd.f32 %v5741, %v5862
      %v5873 = vadd.f32 %v5742, %v5863
      %v5874 = vadd.f32 %v5743, %v5864
      %v5875 = vadd.f32 %v5744, %v5865
      %v5876 = vadd.f32 %v5745, %v5866
      %v5877 = vadd.f32 %v5746, %v5867
      %v5878 = vadd.f32 %v5747, %v5868
      %v5879 = vadd.f32 %v5748, %v5869
      %v5880 = vadd.f32 %v5749, %v5870
      %v5881 = vmul.f32 %v5819, %v5772
      %v5882 = vmul.f32 %v5819, %v5773
      %v5883 = vmul.f32 %v5819, %v5774
      %v5884 = vmul.f32 %v5819, %v5775
      %v5885 = vmul.f32 %v5819, %v5776
      %v5886 = vmul.f32 %v5819, %v5777
      %v5887 = vmul.f32 %v5819, %v5778
      %v5888 = vmul.f32 %v5819, %v5779
      %v5889 = vmul.f32 %v5819, %v5780
      %v5890 = vmul.f32 %v5819, %v5781
      %v5891 = vadd.f32 %v5871, %v5881
      %v5892 = vadd.f32 %v5872, %v5882
      %v5893 = vadd.f32 %v5873, %v5883
      %v5894 = vadd.f32 %v5874, %v5884
      %v5895 = vadd.f32 %v5875, %v5885
      %v5896 = vadd.f32 %v5876, %v5886
      %v5897 = vadd.f32 %v5877, %v5887
      %v5898 = vadd.f32 %v5878, %v5888
      %v5899 = vadd.f32 %v5879, %v5889
      %v5900 = vadd.f32 %v5880, %v5890
      %v5901 = vmul.f32 %v5840, %v5782
      %v5902 = vmul.f32 %v5840, %v5783
      %v5903 = vmul.f32 %v5840, %v5784
      %v5904 = vmul.f32 %v5840, %v5785
      %v5905 = vmul.f32 %v5840, %v5786
      %v5906 = vmul.f32 %v5840, %v5787
      %v5907 = vmul.f32 %v5840, %v5788
      %v5908 = vmul.f32 %v5840, %v5789
      %v5909 = vmul.f32 %v5840, %v5790
      %v5910 = vmul.f32 %v5840, %v5791
      %v5911 = vadd.f32 %v5891, %v5901
      %v5912 = vadd.f32 %v5892, %v5902
      %v5913 = vadd.f32 %v5893, %v5903
      %v5914 = vadd.f32 %v5894, %v5904
      %v5915 = vadd.f32 %v5895, %v5905
      %v5916 = vadd.f32 %v5896, %v5906
      %v5917 = vadd.f32 %v5897, %v5907
      %v5918 = vadd.f32 %v5898, %v5908
      %v5919 = vadd.f32 %v5899, %v5909
      %v5920 = vadd.f32 %v5900, %v5910
      %s5921 = sld [smem:[#allocation11 + %s2840]]
      %v5922 = vmax.f32 %v5851, %v5911
      %v5923 = vmax.f32 %v5852, %v5912
      %v5924 = vmax.f32 %v5853, %v5913
      %v5925 = vmax.f32 %v5854, %v5914
      %v5926 = vmax.f32 %v5855, %v5915
      %v5927 = vmax.f32 %v5856, %v5916
      %v5928 = vmax.f32 %v5857, %v5917
      %v5929 = vmax.f32 %v5858, %v5918
      %v5930 = vmax.f32 %v5859, %v5919
      %v5931 = vmax.f32 %v5860, %v5920
      %v5932 = vstv %s5921
      %v5933 = vadd.f32 %v5922, %v5932
      %v5934 = vadd.f32 %v5923, %v5932
      %v5935 = vadd.f32 %v5924, %v5932
      %v5936 = vadd.f32 %v5925, %v5932
      %v5937 = vadd.f32 %v5926, %v5932
      %v5938 = vadd.f32 %v5927, %v5932
      %v5939 = vadd.f32 %v5928, %v5932
      %v5940 = vadd.f32 %v5929, %v5932
      %v5941 = vadd.f32 %v5930, %v5932
      %v5942 = vadd.f32 %v5931, %v5932
      %v5943 = vmax.f32 %v5933, 0.0
      %v5944 = vmax.f32 %v5934, 0.0
      %v5945 = vmax.f32 %v5935, 0.0
      %v5946 = vmax.f32 %v5936, 0.0
      %v5947 = vmax.f32 %v5937, 0.0
      %v5948 = vmax.f32 %v5938, 0.0
      %v5949 = vmax.f32 %v5939, 0.0
      %v5950 = vmax.f32 %v5940, 0.0
      %v5951 = vmax.f32 %v5941, 0.0
      %v5952 = vmax.f32 %v5942, 0.0
      %v5953 = vmax.f32 %v5943, %v5944
      %v5954 = vmax.f32 %v5945, %v5946
      %v5955 = vmax.f32 %v5947, %v5948
      %v5956 = vmax.f32 %v5949, %v5950
      %v5957 = vmax.f32 %v5951, %v5952
      %s5958 = smul.u32 %s2840, 40
      %s5959 = scalar_lea.vmem [#allocation4], %s5958
      %5960 = vst [vmem:[%s5959] sm:$0x1f] %v5953
      %5961 = vst [vmem:[%s5959 + $0x8] sm:$0x1f] %v5954
      %5962 = vst [vmem:[%s5959 + $0x10] sm:$0x1f] %v5955
      %5963 = vst [vmem:[%s5959 + $0x18] sm:$0x1f] %v5956
      %5964 = vst [vmem:[%s5959 + $0x20] sm:$0x1f] %v5957
    $region73: #{lenet_forward.1} parent=1 // loop_footer
      %s2844 = sadd.s32 1, %s2840
    $region74: #{lenet_forward.1} parent=1 // loop_footer_branch
      %2839 = sbr.rel target = $region70
    $region75: #{lenet_forward.1} parent=1 // loop_exit
      _
    %v5965 = vld [vmem:[#allocation4] sm:$0x1f]
    %5966 = vst [vmem:[#allocation5] sm:$0x1f] %v5965
    %s5967 = scalar_lea.vmem [#allocation4], 8
    %v5968 = vld [vmem:[%s5967] sm:$0x1f]
    %5969 = vst [vmem:[#allocation5 + $0x5] sm:$0x1f] %v5968
    %s5970 = scalar_lea.vmem [#allocation4], 16
    %v5971 = vld [vmem:[%s5970] sm:$0x1f]
    %5972 = vst [vmem:[#allocation5 + $0xa] sm:$0x1f] %v5971
    %s5973 = scalar_lea.vmem [#allocation4], 24
    %v5974 = vld [vmem:[%s5973] sm:$0x1f]
    %5975 = vst [vmem:[#allocation5 + $0xf] sm:$0x1f] %v5974
    %s5976 = scalar_lea.vmem [#allocation4], 32
    %v5977 = vld [vmem:[%s5976] sm:$0x1f]
    %5978 = vst [vmem:[#allocation5 + $0x14] sm:$0x1f] %v5977
    %s5979 = scalar_lea.vmem [#allocation4], 40
    %v5980 = vld [vmem:[%s5979] sm:$0x1f]
    %5981 = vst [vmem:[#allocation5 + $0x19] sm:$0x1f] %v5980
    %s5982 = scalar_lea.vmem [#allocation4], 48
    %v5983 = vld [vmem:[%s5982] sm:$0x1f]
    %5984 = vst [vmem:[#allocation5 + $0x1e] sm:$0x1f] %v5983
    %s5985 = scalar_lea.vmem [#allocation4], 56
    %v5986 = vld [vmem:[%s5985] sm:$0x1f]
    %5987 = vst [vmem:[#allocation5 + $0x23] sm:$0x1f] %v5986
    %s5988 = scalar_lea.vmem [#allocation4], 64
    %v5989 = vld [vmem:[%s5988] sm:$0x1f]
    %5990 = vst [vmem:[#allocation5 + $0x28] sm:$0x1f] %v5989
    %s5991 = scalar_lea.vmem [#allocation4], 72
    %v5992 = vld [vmem:[%s5991] sm:$0x1f]
    %5993 = vst [vmem:[#allocation5 + $0x2d] sm:$0x1f] %v5992
    %s5994 = scalar_lea.vmem [#allocation4], 80
    %v5995 = vld [vmem:[%s5994] sm:$0x1f]
    %5996 = vst [vmem:[#allocation5 + $0x32] sm:$0x1f] %v5995
    %s5997 = scalar_lea.vmem [#allocation4], 88
    %v5998 = vld [vmem:[%s5997] sm:$0x1f]
    %5999 = vst [vmem:[#allocation5 + $0x37] sm:$0x1f] %v5998
    %s6000 = scalar_lea.vmem [#allocation4], 96
    %v6001 = vld [vmem:[%s6000] sm:$0x1f]
    %6002 = vst [vmem:[#allocation5 + $0x3c] sm:$0x1f] %v6001
    %s6003 = scalar_lea.vmem [#allocation4], 104
    %v6004 = vld [vmem:[%s6003] sm:$0x1f]
    %6005 = vst [vmem:[#allocation5 + $0x41] sm:$0x1f] %v6004
    %s6006 = scalar_lea.vmem [#allocation4], 112
    %v6007 = vld [vmem:[%s6006] sm:$0x1f]
    %6008 = vst [vmem:[#allocation5 + $0x46] sm:$0x1f] %v6007
    %s6009 = scalar_lea.vmem [#allocation4], 120
    %v6010 = vld [vmem:[%s6009] sm:$0x1f]
    %6011 = vst [vmem:[#allocation5 + $0x4b] sm:$0x1f] %v6010
    %s6012 = scalar_lea.vmem [#allocation4], 128
    %v6013 = vld [vmem:[%s6012] sm:$0x1f]
    %6014 = vst [vmem:[#allocation5 + $0x50] sm:$0x1f] %v6013
    %s6015 = scalar_lea.vmem [#allocation4], 136
    %v6016 = vld [vmem:[%s6015] sm:$0x1f]
    %6017 = vst [vmem:[#allocation5 + $0x55] sm:$0x1f] %v6016
    %s6018 = scalar_lea.vmem [#allocation4], 144
    %v6019 = vld [vmem:[%s6018] sm:$0x1f]
    %6020 = vst [vmem:[#allocation5 + $0x5a] sm:$0x1f] %v6019
    %s6021 = scalar_lea.vmem [#allocation4], 152
    %v6022 = vld [vmem:[%s6021] sm:$0x1f]
    %6023 = vst [vmem:[#allocation5 + $0x5f] sm:$0x1f] %v6022
    %s6024 = scalar_lea.vmem [#allocation4], 160
    %v6025 = vld [vmem:[%s6024] sm:$0x1f]
    %6026 = vst [vmem:[#allocation5 + $0x64] sm:$0x1f] %v6025
    %s6027 = scalar_lea.vmem [#allocation4], 168
    %v6028 = vld [vmem:[%s6027] sm:$0x1f]
    %6029 = vst [vmem:[#allocation5 + $0x69] sm:$0x1f] %v6028
    %s6030 = scalar_lea.vmem [#allocation4], 176
    %v6031 = vld [vmem:[%s6030] sm:$0x1f]
    %6032 = vst [vmem:[#allocation5 + $0x6e] sm:$0x1f] %v6031
    %s6033 = scalar_lea.vmem [#allocation4], 184
    %v6034 = vld [vmem:[%s6033] sm:$0x1f]
    %6035 = vst [vmem:[#allocation5 + $0x73] sm:$0x1f] %v6034
    %s6036 = scalar_lea.vmem [#allocation4], 192
    %v6037 = vld [vmem:[%s6036] sm:$0x1f]
    %6038 = vst [vmem:[#allocation5 + $0x78] sm:$0x1f] %v6037
    %s6039 = scalar_lea.vmem [#allocation4], 200
    %v6040 = vld [vmem:[%s6039] sm:$0x1f]
    %6041 = vst [vmem:[#allocation5 + $0x7d] sm:$0x1f] %v6040
    %s6042 = scalar_lea.vmem [#allocation4], 208
    %v6043 = vld [vmem:[%s6042] sm:$0x1f]
    %6044 = vst [vmem:[#allocation5 + $0x82] sm:$0x1f] %v6043
    %s6045 = scalar_lea.vmem [#allocation4], 216
    %v6046 = vld [vmem:[%s6045] sm:$0x1f]
    %6047 = vst [vmem:[#allocation5 + $0x87] sm:$0x1f] %v6046
    %s6048 = scalar_lea.vmem [#allocation4], 224
    %v6049 = vld [vmem:[%s6048] sm:$0x1f]
    %6050 = vst [vmem:[#allocation5 + $0x8c] sm:$0x1f] %v6049
    %s6051 = scalar_lea.vmem [#allocation4], 232
    %v6052 = vld [vmem:[%s6051] sm:$0x1f]
    %6053 = vst [vmem:[#allocation5 + $0x91] sm:$0x1f] %v6052
    %s6054 = scalar_lea.vmem [#allocation4], 240
    %v6055 = vld [vmem:[%s6054] sm:$0x1f]
    %6056 = vst [vmem:[#allocation5 + $0x96] sm:$0x1f] %v6055
    %s6057 = scalar_lea.vmem [#allocation4], 248
    %v6058 = vld [vmem:[%s6057] sm:$0x1f]
    %6059 = vst [vmem:[#allocation5 + $0x9b] sm:$0x1f] %v6058
    %s6060 = scalar_lea.vmem [#allocation4], 256
    %v6061 = vld [vmem:[%s6060] sm:$0x1f]
    %6062 = vst [vmem:[#allocation5 + $0xa0] sm:$0x1f] %v6061
    %s6063 = scalar_lea.vmem [#allocation4], 264
    %v6064 = vld [vmem:[%s6063] sm:$0x1f]
    %6065 = vst [vmem:[#allocation5 + $0xa5] sm:$0x1f] %v6064
    %s6066 = scalar_lea.vmem [#allocation4], 272
    %v6067 = vld [vmem:[%s6066] sm:$0x1f]
    %6068 = vst [vmem:[#allocation5 + $0xaa] sm:$0x1f] %v6067
    %s6069 = scalar_lea.vmem [#allocation4], 280
    %v6070 = vld [vmem:[%s6069] sm:$0x1f]
    %6071 = vst [vmem:[#allocation5 + $0xaf] sm:$0x1f] %v6070
    %s6072 = scalar_lea.vmem [#allocation4], 288
    %v6073 = vld [vmem:[%s6072] sm:$0x1f]
    %6074 = vst [vmem:[#allocation5 + $0xb4] sm:$0x1f] %v6073
    %s6075 = scalar_lea.vmem [#allocation4], 296
    %v6076 = vld [vmem:[%s6075] sm:$0x1f]
    %6077 = vst [vmem:[#allocation5 + $0xb9] sm:$0x1f] %v6076
    %s6078 = scalar_lea.vmem [#allocation4], 304
    %v6079 = vld [vmem:[%s6078] sm:$0x1f]
    %6080 = vst [vmem:[#allocation5 + $0xbe] sm:$0x1f] %v6079
    %s6081 = scalar_lea.vmem [#allocation4], 312
    %v6082 = vld [vmem:[%s6081] sm:$0x1f]
    %6083 = vst [vmem:[#allocation5 + $0xc3] sm:$0x1f] %v6082
    %s6084 = scalar_lea.vmem [#allocation4], 320
    %v6085 = vld [vmem:[%s6084] sm:$0x1f]
    %6086 = vst [vmem:[#allocation5 + $0xc8] sm:$0x1f] %v6085
    %s6087 = scalar_lea.vmem [#allocation4], 328
    %v6088 = vld [vmem:[%s6087] sm:$0x1f]
    %6089 = vst [vmem:[#allocation5 + $0xcd] sm:$0x1f] %v6088
    %s6090 = scalar_lea.vmem [#allocation4], 336
    %v6091 = vld [vmem:[%s6090] sm:$0x1f]
    %6092 = vst [vmem:[#allocation5 + $0xd2] sm:$0x1f] %v6091
    %s6093 = scalar_lea.vmem [#allocation4], 344
    %v6094 = vld [vmem:[%s6093] sm:$0x1f]
    %6095 = vst [vmem:[#allocation5 + $0xd7] sm:$0x1f] %v6094
    %s6096 = scalar_lea.vmem [#allocation4], 352
    %v6097 = vld [vmem:[%s6096] sm:$0x1f]
    %6098 = vst [vmem:[#allocation5 + $0xdc] sm:$0x1f] %v6097
    %s6099 = scalar_lea.vmem [#allocation4], 360
    %v6100 = vld [vmem:[%s6099] sm:$0x1f]
    %6101 = vst [vmem:[#allocation5 + $0xe1] sm:$0x1f] %v6100
    %s6102 = scalar_lea.vmem [#allocation4], 368
    %v6103 = vld [vmem:[%s6102] sm:$0x1f]
    %6104 = vst [vmem:[#allocation5 + $0xe6] sm:$0x1f] %v6103
    %s6105 = scalar_lea.vmem [#allocation4], 376
    %v6106 = vld [vmem:[%s6105] sm:$0x1f]
    %6107 = vst [vmem:[#allocation5 + $0xeb] sm:$0x1f] %v6106
    %s6108 = scalar_lea.vmem [#allocation4], 384
    %v6109 = vld [vmem:[%s6108] sm:$0x1f]
    %6110 = vst [vmem:[#allocation5 + $0xf0] sm:$0x1f] %v6109
    %s6111 = scalar_lea.vmem [#allocation4], 392
    %v6112 = vld [vmem:[%s6111] sm:$0x1f]
    %6113 = vst [vmem:[#allocation5 + $0xf5] sm:$0x1f] %v6112
    %s6114 = scalar_lea.vmem [#allocation4], 400
    %v6115 = vld [vmem:[%s6114] sm:$0x1f]
    %6116 = vst [vmem:[#allocation5 + $0xfa] sm:$0x1f] %v6115
    %s6117 = scalar_lea.vmem [#allocation4], 408
    %v6118 = vld [vmem:[%s6117] sm:$0x1f]
    %6119 = vst [vmem:[#allocation5 + $0xff] sm:$0x1f] %v6118
    %s6120 = scalar_lea.vmem [#allocation4], 416
    %v6121 = vld [vmem:[%s6120] sm:$0x1f]
    %6122 = vst [vmem:[#allocation5 + $0x104] sm:$0x1f] %v6121
    %s6123 = scalar_lea.vmem [#allocation4], 424
    %v6124 = vld [vmem:[%s6123] sm:$0x1f]
    %6125 = vst [vmem:[#allocation5 + $0x109] sm:$0x1f] %v6124
    %s6126 = scalar_lea.vmem [#allocation4], 432
    %v6127 = vld [vmem:[%s6126] sm:$0x1f]
    %6128 = vst [vmem:[#allocation5 + $0x10e] sm:$0x1f] %v6127
    %s6129 = scalar_lea.vmem [#allocation4], 440
    %v6130 = vld [vmem:[%s6129] sm:$0x1f]
    %6131 = vst [vmem:[#allocation5 + $0x113] sm:$0x1f] %v6130
    %s6132 = scalar_lea.vmem [#allocation4], 448
    %v6133 = vld [vmem:[%s6132] sm:$0x1f]
    %6134 = vst [vmem:[#allocation5 + $0x118] sm:$0x1f] %v6133
    %s6135 = scalar_lea.vmem [#allocation4], 456
    %v6136 = vld [vmem:[%s6135] sm:$0x1f]
    %6137 = vst [vmem:[#allocation5 + $0x11d] sm:$0x1f] %v6136
    %s6138 = scalar_lea.vmem [#allocation4], 464
    %v6139 = vld [vmem:[%s6138] sm:$0x1f]
    %6140 = vst [vmem:[#allocation5 + $0x122] sm:$0x1f] %v6139
    %s6141 = scalar_lea.vmem [#allocation4], 472
    %v6142 = vld [vmem:[%s6141] sm:$0x1f]
    %6143 = vst [vmem:[#allocation5 + $0x127] sm:$0x1f] %v6142
    %s6144 = scalar_lea.vmem [#allocation4], 480
    %v6145 = vld [vmem:[%s6144] sm:$0x1f]
    %6146 = vst [vmem:[#allocation5 + $0x12c] sm:$0x1f] %v6145
    %s6147 = scalar_lea.vmem [#allocation4], 488
    %v6148 = vld [vmem:[%s6147] sm:$0x1f]
    %6149 = vst [vmem:[#allocation5 + $0x131] sm:$0x1f] %v6148
    %s6150 = scalar_lea.vmem [#allocation4], 496
    %v6151 = vld [vmem:[%s6150] sm:$0x1f]
    %6152 = vst [vmem:[#allocation5 + $0x136] sm:$0x1f] %v6151
    %s6153 = scalar_lea.vmem [#allocation4], 504
    %v6154 = vld [vmem:[%s6153] sm:$0x1f]
    %6155 = vst [vmem:[#allocation5 + $0x13b] sm:$0x1f] %v6154
    %s6156 = scalar_lea.vmem [#allocation4], 512
    %v6157 = vld [vmem:[%s6156] sm:$0x1f]
    %6158 = vst [vmem:[#allocation5 + $0x140] sm:$0x1f] %v6157
    %s6159 = scalar_lea.vmem [#allocation4], 520
    %v6160 = vld [vmem:[%s6159] sm:$0x1f]
    %6161 = vst [vmem:[#allocation5 + $0x145] sm:$0x1f] %v6160
    %s6162 = scalar_lea.vmem [#allocation4], 528
    %v6163 = vld [vmem:[%s6162] sm:$0x1f]
    %6164 = vst [vmem:[#allocation5 + $0x14a] sm:$0x1f] %v6163
    %s6165 = scalar_lea.vmem [#allocation4], 536
    %v6166 = vld [vmem:[%s6165] sm:$0x1f]
    %6167 = vst [vmem:[#allocation5 + $0x14f] sm:$0x1f] %v6166
    %s6168 = scalar_lea.vmem [#allocation4], 544
    %v6169 = vld [vmem:[%s6168] sm:$0x1f]
    %6170 = vst [vmem:[#allocation5 + $0x154] sm:$0x1f] %v6169
    %s6171 = scalar_lea.vmem [#allocation4], 552
    %v6172 = vld [vmem:[%s6171] sm:$0x1f]
    %6173 = vst [vmem:[#allocation5 + $0x159] sm:$0x1f] %v6172
    %s6174 = scalar_lea.vmem [#allocation4], 560
    %v6175 = vld [vmem:[%s6174] sm:$0x1f]
    %6176 = vst [vmem:[#allocation5 + $0x15e] sm:$0x1f] %v6175
    %s6177 = scalar_lea.vmem [#allocation4], 568
    %v6178 = vld [vmem:[%s6177] sm:$0x1f]
    %6179 = vst [vmem:[#allocation5 + $0x163] sm:$0x1f] %v6178
    %s6180 = scalar_lea.vmem [#allocation4], 576
    %v6181 = vld [vmem:[%s6180] sm:$0x1f]
    %6182 = vst [vmem:[#allocation5 + $0x168] sm:$0x1f] %v6181
    %s6183 = scalar_lea.vmem [#allocation4], 584
    %v6184 = vld [vmem:[%s6183] sm:$0x1f]
    %6185 = vst [vmem:[#allocation5 + $0x16d] sm:$0x1f] %v6184
    %s6186 = scalar_lea.vmem [#allocation4], 592
    %v6187 = vld [vmem:[%s6186] sm:$0x1f]
    %6188 = vst [vmem:[#allocation5 + $0x172] sm:$0x1f] %v6187
    %s6189 = scalar_lea.vmem [#allocation4], 600
    %v6190 = vld [vmem:[%s6189] sm:$0x1f]
    %6191 = vst [vmem:[#allocation5 + $0x177] sm:$0x1f] %v6190
    %s6192 = scalar_lea.vmem [#allocation4], 608
    %v6193 = vld [vmem:[%s6192] sm:$0x1f]
    %6194 = vst [vmem:[#allocation5 + $0x17c] sm:$0x1f] %v6193
    %s6195 = scalar_lea.vmem [#allocation4], 616
    %v6196 = vld [vmem:[%s6195] sm:$0x1f]
    %6197 = vst [vmem:[#allocation5 + $0x181] sm:$0x1f] %v6196
    %s6198 = scalar_lea.vmem [#allocation4], 624
    %v6199 = vld [vmem:[%s6198] sm:$0x1f]
    %6200 = vst [vmem:[#allocation5 + $0x186] sm:$0x1f] %v6199
    %s6201 = scalar_lea.vmem [#allocation4], 632
    %v6202 = vld [vmem:[%s6201] sm:$0x1f]
    %6203 = vst [vmem:[#allocation5 + $0x18b] sm:$0x1f] %v6202
    %v6204 = vld [vmem:[#allocation5] sm:$0xff]
    %v6205 = vld [vmem:[#allocation5 + $0x8] sm:$0xff]
    %v6206 = vld [vmem:[#allocation5 + $0x10] sm:$0xff]
    %v6207 = vld [vmem:[#allocation5 + $0x18] sm:$0xff]
    %v6208 = vld [vmem:[#allocation5 + $0x20] sm:$0xff]
    %v6209 = vld [vmem:[#allocation5 + $0x28] sm:$0xff]
    %v6210 = vld [vmem:[#allocation5 + $0x30] sm:$0xff]
    %v6211 = vld [vmem:[#allocation5 + $0x38] sm:$0xff]
    %v6212 = vld [vmem:[#allocation5 + $0x40] sm:$0xff]
    %v6213 = vld [vmem:[#allocation5 + $0x48] sm:$0xff]
    %v6214 = vld [vmem:[#allocation5 + $0x50] sm:$0xff]
    %v6215 = vld [vmem:[#allocation5 + $0x58] sm:$0xff]
    %v6216 = vld [vmem:[#allocation5 + $0x60] sm:$0xff]
    %v6217 = vld [vmem:[#allocation5 + $0x68] sm:$0xff]
    %v6218 = vld [vmem:[#allocation5 + $0x70] sm:$0xff]
    %v6219 = vld [vmem:[#allocation5 + $0x78] sm:$0xff]
    %v6220 = vld [vmem:[#allocation5 + $0x80] sm:$0xff]
    %v6221 = vld [vmem:[#allocation5 + $0x88] sm:$0xff]
    %v6222 = vld [vmem:[#allocation5 + $0x90] sm:$0xff]
    %v6223 = vld [vmem:[#allocation5 + $0x98] sm:$0xff]
    %v6224 = vld [vmem:[#allocation5 + $0xa0] sm:$0xff]
    %v6225 = vld [vmem:[#allocation5 + $0xa8] sm:$0xff]
    %v6226 = vld [vmem:[#allocation5 + $0xb0] sm:$0xff]
    %v6227 = vld [vmem:[#allocation5 + $0xb8] sm:$0xff]
    %v6228 = vld [vmem:[#allocation5 + $0xc0] sm:$0xff]
    %v6229 = vld [vmem:[#allocation5 + $0xc8] sm:$0xff]
    %v6230 = vld [vmem:[#allocation5 + $0xd0] sm:$0xff]
    %v6231 = vld [vmem:[#allocation5 + $0xd8] sm:$0xff]
    %v6232 = vld [vmem:[#allocation5 + $0xe0] sm:$0xff]
    %v6233 = vld [vmem:[#allocation5 + $0xe8] sm:$0xff]
    %v6234 = vld [vmem:[#allocation5 + $0xf0] sm:$0xff]
    %v6235 = vld [vmem:[#allocation5 + $0xf8] sm:$0xff]
    %v6236 = vld [vmem:[#allocation5 + $0x100] sm:$0xff]
    %v6237 = vld [vmem:[#allocation5 + $0x108] sm:$0xff]
    %v6238 = vld [vmem:[#allocation5 + $0x110] sm:$0xff]
    %v6239 = vld [vmem:[#allocation5 + $0x118] sm:$0xff]
    %v6240 = vld [vmem:[#allocation5 + $0x120] sm:$0xff]
    %v6241 = vld [vmem:[#allocation5 + $0x128] sm:$0xff]
    %v6242 = vld [vmem:[#allocation5 + $0x130] sm:$0xff]
    %v6243 = vld [vmem:[#allocation5 + $0x138] sm:$0xff]
    %v6244 = vld [vmem:[#allocation5 + $0x140] sm:$0xff]
    %v6245 = vld [vmem:[#allocation5 + $0x148] sm:$0xff]
    %v6246 = vld [vmem:[#allocation5 + $0x150] sm:$0xff]
    %v6247 = vld [vmem:[#allocation5 + $0x158] sm:$0xff]
    %v6248 = vld [vmem:[#allocation5 + $0x160] sm:$0xff]
    %v6249 = vld [vmem:[#allocation5 + $0x168] sm:$0xff]
    %v6250 = vld [vmem:[#allocation5 + $0x170] sm:$0xff]
    %v6251 = vld [vmem:[#allocation5 + $0x178] sm:$0xff]
    %v6252 = vld [vmem:[#allocation5 + $0x180] sm:$0xff]
    %v6253 = vld [vmem:[#allocation5 + $0x188] sm:$0xff]
    %v6254 = vld [vmem:[%s5] sm:$0xff]
    %v6255 = vld [vmem:[%s5 + $0x8] sm:$0xff]
    %v6256 = vld [vmem:[%s5 + $0x10] sm:$0xff]
    %v6257 = vld [vmem:[%s5 + $0x18] sm:$0xff]
    %v6258 = vld [vmem:[%s5 + $0x20] sm:$0xff]
    %v6259 = vld [vmem:[%s5 + $0x28] sm:$0xff]
    %v6260 = vld [vmem:[%s5 + $0x30] sm:$0xff]
    %v6261 = vld [vmem:[%s5 + $0x38] sm:$0xff]
    %v6262 = vld [vmem:[%s5 + $0x40] sm:$0xff]
    %v6263 = vld [vmem:[%s5 + $0x48] sm:$0xff]
    %v6264 = vld [vmem:[%s5 + $0x50] sm:$0xff]
    %v6265 = vld [vmem:[%s5 + $0x58] sm:$0xff]
    %v6266 = vld [vmem:[%s5 + $0x60] sm:$0xff]
    %v6267 = vld [vmem:[%s5 + $0x68] sm:$0xff]
    %v6268 = vld [vmem:[%s5 + $0x70] sm:$0xff]
    %v6269 = vld [vmem:[%s5 + $0x78] sm:$0xff]
    %v6270 = vld [vmem:[%s5 + $0x80] sm:$0xff]
    %v6271 = vld [vmem:[%s5 + $0x88] sm:$0xff]
    %v6272 = vld [vmem:[%s5 + $0x90] sm:$0xff]
    %v6273 = vld [vmem:[%s5 + $0x98] sm:$0xff]
    %v6274 = vld [vmem:[%s5 + $0xa0] sm:$0xff]
    %v6275 = vld [vmem:[%s5 + $0xa8] sm:$0xff]
    %v6276 = vld [vmem:[%s5 + $0xb0] sm:$0xff]
    %v6277 = vld [vmem:[%s5 + $0xb8] sm:$0xff]
    %v6278 = vld [vmem:[%s5 + $0xc0] sm:$0xff]
    %v6279 = vld [vmem:[%s5 + $0xc8] sm:$0xff]
    %v6280 = vld [vmem:[%s5 + $0xd0] sm:$0xff]
    %v6281 = vld [vmem:[%s5 + $0xd8] sm:$0xff]
    %v6282 = vld [vmem:[%s5 + $0xe0] sm:$0xff]
    %v6283 = vld [vmem:[%s5 + $0xe8] sm:$0xff]
    %v6284 = vld [vmem:[%s5 + $0xf0] sm:$0xff]
    %v6285 = vld [vmem:[%s5 + $0xf8] sm:$0xff]
    %v6286 = vld [vmem:[%s5 + $0x100] sm:$0xff]
    %v6287 = vld [vmem:[%s5 + $0x108] sm:$0xff]
    %v6288 = vld [vmem:[%s5 + $0x110] sm:$0xff]
    %v6289 = vld [vmem:[%s5 + $0x118] sm:$0xff]
    %v6290 = vld [vmem:[%s5 + $0x120] sm:$0xff]
    %v6291 = vld [vmem:[%s5 + $0x128] sm:$0xff]
    %v6292 = vld [vmem:[%s5 + $0x130] sm:$0xff]
    %v6293 = vld [vmem:[%s5 + $0x138] sm:$0xff]
    %v6294 = vld [vmem:[%s5 + $0x140] sm:$0xff]
    %v6295 = vld [vmem:[%s5 + $0x148] sm:$0xff]
    %v6296 = vld [vmem:[%s5 + $0x150] sm:$0xff]
    %v6297 = vld [vmem:[%s5 + $0x158] sm:$0xff]
    %v6298 = vld [vmem:[%s5 + $0x160] sm:$0xff]
    %v6299 = vld [vmem:[%s5 + $0x168] sm:$0xff]
    %v6300 = vld [vmem:[%s5 + $0x170] sm:$0xff]
    %v6301 = vld [vmem:[%s5 + $0x178] sm:$0xff]
    %v6302 = vld [vmem:[%s5 + $0x180] sm:$0xff]
    %v6303 = vld [vmem:[%s5 + $0x188] sm:$0xff]
    %v6304 = vld [vmem:[%s5 + $0x190] sm:$0xff]
    %v6305 = vld [vmem:[%s5 + $0x198] sm:$0xff]
    %v6306 = vld [vmem:[%s5 + $0x1a0] sm:$0xff]
    %v6307 = vld [vmem:[%s5 + $0x1a8] sm:$0xff]
    %v6308 = vld [vmem:[%s5 + $0x1b0] sm:$0xff]
    %v6309 = vld [vmem:[%s5 + $0x1b8] sm:$0xff]
    %v6310 = vld [vmem:[%s5 + $0x1c0] sm:$0xff]
    %v6311 = vld [vmem:[%s5 + $0x1c8] sm:$0xff]
    %v6312 = vld [vmem:[%s5 + $0x1d0] sm:$0xff]
    %v6313 = vld [vmem:[%s5 + $0x1d8] sm:$0xff]
    %v6314 = vld [vmem:[%s5 + $0x1e0] sm:$0xff]
    %v6315 = vld [vmem:[%s5 + $0x1e8] sm:$0xff]
    %v6316 = vld [vmem:[%s5 + $0x1f0] sm:$0xff]
    %v6317 = vld [vmem:[%s5 + $0x1f8] sm:$0xff]
    %v6318 = vld [vmem:[%s6] sm:$0xff]
    %v6319 = vld [vmem:[%s6 + $0x8] sm:$0xff]
    %v6320 = vld [vmem:[%s6 + $0x10] sm:$0xff]
    %v6321 = vld [vmem:[%s6 + $0x18] sm:$0xff]
    %v6322 = vld [vmem:[%s6 + $0x20] sm:$0xff]
    %v6323 = vld [vmem:[%s6 + $0x28] sm:$0xff]
    %v6324 = vld [vmem:[%s6 + $0x30] sm:$0xff]
    %v6325 = vld [vmem:[%s6 + $0x38] sm:$0xff]
    %v6326 = vld [vmem:[%s6 + $0x40] sm:$0xff]
    %v6327 = vld [vmem:[%s6 + $0x48] sm:$0xff]
    %v6328 = vld [vmem:[%s6 + $0x50] sm:$0xff]
    %v6329 = vld [vmem:[%s6 + $0x58] sm:$0xff]
    %v6330 = vld [vmem:[%s6 + $0x60] sm:$0xff]
    %v6331 = vld [vmem:[%s6 + $0x68] sm:$0xff]
    %v6332 = vld [vmem:[%s6 + $0x70] sm:$0xff]
    %v6333 = vld [vmem:[%s6 + $0x78] sm:$0xff]
    %6335 = vset.pattern.permute.xlu0 0
    %6336 = vperm.xlu0 %6335, %v6318
    %v6337 = vpop.permute.xlu0 %6336
    %6340 = vset.pattern.permute.xlu0 0
    %6341 = vperm.xlu0 %6340, %v6319
    %v6342 = vpop.permute.xlu0 %6341
    %6345 = vset.pattern.permute.xlu0 0
    %6346 = vperm.xlu0 %6345, %v6320
    %v6347 = vpop.permute.xlu0 %6346
    %6350 = vset.pattern.permute.xlu0 0
    %6351 = vperm.xlu0 %6350, %v6321
    %v6352 = vpop.permute.xlu0 %6351
    %6355 = vset.pattern.permute.xlu0 0
    %6356 = vperm.xlu0 %6355, %v6322
    %v6357 = vpop.permute.xlu0 %6356
    %6360 = vset.pattern.permute.xlu0 0
    %6361 = vperm.xlu0 %6360, %v6323
    %v6362 = vpop.permute.xlu0 %6361
    %6365 = vset.pattern.permute.xlu0 0
    %6366 = vperm.xlu0 %6365, %v6324
    %v6367 = vpop.permute.xlu0 %6366
    %6370 = vset.pattern.permute.xlu0 0
    %6371 = vperm.xlu0 %6370, %v6325
    %v6372 = vpop.permute.xlu0 %6371
    %6375 = vset.pattern.permute.xlu0 0
    %6376 = vperm.xlu0 %6375, %v6326
    %v6377 = vpop.permute.xlu0 %6376
    %6380 = vset.pattern.permute.xlu0 0
    %6381 = vperm.xlu0 %6380, %v6327
    %v6382 = vpop.permute.xlu0 %6381
    %6385 = vset.pattern.permute.xlu0 0
    %6386 = vperm.xlu0 %6385, %v6328
    %v6387 = vpop.permute.xlu0 %6386
    %6390 = vset.pattern.permute.xlu0 0
    %6391 = vperm.xlu0 %6390, %v6329
    %v6392 = vpop.permute.xlu0 %6391
    %6395 = vset.pattern.permute.xlu0 0
    %6396 = vperm.xlu0 %6395, %v6330
    %v6397 = vpop.permute.xlu0 %6396
    %6400 = vset.pattern.permute.xlu0 0
    %6401 = vperm.xlu0 %6400, %v6331
    %v6402 = vpop.permute.xlu0 %6401
    %6405 = vset.pattern.permute.xlu0 0
    %6406 = vperm.xlu0 %6405, %v6332
    %v6407 = vpop.permute.xlu0 %6406
    %6410 = vset.pattern.permute.xlu0 0
    %6411 = vperm.xlu0 %6410, %v6333
    %v6412 = vpop.permute.xlu0 %6411
    %vm6414 = vcmask 130048
    %v6416 = vsel %vm6414, %v6257, 0
    %v6419 = vsel %vm6414, %v6261, 0
    %v6422 = vsel %vm6414, %v6265, 0
    %v6425 = vsel %vm6414, %v6269, 0
    %v6428 = vsel %vm6414, %v6273, 0
    %v6431 = vsel %vm6414, %v6277, 0
    %v6434 = vsel %vm6414, %v6281, 0
    %v6437 = vsel %vm6414, %v6285, 0
    %v6440 = vsel %vm6414, %v6289, 0
    %v6443 = vsel %vm6414, %v6293, 0
    %v6446 = vsel %vm6414, %v6297, 0
    %v6449 = vsel %vm6414, %v6301, 0
    %v6452 = vsel %vm6414, %v6305, 0
    %v6455 = vsel %vm6414, %v6309, 0
    %v6458 = vsel %vm6414, %v6313, 0
    %v6461 = vsel %vm6414, %v6317, 0
    %6463 = vmatprep.subr.mxu0 0.0
    %6464 = vmatpush1.msra.mxu0 %v6219
    %6465 = vmatprep.subr.mxu0 0.0
    %6466 = vmatpush1.msra.mxu0 %v6218
    %6467 = vmatprep.subr.mxu0 0.0
    %6468 = vmatpush1.msra.mxu0 %v6217
    %6469 = vmatprep.subr.mxu0 0.0
    %6470 = vmatpush1.msra.mxu0 %v6216
    %6471 = vmatprep.subr.mxu0 0.0
    %6472 = vmatpush1.msra.mxu0 %v6215
    %6473 = vmatprep.subr.mxu0 0.0
    %6474 = vmatpush1.msra.mxu0 %v6214
    %6475 = vmatprep.subr.mxu0 0.0
    %6476 = vmatpush1.msra.mxu0 %v6213
    %6477 = vmatprep.subr.mxu0 0.0
    %6478 = vmatpush1.msra.mxu0 %v6212
    %6479 = vmatprep.subr.mxu0 0.0
    %6480 = vmatpush1.msra.mxu0 %v6211
    %6481 = vmatprep.subr.mxu0 0.0
    %6482 = vmatpush1.msra.mxu0 %v6210
    %6483 = vmatprep.subr.mxu0 0.0
    %6484 = vmatpush1.msra.mxu0 %v6209
    %6485 = vmatprep.subr.mxu0 0.0
    %6486 = vmatpush1.msra.mxu0 %v6208
    %6487 = vmatprep.subr.mxu0 0.0
    %6488 = vmatpush1.msra.mxu0 %v6207
    %6489 = vmatprep.subr.mxu0 0.0
    %6490 = vmatpush1.msra.mxu0 %v6206
    %6491 = vmatprep.subr.mxu0 0.0
    %6492 = vmatpush1.msra.mxu0 %v6205
    %6493 = vmatprep.subr.mxu0 0.0
    %6494 = vmatpush1.msra.mxu0 %v6204
    %6495 = vmatprep.subr.mxu0 0.0
    %6496 = vmatpush2.msra.mxu0 %v6235
    %6497 = vmatprep.subr.mxu0 0.0
    %6498 = vmatpush2.msra.mxu0 %v6234
    %6499 = vmatprep.subr.mxu0 0.0
    %6500 = vmatpush2.msra.mxu0 %v6233
    %6501 = vmatprep.subr.mxu0 0.0
    %6502 = vmatpush2.msra.mxu0 %v6232
    %6503 = vmatprep.subr.mxu0 0.0
    %6504 = vmatpush2.msra.mxu0 %v6231
    %6505 = vmatprep.subr.mxu0 0.0
    %6506 = vmatpush2.msra.mxu0 %v6230
    %6507 = vmatprep.subr.mxu0 0.0
    %6508 = vmatpush2.msra.mxu0 %v6229
    %6509 = vmatprep.subr.mxu0 0.0
    %6510 = vmatpush2.msra.mxu0 %v6228
    %6511 = vmatprep.subr.mxu0 0.0
    %6512 = vmatpush2.msra.mxu0 %v6227
    %6513 = vmatprep.subr.mxu0 0.0
    %6514 = vmatpush2.msra.mxu0 %v6226
    %6515 = vmatprep.subr.mxu0 0.0
    %6516 = vmatpush2.msra.mxu0 %v6225
    %6517 = vmatprep.subr.mxu0 0.0
    %6518 = vmatpush2.msra.mxu0 %v6224
    %6519 = vmatprep.subr.mxu0 0.0
    %6520 = vmatpush2.msra.mxu0 %v6223
    %6521 = vmatprep.subr.mxu0 0.0
    %6522 = vmatpush2.msra.mxu0 %v6222
    %6523 = vmatprep.subr.mxu0 0.0
    %6524 = vmatpush2.msra.mxu0 %v6221
    %6525 = vmatprep.subr.mxu0 0.0
    %6526 = vmatpush2.msra.mxu0 %v6220
    %6527 = vmatprep.mubr.f32.mxu0 %v6255
    %6528 = vmatmul.mubr.f32.gmra.mxu0 %v6254
    %v6529 = vpop.f32.mrf.mxu0
    %v6530 = vadd.f32 %v6337, %v6529
    %v6531 = vpop.f32.mrf.mxu0
    %6532 = vmatprep.mubr.f32.mxu0 %v6259
    %6533 = vmatmul.mubr.f32.gmra.mxu0 %v6258
    %v6534 = vpop.f32.mrf.mxu0
    %v6535 = vadd.f32 %v6342, %v6534
    %v6536 = vpop.f32.mrf.mxu0
    %6537 = vmatprep.mubr.f32.mxu0 %v6263
    %6538 = vmatmul.mubr.f32.gmra.mxu0 %v6262
    %v6539 = vpop.f32.mrf.mxu0
    %v6540 = vadd.f32 %v6347, %v6539
    %v6541 = vpop.f32.mrf.mxu0
    %6542 = vmatprep.mubr.f32.mxu0 %v6267
    %6543 = vmatmul.mubr.f32.gmra.mxu0 %v6266
    %v6544 = vpop.f32.mrf.mxu0
    %v6545 = vadd.f32 %v6352, %v6544
    %v6546 = vpop.f32.mrf.mxu0
    %6547 = vmatprep.mubr.f32.mxu0 %v6271
    %6548 = vmatmul.mubr.f32.gmra.mxu0 %v6270
    %v6549 = vpop.f32.mrf.mxu0
    %v6550 = vadd.f32 %v6357, %v6549
    %v6551 = vpop.f32.mrf.mxu0
    %6552 = vmatprep.mubr.f32.mxu0 %v6275
    %6553 = vmatmul.mubr.f32.gmra.mxu0 %v6274
    %v6554 = vpop.f32.mrf.mxu0
    %v6555 = vadd.f32 %v6362, %v6554
    %v6556 = vpop.f32.mrf.mxu0
    %6557 = vmatprep.mubr.f32.mxu0 %v6279
    %6558 = vmatmul.mubr.f32.gmra.mxu0 %v6278
    %v6559 = vpop.f32.mrf.mxu0
    %v6560 = vadd.f32 %v6367, %v6559
    %v6561 = vpop.f32.mrf.mxu0
    %6562 = vmatprep.mubr.f32.mxu0 %v6283
    %6563 = vmatmul.mubr.f32.gmra.mxu0 %v6282
    %v6564 = vpop.f32.mrf.mxu0
    %v6565 = vadd.f32 %v6372, %v6564
    %v6566 = vpop.f32.mrf.mxu0
    %6567 = vmatprep.mubr.f32.mxu0 %v6287
    %6568 = vmatmul.mubr.f32.gmra.mxu0 %v6286
    %v6569 = vpop.f32.mrf.mxu0
    %v6570 = vadd.f32 %v6377, %v6569
    %v6571 = vpop.f32.mrf.mxu0
    %6572 = vmatprep.mubr.f32.mxu0 %v6291
    %6573 = vmatmul.mubr.f32.gmra.mxu0 %v6290
    %v6574 = vpop.f32.mrf.mxu0
    %v6575 = vadd.f32 %v6382, %v6574
    %v6576 = vpop.f32.mrf.mxu0
    %6577 = vmatprep.mubr.f32.mxu0 %v6295
    %6578 = vmatmul.mubr.f32.gmra.mxu0 %v6294
    %v6579 = vpop.f32.mrf.mxu0
    %v6580 = vadd.f32 %v6387, %v6579
    %v6581 = vpop.f32.mrf.mxu0
    %6582 = vmatprep.mubr.f32.mxu0 %v6299
    %6583 = vmatmul.mubr.f32.gmra.mxu0 %v6298
    %v6584 = vpop.f32.mrf.mxu0
    %v6585 = vadd.f32 %v6392, %v6584
    %v6586 = vpop.f32.mrf.mxu0
    %6587 = vmatprep.mubr.f32.mxu0 %v6303
    %6588 = vmatmul.mubr.f32.gmra.mxu0 %v6302
    %v6589 = vpop.f32.mrf.mxu0
    %v6590 = vadd.f32 %v6397, %v6589
    %v6591 = vpop.f32.mrf.mxu0
    %6592 = vmatprep.mubr.f32.mxu0 %v6307
    %6593 = vmatmul.mubr.f32.gmra.mxu0 %v6306
    %v6594 = vpop.f32.mrf.mxu0
    %v6595 = vadd.f32 %v6402, %v6594
    %v6596 = vpop.f32.mrf.mxu0
    %6597 = vmatprep.mubr.f32.mxu0 %v6311
    %6598 = vmatmul.mubr.f32.gmra.mxu0 %v6310
    %v6599 = vpop.f32.mrf.mxu0
    %v6600 = vadd.f32 %v6407, %v6599
    %v6601 = vpop.f32.mrf.mxu0
    %6602 = vmatprep.mubr.f32.mxu0 %v6315
    %6603 = vmatmul.mubr.f32.gmra.mxu0 %v6314
    %v6604 = vpop.f32.mrf.mxu0
    %v6605 = vadd.f32 %v6412, %v6604
    %v6606 = vpop.f32.mrf.mxu0
    %6607 = vdwg.mxu0
    %6608 = vmatprep.subr.mxu0 0.0
    %6609 = vmatpush1.msra.mxu0 %v6251
    %6610 = vmatprep.subr.mxu0 0.0
    %6611 = vmatpush1.msra.mxu0 %v6250
    %6612 = vmatprep.subr.mxu0 0.0
    %6613 = vmatpush1.msra.mxu0 %v6249
    %6614 = vmatprep.subr.mxu0 0.0
    %6615 = vmatpush1.msra.mxu0 %v6248
    %6616 = vmatprep.subr.mxu0 0.0
    %6617 = vmatpush1.msra.mxu0 %v6247
    %6618 = vmatprep.subr.mxu0 0.0
    %6619 = vmatpush1.msra.mxu0 %v6246
    %6620 = vmatprep.subr.mxu0 0.0
    %6621 = vmatpush1.msra.mxu0 %v6245
    %6622 = vmatprep.subr.mxu0 0.0
    %6623 = vmatpush1.msra.mxu0 %v6244
    %6624 = vmatprep.subr.mxu0 0.0
    %6625 = vmatpush1.msra.mxu0 %v6243
    %6626 = vmatprep.subr.mxu0 0.0
    %6627 = vmatpush1.msra.mxu0 %v6242
    %6628 = vmatprep.subr.mxu0 0.0
    %6629 = vmatpush1.msra.mxu0 %v6241
    %6630 = vmatprep.subr.mxu0 0.0
    %6631 = vmatpush1.msra.mxu0 %v6240
    %6632 = vmatprep.subr.mxu0 0.0
    %6633 = vmatpush1.msra.mxu0 %v6239
    %6634 = vmatprep.subr.mxu0 0.0
    %6635 = vmatpush1.msra.mxu0 %v6238
    %6636 = vmatprep.subr.mxu0 0.0
    %6637 = vmatpush1.msra.mxu0 %v6237
    %6638 = vmatprep.subr.mxu0 0.0
    %6639 = vmatpush1.msra.mxu0 %v6236
    %6640 = vmatprep.subr.mxu0 0.0
    %6641 = vmatpush2.msra.mxu0 0.0
    %6642 = vmatprep.subr.mxu0 0.0
    %6643 = vmatpush2.msra.mxu0 0.0
    %6644 = vmatprep.subr.mxu0 0.0
    %6645 = vmatpush2.msra.mxu0 0.0
    %6646 = vmatprep.subr.mxu0 0.0
    %6647 = vmatpush2.msra.mxu0 0.0
    %6648 = vmatprep.subr.mxu0 0.0
    %6649 = vmatpush2.msra.mxu0 0.0
    %6650 = vmatprep.subr.mxu0 0.0
    %6651 = vmatpush2.msra.mxu0 0.0
    %6652 = vmatprep.subr.mxu0 0.0
    %6653 = vmatpush2.msra.mxu0 0.0
    %6654 = vmatprep.subr.mxu0 0.0
    %6655 = vmatpush2.msra.mxu0 0.0
    %6656 = vmatprep.subr.mxu0 0.0
    %6657 = vmatpush2.msra.mxu0 0.0
    %6658 = vmatprep.subr.mxu0 0.0
    %6659 = vmatpush2.msra.mxu0 0.0
    %6660 = vmatprep.subr.mxu0 0.0
    %6661 = vmatpush2.msra.mxu0 0.0
    %6662 = vmatprep.subr.mxu0 0.0
    %6663 = vmatpush2.msra.mxu0 0.0
    %6664 = vmatprep.subr.mxu0 0.0
    %6665 = vmatpush2.msra.mxu0 0.0
    %6666 = vmatprep.subr.mxu0 0.0
    %6667 = vmatpush2.msra.mxu0 0.0
    %6668 = vmatprep.subr.mxu0 0.0
    %6669 = vmatpush2.msra.mxu0 %v6253
    %6670 = vmatprep.subr.mxu0 0.0
    %6671 = vmatpush2.msra.mxu0 %v6252
    %6672 = vmatprep.mubr.f32.mxu0 %v6416
    %6673 = vmatmul.mubr.f32.gmra.mxu0 %v6256
    %v6674 = vpop.f32.mrf.mxu0
    %v6675 = vadd.f32 %v6530, %v6674
    %v6676 = vpop.f32.mrf.mxu0
    %6677 = vmatprep.mubr.f32.mxu0 %v6419
    %6678 = vmatmul.mubr.f32.gmra.mxu0 %v6260
    %v6679 = vpop.f32.mrf.mxu0
    %v6680 = vadd.f32 %v6535, %v6679
    %v6681 = vpop.f32.mrf.mxu0
    %6682 = vmatprep.mubr.f32.mxu0 %v6422
    %6683 = vmatmul.mubr.f32.gmra.mxu0 %v6264
    %v6684 = vpop.f32.mrf.mxu0
    %v6685 = vadd.f32 %v6540, %v6684
    %v6686 = vpop.f32.mrf.mxu0
    %6687 = vmatprep.mubr.f32.mxu0 %v6425
    %6688 = vmatmul.mubr.f32.gmra.mxu0 %v6268
    %v6689 = vpop.f32.mrf.mxu0
    %v6690 = vadd.f32 %v6545, %v6689
    %v6691 = vpop.f32.mrf.mxu0
    %6692 = vmatprep.mubr.f32.mxu0 %v6428
    %6693 = vmatmul.mubr.f32.gmra.mxu0 %v6272
    %v6694 = vpop.f32.mrf.mxu0
    %v6695 = vadd.f32 %v6550, %v6694
    %v6696 = vpop.f32.mrf.mxu0
    %6697 = vmatprep.mubr.f32.mxu0 %v6431
    %6698 = vmatmul.mubr.f32.gmra.mxu0 %v6276
    %v6699 = vpop.f32.mrf.mxu0
    %v6700 = vadd.f32 %v6555, %v6699
    %v6701 = vpop.f32.mrf.mxu0
    %6702 = vmatprep.mubr.f32.mxu0 %v6434
    %6703 = vmatmul.mubr.f32.gmra.mxu0 %v6280
    %v6704 = vpop.f32.mrf.mxu0
    %v6705 = vadd.f32 %v6560, %v6704
    %v6706 = vpop.f32.mrf.mxu0
    %6707 = vmatprep.mubr.f32.mxu0 %v6437
    %6708 = vmatmul.mubr.f32.gmra.mxu0 %v6284
    %v6709 = vpop.f32.mrf.mxu0
    %v6710 = vadd.f32 %v6565, %v6709
    %v6711 = vpop.f32.mrf.mxu0
    %6712 = vmatprep.mubr.f32.mxu0 %v6440
    %6713 = vmatmul.mubr.f32.gmra.mxu0 %v6288
    %v6714 = vpop.f32.mrf.mxu0
    %v6715 = vadd.f32 %v6570, %v6714
    %v6716 = vpop.f32.mrf.mxu0
    %6717 = vmatprep.mubr.f32.mxu0 %v6443
    %6718 = vmatmul.mubr.f32.gmra.mxu0 %v6292
    %v6719 = vpop.f32.mrf.mxu0
    %v6720 = vadd.f32 %v6575, %v6719
    %v6721 = vpop.f32.mrf.mxu0
    %6722 = vmatprep.mubr.f32.mxu0 %v6446
    %6723 = vmatmul.mubr.f32.gmra.mxu0 %v6296
    %v6724 = vpop.f32.mrf.mxu0
    %v6725 = vadd.f32 %v6580, %v6724
    %v6726 = vpop.f32.mrf.mxu0
    %6727 = vmatprep.mubr.f32.mxu0 %v6449
    %6728 = vmatmul.mubr.f32.gmra.mxu0 %v6300
    %v6729 = vpop.f32.mrf.mxu0
    %v6730 = vadd.f32 %v6585, %v6729
    %v6731 = vpop.f32.mrf.mxu0
    %6732 = vmatprep.mubr.f32.mxu0 %v6452
    %6733 = vmatmul.mubr.f32.gmra.mxu0 %v6304
    %v6734 = vpop.f32.mrf.mxu0
    %v6735 = vadd.f32 %v6590, %v6734
    %v6736 = vpop.f32.mrf.mxu0
    %6737 = vmatprep.mubr.f32.mxu0 %v6455
    %6738 = vmatmul.mubr.f32.gmra.mxu0 %v6308
    %v6739 = vpop.f32.mrf.mxu0
    %v6740 = vadd.f32 %v6595, %v6739
    %v6741 = vpop.f32.mrf.mxu0
    %6742 = vmatprep.mubr.f32.mxu0 %v6458
    %6743 = vmatmul.mubr.f32.gmra.mxu0 %v6312
    %v6744 = vpop.f32.mrf.mxu0
    %v6745 = vadd.f32 %v6600, %v6744
    %v6746 = vpop.f32.mrf.mxu0
    %6747 = vmatprep.mubr.f32.mxu0 %v6461
    %6748 = vmatmul.mubr.f32.gmra.mxu0 %v6316
    %v6749 = vpop.f32.mrf.mxu0
    %v6750 = vadd.f32 %v6605, %v6749
    %v6751 = vpop.f32.mrf.mxu0
    %6752 = vdwg.mxu0
    %v6753 = vmax.f32 %v6675, 0.0
    %v6754 = vmax.f32 %v6680, 0.0
    %v6755 = vmax.f32 %v6685, 0.0
    %v6756 = vmax.f32 %v6690, 0.0
    %v6757 = vmax.f32 %v6695, 0.0
    %v6758 = vmax.f32 %v6700, 0.0
    %v6759 = vmax.f32 %v6705, 0.0
    %v6760 = vmax.f32 %v6710, 0.0
    %v6761 = vmax.f32 %v6715, 0.0
    %v6762 = vmax.f32 %v6720, 0.0
    %v6763 = vmax.f32 %v6725, 0.0
    %v6764 = vmax.f32 %v6730, 0.0
    %v6765 = vmax.f32 %v6735, 0.0
    %v6766 = vmax.f32 %v6740, 0.0
    %v6767 = vmax.f32 %v6745, 0.0
    %v6768 = vmax.f32 %v6750, 0.0
    %v6769 = vld [vmem:[%s7] sm:$0xff]
    %v6770 = vld [vmem:[%s7 + $0x8] sm:$0xff]
    %v6771 = vld [vmem:[%s7 + $0x10] sm:$0xff]
    %v6772 = vld [vmem:[%s7 + $0x18] sm:$0xff]
    %v6773 = vld [vmem:[%s7 + $0x20] sm:$0xff]
    %v6774 = vld [vmem:[%s7 + $0x28] sm:$0xff]
    %v6775 = vld [vmem:[%s7 + $0x30] sm:$0xff]
    %v6776 = vld [vmem:[%s7 + $0x38] sm:$0xff]
    %v6777 = vld [vmem:[%s7 + $0x40] sm:$0xff]
    %v6778 = vld [vmem:[%s7 + $0x48] sm:$0xff]
    %v6779 = vld [vmem:[%s7 + $0x50] sm:$0xff]
    %v6780 = vld [vmem:[%s7 + $0x58] sm:$0xff]
    %v6781 = vld [vmem:[%s7 + $0x60] sm:$0xff]
    %v6782 = vld [vmem:[%s7 + $0x68] sm:$0xff]
    %v6783 = vld [vmem:[%s7 + $0x70] sm:$0xff]
    %v6784 = vld [vmem:[%s7 + $0x78] sm:$0xff]
    %v6785 = vld [vmem:[%s8] sm:$0xff]
    %v6786 = vld [vmem:[%s8 + $0x8] sm:$0xff]
    %v6787 = vld [vmem:[%s8 + $0x10] sm:$0xff]
    %v6788 = vld [vmem:[%s8 + $0x18] sm:$0xff]
    %v6789 = vld [vmem:[%s8 + $0x20] sm:$0xff]
    %v6790 = vld [vmem:[%s8 + $0x28] sm:$0xff]
    %v6791 = vld [vmem:[%s8 + $0x30] sm:$0xff]
    %v6792 = vld [vmem:[%s8 + $0x38] sm:$0xff]
    %v6793 = vld [vmem:[%s8 + $0x40] sm:$0xff]
    %v6794 = vld [vmem:[%s8 + $0x48] sm:$0xff]
    %v6795 = vld [vmem:[%s8 + $0x50] sm:$0xff]
    %v6796 = vld [vmem:[%s8 + $0x58] sm:$0xff]
    %v6797 = vld [vmem:[%s8 + $0x60] sm:$0xff]
    %v6798 = vld [vmem:[%s8 + $0x68] sm:$0xff]
    %v6799 = vld [vmem:[%s8 + $0x70] sm:$0xff]
    %v6800 = vld [vmem:[%s8 + $0x78] sm:$0xff]
    %6802 = vset.pattern.permute.xlu0 0
    %6803 = vperm.xlu0 %6802, %v6785
    %v6804 = vpop.permute.xlu0 %6803
    %6807 = vset.pattern.permute.xlu0 0
    %6808 = vperm.xlu0 %6807, %v6786
    %v6809 = vpop.permute.xlu0 %6808
    %6812 = vset.pattern.permute.xlu0 0
    %6813 = vperm.xlu0 %6812, %v6787
    %v6814 = vpop.permute.xlu0 %6813
    %6817 = vset.pattern.permute.xlu0 0
    %6818 = vperm.xlu0 %6817, %v6788
    %v6819 = vpop.permute.xlu0 %6818
    %6822 = vset.pattern.permute.xlu0 0
    %6823 = vperm.xlu0 %6822, %v6789
    %v6824 = vpop.permute.xlu0 %6823
    %6827 = vset.pattern.permute.xlu0 0
    %6828 = vperm.xlu0 %6827, %v6790
    %v6829 = vpop.permute.xlu0 %6828
    %6832 = vset.pattern.permute.xlu0 0
    %6833 = vperm.xlu0 %6832, %v6791
    %v6834 = vpop.permute.xlu0 %6833
    %6837 = vset.pattern.permute.xlu0 0
    %6838 = vperm.xlu0 %6837, %v6792
    %v6839 = vpop.permute.xlu0 %6838
    %6842 = vset.pattern.permute.xlu0 0
    %6843 = vperm.xlu0 %6842, %v6793
    %v6844 = vpop.permute.xlu0 %6843
    %6847 = vset.pattern.permute.xlu0 0
    %6848 = vperm.xlu0 %6847, %v6794
    %v6849 = vpop.permute.xlu0 %6848
    %6852 = vset.pattern.permute.xlu0 0
    %6853 = vperm.xlu0 %6852, %v6795
    %v6854 = vpop.permute.xlu0 %6853
    %6857 = vset.pattern.permute.xlu0 0
    %6858 = vperm.xlu0 %6857, %v6796
    %v6859 = vpop.permute.xlu0 %6858
    %6862 = vset.pattern.permute.xlu0 0
    %6863 = vperm.xlu0 %6862, %v6797
    %v6864 = vpop.permute.xlu0 %6863
    %6867 = vset.pattern.permute.xlu0 0
    %6868 = vperm.xlu0 %6867, %v6798
    %v6869 = vpop.permute.xlu0 %6868
    %6872 = vset.pattern.permute.xlu0 0
    %6873 = vperm.xlu0 %6872, %v6799
    %v6874 = vpop.permute.xlu0 %6873
    %6877 = vset.pattern.permute.xlu0 0
    %6878 = vperm.xlu0 %6877, %v6800
    %v6879 = vpop.permute.xlu0 %6878
    %6881 = vmatprep.subr.mxu0 0.0
    %6882 = vmatpush1.msra.mxu0 %v6768
    %6883 = vmatprep.subr.mxu0 0.0
    %6884 = vmatpush1.msra.mxu0 %v6767
    %6885 = vmatprep.subr.mxu0 0.0
    %6886 = vmatpush1.msra.mxu0 %v6766
    %6887 = vmatprep.subr.mxu0 0.0
    %6888 = vmatpush1.msra.mxu0 %v6765
    %6889 = vmatprep.subr.mxu0 0.0
    %6890 = vmatpush1.msra.mxu0 %v6764
    %6891 = vmatprep.subr.mxu0 0.0
    %6892 = vmatpush1.msra.mxu0 %v6763
    %6893 = vmatprep.subr.mxu0 0.0
    %6894 = vmatpush1.msra.mxu0 %v6762
    %6895 = vmatprep.subr.mxu0 0.0
    %6896 = vmatpush1.msra.mxu0 %v6761
    %6897 = vmatprep.subr.mxu0 0.0
    %6898 = vmatpush1.msra.mxu0 %v6760
    %6899 = vmatprep.subr.mxu0 0.0
    %6900 = vmatpush1.msra.mxu0 %v6759
    %6901 = vmatprep.subr.mxu0 0.0
    %6902 = vmatpush1.msra.mxu0 %v6758
    %6903 = vmatprep.subr.mxu0 0.0
    %6904 = vmatpush1.msra.mxu0 %v6757
    %6905 = vmatprep.subr.mxu0 0.0
    %6906 = vmatpush1.msra.mxu0 %v6756
    %6907 = vmatprep.subr.mxu0 0.0
    %6908 = vmatpush1.msra.mxu0 %v6755
    %6909 = vmatprep.subr.mxu0 0.0
    %6910 = vmatpush1.msra.mxu0 %v6754
    %6911 = vmatprep.subr.mxu0 0.0
    %6912 = vmatpush1.msra.mxu0 %v6753
    %6913 = vmatprep.subr.mxu0 0.0
    %6914 = vmatpush2.msra.mxu0 0.0
    %6915 = vmatprep.subr.mxu0 0.0
    %6916 = vmatpush2.msra.mxu0 0.0
    %6917 = vmatprep.subr.mxu0 0.0
    %6918 = vmatpush2.msra.mxu0 0.0
    %6919 = vmatprep.subr.mxu0 0.0
    %6920 = vmatpush2.msra.mxu0 0.0
    %6921 = vmatprep.subr.mxu0 0.0
    %6922 = vmatpush2.msra.mxu0 0.0
    %6923 = vmatprep.subr.mxu0 0.0
    %6924 = vmatpush2.msra.mxu0 0.0
    %6925 = vmatprep.subr.mxu0 0.0
    %6926 = vmatpush2.msra.mxu0 0.0
    %6927 = vmatprep.subr.mxu0 0.0
    %6928 = vmatpush2.msra.mxu0 0.0
    %6929 = vmatprep.subr.mxu0 0.0
    %6930 = vmatpush2.msra.mxu0 0.0
    %6931 = vmatprep.subr.mxu0 0.0
    %6932 = vmatpush2.msra.mxu0 0.0
    %6933 = vmatprep.subr.mxu0 0.0
    %6934 = vmatpush2.msra.mxu0 0.0
    %6935 = vmatprep.subr.mxu0 0.0
    %6936 = vmatpush2.msra.mxu0 0.0
    %6937 = vmatprep.subr.mxu0 0.0
    %6938 = vmatpush2.msra.mxu0 0.0
    %6939 = vmatprep.subr.mxu0 0.0
    %6940 = vmatpush2.msra.mxu0 0.0
    %6941 = vmatprep.subr.mxu0 0.0
    %6942 = vmatpush2.msra.mxu0 0.0
    %6943 = vmatprep.subr.mxu0 0.0
    %6944 = vmatpush2.msra.mxu0 0.0
    %6945 = vmatprep.mubr.f32.mxu0 0.0
    %6946 = vmatmul.mubr.f32.gmra.mxu0 %v6769
    %v6947 = vpop.f32.mrf.mxu0
    %v6948 = vadd.f32 %v6804, %v6947
    %v6949 = vpop.f32.mrf.mxu0
    %6950 = vmatprep.mubr.f32.mxu0 0.0
    %6951 = vmatmul.mubr.f32.gmra.mxu0 %v6770
    %v6952 = vpop.f32.mrf.mxu0
    %v6953 = vadd.f32 %v6809, %v6952
    %v6954 = vpop.f32.mrf.mxu0
    %6955 = vmatprep.mubr.f32.mxu0 0.0
    %6956 = vmatmul.mubr.f32.gmra.mxu0 %v6771
    %v6957 = vpop.f32.mrf.mxu0
    %v6958 = vadd.f32 %v6814, %v6957
    %v6959 = vpop.f32.mrf.mxu0
    %6960 = vmatprep.mubr.f32.mxu0 0.0
    %6961 = vmatmul.mubr.f32.gmra.mxu0 %v6772
    %v6962 = vpop.f32.mrf.mxu0
    %v6963 = vadd.f32 %v6819, %v6962
    %v6964 = vpop.f32.mrf.mxu0
    %6965 = vmatprep.mubr.f32.mxu0 0.0
    %6966 = vmatmul.mubr.f32.gmra.mxu0 %v6773
    %v6967 = vpop.f32.mrf.mxu0
    %v6968 = vadd.f32 %v6824, %v6967
    %v6969 = vpop.f32.mrf.mxu0
    %6970 = vmatprep.mubr.f32.mxu0 0.0
    %6971 = vmatmul.mubr.f32.gmra.mxu0 %v6774
    %v6972 = vpop.f32.mrf.mxu0
    %v6973 = vadd.f32 %v6829, %v6972
    %v6974 = vpop.f32.mrf.mxu0
    %6975 = vmatprep.mubr.f32.mxu0 0.0
    %6976 = vmatmul.mubr.f32.gmra.mxu0 %v6775
    %v6977 = vpop.f32.mrf.mxu0
    %v6978 = vadd.f32 %v6834, %v6977
    %v6979 = vpop.f32.mrf.mxu0
    %6980 = vmatprep.mubr.f32.mxu0 0.0
    %6981 = vmatmul.mubr.f32.gmra.mxu0 %v6776
    %v6982 = vpop.f32.mrf.mxu0
    %v6983 = vadd.f32 %v6839, %v6982
    %v6984 = vpop.f32.mrf.mxu0
    %6985 = vmatprep.mubr.f32.mxu0 0.0
    %6986 = vmatmul.mubr.f32.gmra.mxu0 %v6777
    %v6987 = vpop.f32.mrf.mxu0
    %v6988 = vadd.f32 %v6844, %v6987
    %v6989 = vpop.f32.mrf.mxu0
    %6990 = vmatprep.mubr.f32.mxu0 0.0
    %6991 = vmatmul.mubr.f32.gmra.mxu0 %v6778
    %v6992 = vpop.f32.mrf.mxu0
    %v6993 = vadd.f32 %v6849, %v6992
    %v6994 = vpop.f32.mrf.mxu0
    %6995 = vmatprep.mubr.f32.mxu0 0.0
    %6996 = vmatmul.mubr.f32.gmra.mxu0 %v6779
    %v6997 = vpop.f32.mrf.mxu0
    %v6998 = vadd.f32 %v6854, %v6997
    %v6999 = vpop.f32.mrf.mxu0
    %7000 = vmatprep.mubr.f32.mxu0 0.0
    %7001 = vmatmul.mubr.f32.gmra.mxu0 %v6780
    %v7002 = vpop.f32.mrf.mxu0
    %v7003 = vadd.f32 %v6859, %v7002
    %v7004 = vpop.f32.mrf.mxu0
    %7005 = vmatprep.mubr.f32.mxu0 0.0
    %7006 = vmatmul.mubr.f32.gmra.mxu0 %v6781
    %v7007 = vpop.f32.mrf.mxu0
    %v7008 = vadd.f32 %v6864, %v7007
    %v7009 = vpop.f32.mrf.mxu0
    %7010 = vmatprep.mubr.f32.mxu0 0.0
    %7011 = vmatmul.mubr.f32.gmra.mxu0 %v6782
    %v7012 = vpop.f32.mrf.mxu0
    %v7013 = vadd.f32 %v6869, %v7012
    %v7014 = vpop.f32.mrf.mxu0
    %7015 = vmatprep.mubr.f32.mxu0 0.0
    %7016 = vmatmul.mubr.f32.gmra.mxu0 %v6783
    %v7017 = vpop.f32.mrf.mxu0
    %v7018 = vadd.f32 %v6874, %v7017
    %v7019 = vpop.f32.mrf.mxu0
    %7020 = vmatprep.mubr.f32.mxu0 0.0
    %7021 = vmatmul.mubr.f32.gmra.mxu0 %v6784
    %v7022 = vpop.f32.mrf.mxu0
    %v7023 = vadd.f32 %v6879, %v7022
    %v7024 = vpop.f32.mrf.mxu0
    %7025 = vdwg.mxu0
    %v7026 = vmax.f32 %v6948, 0.0
    %v7027 = vmax.f32 %v6953, 0.0
    %v7028 = vmax.f32 %v6958, 0.0
    %v7029 = vmax.f32 %v6963, 0.0
    %v7030 = vmax.f32 %v6968, 0.0
    %v7031 = vmax.f32 %v6973, 0.0
    %v7032 = vmax.f32 %v6978, 0.0
    %v7033 = vmax.f32 %v6983, 0.0
    %v7034 = vmax.f32 %v6988, 0.0
    %v7035 = vmax.f32 %v6993, 0.0
    %v7036 = vmax.f32 %v6998, 0.0
    %v7037 = vmax.f32 %v7003, 0.0
    %v7038 = vmax.f32 %v7008, 0.0
    %v7039 = vmax.f32 %v7013, 0.0
    %v7040 = vmax.f32 %v7018, 0.0
    %v7041 = vmax.f32 %v7023, 0.0
    %v7042 = vld [vmem:[%s9] sm:$0xff]
    %v7043 = vld [vmem:[%s9 + $0x8] sm:$0x3]
    %v7044 = vld [vmem:[%s10] sm:$0xff]
    %v7045 = vld [vmem:[%s10 + $0x8] sm:$0x3]
    %7047 = vset.pattern.permute.xlu0 0
    %7048 = vperm.xlu0 %7047, %v7044
    %v7049 = vpop.permute.xlu0 %7048
    %7052 = vset.pattern.permute.xlu0 0
    %7053 = vperm.xlu0 %7052, %v7045
    %v7054 = vpop.permute.xlu0 %7053
    %7056 = vmatprep.subr.mxu0 0.0
    %7057 = vmatpush1.msra.mxu0 %v7041
    %7058 = vmatprep.subr.mxu0 0.0
    %7059 = vmatpush1.msra.mxu0 %v7040
    %7060 = vmatprep.subr.mxu0 0.0
    %7061 = vmatpush1.msra.mxu0 %v7039
    %7062 = vmatprep.subr.mxu0 0.0
    %7063 = vmatpush1.msra.mxu0 %v7038
    %7064 = vmatprep.subr.mxu0 0.0
    %7065 = vmatpush1.msra.mxu0 %v7037
    %7066 = vmatprep.subr.mxu0 0.0
    %7067 = vmatpush1.msra.mxu0 %v7036
    %7068 = vmatprep.subr.mxu0 0.0
    %7069 = vmatpush1.msra.mxu0 %v7035
    %7070 = vmatprep.subr.mxu0 0.0
    %7071 = vmatpush1.msra.mxu0 %v7034
    %7072 = vmatprep.subr.mxu0 0.0
    %7073 = vmatpush1.msra.mxu0 %v7033
    %7074 = vmatprep.subr.mxu0 0.0
    %7075 = vmatpush1.msra.mxu0 %v7032
    %7076 = vmatprep.subr.mxu0 0.0
    %7077 = vmatpush1.msra.mxu0 %v7031
    %7078 = vmatprep.subr.mxu0 0.0
    %7079 = vmatpush1.msra.mxu0 %v7030
    %7080 = vmatprep.subr.mxu0 0.0
    %7081 = vmatpush1.msra.mxu0 %v7029
    %7082 = vmatprep.subr.mxu0 0.0
    %7083 = vmatpush1.msra.mxu0 %v7028
    %7084 = vmatprep.subr.mxu0 0.0
    %7085 = vmatpush1.msra.mxu0 %v7027
    %7086 = vmatprep.subr.mxu0 0.0
    %7087 = vmatpush1.msra.mxu0 %v7026
    %7088 = vmatprep.subr.mxu0 0.0
    %7089 = vmatpush2.msra.mxu0 0.0
    %7090 = vmatprep.subr.mxu0 0.0
    %7091 = vmatpush2.msra.mxu0 0.0
    %7092 = vmatprep.subr.mxu0 0.0
    %7093 = vmatpush2.msra.mxu0 0.0
    %7094 = vmatprep.subr.mxu0 0.0
    %7095 = vmatpush2.msra.mxu0 0.0
    %7096 = vmatprep.subr.mxu0 0.0
    %7097 = vmatpush2.msra.mxu0 0.0
    %7098 = vmatprep.subr.mxu0 0.0
    %7099 = vmatpush2.msra.mxu0 0.0
    %7100 = vmatprep.subr.mxu0 0.0
    %7101 = vmatpush2.msra.mxu0 0.0
    %7102 = vmatprep.subr.mxu0 0.0
    %7103 = vmatpush2.msra.mxu0 0.0
    %7104 = vmatprep.subr.mxu0 0.0
    %7105 = vmatpush2.msra.mxu0 0.0
    %7106 = vmatprep.subr.mxu0 0.0
    %7107 = vmatpush2.msra.mxu0 0.0
    %7108 = vmatprep.subr.mxu0 0.0
    %7109 = vmatpush2.msra.mxu0 0.0
    %7110 = vmatprep.subr.mxu0 0.0
    %7111 = vmatpush2.msra.mxu0 0.0
    %7112 = vmatprep.subr.mxu0 0.0
    %7113 = vmatpush2.msra.mxu0 0.0
    %7114 = vmatprep.subr.mxu0 0.0
    %7115 = vmatpush2.msra.mxu0 0.0
    %7116 = vmatprep.subr.mxu0 0.0
    %7117 = vmatpush2.msra.mxu0 0.0
    %7118 = vmatprep.subr.mxu0 0.0
    %7119 = vmatpush2.msra.mxu0 0.0
    %7120 = vmatprep.mubr.f32.mxu0 0.0
    %7121 = vmatmul.mubr.f32.gmra.mxu0 %v7042
    %v7122 = vpop.f32.mrf.mxu0
    %v7123 = vadd.f32 %v7049, %v7122
    %v7124 = vpop.f32.mrf.mxu0
    %7125 = vmatprep.mubr.f32.mxu0 0.0
    %7126 = vmatmul.mubr.f32.gmra.mxu0 %v7043
    %v7127 = vpop.f32.mrf.mxu0
    %v7128 = vadd.f32 %v7054, %v7127
    %v7129 = vpop.f32.mrf.mxu0
    %7130 = vdwg.mxu0
    %7131 = vst [vmem:[%s11] sm:$0xff] %v7123
    %7132 = vst [vmem:[%s11 + $0x8] sm:$0x3] %v7128
    // Predicated region
    $region76: #{lenet_forward.1} parent=1 // pred_check
      _
    $region77: #{lenet_forward.1} parent=1 // pred_check_branch
      %7134 = sbr.rel (0) target = $region79
    $region78: #{lenet_forward.1} parent=1 // pred_region
      _
    $region79: #{lenet_forward.1} parent=1 // pred_fallthru
      _
    // Predicated region
    $region80: #{lenet_forward.1} parent=1 // pred_check
      _
    $region81: #{lenet_forward.1} parent=1 // pred_check_branch
      %7136 = sbr.rel (0) target = $region83
    $region82: #{lenet_forward.1} parent=1 // pred_region
      _
    $region83: #{lenet_forward.1} parent=1 // pred_fallthru
      _
    %7137 = vsyncpa [#allocation7], 1
    %7138 = vsyncpa [#allocation9], 1
    %7139 = vsyncpa [#allocation12], 1

</llo_original>
